<compile_context>
chip_gen: v7x
topology: tpu7x:2x2x1
jax: 0.10.0
libtpu: 0.0.40
codegen_flags: <defaults>
</compile_context>

<pallas_src>
import functools

import jax
import jax.numpy as jnp
from jax.experimental import pallas as pl
from jax.experimental.pallas import tpu as pltpu


def _round_up(x, m):
    return (x + m - 1) // m * m


def _pick_row_tile(rows, lanes, max_bytes=4 << 20):
    """Largest row tile (multiple of 8) dividing `rows` whose f32 block fits the budget."""
    for t in (512, 256, 128, 64, 32, 16, 8):
        if rows % t == 0 and t * lanes * 4 <= max_bytes:
            return t
    return rows


# ---------------------------------------------------------------------------
# Kernel 1: Conv3d (padding='same', stride 1) as shift-and-matmul over the
# padded flat spatial axis, fused with bias and masked BatchNorm statistics.
# ---------------------------------------------------------------------------
def _conv_stats_kernel(x_hbm, w_ref, b_ref, m_ref,        # inputs
                       y_ref, s1_ref, s2_ref,             # outputs
                       xbuf, sem,                         # scratch
                       *, offs, tl, halo_pad, cout):
    n = pl.program_id(0)
    j = pl.program_id(1)

    # manual DMA of the lane tile + halo (128-aligned start / size)
    start = pl.multiple_of(j * tl, 128)
    cp = pltpu.make_async_copy(
        x_hbm.at[n, :, pl.ds(start, tl + halo_pad)], xbuf, sem)
    cp.start()
    cp.wait()

    acc = jnp.zeros((cout, tl), jnp.float32)
    for idx, off in enumerate(offs):
        acc = acc + jnp.dot(w_ref[idx], xbuf[:, off:off + tl],
                            preferred_element_type=jnp.float32)
    y = acc + b_ref[...]                        # (cout, tl) + (cout, 1)
    y_ref[0] = y

    # masked sum / sum-of-squares for train-mode BatchNorm statistics
    @pl.when(j == 0)
    def _():
        s1_ref[...] = jnp.zeros_like(s1_ref)
        s2_ref[...] = jnp.zeros_like(s2_ref)

    ym = y * m_ref[...]                         # zero out invalid (padding) lanes
    s1_ref[0] += jnp.sum(ym, axis=1, keepdims=True)
    s2_ref[0] += jnp.sum(ym * y, axis=1, keepdims=True)


def conv3d_bn_stats(xpf, w_stack, bias_col, mask_row, *, cout, cin_pad,
                    lo, tl, halo_pad, offs):
    n_batch = xpf.shape[0]
    nj = lo // tl
    k3 = len(offs)
    kernel = functools.partial(_conv_stats_kernel, offs=offs, tl=tl,
                               halo_pad=halo_pad, cout=cout)
    return pl.pallas_call(
        kernel,
        grid=(n_batch, nj),
        in_specs=[
            pl.BlockSpec(memory_space=pl.ANY),                          # x stays in HBM
            pl.BlockSpec((k3, cout, cin_pad), lambda n, j: (0, 0, 0)),  # weights (resident)
            pl.BlockSpec((cout, 1), lambda n, j: (0, 0)),               # bias column
            pl.BlockSpec((1, tl), lambda n, j: (0, j)),                 # validity mask tile
        ],
        out_specs=[
            pl.BlockSpec((1, cout, tl), lambda n, j: (n, 0, j)),
            pl.BlockSpec((1, cout, 1), lambda n, j: (n, 0, 0)),
            pl.BlockSpec((1, cout, 1), lambda n, j: (n, 0, 0)),
        ],
        out_shape=[
            jax.ShapeDtypeStruct((n_batch, cout, lo), jnp.float32),
            jax.ShapeDtypeStruct((n_batch, cout, 1), jnp.float32),
            jax.ShapeDtypeStruct((n_batch, cout, 1), jnp.float32),
        ],
        scratch_shapes=[
            pltpu.VMEM((cin_pad, tl + halo_pad), jnp.float32),
            pltpu.SemaphoreType.DMA(()),
        ],
        compiler_params=pltpu.CompilerParams(
            dimension_semantics=("parallel", "arbitrary")),
    )(xpf, w_stack, bias_col, mask_row)


# ---------------------------------------------------------------------------
# Kernel 2: fused BatchNorm affine + ELU + ChannelAttention avg / max pools.
# ---------------------------------------------------------------------------
def _bn_elu_pool_kernel(y_ref, a_ref, b_ref, m_ref,
                        z_ref, avg_ref, max_ref, *, inv_count):
    v = y_ref[...] * a_ref[...] + b_ref[...]                 # per-row BN affine
    z = jnp.where(v > 0.0, v, jnp.exp(jnp.minimum(v, 0.0)) - 1.0)   # ELU(alpha=1)
    z_ref[...] = z
    mask = m_ref[...]
    avg_ref[...] = jnp.sum(z * mask, axis=1, keepdims=True) * inv_count
    max_ref[...] = jnp.max(jnp.where(mask > 0.5, z, -jnp.inf),
                           axis=1, keepdims=True)


def bn_elu_pool(y2d, a_col, b_col, mask_row, inv_count, tr):
    r, lanes = y2d.shape
    kernel = functools.partial(_bn_elu_pool_kernel, inv_count=inv_count)
    return pl.pallas_call(
        kernel,
        grid=(r // tr,),
        in_specs=[
            pl.BlockSpec((tr, lanes), lambda i: (i, 0)),
            pl.BlockSpec((tr, 1), lambda i: (i, 0)),
            pl.BlockSpec((tr, 1), lambda i: (i, 0)),
            pl.BlockSpec((1, lanes), lambda i: (0, 0)),
        ],
        out_specs=[
            pl.BlockSpec((tr, lanes), lambda i: (i, 0)),
            pl.BlockSpec((tr, 1), lambda i: (i, 0)),
            pl.BlockSpec((tr, 1), lambda i: (i, 0)),
        ],
        out_shape=[
            jax.ShapeDtypeStruct((r, lanes), jnp.float32),
            jax.ShapeDtypeStruct((r, 1), jnp.float32),
            jax.ShapeDtypeStruct((r, 1), jnp.float32),
        ],
        compiler_params=pltpu.CompilerParams(
            dimension_semantics=("parallel",)),
    )(y2d, a_col, b_col, mask_row)


# ---------------------------------------------------------------------------
# Kernel 3: ChannelAttention sigmoid gate + cross-channel mean / max
# (inputs for SpatialAttention), writing a pool-halo-padded activation.
# ---------------------------------------------------------------------------
def _ca_gate_kernel(z_ref, g_ref,
                    z2_ref, avgc_ref, maxc_ref, *, lo, lz, inv_c):
    j = pl.program_id(1)
    gate = pl.reciprocal(1.0 + jnp.exp(-g_ref[...]), approx=True)    # sigmoid (1,tc,1)
    z2 = z_ref[...] * gate                                           # (1, tc, lo)
    tc = z_ref.shape[1]
    z2_ref[:, :, :lo] = z2
    z2_ref[:, :, lo:] = jnp.zeros((1, tc, lz - lo), jnp.float32)     # halo for the pool

    @pl.when(j == 0)
    def _():
        avgc_ref[...] = jnp.zeros_like(avgc_ref)
        maxc_ref[...] = jnp.full_like(maxc_ref, -jnp.inf)
    avgc_ref[...] = avgc_ref[...] + jnp.sum(z2, axis=1, keepdims=True) * inv_c
    maxc_ref[...] = jnp.maximum(maxc_ref[...], jnp.max(z2, axis=1, keepdims=True))


def ca_gate(z3d, gates, lo, lz, tc):
    n_batch, c, _ = z3d.shape
    kernel = functools.partial(_ca_gate_kernel, lo=lo, lz=lz, inv_c=1.0 / c)
    return pl.pallas_call(
        kernel,
        grid=(n_batch, c // tc),
        in_specs=[
            pl.BlockSpec((1, tc, lo), lambda n, j: (n, j, 0)),
            pl.BlockSpec((1, tc, 1), lambda n, j: (n, j, 0)),
        ],
        out_specs=[
            pl.BlockSpec((1, tc, lz), lambda n, j: (n, j, 0)),
            pl.BlockSpec((1, 1, lo), lambda n, j: (n, 0, 0)),
            pl.BlockSpec((1, 1, lo), lambda n, j: (n, 0, 0)),
        ],
        out_shape=[
            jax.ShapeDtypeStruct((n_batch, c, lz), jnp.float32),
            jax.ShapeDtypeStruct((n_batch, 1, lo), jnp.float32),
            jax.ShapeDtypeStruct((n_batch, 1, lo), jnp.float32),
        ],
        compiler_params=pltpu.CompilerParams(
            dimension_semantics=("parallel", "arbitrary")),
    )(z3d, gates)


# ---------------------------------------------------------------------------
# Kernel 4: SpatialAttention Conv3d(2 -> 1, k=7, pad=3, bias=False) as a VPU
# accumulation; kd taps are a reduction grid axis, weights live in SMEM.
# ---------------------------------------------------------------------------
def _sa_conv_kernel(x_ref, w_ref, o_ref, *, d_out, wp2, l_out):
    kd = pl.program_id(1)

    @pl.when(kd == 0)
    def _():
        o_ref[...] = jnp.zeros_like(o_ref)

    a0 = x_ref[0, 0, pl.ds(kd, d_out), :]       # avg-channel planes (d_out, l_in)
    a1 = x_ref[0, 1, pl.ds(kd, d_out), :]       # max-channel planes (d_out, l_in)
    acc = jnp.zeros((d_out, l_out), jnp.float32)
    for kh in range(7):
        for kw in range(7):
            off = kh * wp2 + kw
            base = ((kd * 7 + kh) * 7 + kw) * 2
            w0 = w_ref[base]
            w1 = w_ref[base + 1]
            acc = acc + w0 * a0[:, off:off + l_out] + w1 * a1[:, off:off + l_out]
    o_ref[0] += acc


def sa_conv(sa_x, w_flat, d_out, dp2, wp2, l_in, l_out):
    n_batch = sa_x.shape[0]
    kernel = functools.partial(_sa_conv_kernel, d_out=d_out, wp2=wp2, l_out=l_out)
    return pl.pallas_call(
        kernel,
        grid=(n_batch, 7),
        in_specs=[
            pl.BlockSpec((1, 2, dp2, l_in), lambda n, kd: (n, 0, 0, 0)),
            pl.BlockSpec(memory_space=pltpu.MemorySpace.SMEM),
        ],
        out_specs=pl.BlockSpec((1, d_out, l_out), lambda n, kd: (n, 0, 0)),
        out_shape=jax.ShapeDtypeStruct((n_batch, d_out, l_out), jnp.float32),
        compiler_params=pltpu.CompilerParams(
            dimension_semantics=("parallel", "arbitrary")),
    )(sa_x, w_flat)


# ---------------------------------------------------------------------------
# Kernel 5: SpatialAttention sigmoid gate + MaxPool3d(kernel=k, stride=(1,1,2))
# as a running max over the k^3 window offsets (no stacked window tensor).
# ---------------------------------------------------------------------------
def _sa_gate_pool_kernel(z2_ref, g_ref, o_ref, *, lo, offs):
    gate = pl.reciprocal(1.0 + jnp.exp(-g_ref[...]), approx=True)    # sigmoid (1,1,lz)
    z3 = z2_ref[...] * gate                                          # (1, tc, lz)
    m = z3[:, :, 0:lo]
    for off in offs[1:]:
        m = jnp.maximum(m, z3[:, :, off:off + lo])
    o_ref[...] = m


def sa_gate_pool(z2, sa_g, lo, offs, tc):
    n_batch, c, lz = z2.shape
    kernel = functools.partial(_sa_gate_pool_kernel, lo=lo, offs=tuple(offs))
    return pl.pallas_call(
        kernel,
        grid=(n_batch, c // tc),
        in_specs=[
            pl.BlockSpec((1, tc, lz), lambda n, j: (n, j, 0)),
            pl.BlockSpec((1, 1, lz), lambda n, j: (n, 0, 0)),
        ],
        out_specs=pl.BlockSpec((1, tc, lo), lambda n, j: (n, j, 0)),
        out_shape=jax.ShapeDtypeStruct((n_batch, c, lo), jnp.float32),
        compiler_params=pltpu.CompilerParams(
            dimension_semantics=("parallel", "parallel")),
    )(z2, sa_g)


# ------------------------------ BasicBlock ---------------------------------
class BasicBlockPallas:
    RATIO = 32  # config.RATIO

    def __init__(self, kernel_size, inplanes, planes, key):
        assert planes // self.RATIO >= 1, "planes must be >= ratio (32)"
        assert planes % 8 == 0, "planes must be a multiple of 8"
        self.k = kernel_size
        self.inplanes = inplanes
        self.planes = planes
        hidden = planes // self.RATIO
        kk = kernel_size
        ks = jax.random.split(key, 5)
        # main conv (bias=True)
        self.conv_w = 0.1 * jax.random.normal(ks[0], (planes, inplanes, kk, kk, kk), jnp.float32)
        self.conv_b = 0.1 * jax.random.normal(ks[1], (planes,), jnp.float32)
        # BatchNorm3d default init (train mode, batch statistics)
        self.gamma = jnp.ones((planes,), jnp.float32)
        self.beta = jnp.zeros((planes,), jnp.float32)
        # ChannelAttention 1x1x1 convs (bias=False)
        self.ca_w1 = 0.1 * jax.random.normal(ks[2], (hidden, planes), jnp.float32)
        self.ca_w2 = 0.1 * jax.random.normal(ks[3], (planes, hidden), jnp.float32)
        # SpatialAttention conv: Conv3d(2, 1, 7, padding=3, bias=False)
        self.sa_w = 0.05 * jax.random.normal(ks[4], (1, 2, 7, 7, 7), jnp.float32)

    def __call__(self, x):
        N, Cin, D, H, W = x.shape
        C = self.planes
        k = self.k
        p1 = k // 2
        Dp, Hp, Wp = D + 2 * p1, H + 2 * p1, W + 2 * p1
        HWp = Hp * Wp
        Lraw = Dp * HWp
        S = D * H * W

        # ---- lane geometry (padded flat spatial axis) ----
        halo = (k - 1) * (HWp + Wp + 1)
        halo_pad = _round_up(halo, 128)
        if Lraw <= 2048:
            Lo = _round_up(Lraw, 128)
            TL = Lo
        else:
            TL = 2048
            Lo = _round_up(Lraw, TL)
        Lz = Lo + halo_pad            # pool-halo-padded lane length
        Lin = Lo + halo_pad           # conv input lane length
        cin_pad = _round_up(max(Cin, 8), 8)

        offs = tuple(kd * HWp + kh * Wp + kw
                     for kd in range(k) for kh in range(k) for kw in range(k))

        # validity mask over the padded-flat spatial axis
        r = jnp.arange(Lo)
        d_idx = r // HWp
        h_idx = (r // Wp) % Hp
        w_idx = r % Wp
        mask_row = ((d_idx < D) & (h_idx < H) & (w_idx < W)).astype(jnp.float32).reshape(1, Lo)

        # ---- conv inputs: channel-padded, spatially padded, flattened, lane-padded ----
        xp = jnp.pad(x, ((0, 0), (0, cin_pad - Cin), (p1, p1), (p1, p1), (p1, p1)))
        xpf = jnp.pad(xp.reshape(N, cin_pad, Lraw), ((0, 0), (0, 0), (0, Lin - Lraw)))
        w_stack = jnp.pad(self.conv_w.transpose(2, 3, 4, 0, 1).reshape(k ** 3, C, Cin),
                          ((0, 0), (0, 0), (0, cin_pad - Cin)))
        bias_col = self.conv_b.reshape(C, 1)

        # ---- Conv3d + bias + masked BN statistics (Pallas) ----
        y_p, s1, s2 = conv3d_bn_stats(xpf, w_stack, bias_col, mask_row,
                                      cout=C, cin_pad=cin_pad, lo=Lo, tl=TL,
                                      halo_pad=halo_pad, offs=offs)

        # ---- BatchNorm (train-mode) affine parameters from fused statistics ----
        cnt = float(N * S)
        mean = jnp.sum(s1[:, :, 0], axis=0) / cnt
        ex2 = jnp.sum(s2[:, :, 0], axis=0) / cnt
        var = jnp.maximum(ex2 - mean * mean, 0.0)
        a = self.gamma / jnp.sqrt(var + 1e-5)
        b = self.beta - mean * a
        a_col = jnp.tile(a, (N,)).reshape(N * C, 1)
        b_col = jnp.tile(b, (N,)).reshape(N * C, 1)

        # ---- fused BN + ELU + ChannelAttention avg/max pools (Pallas) ----
        tr = _pick_row_tile(N * C, Lo)
        z2d, avg_row, max_row = bn_elu_pool(y_p.reshape(N * C, Lo), a_col, b_col,
                                            mask_row, 1.0 / S, tr)

        # ---- ChannelAttention logits (tiny FC, XLA) ----
        avg_nc = avg_row.reshape(N, C)
        max_nc = max_row.reshape(N, C)

        def fc(v):
            h = jnp.maximum(v @ self.ca_w1.T, 0.0)
            return h @ self.ca_w2.T

        ca_logits = (fc(avg_nc) + fc(max_nc)).reshape(N, C, 1)

        # ---- CA gate + cross-channel mean/max, fused (Pallas) ----
        tc = _pick_row_tile(C, Lz)
        z2, avg_c, max_c = ca_gate(z2d.reshape(N, C, Lo), ca_logits, Lo, Lz, tc)

        # ---- SpatialAttention conv input (tiny): valid region re-padded by 3 ----
        def to_valid(t):  # (N,1,Lo) -> (N,1,D,H,W)
            return t[:, :, :Lraw].reshape(N, 1, Dp, Hp, Wp)[:, :, :D, :H, :W]

        sa_in = jnp.concatenate([to_valid(avg_c), to_valid(max_c)], axis=1)
        p2 = 3
        Dp2, Hp2, Wp2 = D + 2 * p2, H + 2 * p2, W + 2 * p2
        HW2 = Hp2 * Wp2
        l_out = _round_up(HW2, 128)
        l_in = l_out + _round_up(6 * Wp2 + 6, 128)
        sa_x = jnp.pad(sa_in, ((0, 0), (0, 0), (p2, p2), (p2, p2), (p2, p2)))
        sa_x = jnp.pad(sa_x.reshape(N, 2, Dp2, HW2),
                       ((0, 0), (0, 0), (0, 0), (0, l_in - HW2)))
        w_flat = self.sa_w[0].transpose(1, 2, 3, 0).reshape(-1)

        sa_logits = sa_conv(sa_x, w_flat, D, Dp2, Wp2, l_in, l_out)   # (N, D, l_out)

        # place logits back onto the padded-flat spatial layout (lane-padded to Lz)
        sa_v = sa_logits[:, :, :HW2].reshape(N, D, Hp2, Wp2)[:, :, :H, :W]
        sa_g = jnp.pad(sa_v.reshape(N, 1, D, H, W),
                       ((0, 0), (0, 0), (0, Dp - D), (0, Hp - H), (0, Wp - W)))
        sa_g = jnp.pad(sa_g.reshape(N, 1, Lraw), ((0, 0), (0, 0), (0, Lz - Lraw)))

        # ---- SA gate + MaxPool3d(kernel=k, stride=(1,1,2)), fused (Pallas) ----
        pooled = sa_gate_pool(z2, sa_g, Lo, offs, tc)                 # (N, C, Lo)

        Do, Ho, Wo = D - k + 1, H - k + 1, (W - k) // 2 + 1
        out = pooled[:, :, :Lraw].reshape(N, C, Dp, Hp, Wp)
        out = out[:, :, :Do, :Ho, 0:2 * Wo:2]
        return out


# --------------------------------- main -------------------------------------
if __name__ == "__main__":
    key = jax.random.PRNGKey(0)
    kx, kp = jax.random.split(key)

    # small shapes consistent with the module: kernel_size=3, inplanes=4, planes=32
    N, Cin, D, H, W = 2, 4, 4, 8, 8
    planes, ksz = 32, 3

    x = jax.random.normal(kx, (N, Cin, D, H, W), jnp.float32)
    block = BasicBlockPallas(ksz, Cin, planes, kp)

    out = jax.block_until_ready(block(x))

    expected = (N, planes, D - ksz + 1, H - ksz + 1, (W - ksz) // 2 + 1)
    assert out.shape == expected, (out.shape, expected)
    assert bool(jnp.all(jnp.isfinite(out)))
    print("KERNEL_OK")
</pallas_src>

<mosaic_0001>
module attributes {stable_mosaic.version = 11 : i64} {
  func.func @_conv_stats_kernel(%arg0: i32, %arg1: i32, %arg2: memref<2x8x896xf32, #tpu.memory_space<any>>, %arg3: memref<27x32x8xf32, #tpu.memory_space<vmem>>, %arg4: memref<32x1xf32, #tpu.memory_space<vmem>>, %arg5: memref<1x640xf32, #tpu.memory_space<vmem>>, %arg6: memref<1x32x640xf32, #tpu.memory_space<vmem>>, %arg7: memref<1x32x1xf32, #tpu.memory_space<vmem>>, %arg8: memref<1x32x1xf32, #tpu.memory_space<vmem>>, %arg9: memref<8x896xf32, #tpu.memory_space<vmem>>, %arg10: memref<!tpu.dma_semaphore, #tpu.memory_space<semaphore_mem>>) attributes {dimension_semantics = [#tpu.dimension_semantics<parallel>, #tpu.dimension_semantics<arbitrary>], iteration_bounds = array<i64: 2, 1>, scalar_prefetch = 0 : i64, scratch_operands = 2 : i64, tpu.core_type = #tpu.core_type<tc>, window_params = [{}, {pipeline_mode = #tpu.pipeline_mode<synchronous>, transform_indices = @transform_1, window_bounds = array<i64: 27, 32, 8>}, {pipeline_mode = #tpu.pipeline_mode<synchronous>, transform_indices = @transform_2, window_bounds = array<i64: 32, 1>}, {transform_indices = @transform_3, window_bounds = array<i64: 1, 640>}, {transform_indices = @transform_4, window_bounds = array<i64: 1, 32, 640>}, {transform_indices = @transform_5, window_bounds = array<i64: 1, 32, 1>}, {transform_indices = @transform_6, window_bounds = array<i64: 1, 32, 1>}]} {
    %c640_i32 = arith.constant 640 : i32
    %0 = arith.muli %arg1, %c640_i32 : i32
    %1 = tpu.assume_multiple %0, 128 : i32
    %c0_i32 = arith.constant 0 : i32
    %2 = tpu.memref_slice %arg2[%arg0, %c0_i32, %1] : memref<2x8x896xf32, #tpu.memory_space<any>> -> memref<1x8x896xf32, #tpu.memory_space<any>>
    %3 = tpu.memref_squeeze %2 : memref<1x8x896xf32, #tpu.memory_space<any>> -> memref<8x896xf32, #tpu.memory_space<any>>
    tpu.enqueue_dma source(%3 : memref<8x896xf32, #tpu.memory_space<any>>) target(%arg9 : memref<8x896xf32, #tpu.memory_space<vmem>>) target_semaphore(%arg10 : memref<!tpu.dma_semaphore, #tpu.memory_space<semaphore_mem>>)
    %c0_i32_0 = arith.constant 0 : i32
    %4 = tpu.memref_slice %arg2[%arg0, %c0_i32_0, %1] : memref<2x8x896xf32, #tpu.memory_space<any>> -> memref<1x8x896xf32, #tpu.memory_space<any>>
    %5 = tpu.memref_squeeze %4 : memref<1x8x896xf32, #tpu.memory_space<any>> -> memref<8x896xf32, #tpu.memory_space<any>>
    tpu.wait_dma2 semaphore(%arg10 : memref<!tpu.dma_semaphore, #tpu.memory_space<semaphore_mem>>) src(%5 : memref<8x896xf32, #tpu.memory_space<any>>) dst(%arg9 : memref<8x896xf32, #tpu.memory_space<vmem>>)
    %cst = arith.constant 0.000000e+00 : f32
    %6 = vector.broadcast %cst : f32 to vector<32x640xf32>
    %c0 = arith.constant 0 : index
    %c0_1 = arith.constant 0 : index
    %c0_2 = arith.constant 0 : index
    %7 = vector.load %arg3[%c0, %c0_1, %c0_2] : memref<27x32x8xf32, #tpu.memory_space<vmem>>, vector<1x32x8xf32>
    %8 = vector.shape_cast %7 : vector<1x32x8xf32> to vector<32x8xf32>
    %c0_3 = arith.constant 0 : index
    %c0_4 = arith.constant 0 : index
    %9 = vector.load %arg9[%c0_3, %c0_4] : memref<8x896xf32, #tpu.memory_space<vmem>>, vector<8x640xf32>
    %cst_5 = arith.constant dense<0.000000e+00> : vector<32x640xf32>
    %10 = tpu.matmul %8, %9, %cst_5 {dimension_numbers = #tpu.dot_dimension_numbers<[1], [0], [0], [1], [0, 0, 1, 1], [], []>} : vector<32x8xf32>, vector<8x640xf32>, vector<32x640xf32> -> vector<32x640xf32>
    %11 = arith.addf %6, %10 : vector<32x640xf32>
    %c1 = arith.constant 1 : index
    %c0_6 = arith.constant 0 : index
    %c0_7 = arith.constant 0 : index
    %12 = vector.load %arg3[%c1, %c0_6, %c0_7] : memref<27x32x8xf32, #tpu.memory_space<vmem>>, vector<1x32x8xf32>
    %13 = vector.shape_cast %12 : vector<1x32x8xf32> to vector<32x8xf32>
    %c0_8 = arith.constant 0 : index
    %c1_9 = arith.constant 1 : index
    %14 = vector.load %arg9[%c0_8, %c1_9] : memref<8x896xf32, #tpu.memory_space<vmem>>, vector<8x640xf32>
    %cst_10 = arith.constant dense<0.000000e+00> : vector<32x640xf32>
    %15 = tpu.matmul %13, %14, %cst_10 {dimension_numbers = #tpu.dot_dimension_numbers<[1], [0], [0], [1], [0, 0, 1, 1], [], []>} : vector<32x8xf32>, vector<8x640xf32>, vector<32x640xf32> -> vector<32x640xf32>
    %16 = arith.addf %11, %15 : vector<32x640xf32>
    %c2 = arith.constant 2 : index
    %c0_11 = arith.constant 0 : index
    %c0_12 = arith.constant 0 : index
    %17 = vector.load %arg3[%c2, %c0_11, %c0_12] : memref<27x32x8xf32, #tpu.memory_space<vmem>>, vector<1x32x8xf32>
    %18 = vector.shape_cast %17 : vector<1x32x8xf32> to vector<32x8xf32>
    %c0_13 = arith.constant 0 : index
    %c2_14 = arith.constant 2 : index
    %19 = vector.load %arg9[%c0_13, %c2_14] : memref<8x896xf32, #tpu.memory_space<vmem>>, vector<8x640xf32>
    %cst_15 = arith.constant dense<0.000000e+00> : vector<32x640xf32>
    %20 = tpu.matmul %18, %19, %cst_15 {dimension_numbers = #tpu.dot_dimension_numbers<[1], [0], [0], [1], [0, 0, 1, 1], [], []>} : vector<32x8xf32>, vector<8x640xf32>, vector<32x640xf32> -> vector<32x640xf32>
    %21 = arith.addf %16, %20 : vector<32x640xf32>
    %c3 = arith.constant 3 : index
    %c0_16 = arith.constant 0 : index
    %c0_17 = arith.constant 0 : index
    %22 = vector.load %arg3[%c3, %c0_16, %c0_17] : memref<27x32x8xf32, #tpu.memory_space<vmem>>, vector<1x32x8xf32>
    %23 = vector.shape_cast %22 : vector<1x32x8xf32> to vector<32x8xf32>
    %c0_18 = arith.constant 0 : index
    %c10 = arith.constant 10 : index
    %24 = vector.load %arg9[%c0_18, %c10] : memref<8x896xf32, #tpu.memory_space<vmem>>, vector<8x640xf32>
    %cst_19 = arith.constant dense<0.000000e+00> : vector<32x640xf32>
    %25 = tpu.matmul %23, %24, %cst_19 {dimension_numbers = #tpu.dot_dimension_numbers<[1], [0], [0], [1], [0, 0, 1, 1], [], []>} : vector<32x8xf32>, vector<8x640xf32>, vector<32x640xf32> -> vector<32x640xf32>
    %26 = arith.addf %21, %25 : vector<32x640xf32>
    %c4 = arith.constant 4 : index
    %c0_20 = arith.constant 0 : index
    %c0_21 = arith.constant 0 : index
    %27 = vector.load %arg3[%c4, %c0_20, %c0_21] : memref<27x32x8xf32, #tpu.memory_space<vmem>>, vector<1x32x8xf32>
    %28 = vector.shape_cast %27 : vector<1x32x8xf32> to vector<32x8xf32>
    %c0_22 = arith.constant 0 : index
    %c11 = arith.constant 11 : index
    %29 = vector.load %arg9[%c0_22, %c11] : memref<8x896xf32, #tpu.memory_space<vmem>>, vector<8x640xf32>
    %cst_23 = arith.constant dense<0.000000e+00> : vector<32x640xf32>
    %30 = tpu.matmul %28, %29, %cst_23 {dimension_numbers = #tpu.dot_dimension_numbers<[1], [0], [0], [1], [0, 0, 1, 1], [], []>} : vector<32x8xf32>, vector<8x640xf32>, vector<32x640xf32> -> vector<32x640xf32>
    %31 = arith.addf %26, %30 : vector<32x640xf32>
    %c5 = arith.constant 5 : index
    %c0_24 = arith.constant 0 : index
    %c0_25 = arith.constant 0 : index
    %32 = vector.load %arg3[%c5, %c0_24, %c0_25] : memref<27x32x8xf32, #tpu.memory_space<vmem>>, vector<1x32x8xf32>
    %33 = vector.shape_cast %32 : vector<1x32x8xf32> to vector<32x8xf32>
    %c0_26 = arith.constant 0 : index
    %c12 = arith.constant 12 : index
    %34 = vector.load %arg9[%c0_26, %c12] : memref<8x896xf32, #tpu.memory_space<vmem>>, vector<8x640xf32>
    %cst_27 = arith.constant dense<0.000000e+00> : vector<32x640xf32>
    %35 = tpu.matmul %33, %34, %cst_27 {dimension_numbers = #tpu.dot_dimension_numbers<[1], [0], [0], [1], [0, 0, 1, 1], [], []>} : vector<32x8xf32>, vector<8x640xf32>, vector<32x640xf32> -> vector<32x640xf32>
    %36 = arith.addf %31, %35 : vector<32x640xf32>
    %c6 = arith.constant 6 : index
    %c0_28 = arith.constant 0 : index
    %c0_29 = arith.constant 0 : index
    %37 = vector.load %arg3[%c6, %c0_28, %c0_29] : memref<27x32x8xf32, #tpu.memory_space<vmem>>, vector<1x32x8xf32>
    %38 = vector.shape_cast %37 : vector<1x32x8xf32> to vector<32x8xf32>
    %c0_30 = arith.constant 0 : index
    %c20 = arith.constant 20 : index
    %39 = vector.load %arg9[%c0_30, %c20] : memref<8x896xf32, #tpu.memory_space<vmem>>, vector<8x640xf32>
    %cst_31 = arith.constant dense<0.000000e+00> : vector<32x640xf32>
    %40 = tpu.matmul %38, %39, %cst_31 {dimension_numbers = #tpu.dot_dimension_numbers<[1], [0], [0], [1], [0, 0, 1, 1], [], []>} : vector<32x8xf32>, vector<8x640xf32>, vector<32x640xf32> -> vector<32x640xf32>
    %41 = arith.addf %36, %40 : vector<32x640xf32>
    %c7 = arith.constant 7 : index
    %c0_32 = arith.constant 0 : index
    %c0_33 = arith.constant 0 : index
    %42 = vector.load %arg3[%c7, %c0_32, %c0_33] : memref<27x32x8xf32, #tpu.memory_space<vmem>>, vector<1x32x8xf32>
    %43 = vector.shape_cast %42 : vector<1x32x8xf32> to vector<32x8xf32>
    %c0_34 = arith.constant 0 : index
    %c21 = arith.constant 21 : index
    %44 = vector.load %arg9[%c0_34, %c21] : memref<8x896xf32, #tpu.memory_space<vmem>>, vector<8x640xf32>
    %cst_35 = arith.constant dense<0.000000e+00> : vector<32x640xf32>
    %45 = tpu.matmul %43, %44, %cst_35 {dimension_numbers = #tpu.dot_dimension_numbers<[1], [0], [0], [1], [0, 0, 1, 1], [], []>} : vector<32x8xf32>, vector<8x640xf32>, vector<32x640xf32> -> vector<32x640xf32>
    %46 = arith.addf %41, %45 : vector<32x640xf32>
    %c8 = arith.constant 8 : index
    %c0_36 = arith.constant 0 : index
    %c0_37 = arith.constant 0 : index
    %47 = vector.load %arg3[%c8, %c0_36, %c0_37] : memref<27x32x8xf32, #tpu.memory_space<vmem>>, vector<1x32x8xf32>
    %48 = vector.shape_cast %47 : vector<1x32x8xf32> to vector<32x8xf32>
    %c0_38 = arith.constant 0 : index
    %c22 = arith.constant 22 : index
    %49 = vector.load %arg9[%c0_38, %c22] : memref<8x896xf32, #tpu.memory_space<vmem>>, vector<8x640xf32>
    %cst_39 = arith.constant dense<0.000000e+00> : vector<32x640xf32>
    %50 = tpu.matmul %48, %49, %cst_39 {dimension_numbers = #tpu.dot_dimension_numbers<[1], [0], [0], [1], [0, 0, 1, 1], [], []>} : vector<32x8xf32>, vector<8x640xf32>, vector<32x640xf32> -> vector<32x640xf32>
    %51 = arith.addf %46, %50 : vector<32x640xf32>
    %c9 = arith.constant 9 : index
    %c0_40 = arith.constant 0 : index
    %c0_41 = arith.constant 0 : index
    %52 = vector.load %arg3[%c9, %c0_40, %c0_41] : memref<27x32x8xf32, #tpu.memory_space<vmem>>, vector<1x32x8xf32>
    %53 = vector.shape_cast %52 : vector<1x32x8xf32> to vector<32x8xf32>
    %c0_42 = arith.constant 0 : index
    %c100 = arith.constant 100 : index
    %54 = vector.load %arg9[%c0_42, %c100] : memref<8x896xf32, #tpu.memory_space<vmem>>, vector<8x640xf32>
    %cst_43 = arith.constant dense<0.000000e+00> : vector<32x640xf32>
    %55 = tpu.matmul %53, %54, %cst_43 {dimension_numbers = #tpu.dot_dimension_numbers<[1], [0], [0], [1], [0, 0, 1, 1], [], []>} : vector<32x8xf32>, vector<8x640xf32>, vector<32x640xf32> -> vector<32x640xf32>
    %56 = arith.addf %51, %55 : vector<32x640xf32>
    %c10_44 = arith.constant 10 : index
    %c0_45 = arith.constant 0 : index
    %c0_46 = arith.constant 0 : index
    %57 = vector.load %arg3[%c10_44, %c0_45, %c0_46] : memref<27x32x8xf32, #tpu.memory_space<vmem>>, vector<1x32x8xf32>
    %58 = vector.shape_cast %57 : vector<1x32x8xf32> to vector<32x8xf32>
    %c0_47 = arith.constant 0 : index
    %c101 = arith.constant 101 : index
    %59 = vector.load %arg9[%c0_47, %c101] : memref<8x896xf32, #tpu.memory_space<vmem>>, vector<8x640xf32>
    %cst_48 = arith.constant dense<0.000000e+00> : vector<32x640xf32>
    %60 = tpu.matmul %58, %59, %cst_48 {dimension_numbers = #tpu.dot_dimension_numbers<[1], [0], [0], [1], [0, 0, 1, 1], [], []>} : vector<32x8xf32>, vector<8x640xf32>, vector<32x640xf32> -> vector<32x640xf32>
    %61 = arith.addf %56, %60 : vector<32x640xf32>
    %c11_49 = arith.constant 11 : index
    %c0_50 = arith.constant 0 : index
    %c0_51 = arith.constant 0 : index
    %62 = vector.load %arg3[%c11_49, %c0_50, %c0_51] : memref<27x32x8xf32, #tpu.memory_space<vmem>>, vector<1x32x8xf32>
    %63 = vector.shape_cast %62 : vector<1x32x8xf32> to vector<32x8xf32>
    %c0_52 = arith.constant 0 : index
    %c102 = arith.constant 102 : index
    %64 = vector.load %arg9[%c0_52, %c102] : memref<8x896xf32, #tpu.memory_space<vmem>>, vector<8x640xf32>
    %cst_53 = arith.constant dense<0.000000e+00> : vector<32x640xf32>
    %65 = tpu.matmul %63, %64, %cst_53 {dimension_numbers = #tpu.dot_dimension_numbers<[1], [0], [0], [1], [0, 0, 1, 1], [], []>} : vector<32x8xf32>, vector<8x640xf32>, vector<32x640xf32> -> vector<32x640xf32>
    %66 = arith.addf %61, %65 : vector<32x640xf32>
    %c12_54 = arith.constant 12 : index
    %c0_55 = arith.constant 0 : index
    %c0_56 = arith.constant 0 : index
    %67 = vector.load %arg3[%c12_54, %c0_55, %c0_56] : memref<27x32x8xf32, #tpu.memory_space<vmem>>, vector<1x32x8xf32>
    %68 = vector.shape_cast %67 : vector<1x32x8xf32> to vector<32x8xf32>
    %c0_57 = arith.constant 0 : index
    %c110 = arith.constant 110 : index
    %69 = vector.load %arg9[%c0_57, %c110] : memref<8x896xf32, #tpu.memory_space<vmem>>, vector<8x640xf32>
    %cst_58 = arith.constant dense<0.000000e+00> : vector<32x640xf32>
    %70 = tpu.matmul %68, %69, %cst_58 {dimension_numbers = #tpu.dot_dimension_numbers<[1], [0], [0], [1], [0, 0, 1, 1], [], []>} : vector<32x8xf32>, vector<8x640xf32>, vector<32x640xf32> -> vector<32x640xf32>
    %71 = arith.addf %66, %70 : vector<32x640xf32>
    %c13 = arith.constant 13 : index
    %c0_59 = arith.constant 0 : index
    %c0_60 = arith.constant 0 : index
    %72 = vector.load %arg3[%c13, %c0_59, %c0_60] : memref<27x32x8xf32, #tpu.memory_space<vmem>>, vector<1x32x8xf32>
    %73 = vector.shape_cast %72 : vector<1x32x8xf32> to vector<32x8xf32>
    %c0_61 = arith.constant 0 : index
    %c111 = arith.constant 111 : index
    %74 = vector.load %arg9[%c0_61, %c111] : memref<8x896xf32, #tpu.memory_space<vmem>>, vector<8x640xf32>
    %cst_62 = arith.constant dense<0.000000e+00> : vector<32x640xf32>
    %75 = tpu.matmul %73, %74, %cst_62 {dimension_numbers = #tpu.dot_dimension_numbers<[1], [0], [0], [1], [0, 0, 1, 1], [], []>} : vector<32x8xf32>, vector<8x640xf32>, vector<32x640xf32> -> vector<32x640xf32>
    %76 = arith.addf %71, %75 : vector<32x640xf32>
    %c14 = arith.constant 14 : index
    %c0_63 = arith.constant 0 : index
    %c0_64 = arith.constant 0 : index
    %77 = vector.load %arg3[%c14, %c0_63, %c0_64] : memref<27x32x8xf32, #tpu.memory_space<vmem>>, vector<1x32x8xf32>
    %78 = vector.shape_cast %77 : vector<1x32x8xf32> to vector<32x8xf32>
    %c0_65 = arith.constant 0 : index
    %c112 = arith.constant 112 : index
    %79 = vector.load %arg9[%c0_65, %c112] : memref<8x896xf32, #tpu.memory_space<vmem>>, vector<8x640xf32>
    %cst_66 = arith.constant dense<0.000000e+00> : vector<32x640xf32>
    %80 = tpu.matmul %78, %79, %cst_66 {dimension_numbers = #tpu.dot_dimension_numbers<[1], [0], [0], [1], [0, 0, 1, 1], [], []>} : vector<32x8xf32>, vector<8x640xf32>, vector<32x640xf32> -> vector<32x640xf32>
    %81 = arith.addf %76, %80 : vector<32x640xf32>
    %c15 = arith.constant 15 : index
    %c0_67 = arith.constant 0 : index
    %c0_68 = arith.constant 0 : index
    %82 = vector.load %arg3[%c15, %c0_67, %c0_68] : memref<27x32x8xf32, #tpu.memory_space<vmem>>, vector<1x32x8xf32>
    %83 = vector.shape_cast %82 : vector<1x32x8xf32> to vector<32x8xf32>
    %c0_69 = arith.constant 0 : index
    %c120 = arith.constant 120 : index
    %84 = vector.load %arg9[%c0_69, %c120] : memref<8x896xf32, #tpu.memory_space<vmem>>, vector<8x640xf32>
    %cst_70 = arith.constant dense<0.000000e+00> : vector<32x640xf32>
    %85 = tpu.matmul %83, %84, %cst_70 {dimension_numbers = #tpu.dot_dimension_numbers<[1], [0], [0], [1], [0, 0, 1, 1], [], []>} : vector<32x8xf32>, vector<8x640xf32>, vector<32x640xf32> -> vector<32x640xf32>
    %86 = arith.addf %81, %85 : vector<32x640xf32>
    %c16 = arith.constant 16 : index
    %c0_71 = arith.constant 0 : index
    %c0_72 = arith.constant 0 : index
    %87 = vector.load %arg3[%c16, %c0_71, %c0_72] : memref<27x32x8xf32, #tpu.memory_space<vmem>>, vector<1x32x8xf32>
    %88 = vector.shape_cast %87 : vector<1x32x8xf32> to vector<32x8xf32>
    %c0_73 = arith.constant 0 : index
    %c121 = arith.constant 121 : index
    %89 = vector.load %arg9[%c0_73, %c121] : memref<8x896xf32, #tpu.memory_space<vmem>>, vector<8x640xf32>
    %cst_74 = arith.constant dense<0.000000e+00> : vector<32x640xf32>
    %90 = tpu.matmul %88, %89, %cst_74 {dimension_numbers = #tpu.dot_dimension_numbers<[1], [0], [0], [1], [0, 0, 1, 1], [], []>} : vector<32x8xf32>, vector<8x640xf32>, vector<32x640xf32> -> vector<32x640xf32>
    %91 = arith.addf %86, %90 : vector<32x640xf32>
    %c17 = arith.constant 17 : index
    %c0_75 = arith.constant 0 : index
    %c0_76 = arith.constant 0 : index
    %92 = vector.load %arg3[%c17, %c0_75, %c0_76] : memref<27x32x8xf32, #tpu.memory_space<vmem>>, vector<1x32x8xf32>
    %93 = vector.shape_cast %92 : vector<1x32x8xf32> to vector<32x8xf32>
    %c0_77 = arith.constant 0 : index
    %c122 = arith.constant 122 : index
    %94 = vector.load %arg9[%c0_77, %c122] : memref<8x896xf32, #tpu.memory_space<vmem>>, vector<8x640xf32>
    %cst_78 = arith.constant dense<0.000000e+00> : vector<32x640xf32>
    %95 = tpu.matmul %93, %94, %cst_78 {dimension_numbers = #tpu.dot_dimension_numbers<[1], [0], [0], [1], [0, 0, 1, 1], [], []>} : vector<32x8xf32>, vector<8x640xf32>, vector<32x640xf32> -> vector<32x640xf32>
    %96 = arith.addf %91, %95 : vector<32x640xf32>
    %c18 = arith.constant 18 : index
    %c0_79 = arith.constant 0 : index
    %c0_80 = arith.constant 0 : index
    %97 = vector.load %arg3[%c18, %c0_79, %c0_80] : memref<27x32x8xf32, #tpu.memory_space<vmem>>, vector<1x32x8xf32>
    %98 = vector.shape_cast %97 : vector<1x32x8xf32> to vector<32x8xf32>
    %c0_81 = arith.constant 0 : index
    %c200 = arith.constant 200 : index
    %99 = vector.load %arg9[%c0_81, %c200] : memref<8x896xf32, #tpu.memory_space<vmem>>, vector<8x640xf32>
    %cst_82 = arith.constant dense<0.000000e+00> : vector<32x640xf32>
    %100 = tpu.matmul %98, %99, %cst_82 {dimension_numbers = #tpu.dot_dimension_numbers<[1], [0], [0], [1], [0, 0, 1, 1], [], []>} : vector<32x8xf32>, vector<8x640xf32>, vector<32x640xf32> -> vector<32x640xf32>
    %101 = arith.addf %96, %100 : vector<32x640xf32>
    %c19 = arith.constant 19 : index
    %c0_83 = arith.constant 0 : index
    %c0_84 = arith.constant 0 : index
    %102 = vector.load %arg3[%c19, %c0_83, %c0_84] : memref<27x32x8xf32, #tpu.memory_space<vmem>>, vector<1x32x8xf32>
    %103 = vector.shape_cast %102 : vector<1x32x8xf32> to vector<32x8xf32>
    %c0_85 = arith.constant 0 : index
    %c201 = arith.constant 201 : index
    %104 = vector.load %arg9[%c0_85, %c201] : memref<8x896xf32, #tpu.memory_space<vmem>>, vector<8x640xf32>
    %cst_86 = arith.constant dense<0.000000e+00> : vector<32x640xf32>
    %105 = tpu.matmul %103, %104, %cst_86 {dimension_numbers = #tpu.dot_dimension_numbers<[1], [0], [0], [1], [0, 0, 1, 1], [], []>} : vector<32x8xf32>, vector<8x640xf32>, vector<32x640xf32> -> vector<32x640xf32>
    %106 = arith.addf %101, %105 : vector<32x640xf32>
    %c20_87 = arith.constant 20 : index
    %c0_88 = arith.constant 0 : index
    %c0_89 = arith.constant 0 : index
    %107 = vector.load %arg3[%c20_87, %c0_88, %c0_89] : memref<27x32x8xf32, #tpu.memory_space<vmem>>, vector<1x32x8xf32>
    %108 = vector.shape_cast %107 : vector<1x32x8xf32> to vector<32x8xf32>
    %c0_90 = arith.constant 0 : index
    %c202 = arith.constant 202 : index
    %109 = vector.load %arg9[%c0_90, %c202] : memref<8x896xf32, #tpu.memory_space<vmem>>, vector<8x640xf32>
    %cst_91 = arith.constant dense<0.000000e+00> : vector<32x640xf32>
    %110 = tpu.matmul %108, %109, %cst_91 {dimension_numbers = #tpu.dot_dimension_numbers<[1], [0], [0], [1], [0, 0, 1, 1], [], []>} : vector<32x8xf32>, vector<8x640xf32>, vector<32x640xf32> -> vector<32x640xf32>
    %111 = arith.addf %106, %110 : vector<32x640xf32>
    %c21_92 = arith.constant 21 : index
    %c0_93 = arith.constant 0 : index
    %c0_94 = arith.constant 0 : index
    %112 = vector.load %arg3[%c21_92, %c0_93, %c0_94] : memref<27x32x8xf32, #tpu.memory_space<vmem>>, vector<1x32x8xf32>
    %113 = vector.shape_cast %112 : vector<1x32x8xf32> to vector<32x8xf32>
    %c0_95 = arith.constant 0 : index
    %c210 = arith.constant 210 : index
    %114 = vector.load %arg9[%c0_95, %c210] : memref<8x896xf32, #tpu.memory_space<vmem>>, vector<8x640xf32>
    %cst_96 = arith.constant dense<0.000000e+00> : vector<32x640xf32>
    %115 = tpu.matmul %113, %114, %cst_96 {dimension_numbers = #tpu.dot_dimension_numbers<[1], [0], [0], [1], [0, 0, 1, 1], [], []>} : vector<32x8xf32>, vector<8x640xf32>, vector<32x640xf32> -> vector<32x640xf32>
    %116 = arith.addf %111, %115 : vector<32x640xf32>
    %c22_97 = arith.constant 22 : index
    %c0_98 = arith.constant 0 : index
    %c0_99 = arith.constant 0 : index
    %117 = vector.load %arg3[%c22_97, %c0_98, %c0_99] : memref<27x32x8xf32, #tpu.memory_space<vmem>>, vector<1x32x8xf32>
    %118 = vector.shape_cast %117 : vector<1x32x8xf32> to vector<32x8xf32>
    %c0_100 = arith.constant 0 : index
    %c211 = arith.constant 211 : index
    %119 = vector.load %arg9[%c0_100, %c211] : memref<8x896xf32, #tpu.memory_space<vmem>>, vector<8x640xf32>
    %cst_101 = arith.constant dense<0.000000e+00> : vector<32x640xf32>
    %120 = tpu.matmul %118, %119, %cst_101 {dimension_numbers = #tpu.dot_dimension_numbers<[1], [0], [0], [1], [0, 0, 1, 1], [], []>} : vector<32x8xf32>, vector<8x640xf32>, vector<32x640xf32> -> vector<32x640xf32>
    %121 = arith.addf %116, %120 : vector<32x640xf32>
    %c23 = arith.constant 23 : index
    %c0_102 = arith.constant 0 : index
    %c0_103 = arith.constant 0 : index
    %122 = vector.load %arg3[%c23, %c0_102, %c0_103] : memref<27x32x8xf32, #tpu.memory_space<vmem>>, vector<1x32x8xf32>
    %123 = vector.shape_cast %122 : vector<1x32x8xf32> to vector<32x8xf32>
    %c0_104 = arith.constant 0 : index
    %c212 = arith.constant 212 : index
    %124 = vector.load %arg9[%c0_104, %c212] : memref<8x896xf32, #tpu.memory_space<vmem>>, vector<8x640xf32>
    %cst_105 = arith.constant dense<0.000000e+00> : vector<32x640xf32>
    %125 = tpu.matmul %123, %124, %cst_105 {dimension_numbers = #tpu.dot_dimension_numbers<[1], [0], [0], [1], [0, 0, 1, 1], [], []>} : vector<32x8xf32>, vector<8x640xf32>, vector<32x640xf32> -> vector<32x640xf32>
    %126 = arith.addf %121, %125 : vector<32x640xf32>
    %c24 = arith.constant 24 : index
    %c0_106 = arith.constant 0 : index
    %c0_107 = arith.constant 0 : index
    %127 = vector.load %arg3[%c24, %c0_106, %c0_107] : memref<27x32x8xf32, #tpu.memory_space<vmem>>, vector<1x32x8xf32>
    %128 = vector.shape_cast %127 : vector<1x32x8xf32> to vector<32x8xf32>
    %c0_108 = arith.constant 0 : index
    %c220 = arith.constant 220 : index
    %129 = vector.load %arg9[%c0_108, %c220] : memref<8x896xf32, #tpu.memory_space<vmem>>, vector<8x640xf32>
    %cst_109 = arith.constant dense<0.000000e+00> : vector<32x640xf32>
    %130 = tpu.matmul %128, %129, %cst_109 {dimension_numbers = #tpu.dot_dimension_numbers<[1], [0], [0], [1], [0, 0, 1, 1], [], []>} : vector<32x8xf32>, vector<8x640xf32>, vector<32x640xf32> -> vector<32x640xf32>
    %131 = arith.addf %126, %130 : vector<32x640xf32>
    %c25 = arith.constant 25 : index
    %c0_110 = arith.constant 0 : index
    %c0_111 = arith.constant 0 : index
    %132 = vector.load %arg3[%c25, %c0_110, %c0_111] : memref<27x32x8xf32, #tpu.memory_space<vmem>>, vector<1x32x8xf32>
    %133 = vector.shape_cast %132 : vector<1x32x8xf32> to vector<32x8xf32>
    %c0_112 = arith.constant 0 : index
    %c221 = arith.constant 221 : index
    %134 = vector.load %arg9[%c0_112, %c221] : memref<8x896xf32, #tpu.memory_space<vmem>>, vector<8x640xf32>
    %cst_113 = arith.constant dense<0.000000e+00> : vector<32x640xf32>
    %135 = tpu.matmul %133, %134, %cst_113 {dimension_numbers = #tpu.dot_dimension_numbers<[1], [0], [0], [1], [0, 0, 1, 1], [], []>} : vector<32x8xf32>, vector<8x640xf32>, vector<32x640xf32> -> vector<32x640xf32>
    %136 = arith.addf %131, %135 : vector<32x640xf32>
    %c26 = arith.constant 26 : index
    %c0_114 = arith.constant 0 : index
    %c0_115 = arith.constant 0 : index
    %137 = vector.load %arg3[%c26, %c0_114, %c0_115] : memref<27x32x8xf32, #tpu.memory_space<vmem>>, vector<1x32x8xf32>
    %138 = vector.shape_cast %137 : vector<1x32x8xf32> to vector<32x8xf32>
    %c0_116 = arith.constant 0 : index
    %c222 = arith.constant 222 : index
    %139 = vector.load %arg9[%c0_116, %c222] : memref<8x896xf32, #tpu.memory_space<vmem>>, vector<8x640xf32>
    %cst_117 = arith.constant dense<0.000000e+00> : vector<32x640xf32>
    %140 = tpu.matmul %138, %139, %cst_117 {dimension_numbers = #tpu.dot_dimension_numbers<[1], [0], [0], [1], [0, 0, 1, 1], [], []>} : vector<32x8xf32>, vector<8x640xf32>, vector<32x640xf32> -> vector<32x640xf32>
    %141 = arith.addf %136, %140 : vector<32x640xf32>
    %c0_118 = arith.constant 0 : index
    %c0_119 = arith.constant 0 : index
    %142 = vector.load %arg4[%c0_118, %c0_119] : memref<32x1xf32, #tpu.memory_space<vmem>>, vector<32x1xf32>
    %143 = vector.broadcast %142 : vector<32x1xf32> to vector<32x640xf32>
    %144 = arith.addf %141, %143 : vector<32x640xf32>
    %c0_120 = arith.constant 0 : index
    %c0_121 = arith.constant 0 : index
    %c0_122 = arith.constant 0 : index
    %145 = vector.load %arg6[%c0_120, %c0_121, %c0_122] : memref<1x32x640xf32, #tpu.memory_space<vmem>>, vector<1x32x640xf32>
    %146 = vector.shape_cast %145 : vector<1x32x640xf32> to vector<32x640xf32>
    %147 = vector.shape_cast %144 : vector<32x640xf32> to vector<1x32x640xf32>
    tpu.vector_store %arg6[%c0_120, %c0_121, %c0_122], %147 {strides = array<i32>} : memref<1x32x640xf32, #tpu.memory_space<vmem>>, vector<1x32x640xf32>,
    %c0_i32_123 = arith.constant 0 : i32
    %148 = arith.cmpi eq, %arg1, %c0_i32_123 : i32
    %149 = arith.extui %148 : i1 to i32
    %c0_i32_124 = arith.constant 0 : i32
    %150 = arith.cmpi ne, %149, %c0_i32_124 : i32
    scf.if %150 {
      %cst_141 = arith.constant 0.000000e+00 : f32
      %171 = vector.broadcast %cst_141 : f32 to vector<1x32x1xf32>
      %c0_142 = arith.constant 0 : index
      %c0_143 = arith.constant 0 : index
      %c0_144 = arith.constant 0 : index
      %172 = vector.load %arg7[%c0_142, %c0_143, %c0_144] : memref<1x32x1xf32, #tpu.memory_space<vmem>>, vector<1x32x1xf32>
      tpu.vector_store %arg7[%c0_142, %c0_143, %c0_144], %171 {strides = array<i32>} : memref<1x32x1xf32, #tpu.memory_space<vmem>>, vector<1x32x1xf32>,
      %cst_145 = arith.constant 0.000000e+00 : f32
      %173 = vector.broadcast %cst_145 : f32 to vector<1x32x1xf32>
      %c0_146 = arith.constant 0 : index
      %c0_147 = arith.constant 0 : index
      %c0_148 = arith.constant 0 : index
      %174 = vector.load %arg8[%c0_146, %c0_147, %c0_148] : memref<1x32x1xf32, #tpu.memory_space<vmem>>, vector<1x32x1xf32>
      tpu.vector_store %arg8[%c0_146, %c0_147, %c0_148], %173 {strides = array<i32>} : memref<1x32x1xf32, #tpu.memory_space<vmem>>, vector<1x32x1xf32>,
    } else {
    }
    %c0_125 = arith.constant 0 : index
    %c0_126 = arith.constant 0 : index
    %151 = vector.load %arg5[%c0_125, %c0_126] : memref<1x640xf32, #tpu.memory_space<vmem>>, vector<1x640xf32>
    %152 = vector.broadcast %151 : vector<1x640xf32> to vector<32x640xf32>
    %153 = arith.mulf %144, %152 : vector<32x640xf32>
    %c0_127 = arith.constant 0 : index
    %c0_128 = arith.constant 0 : index
    %c0_129 = arith.constant 0 : index
    %154 = vector.load %arg7[%c0_127, %c0_128, %c0_129] : memref<1x32x1xf32, #tpu.memory_space<vmem>>, vector<1x32x1xf32>
    %155 = vector.shape_cast %154 : vector<1x32x1xf32> to vector<32x1xf32>
    %cst_130 = arith.constant dense<0.000000e+00> : vector<32xf32>
    %156 = vector.multi_reduction <add>, %153, %cst_130 [1] : vector<32x640xf32> to vector<32xf32>
    %157 = vector.shape_cast %156 : vector<32xf32> to vector<32x1xf32>
    %158 = arith.addf %155, %157 : vector<32x1xf32>
    %c0_131 = arith.constant 0 : index
    %c0_132 = arith.constant 0 : index
    %c0_133 = arith.constant 0 : index
    %159 = vector.load %arg7[%c0_131, %c0_132, %c0_133] : memref<1x32x1xf32, #tpu.memory_space<vmem>>, vector<1x32x1xf32>
    %160 = vector.shape_cast %159 : vector<1x32x1xf32> to vector<32x1xf32>
    %161 = vector.shape_cast %158 : vector<32x1xf32> to vector<1x32x1xf32>
    tpu.vector_store %arg7[%c0_131, %c0_132, %c0_133], %161 {strides = array<i32>} : memref<1x32x1xf32, #tpu.memory_space<vmem>>, vector<1x32x1xf32>,
    %c0_134 = arith.constant 0 : index
    %c0_135 = arith.constant 0 : index
    %c0_136 = arith.constant 0 : index
    %162 = vector.load %arg8[%c0_134, %c0_135, %c0_136] : memref<1x32x1xf32, #tpu.memory_space<vmem>>, vector<1x32x1xf32>
    %163 = vector.shape_cast %162 : vector<1x32x1xf32> to vector<32x1xf32>
    %164 = arith.mulf %153, %144 : vector<32x640xf32>
    %cst_137 = arith.constant dense<0.000000e+00> : vector<32xf32>
    %165 = vector.multi_reduction <add>, %164, %cst_137 [1] : vector<32x640xf32> to vector<32xf32>
    %166 = vector.shape_cast %165 : vector<32xf32> to vector<32x1xf32>
    %167 = arith.addf %163, %166 : vector<32x1xf32>
    %c0_138 = arith.constant 0 : index
    %c0_139 = arith.constant 0 : index
    %c0_140 = arith.constant 0 : index
    %168 = vector.load %arg8[%c0_138, %c0_139, %c0_140] : memref<1x32x1xf32, #tpu.memory_space<vmem>>, vector<1x32x1xf32>
    %169 = vector.shape_cast %168 : vector<1x32x1xf32> to vector<32x1xf32>
    %170 = vector.shape_cast %167 : vector<32x1xf32> to vector<1x32x1xf32>
    tpu.vector_store %arg8[%c0_138, %c0_139, %c0_140], %170 {strides = array<i32>} : memref<1x32x1xf32, #tpu.memory_space<vmem>>, vector<1x32x1xf32>,
    return
  }
  func.func @transform_1(%arg0: i32, %arg1: i32) -> (i32, i32, i32) {
    %c0_i32 = arith.constant 0 : i32
    %c0_i32_0 = arith.constant 0 : i32
    %c0_i32_1 = arith.constant 0 : i32
    %c0_i32_2 = arith.constant 0 : i32
    return %c0_i32, %c0_i32_0, %c0_i32_1 : i32, i32, i32
  }
  func.func @transform_2(%arg0: i32, %arg1: i32) -> (i32, i32) {
    %c0_i32 = arith.constant 0 : i32
    %c0_i32_0 = arith.constant 0 : i32
    %c0_i32_1 = arith.constant 0 : i32
    return %c0_i32, %c0_i32_0 : i32, i32
  }
  func.func @transform_3(%arg0: i32, %arg1: i32) -> (i32, i32) {
    %c0_i32 = arith.constant 0 : i32
    %c0_i32_0 = arith.constant 0 : i32
    return %c0_i32, %arg1 : i32, i32
  }
  func.func @transform_4(%arg0: i32, %arg1: i32) -> (i32, i32, i32) {
    %c0_i32 = arith.constant 0 : i32
    %c0_i32_0 = arith.constant 0 : i32
    return %arg0, %c0_i32, %arg1 : i32, i32, i32
  }
  func.func @transform_5(%arg0: i32, %arg1: i32) -> (i32, i32, i32) {
    %c0_i32 = arith.constant 0 : i32
    %c0_i32_0 = arith.constant 0 : i32
    %c0_i32_1 = arith.constant 0 : i32
    return %arg0, %c0_i32, %c0_i32_0 : i32, i32, i32
  }
  func.func @transform_6(%arg0: i32, %arg1: i32) -> (i32, i32, i32) {
    %c0_i32 = arith.constant 0 : i32
    %c0_i32_0 = arith.constant 0 : i32
    %c0_i32_1 = arith.constant 0 : i32
    return %arg0, %c0_i32, %c0_i32_0 : i32, i32, i32
  }
}

</mosaic_0001>

<llo_original>
// kernel: tpu_custom_call.1
$region0: #{tpu_custom_call.1}
  #allocation0 [shape = 'u32[]', space=smem, size = 0x4, offset = 0x4, fixed_abs, tag = 'smem constant byte address 0x4 - core index']
  #allocation1 [shape = 'u32[144,128]{1,0:T(1,128)}', space=vmem, size = 0x12000, scoped, tag = 'internal scratch']
  #allocation2 [shape = 'f32[8,896]{1,0:T(8,128)}', space=vmem, size = 0x7000, scoped, tag = 'scratch operand']
  #allocation3 [shape = 's32[1]{0}', space=sflag, size = 0x4, scoped, tag = 'scratch operand']
  #allocation6 [shape = 's32[]', space=sflag, size = 0x4, offset = 0, fixed_abs, tag = 'sflag constant byte address 0x0 - dummy sync flag']
  %s0 = inlined_call_operand.vmem [shape: f32[2,8,896], index: 0, kind: input, shape index: {}]
  %s1 = inlined_call_operand.vmem [shape: f32[27,32,8], index: 1, kind: input, shape index: {}]
  %s2 = inlined_call_operand.vmem [shape: f32[32,1], index: 2, kind: input, shape index: {}]
  %s3 = inlined_call_operand.vmem [shape: f32[1,640], index: 3, kind: input, shape index: {}]
  %s4 = inlined_call_operand.hbm [shape: f32[2,32,640], index: 4, kind: output, shape index: {0}]
  %s5 = inlined_call_operand.vmem [shape: f32[2,32,1], index: 5, kind: output, shape index: {1}]
  %s6 = inlined_call_operand.vmem [shape: f32[2,32,1], index: 6, kind: output, shape index: {2}]
  %7 = xla_tuple %s4, %s5, %s6
  %s8 = sld [smem:[#allocation0]]
  $region99: #{tpu_custom_call.1} parent=0
    _
  %s10 = ssub.s32 1, %s8
  %s11 = scalar_select 0, %s10, %s8
  $region1: #{tpu_custom_call.1} parent=0
    #allocation4 [shape = 'u8[163840]{0}', space=vmem, size = 0x28000, scoped, tag = 'output window, operand 0']
    #allocation5 [shape = 's32[2]{0}', space=sflag, size = 0x8, scoped, tag = 'scoped memory for tpu_custom_call.1']
    %12 = vsyncpa [#allocation5], 0
    %s13 = scalar_lea.sflag [#allocation5], 1
    %14 = vsyncpa %s13, 0
    loop: start=0, step=1, limit=4
    $region2: #{tpu_custom_call.1} parent=1 // loop_pre_header
      _
    $region3: #{tpu_custom_call.1} parent=1 // loop_header
      %s16 = sphi 0, %s20
      %p17 = scmp.ge.s32.totalorder %s16, 4
      %s23 = sphi 0, %s35
      %s24 = sphi 0, %s31
      %s25 = sphi 0, %s23
      %s26 = sphi 0, %s24
      %s27 = sphi 0, %s25
      %s28 = sphi 0, %s26
      %s36 = sphi 0, %s36
      %s38 = sphi 0, %s36
      %s39 = sphi 0, %s38
      %s53 = sphi 0, %s39
      %s57 = sphi 0, %s57
      %s59 = sphi 0, %s57
      %s60 = sphi 0, %s59
      %s74 = sphi 0, %s60
      %s80 = sphi 0, %s82
      %s83 = sphi 0, %s80
      %s84 = sphi 0, %s83
      %s100 = sphi 0, %s84
      %s108 = sphi 0, %s110
      %s111 = sphi 0, %s108
      %s112 = sphi 0, %s111
      %s128 = sphi 0, %s112
      %s134 = sphi 0, %s136
      %s137 = sphi 0, %s134
      %s138 = sphi 0, %s137
      %s154 = sphi 0, %s138
      %s160 = sphi 0, %s162
      %s163 = sphi 0, %s160
      %s164 = sphi 0, %s163
      %s180 = sphi 0, %s164
    $region4: #{tpu_custom_call.1} parent=1 // loop_header_branch
      %19 = sbr.rel (%p17) target = $region8
    $region5: #{tpu_custom_call.1} parent=1 // loop_body
      %s21 = ssub.s32 %s16, 1
      %s22 = ssub.s32 %s16, 2
      %s29 = sadd.s32 1, %s24
      %p30 = scmp.ge.s32.totalorder %s29, 1
      %s31 = scalar_select %p30, 0, %s29
      %s32 = sadd.s32 1, %s23
      %s33 = scalar_select %p30, %s32, %s23
      %p34 = scmp.ge.s32.totalorder %s33, 2
      %s35 = scalar_select %p34, 0, %s33
      %s37 = sadd.s32 %s36, 1
      %p40 = scmp.eq.s32.totalorder %s16, 1
      %p41 = scmp.ne.s32.totalorder %s36, %s38
      %p42 = scmp.eq.s32.totalorder %s16, 0
      %p43 = por %p41, %p42
      %p44 = scmp.ne.s32.totalorder %s36, %s38
      %p45 = scmp.eq.s32.totalorder %s21, 1
      %p46 = por %p44, %p45
      %p47 = scmp.ne.s32.totalorder %s38, %s39
      %p48 = scmp.eq.s32.totalorder %s21, 0
      %p49 = por %p47, %p48
      %p50 = scmp.ne.s32.totalorder %s38, %s39
      %p51 = scmp.eq.s32.totalorder %s22, 1
      %p52 = por %p50, %p51
      %p54 = scmp.ne.s32.totalorder %s39, %s53
      %p55 = scmp.eq.s32.totalorder %s22, 0
      %p56 = por %p54, %p55
      %s58 = sadd.s32 %s57, 1
      %p61 = scmp.eq.s32.totalorder %s16, 1
      %p62 = scmp.ne.s32.totalorder %s57, %s59
      %p63 = scmp.eq.s32.totalorder %s16, 0
      %p64 = por %p62, %p63
      %p65 = scmp.ne.s32.totalorder %s57, %s59
      %p66 = scmp.eq.s32.totalorder %s21, 1
      %p67 = por %p65, %p66
      %p68 = scmp.ne.s32.totalorder %s59, %s60
      %p69 = scmp.eq.s32.totalorder %s21, 0
      %p70 = por %p68, %p69
      %p71 = scmp.ne.s32.totalorder %s59, %s60
      %p72 = scmp.eq.s32.totalorder %s22, 1
      %p73 = por %p71, %p72
      %p75 = scmp.ne.s32.totalorder %s60, %s74
      %p76 = scmp.eq.s32.totalorder %s22, 0
      %p77 = por %p75, %p76
      %s78 = ssub.s32 %s24, %s31
      %p79 = scmp.eq.s32.totalorder %s78, 0
      %s81 = sadd.s32 %s80, 1
      %s82 = scalar_select %p79, %s80, %s81
      %p85 = pneg %p79
      %p86 = scmp.eq.s32.totalorder %s16, 1
      %p87 = por %p85, %p86
      %p88 = scmp.ne.s32.totalorder %s80, %s83
      %p89 = scmp.eq.s32.totalorder %s16, 0
      %p90 = por %p88, %p89
      %p91 = scmp.ne.s32.totalorder %s80, %s83
      %p92 = scmp.eq.s32.totalorder %s21, 1
      %p93 = por %p91, %p92
      %p94 = scmp.ne.s32.totalorder %s83, %s84
      %p95 = scmp.eq.s32.totalorder %s21, 0
      %p96 = por %p94, %p95
      %p97 = scmp.ne.s32.totalorder %s83, %s84
      %p98 = scmp.eq.s32.totalorder %s22, 1
      %p99 = por %p97, %p98
      %p101 = scmp.ne.s32.totalorder %s84, %s100
      %p102 = scmp.eq.s32.totalorder %s22, 0
      %p103 = por %p101, %p102
      %s104 = ssub.s32 %s23, %s35
      %s105 = ssub.s32 %s24, %s31
      %s106 = sor.u32 %s104, %s105
      %p107 = scmp.eq.s32.totalorder %s106, 0
      %s109 = sadd.s32 %s108, 1
      %s110 = scalar_select %p107, %s108, %s109
      %p113 = pneg %p107
      %p114 = scmp.eq.s32.totalorder %s16, 1
      %p115 = por %p113, %p114
      %p116 = scmp.ne.s32.totalorder %s108, %s111
      %p117 = scmp.eq.s32.totalorder %s16, 0
      %p118 = por %p116, %p117
      %p119 = scmp.ne.s32.totalorder %s108, %s111
      %p120 = scmp.eq.s32.totalorder %s21, 1
      %p121 = por %p119, %p120
      %p122 = scmp.ne.s32.totalorder %s111, %s112
      %p123 = scmp.eq.s32.totalorder %s21, 0
      %p124 = por %p122, %p123
      %p125 = scmp.ne.s32.totalorder %s111, %s112
      %p126 = scmp.eq.s32.totalorder %s22, 1
      %p127 = por %p125, %p126
      %p129 = scmp.ne.s32.totalorder %s112, %s128
      %p130 = scmp.eq.s32.totalorder %s22, 0
      %p131 = por %p129, %p130
      %s132 = ssub.s32 %s23, %s35
      %p133 = scmp.eq.s32.totalorder %s132, 0
      %s135 = sadd.s32 %s134, 1
      %s136 = scalar_select %p133, %s134, %s135
      %p139 = pneg %p133
      %p140 = scmp.eq.s32.totalorder %s16, 1
      %p141 = por %p139, %p140
      %p142 = scmp.ne.s32.totalorder %s134, %s137
      %p143 = scmp.eq.s32.totalorder %s16, 0
      %p144 = por %p142, %p143
      %p145 = scmp.ne.s32.totalorder %s134, %s137
      %p146 = scmp.eq.s32.totalorder %s21, 1
      %p147 = por %p145, %p146
      %p148 = scmp.ne.s32.totalorder %s137, %s138
      %p149 = scmp.eq.s32.totalorder %s21, 0
      %p150 = por %p148, %p149
      %p151 = scmp.ne.s32.totalorder %s137, %s138
      %p152 = scmp.eq.s32.totalorder %s22, 1
      %p153 = por %p151, %p152
      %p155 = scmp.ne.s32.totalorder %s138, %s154
      %p156 = scmp.eq.s32.totalorder %s22, 0
      %p157 = por %p155, %p156
      %s158 = ssub.s32 %s23, %s35
      %p159 = scmp.eq.s32.totalorder %s158, 0
      %s161 = sadd.s32 %s160, 1
      %s162 = scalar_select %p159, %s160, %s161
      %p165 = pneg %p159
      %p166 = scmp.eq.s32.totalorder %s16, 1
      %p167 = por %p165, %p166
      %p168 = scmp.ne.s32.totalorder %s160, %s163
      %p169 = scmp.eq.s32.totalorder %s16, 0
      %p170 = por %p168, %p169
      %p171 = scmp.ne.s32.totalorder %s160, %s163
      %p172 = scmp.eq.s32.totalorder %s21, 1
      %p173 = por %p171, %p172
      %p174 = scmp.ne.s32.totalorder %s163, %s164
      %p175 = scmp.eq.s32.totalorder %s21, 0
      %p176 = por %p174, %p175
      %p177 = scmp.ne.s32.totalorder %s163, %s164
      %p178 = scmp.eq.s32.totalorder %s22, 1
      %p179 = por %p177, %p178
      %p181 = scmp.ne.s32.totalorder %s164, %s180
      %p182 = scmp.eq.s32.totalorder %s22, 0
      %p183 = por %p181, %p182
      %p184 = scmp.le.s32.totalorder 1, %s16
      %p185 = scmp.lt.s32.totalorder %s16, 3
      %p186 = pnand %p184, %p185
      %p187 = pneg %p186
      // Predicated region
      $region9: #{tpu_custom_call.1} parent=5 // pred_check
        _
      $region10: #{tpu_custom_call.1} parent=5 // pred_check_branch
        %189 = sbr.rel (%p186) target = $region12
      $region11: #{tpu_custom_call.1} parent=5 // pred_region
        %s190 = ssub.s32 %s16, 1
        // Predicated region
        $region13: #{tpu_custom_call.1} parent=11 // pred_check
          %p191 = pneg %p49
        $region14: #{tpu_custom_call.1} parent=11 // pred_check_branch
          %193 = sbr.rel (%p191) target = $region16
        $region15: #{tpu_custom_call.1} parent=11 // pred_region
          _
        $region16: #{tpu_custom_call.1} parent=11 // pred_fallthru
          _
        // Predicated region
        $region17: #{tpu_custom_call.1} parent=11 // pred_check
          %p194 = pneg %p70
        $region18: #{tpu_custom_call.1} parent=11 // pred_check_branch
          %196 = sbr.rel (%p194) target = $region20
        $region19: #{tpu_custom_call.1} parent=11 // pred_region
          _
        $region20: #{tpu_custom_call.1} parent=11 // pred_fallthru
          _
        // Predicated region
        $region21: #{tpu_custom_call.1} parent=11 // pred_check
          %p197 = pneg %p96
        $region22: #{tpu_custom_call.1} parent=11 // pred_check_branch
          %199 = sbr.rel (%p197) target = $region24
        $region23: #{tpu_custom_call.1} parent=11 // pred_region
          %s200 = smul.u32 5, %s26
          %p201 = scmp.lt.s32.totalorder %s200, 4
          %s202 = scalar_select %p201, %s200, 4
          %s203 = scalar_lea.vmem %s3, %s202
          %s204 = smul.u32 5, %s26
        $region24: #{tpu_custom_call.1} parent=11 // pred_fallthru
          _
      $region12: #{tpu_custom_call.1} parent=5 // pred_fallthru
        _
      %p205 = scmp.lt.s32.totalorder %s16, 2
      // Predicated region
      $region25: #{tpu_custom_call.1} parent=5 // pred_check
        %p206 = pneg %p205
      $region26: #{tpu_custom_call.1} parent=5 // pred_check_branch
        %208 = sbr.rel (%p206) target = $region28
      $region27: #{tpu_custom_call.1} parent=5 // pred_region
        _
      $region28: #{tpu_custom_call.1} parent=5 // pred_fallthru
        _
      %p209 = scmp.le.s32.totalorder 1, %s16
      %p210 = scmp.lt.s32.totalorder %s16, 3
      %p211 = pnand %p209, %p210
      %p212 = pneg %p211
      // Predicated region
      $region29: #{tpu_custom_call.1} parent=5 // pred_check
        _
      $region30: #{tpu_custom_call.1} parent=5 // pred_check_branch
        %214 = sbr.rel (%p211) target = $region32
      $region31: #{tpu_custom_call.1} parent=5 // pred_region
        %s215 = ssub.s32 %s16, 1
        %p216 = pneg %p49
        %p217 = pneg %p46
        %p218 = pneg %p70
        %p219 = pneg %p67
        %s220 = smul.u32 5, %s26
        %p221 = scmp.lt.s32.totalorder %s220, 4
        %s222 = scalar_select %p221, %s220, 4
        %s223 = scalar_lea.vmem %s3, %s222
        %p224 = pneg %p96
        %p225 = pneg %p93
        %p226 = pneg %p124
        %p227 = pneg %p121
        %s228 = sand.u32 %s111, 1
        %s229 = scalar_lea.sflag [#allocation5], %s228
        %s230 = sand.u32 %s111, 1
        %s231 = smul.addr %s230, 160
        %s232 = scalar_lea.vmem [#allocation4], %s231
        %p233 = pneg %p150
        %p234 = pneg %p147
        %p235 = scmp.lt.s32.totalorder %s25, 1
        %s236 = scalar_select %p235, %s25, 1
        %s237 = smul.addr %s236, 4
        %s238 = smul.addr %s237, 8
        %s239 = scalar_lea.vmem %s5, %s238
        %p240 = pneg %p176
        %p241 = pneg %p173
        %p242 = scmp.lt.s32.totalorder %s25, 1
        %s243 = scalar_select %p242, %s25, 1
        %s244 = smul.addr %s243, 4
        %s245 = smul.addr %s244, 8
        %s246 = scalar_lea.vmem %s6, %s245
        %s247 = smul.u32 5, %s26
        %p248 = scmp.lt.s32.totalorder %s247, 4
        %s249 = scalar_select %p248, %s247, 4
        %s250 = scalar_lea.vmem %s3, %s249
        %s251 = smul.u32 5, %s26
        %s252 = smul.u32 5, %s26
        %p253 = scmp.lt.s32.totalorder %s25, 1
        %s254 = scalar_select %p253, %s25, 1
        %s255 = smul.addr %s254, 4
        %s256 = smul.addr %s255, 8
        %s257 = scalar_lea.vmem %s5, %s256
        %p258 = scmp.lt.s32.totalorder %s25, 1
        %s259 = scalar_select %p258, %s25, 1
        %s260 = smul.addr %s259, 4
        %s261 = smul.addr %s260, 8
        %s262 = scalar_lea.vmem %s6, %s261
        %s263 = smul.u32 %s26, 640
        %s264 = sshra.s32 %s263, 7
        %s265 = sand.u32 %s263, 127
        %s266 = smul.u32 %s25, 7
        %s267 = sadd.s32 %s264, %s266
        %s268 = smul.addr %s267, 8
        %s269 = scalar_lea.vmem %s0, %s268
        %p271 = scmp.lt.u32.totalorder 56, 8
        %p272 = pneg %p271
        // Predicated region
        $region33: #{tpu_custom_call.1} parent=31 // pred_check
          _
        $region34: #{tpu_custom_call.1} parent=31 // pred_check_branch
          %274 = sbr.rel (%p271) target = $region36
        $region35: #{tpu_custom_call.1} parent=31 // pred_region
          %s289 = sand.u32 56, 7
          %p290 = scmp.eq.s32.totalorder %s289, 0
          // Predicated region
          $region48: #{tpu_custom_call.1} parent=35 // pred_check
            %p291 = pneg %p290
          $region49: #{tpu_custom_call.1} parent=35 // pred_check_branch
            %293 = sbr.rel (%p291) target = $region51
          $region50: #{tpu_custom_call.1} parent=35 // pred_region
            loop: start=0, step=1, limit=1
            $region52: #{tpu_custom_call.1} parent=50 // loop_pre_header
              _
            $region53: #{tpu_custom_call.1} parent=50 // loop_header
              %s295 = sphi 0, %s299
              %p296 = scmp.ge.s32.totalorder %s295, 1
              %s300 = sphi %s269, %s269
              %s301 = sphi [#allocation2], [#allocation2]
            $region54: #{tpu_custom_call.1} parent=50 // loop_header_branch
              %298 = sbr.rel (%p296) target = $region58
            $region55: #{tpu_custom_call.1} parent=50 // loop_body
              %v302 = vld [vmem:[%s300] sm:$0xff]
              %303 = vst [vmem:[%s301] sm:$0xff] %v302
              %v304 = vld [vmem:[%s300 + $0x8] sm:$0xff]
              %305 = vst [vmem:[%s301 + $0x8] sm:$0xff] %v304
              %v306 = vld [vmem:[%s300 + $0x10] sm:$0xff]
              %307 = vst [vmem:[%s301 + $0x10] sm:$0xff] %v306
              %v308 = vld [vmem:[%s300 + $0x18] sm:$0xff]
              %309 = vst [vmem:[%s301 + $0x18] sm:$0xff] %v308
              %v310 = vld [vmem:[%s300 + $0x20] sm:$0xff]
              %311 = vst [vmem:[%s301 + $0x20] sm:$0xff] %v310
              %v312 = vld [vmem:[%s300 + $0x28] sm:$0xff]
              %313 = vst [vmem:[%s301 + $0x28] sm:$0xff] %v312
              %v314 = vld [vmem:[%s300 + $0x30] sm:$0xff]
              %315 = vst [vmem:[%s301 + $0x30] sm:$0xff] %v314
            $region56: #{tpu_custom_call.1} parent=50 // loop_footer
              %s299 = sadd.s32 1, %s295
            $region57: #{tpu_custom_call.1} parent=50 // loop_footer_branch
              %294 = sbr.rel target = $region53
            $region58: #{tpu_custom_call.1} parent=50 // loop_exit
              _
          $region51: #{tpu_custom_call.1} parent=35 // pred_fallthru
            _
          %p316 = pneg %p290
          // Predicated region
          $region59: #{tpu_custom_call.1} parent=35 // pred_check
            _
          $region60: #{tpu_custom_call.1} parent=35 // pred_check_branch
            %318 = sbr.rel (%p290) target = $region62
          $region61: #{tpu_custom_call.1} parent=35 // pred_region
            %s319 = sand.u32 56, 7
          $region62: #{tpu_custom_call.1} parent=35 // pred_fallthru
            _
        $region36: #{tpu_custom_call.1} parent=31 // pred_fallthru
          _
        // Predicated region
        $region37: #{tpu_custom_call.1} parent=31 // pred_check
          %p275 = pneg %p271
        $region38: #{tpu_custom_call.1} parent=31 // pred_check_branch
          %277 = sbr.rel (%p275) target = $region40
        $region39: #{tpu_custom_call.1} parent=31 // pred_region
          %s278 = sshllo.u32 0, 56
          loop: start=0, step=1, limit=1
          $region41: #{tpu_custom_call.1} parent=39 // loop_pre_header
            _
          $region42: #{tpu_custom_call.1} parent=39 // loop_header
            %s280 = sphi 0, %s284
            %p281 = scmp.ge.s32.totalorder %s280, 1
            %s285 = sphi %s269, %s269
            %s286 = sphi [#allocation2], [#allocation2]
          $region43: #{tpu_custom_call.1} parent=39 // loop_header_branch
            %283 = sbr.rel (%p281) target = $region47
          $region44: #{tpu_custom_call.1} parent=39 // loop_body
            %v287 = vld [vmem:[%s285] sm:%s278]
            %288 = vst [vmem:[%s286] sm:%s278] %v287
          $region45: #{tpu_custom_call.1} parent=39 // loop_footer
            %s284 = sadd.s32 1, %s280
          $region46: #{tpu_custom_call.1} parent=39 // loop_footer_branch
            %279 = sbr.rel target = $region42
          $region47: #{tpu_custom_call.1} parent=39 // loop_exit
            _
        $region40: #{tpu_custom_call.1} parent=31 // pred_fallthru
          _
        // Predicated region
        $region63: #{tpu_custom_call.1} parent=31 // pred_check
          _
        $region64: #{tpu_custom_call.1} parent=31 // pred_check_branch
          %322 = sbr.rel (0) target = $region66
        $region65: #{tpu_custom_call.1} parent=31 // pred_region
          %323 = vsyncadd [#allocation3], 896
        $region66: #{tpu_custom_call.1} parent=31 // pred_fallthru
          _
        %s324 = smul.u32 8, 1
        %s325 = smul.u32 %s324, 7
        %s326 = sshll.u32 %s325, 4
        %327 = dma.done [#allocation3], %s326
        %v328 = vld [vmem:[%s1] sm:$0xff]
        %v329 = vld [vmem:[%s1 + $0x8] sm:$0xff]
        %v330 = vld [vmem:[%s1 + $0x10] sm:$0xff]
        %v331 = vld [vmem:[%s1 + $0x18] sm:$0xff]
        %v332 = vld [vmem:[#allocation2] sm:$0xff]
        %v333 = vld [vmem:[#allocation2 + $0x8] sm:$0xff]
        %v334 = vld [vmem:[#allocation2 + $0x10] sm:$0xff]
        %v335 = vld [vmem:[#allocation2 + $0x18] sm:$0xff]
        %v336 = vld [vmem:[#allocation2 + $0x20] sm:$0xff]
        %s337 = scalar_lea.vmem %s1, 32
        %v338 = vld [vmem:[%s337] sm:$0xff]
        %v339 = vld [vmem:[%s337 + $0x8] sm:$0xff]
        %v340 = vld [vmem:[%s337 + $0x10] sm:$0xff]
        %v341 = vld [vmem:[%s337 + $0x18] sm:$0xff]
        %v342 = vld [vmem:[#allocation2 + $0x28] sm:$0xff]
        %349 = vrot.lane.b32.xlu0 %v332, 127
        %v350 = vpop.permute.xlu0 %349
        %351 = vrot.lane.b32.xlu0 %v333, 127
        %v352 = vpop.permute.xlu0 %351
        %353 = vrot.lane.b32.xlu0 %v334, 127
        %v354 = vpop.permute.xlu0 %353
        %355 = vrot.lane.b32.xlu0 %v335, 127
        %v356 = vpop.permute.xlu0 %355
        %357 = vrot.lane.b32.xlu0 %v336, 127
        %v358 = vpop.permute.xlu0 %357
        %359 = vrot.lane.b32.xlu0 %v342, 127
        %v360 = vpop.permute.xlu0 %359
        %vm361 = vcmask 1039360
        %v362 = vsel %vm361, %v350, %v352
        %v363 = vsel %vm361, %v352, %v354
        %v364 = vsel %vm361, %v354, %v356
        %v365 = vsel %vm361, %v356, %v358
        %v366 = vsel %vm361, %v358, %v360
        %vm372 = vcmask 64512
        %v374 = vsel %vm372, %v338, 0
        %v377 = vsel %vm372, %v339, 0
        %v380 = vsel %vm372, %v340, 0
        %v383 = vsel %vm372, %v341, 0
        %385 = vmatprep.subr.mxu0 %v363
        %386 = vmatpush1.msra.mxu0 %v362
        %387 = vmatprep.subr.mxu0 0.0
        %388 = vmatpush1.msra.mxu0 0.0
        %389 = vmatprep.subr.mxu0 0.0
        %390 = vmatpush1.msra.mxu0 0.0
        %391 = vmatprep.subr.mxu0 0.0
        %392 = vmatpush1.msra.mxu0 0.0
        %393 = vmatprep.subr.mxu0 0.0
        %394 = vmatpush1.msra.mxu0 0.0
        %395 = vmatprep.subr.mxu0 0.0
        %396 = vmatpush1.msra.mxu0 0.0
        %397 = vmatprep.subr.mxu0 0.0
        %398 = vmatpush1.msra.mxu0 0.0
        %399 = vmatprep.subr.mxu0 0.0
        %400 = vmatpush1.msra.mxu0 0.0
        %401 = vmatprep.subr.mxu0 0.0
        %402 = vmatpush1.msra.mxu0 0.0
        %403 = vmatprep.subr.mxu0 0.0
        %404 = vmatpush1.msra.mxu0 0.0
        %405 = vmatprep.subr.mxu0 0.0
        %406 = vmatpush1.msra.mxu0 0.0
        %407 = vmatprep.subr.mxu0 0.0
        %408 = vmatpush1.msra.mxu0 0.0
        %409 = vmatprep.subr.mxu0 0.0
        %410 = vmatpush1.msra.mxu0 0.0
        %411 = vmatprep.subr.mxu0 0.0
        %412 = vmatpush1.msra.mxu0 0.0
        %413 = vmatprep.subr.mxu0 0.0
        %414 = vmatpush1.msra.mxu0 0.0
        %415 = vmatprep.subr.mxu0 0.0
        %416 = vmatpush1.msra.mxu0 0.0
        %417 = vmatprep.subr.mxu0 0.0
        %418 = vmatpush1.msra.mxu0 0.0
        %419 = vmatprep.subr.mxu0 0.0
        %420 = vmatpush1.msra.mxu0 0.0
        %421 = vmatprep.subr.mxu0 0.0
        %422 = vmatpush1.msra.mxu0 0.0
        %423 = vmatprep.subr.mxu0 0.0
        %424 = vmatpush1.msra.mxu0 0.0
        %425 = vmatprep.subr.mxu0 0.0
        %426 = vmatpush1.msra.mxu0 0.0
        %427 = vmatprep.subr.mxu0 0.0
        %428 = vmatpush1.msra.mxu0 0.0
        %429 = vmatprep.subr.mxu0 0.0
        %430 = vmatpush1.msra.mxu0 0.0
        %431 = vmatprep.subr.mxu0 0.0
        %432 = vmatpush1.msra.mxu0 0.0
        %433 = vmatprep.subr.mxu0 0.0
        %434 = vmatpush1.msra.mxu0 0.0
        %435 = vmatprep.subr.mxu0 0.0
        %436 = vmatpush1.msra.mxu0 0.0
        %437 = vmatprep.subr.mxu0 0.0
        %438 = vmatpush1.msra.mxu0 0.0
        %439 = vmatprep.subr.mxu0 0.0
        %440 = vmatpush1.msra.mxu0 0.0
        %441 = vmatprep.subr.mxu0 0.0
        %442 = vmatpush1.msra.mxu0 0.0
        %443 = vmatprep.subr.mxu0 0.0
        %444 = vmatpush1.msra.mxu0 0.0
        %445 = vmatprep.subr.mxu0 0.0
        %446 = vmatpush1.msra.mxu0 0.0
        %447 = vmatprep.subr.mxu0 0.0
        %448 = vmatpush1.msra.mxu0 0.0
        %449 = vmatprep.mubr.f32.mxu0 0.0
        %450 = vmatmul.mubr.f32.gmra.mrb[0].mxu0 %v374
        %v451 = vpop.f32.mrb[0].mxu0
        %v452 = vadd.f32 0.0, %v451
        %v453 = vpop.f32.mrb[0].mxu0
        %v454 = vadd.f32 0.0, %v453
        %455 = vmatprep.mubr.f32.mxu0 0.0
        %456 = vmatmul.mubr.f32.gmra.mrb[0].mxu0 %v377
        %v457 = vpop.f32.mrb[0].mxu0
        %v458 = vadd.f32 0.0, %v457
        %v459 = vpop.f32.mrb[0].mxu0
        %v460 = vadd.f32 0.0, %v459
        %461 = vmatprep.mubr.f32.mxu0 0.0
        %462 = vmatmul.mubr.f32.gmra.mrb[0].mxu0 %v380
        %v463 = vpop.f32.mrb[0].mxu0
        %v464 = vadd.f32 0.0, %v463
        %v465 = vpop.f32.mrb[0].mxu0
        %v466 = vadd.f32 0.0, %v465
        %467 = vmatprep.mubr.f32.mxu0 0.0
        %468 = vmatmul.mubr.f32.gmra.mrb[0].mxu0 %v383
        %v469 = vpop.f32.mrb[0].mxu0
        %v470 = vadd.f32 0.0, %v469
        %v471 = vpop.f32.mrb[0].mxu0
        %v472 = vadd.f32 0.0, %v471
        %473 = vdwg.mxu0
        %474 = vmatprep.subr.mxu0 %v365
        %475 = vmatpush1.msra.mxu0 %v364
        %476 = vmatprep.subr.mxu0 0.0
        %477 = vmatpush1.msra.mxu0 0.0
        %478 = vmatprep.subr.mxu0 0.0
        %479 = vmatpush1.msra.mxu0 0.0
        %480 = vmatprep.subr.mxu0 0.0
        %481 = vmatpush1.msra.mxu0 0.0
        %482 = vmatprep.subr.mxu0 0.0
        %483 = vmatpush1.msra.mxu0 0.0
        %484 = vmatprep.subr.mxu0 0.0
        %485 = vmatpush1.msra.mxu0 0.0
        %486 = vmatprep.subr.mxu0 0.0
        %487 = vmatpush1.msra.mxu0 0.0
        %488 = vmatprep.subr.mxu0 0.0
        %489 = vmatpush1.msra.mxu0 0.0
        %490 = vmatprep.subr.mxu0 0.0
        %491 = vmatpush1.msra.mxu0 0.0
        %492 = vmatprep.subr.mxu0 0.0
        %493 = vmatpush1.msra.mxu0 0.0
        %494 = vmatprep.subr.mxu0 0.0
        %495 = vmatpush1.msra.mxu0 0.0
        %496 = vmatprep.subr.mxu0 0.0
        %497 = vmatpush1.msra.mxu0 0.0
        %498 = vmatprep.subr.mxu0 0.0
        %499 = vmatpush1.msra.mxu0 0.0
        %500 = vmatprep.subr.mxu0 0.0
        %501 = vmatpush1.msra.mxu0 0.0
        %502 = vmatprep.subr.mxu0 0.0
        %503 = vmatpush1.msra.mxu0 0.0
        %504 = vmatprep.subr.mxu0 0.0
        %505 = vmatpush1.msra.mxu0 0.0
        %506 = vmatprep.subr.mxu0 0.0
        %507 = vmatpush1.msra.mxu0 0.0
        %508 = vmatprep.subr.mxu0 0.0
        %509 = vmatpush1.msra.mxu0 0.0
        %510 = vmatprep.subr.mxu0 0.0
        %511 = vmatpush1.msra.mxu0 0.0
        %512 = vmatprep.subr.mxu0 0.0
        %513 = vmatpush1.msra.mxu0 0.0
        %514 = vmatprep.subr.mxu0 0.0
        %515 = vmatpush1.msra.mxu0 0.0
        %516 = vmatprep.subr.mxu0 0.0
        %517 = vmatpush1.msra.mxu0 0.0
        %518 = vmatprep.subr.mxu0 0.0
        %519 = vmatpush1.msra.mxu0 0.0
        %520 = vmatprep.subr.mxu0 0.0
        %521 = vmatpush1.msra.mxu0 0.0
        %522 = vmatprep.subr.mxu0 0.0
        %523 = vmatpush1.msra.mxu0 0.0
        %524 = vmatprep.subr.mxu0 0.0
        %525 = vmatpush1.msra.mxu0 0.0
        %526 = vmatprep.subr.mxu0 0.0
        %527 = vmatpush1.msra.mxu0 0.0
        %528 = vmatprep.subr.mxu0 0.0
        %529 = vmatpush1.msra.mxu0 0.0
        %530 = vmatprep.subr.mxu0 0.0
        %531 = vmatpush1.msra.mxu0 0.0
        %532 = vmatprep.subr.mxu0 0.0
        %533 = vmatpush1.msra.mxu0 0.0
        %534 = vmatprep.subr.mxu0 0.0
        %535 = vmatpush1.msra.mxu0 0.0
        %536 = vmatprep.subr.mxu0 0.0
        %537 = vmatpush1.msra.mxu0 0.0
        %538 = vmatprep.mubr.f32.mxu0 0.0
        %539 = vmatmul.mubr.f32.gmra.mrb[0].mxu0 %v374
        %v540 = vpop.f32.mrb[0].mxu0
        %v541 = vadd.f32 0.0, %v540
        %v542 = vpop.f32.mrb[0].mxu0
        %v543 = vadd.f32 0.0, %v542
        %544 = vmatprep.mubr.f32.mxu0 0.0
        %545 = vmatmul.mubr.f32.gmra.mrb[0].mxu0 %v377
        %v546 = vpop.f32.mrb[0].mxu0
        %v547 = vadd.f32 0.0, %v546
        %v548 = vpop.f32.mrb[0].mxu0
        %v549 = vadd.f32 0.0, %v548
        %550 = vmatprep.mubr.f32.mxu0 0.0
        %551 = vmatmul.mubr.f32.gmra.mrb[0].mxu0 %v380
        %v552 = vpop.f32.mrb[0].mxu0
        %v553 = vadd.f32 0.0, %v552
        %v554 = vpop.f32.mrb[0].mxu0
        %v555 = vadd.f32 0.0, %v554
        %556 = vmatprep.mubr.f32.mxu0 0.0
        %557 = vmatmul.mubr.f32.gmra.mrb[0].mxu0 %v383
        %v558 = vpop.f32.mrb[0].mxu0
        %v559 = vadd.f32 0.0, %v558
        %v560 = vpop.f32.mrb[0].mxu0
        %v561 = vadd.f32 0.0, %v560
        %562 = vdwg.mxu0
        %563 = vmatprep.subr.mxu0 0.0
        %564 = vmatpush1.msra.mxu0 %v366
        %565 = vmatprep.subr.mxu0 0.0
        %566 = vmatpush1.msra.mxu0 0.0
        %567 = vmatprep.subr.mxu0 0.0
        %568 = vmatpush1.msra.mxu0 0.0
        %569 = vmatprep.subr.mxu0 0.0
        %570 = vmatpush1.msra.mxu0 0.0
        %571 = vmatprep.subr.mxu0 0.0
        %572 = vmatpush1.msra.mxu0 0.0
        %573 = vmatprep.subr.mxu0 0.0
        %574 = vmatpush1.msra.mxu0 0.0
        %575 = vmatprep.subr.mxu0 0.0
        %576 = vmatpush1.msra.mxu0 0.0
        %577 = vmatprep.subr.mxu0 0.0
        %578 = vmatpush1.msra.mxu0 0.0
        %579 = vmatprep.subr.mxu0 0.0
        %580 = vmatpush1.msra.mxu0 0.0
        %581 = vmatprep.subr.mxu0 0.0
        %582 = vmatpush1.msra.mxu0 0.0
        %583 = vmatprep.subr.mxu0 0.0
        %584 = vmatpush1.msra.mxu0 0.0
        %585 = vmatprep.subr.mxu0 0.0
        %586 = vmatpush1.msra.mxu0 0.0
        %587 = vmatprep.subr.mxu0 0.0
        %588 = vmatpush1.msra.mxu0 0.0
        %589 = vmatprep.subr.mxu0 0.0
        %590 = vmatpush1.msra.mxu0 0.0
        %591 = vmatprep.subr.mxu0 0.0
        %592 = vmatpush1.msra.mxu0 0.0
        %593 = vmatprep.subr.mxu0 0.0
        %594 = vmatpush1.msra.mxu0 0.0
        %595 = vmatprep.subr.mxu0 0.0
        %596 = vmatpush1.msra.mxu0 0.0
        %597 = vmatprep.subr.mxu0 0.0
        %598 = vmatpush1.msra.mxu0 0.0
        %599 = vmatprep.subr.mxu0 0.0
        %600 = vmatpush1.msra.mxu0 0.0
        %601 = vmatprep.subr.mxu0 0.0
        %602 = vmatpush1.msra.mxu0 0.0
        %603 = vmatprep.subr.mxu0 0.0
        %604 = vmatpush1.msra.mxu0 0.0
        %605 = vmatprep.subr.mxu0 0.0
        %606 = vmatpush1.msra.mxu0 0.0
        %607 = vmatprep.subr.mxu0 0.0
        %608 = vmatpush1.msra.mxu0 0.0
        %609 = vmatprep.subr.mxu0 0.0
        %610 = vmatpush1.msra.mxu0 0.0
        %611 = vmatprep.subr.mxu0 0.0
        %612 = vmatpush1.msra.mxu0 0.0
        %613 = vmatprep.subr.mxu0 0.0
        %614 = vmatpush1.msra.mxu0 0.0
        %615 = vmatprep.subr.mxu0 0.0
        %616 = vmatpush1.msra.mxu0 0.0
        %617 = vmatprep.subr.mxu0 0.0
        %618 = vmatpush1.msra.mxu0 0.0
        %619 = vmatprep.subr.mxu0 0.0
        %620 = vmatpush1.msra.mxu0 0.0
        %621 = vmatprep.subr.mxu0 0.0
        %622 = vmatpush1.msra.mxu0 0.0
        %623 = vmatprep.subr.mxu0 0.0
        %624 = vmatpush1.msra.mxu0 0.0
        %625 = vmatprep.subr.mxu0 0.0
        %626 = vmatpush1.msra.mxu0 0.0
        %627 = vmatprep.mubr.f32.mxu0 0.0
        %628 = vmatmul.mubr.f32.gmra.mrb[0].mxu0 %v374
        %v629 = vpop.f32.mrb[0].mxu0
        %v630 = vadd.f32 0.0, %v629
        %v631 = vpop.f32.mrb[0].mxu0
        %632 = vmatprep.mubr.f32.mxu0 0.0
        %633 = vmatmul.mubr.f32.gmra.mrb[0].mxu0 %v377
        %v634 = vpop.f32.mrb[0].mxu0
        %v635 = vadd.f32 0.0, %v634
        %v636 = vpop.f32.mrb[0].mxu0
        %637 = vmatprep.mubr.f32.mxu0 0.0
        %638 = vmatmul.mubr.f32.gmra.mrb[0].mxu0 %v380
        %v639 = vpop.f32.mrb[0].mxu0
        %v640 = vadd.f32 0.0, %v639
        %v641 = vpop.f32.mrb[0].mxu0
        %642 = vmatprep.mubr.f32.mxu0 0.0
        %643 = vmatmul.mubr.f32.gmra.mrb[0].mxu0 %v383
        %v644 = vpop.f32.mrb[0].mxu0
        %v645 = vadd.f32 0.0, %v644
        %v646 = vpop.f32.mrb[0].mxu0
        %647 = vdwg.mxu0
        %v649 = vsel %vm372, %v328, 0
        %v652 = vsel %vm372, %v329, 0
        %v655 = vsel %vm372, %v330, 0
        %v658 = vsel %vm372, %v331, 0
        %660 = vmatprep.subr.mxu0 %v333
        %661 = vmatpush1.msra.mxu0 %v332
        %662 = vmatprep.subr.mxu0 0.0
        %663 = vmatpush1.msra.mxu0 0.0
        %664 = vmatprep.subr.mxu0 0.0
        %665 = vmatpush1.msra.mxu0 0.0
        %666 = vmatprep.subr.mxu0 0.0
        %667 = vmatpush1.msra.mxu0 0.0
        %668 = vmatprep.subr.mxu0 0.0
        %669 = vmatpush1.msra.mxu0 0.0
        %670 = vmatprep.subr.mxu0 0.0
        %671 = vmatpush1.msra.mxu0 0.0
        %672 = vmatprep.subr.mxu0 0.0
        %673 = vmatpush1.msra.mxu0 0.0
        %674 = vmatprep.subr.mxu0 0.0
        %675 = vmatpush1.msra.mxu0 0.0
        %676 = vmatprep.subr.mxu0 0.0
        %677 = vmatpush1.msra.mxu0 0.0
        %678 = vmatprep.subr.mxu0 0.0
        %679 = vmatpush1.msra.mxu0 0.0
        %680 = vmatprep.subr.mxu0 0.0
        %681 = vmatpush1.msra.mxu0 0.0
        %682 = vmatprep.subr.mxu0 0.0
        %683 = vmatpush1.msra.mxu0 0.0
        %684 = vmatprep.subr.mxu0 0.0
        %685 = vmatpush1.msra.mxu0 0.0
        %686 = vmatprep.subr.mxu0 0.0
        %687 = vmatpush1.msra.mxu0 0.0
        %688 = vmatprep.subr.mxu0 0.0
        %689 = vmatpush1.msra.mxu0 0.0
        %690 = vmatprep.subr.mxu0 0.0
        %691 = vmatpush1.msra.mxu0 0.0
        %692 = vmatprep.subr.mxu0 0.0
        %693 = vmatpush1.msra.mxu0 0.0
        %694 = vmatprep.subr.mxu0 0.0
        %695 = vmatpush1.msra.mxu0 0.0
        %696 = vmatprep.subr.mxu0 0.0
        %697 = vmatpush1.msra.mxu0 0.0
        %698 = vmatprep.subr.mxu0 0.0
        %699 = vmatpush1.msra.mxu0 0.0
        %700 = vmatprep.subr.mxu0 0.0
        %701 = vmatpush1.msra.mxu0 0.0
        %702 = vmatprep.subr.mxu0 0.0
        %703 = vmatpush1.msra.mxu0 0.0
        %704 = vmatprep.subr.mxu0 0.0
        %705 = vmatpush1.msra.mxu0 0.0
        %706 = vmatprep.subr.mxu0 0.0
        %707 = vmatpush1.msra.mxu0 0.0
        %708 = vmatprep.subr.mxu0 0.0
        %709 = vmatpush1.msra.mxu0 0.0
        %710 = vmatprep.subr.mxu0 0.0
        %711 = vmatpush1.msra.mxu0 0.0
        %712 = vmatprep.subr.mxu0 0.0
        %713 = vmatpush1.msra.mxu0 0.0
        %714 = vmatprep.subr.mxu0 0.0
        %715 = vmatpush1.msra.mxu0 0.0
        %716 = vmatprep.subr.mxu0 0.0
        %717 = vmatpush1.msra.mxu0 0.0
        %718 = vmatprep.subr.mxu0 0.0
        %719 = vmatpush1.msra.mxu0 0.0
        %720 = vmatprep.subr.mxu0 0.0
        %721 = vmatpush1.msra.mxu0 0.0
        %722 = vmatprep.subr.mxu0 0.0
        %723 = vmatpush1.msra.mxu0 0.0
        %724 = vmatprep.mubr.f32.mxu0 0.0
        %725 = vmatmul.mubr.f32.gmra.mrb[0].mxu0 %v649
        %v726 = vpop.f32.mrb[0].mxu0
        %v727 = vadd.f32 %v452, %v726
        %v728 = vpop.f32.mrb[0].mxu0
        %v729 = vadd.f32 %v454, %v728
        %730 = vmatprep.mubr.f32.mxu0 0.0
        %731 = vmatmul.mubr.f32.gmra.mrb[0].mxu0 %v652
        %v732 = vpop.f32.mrb[0].mxu0
        %v733 = vadd.f32 %v458, %v732
        %v734 = vpop.f32.mrb[0].mxu0
        %v735 = vadd.f32 %v460, %v734
        %736 = vmatprep.mubr.f32.mxu0 0.0
        %737 = vmatmul.mubr.f32.gmra.mrb[0].mxu0 %v655
        %v738 = vpop.f32.mrb[0].mxu0
        %v739 = vadd.f32 %v464, %v738
        %v740 = vpop.f32.mrb[0].mxu0
        %v741 = vadd.f32 %v466, %v740
        %742 = vmatprep.mubr.f32.mxu0 0.0
        %743 = vmatmul.mubr.f32.gmra.mrb[0].mxu0 %v658
        %v744 = vpop.f32.mrb[0].mxu0
        %v745 = vadd.f32 %v470, %v744
        %v746 = vpop.f32.mrb[0].mxu0
        %v747 = vadd.f32 %v472, %v746
        %748 = vdwg.mxu0
        %749 = vmatprep.subr.mxu0 %v335
        %750 = vmatpush1.msra.mxu0 %v334
        %751 = vmatprep.subr.mxu0 0.0
        %752 = vmatpush1.msra.mxu0 0.0
        %753 = vmatprep.subr.mxu0 0.0
        %754 = vmatpush1.msra.mxu0 0.0
        %755 = vmatprep.subr.mxu0 0.0
        %756 = vmatpush1.msra.mxu0 0.0
        %757 = vmatprep.subr.mxu0 0.0
        %758 = vmatpush1.msra.mxu0 0.0
        %759 = vmatprep.subr.mxu0 0.0
        %760 = vmatpush1.msra.mxu0 0.0
        %761 = vmatprep.subr.mxu0 0.0
        %762 = vmatpush1.msra.mxu0 0.0
        %763 = vmatprep.subr.mxu0 0.0
        %764 = vmatpush1.msra.mxu0 0.0
        %765 = vmatprep.subr.mxu0 0.0
        %766 = vmatpush1.msra.mxu0 0.0
        %767 = vmatprep.subr.mxu0 0.0
        %768 = vmatpush1.msra.mxu0 0.0
        %769 = vmatprep.subr.mxu0 0.0
        %770 = vmatpush1.msra.mxu0 0.0
        %771 = vmatprep.subr.mxu0 0.0
        %772 = vmatpush1.msra.mxu0 0.0
        %773 = vmatprep.subr.mxu0 0.0
        %774 = vmatpush1.msra.mxu0 0.0
        %775 = vmatprep.subr.mxu0 0.0
        %776 = vmatpush1.msra.mxu0 0.0
        %777 = vmatprep.subr.mxu0 0.0
        %778 = vmatpush1.msra.mxu0 0.0
        %779 = vmatprep.subr.mxu0 0.0
        %780 = vmatpush1.msra.mxu0 0.0
        %781 = vmatprep.subr.mxu0 0.0
        %782 = vmatpush1.msra.mxu0 0.0
        %783 = vmatprep.subr.mxu0 0.0
        %784 = vmatpush1.msra.mxu0 0.0
        %785 = vmatprep.subr.mxu0 0.0
        %786 = vmatpush1.msra.mxu0 0.0
        %787 = vmatprep.subr.mxu0 0.0
        %788 = vmatpush1.msra.mxu0 0.0
        %789 = vmatprep.subr.mxu0 0.0
        %790 = vmatpush1.msra.mxu0 0.0
        %791 = vmatprep.subr.mxu0 0.0
        %792 = vmatpush1.msra.mxu0 0.0
        %793 = vmatprep.subr.mxu0 0.0
        %794 = vmatpush1.msra.mxu0 0.0
        %795 = vmatprep.subr.mxu0 0.0
        %796 = vmatpush1.msra.mxu0 0.0
        %797 = vmatprep.subr.mxu0 0.0
        %798 = vmatpush1.msra.mxu0 0.0
        %799 = vmatprep.subr.mxu0 0.0
        %800 = vmatpush1.msra.mxu0 0.0
        %801 = vmatprep.subr.mxu0 0.0
        %802 = vmatpush1.msra.mxu0 0.0
        %803 = vmatprep.subr.mxu0 0.0
        %804 = vmatpush1.msra.mxu0 0.0
        %805 = vmatprep.subr.mxu0 0.0
        %806 = vmatpush1.msra.mxu0 0.0
        %807 = vmatprep.subr.mxu0 0.0
        %808 = vmatpush1.msra.mxu0 0.0
        %809 = vmatprep.subr.mxu0 0.0
        %810 = vmatpush1.msra.mxu0 0.0
        %811 = vmatprep.subr.mxu0 0.0
        %812 = vmatpush1.msra.mxu0 0.0
        %813 = vmatprep.mubr.f32.mxu0 0.0
        %814 = vmatmul.mubr.f32.gmra.mrb[0].mxu0 %v649
        %v815 = vpop.f32.mrb[0].mxu0
        %v816 = vadd.f32 %v541, %v815
        %v817 = vpop.f32.mrb[0].mxu0
        %v818 = vadd.f32 %v543, %v817
        %819 = vmatprep.mubr.f32.mxu0 0.0
        %820 = vmatmul.mubr.f32.gmra.mrb[0].mxu0 %v652
        %v821 = vpop.f32.mrb[0].mxu0
        %v822 = vadd.f32 %v547, %v821
        %v823 = vpop.f32.mrb[0].mxu0
        %v824 = vadd.f32 %v549, %v823
        %825 = vmatprep.mubr.f32.mxu0 0.0
        %826 = vmatmul.mubr.f32.gmra.mrb[0].mxu0 %v655
        %v827 = vpop.f32.mrb[0].mxu0
        %v828 = vadd.f32 %v553, %v827
        %v829 = vpop.f32.mrb[0].mxu0
        %v830 = vadd.f32 %v555, %v829
        %831 = vmatprep.mubr.f32.mxu0 0.0
        %832 = vmatmul.mubr.f32.gmra.mrb[0].mxu0 %v658
        %v833 = vpop.f32.mrb[0].mxu0
        %v834 = vadd.f32 %v559, %v833
        %v835 = vpop.f32.mrb[0].mxu0
        %v836 = vadd.f32 %v561, %v835
        %837 = vdwg.mxu0
        %838 = vmatprep.subr.mxu0 0.0
        %839 = vmatpush1.msra.mxu0 %v336
        %840 = vmatprep.subr.mxu0 0.0
        %841 = vmatpush1.msra.mxu0 0.0
        %842 = vmatprep.subr.mxu0 0.0
        %843 = vmatpush1.msra.mxu0 0.0
        %844 = vmatprep.subr.mxu0 0.0
        %845 = vmatpush1.msra.mxu0 0.0
        %846 = vmatprep.subr.mxu0 0.0
        %847 = vmatpush1.msra.mxu0 0.0
        %848 = vmatprep.subr.mxu0 0.0
        %849 = vmatpush1.msra.mxu0 0.0
        %850 = vmatprep.subr.mxu0 0.0
        %851 = vmatpush1.msra.mxu0 0.0
        %852 = vmatprep.subr.mxu0 0.0
        %853 = vmatpush1.msra.mxu0 0.0
        %854 = vmatprep.subr.mxu0 0.0
        %855 = vmatpush1.msra.mxu0 0.0
        %856 = vmatprep.subr.mxu0 0.0
        %857 = vmatpush1.msra.mxu0 0.0
        %858 = vmatprep.subr.mxu0 0.0
        %859 = vmatpush1.msra.mxu0 0.0
        %860 = vmatprep.subr.mxu0 0.0
        %861 = vmatpush1.msra.mxu0 0.0
        %862 = vmatprep.subr.mxu0 0.0
        %863 = vmatpush1.msra.mxu0 0.0
        %864 = vmatprep.subr.mxu0 0.0
        %865 = vmatpush1.msra.mxu0 0.0
        %866 = vmatprep.subr.mxu0 0.0
        %867 = vmatpush1.msra.mxu0 0.0
        %868 = vmatprep.subr.mxu0 0.0
        %869 = vmatpush1.msra.mxu0 0.0
        %870 = vmatprep.subr.mxu0 0.0
        %871 = vmatpush1.msra.mxu0 0.0
        %872 = vmatprep.subr.mxu0 0.0
        %873 = vmatpush1.msra.mxu0 0.0
        %874 = vmatprep.subr.mxu0 0.0
        %875 = vmatpush1.msra.mxu0 0.0
        %876 = vmatprep.subr.mxu0 0.0
        %877 = vmatpush1.msra.mxu0 0.0
        %878 = vmatprep.subr.mxu0 0.0
        %879 = vmatpush1.msra.mxu0 0.0
        %880 = vmatprep.subr.mxu0 0.0
        %881 = vmatpush1.msra.mxu0 0.0
        %882 = vmatprep.subr.mxu0 0.0
        %883 = vmatpush1.msra.mxu0 0.0
        %884 = vmatprep.subr.mxu0 0.0
        %885 = vmatpush1.msra.mxu0 0.0
        %886 = vmatprep.subr.mxu0 0.0
        %887 = vmatpush1.msra.mxu0 0.0
        %888 = vmatprep.subr.mxu0 0.0
        %889 = vmatpush1.msra.mxu0 0.0
        %890 = vmatprep.subr.mxu0 0.0
        %891 = vmatpush1.msra.mxu0 0.0
        %892 = vmatprep.subr.mxu0 0.0
        %893 = vmatpush1.msra.mxu0 0.0
        %894 = vmatprep.subr.mxu0 0.0
        %895 = vmatpush1.msra.mxu0 0.0
        %896 = vmatprep.subr.mxu0 0.0
        %897 = vmatpush1.msra.mxu0 0.0
        %898 = vmatprep.subr.mxu0 0.0
        %899 = vmatpush1.msra.mxu0 0.0
        %900 = vmatprep.subr.mxu0 0.0
        %901 = vmatpush1.msra.mxu0 0.0
        %902 = vmatprep.mubr.f32.mxu0 0.0
        %903 = vmatmul.mubr.f32.gmra.mrb[0].mxu0 %v649
        %v904 = vpop.f32.mrb[0].mxu0
        %v905 = vadd.f32 %v630, %v904
        %v906 = vpop.f32.mrb[0].mxu0
        %907 = vmatprep.mubr.f32.mxu0 0.0
        %908 = vmatmul.mubr.f32.gmra.mrb[0].mxu0 %v652
        %v909 = vpop.f32.mrb[0].mxu0
        %v910 = vadd.f32 %v635, %v909
        %v911 = vpop.f32.mrb[0].mxu0
        %912 = vmatprep.mubr.f32.mxu0 0.0
        %913 = vmatmul.mubr.f32.gmra.mrb[0].mxu0 %v655
        %v914 = vpop.f32.mrb[0].mxu0
        %v915 = vadd.f32 %v640, %v914
        %v916 = vpop.f32.mrb[0].mxu0
        %917 = vmatprep.mubr.f32.mxu0 0.0
        %918 = vmatmul.mubr.f32.gmra.mrb[0].mxu0 %v658
        %v919 = vpop.f32.mrb[0].mxu0
        %v920 = vadd.f32 %v645, %v919
        %v921 = vpop.f32.mrb[0].mxu0
        %922 = vdwg.mxu0
        %s923 = scalar_lea.vmem %s1, 64
        %v924 = vld [vmem:[%s923] sm:$0xff]
        %v925 = vld [vmem:[%s923 + $0x8] sm:$0xff]
        %v926 = vld [vmem:[%s923 + $0x10] sm:$0xff]
        %v927 = vld [vmem:[%s923 + $0x18] sm:$0xff]
        %928 = vrot.lane.b32.xlu0 %v332, 126
        %v929 = vpop.permute.xlu0 %928
        %930 = vrot.lane.b32.xlu0 %v333, 126
        %v931 = vpop.permute.xlu0 %930
        %932 = vrot.lane.b32.xlu0 %v334, 126
        %v933 = vpop.permute.xlu0 %932
        %934 = vrot.lane.b32.xlu0 %v335, 126
        %v935 = vpop.permute.xlu0 %934
        %936 = vrot.lane.b32.xlu0 %v336, 126
        %v937 = vpop.permute.xlu0 %936
        %938 = vrot.lane.b32.xlu0 %v342, 126
        %v939 = vpop.permute.xlu0 %938
        %vm940 = vcmask 1031168
        %v941 = vsel %vm940, %v929, %v931
        %v942 = vsel %vm940, %v931, %v933
        %v943 = vsel %vm940, %v933, %v935
        %v944 = vsel %vm940, %v935, %v937
        %v945 = vsel %vm940, %v937, %v939
        %v952 = vsel %vm372, %v924, 0
        %v955 = vsel %vm372, %v925, 0
        %v958 = vsel %vm372, %v926, 0
        %v961 = vsel %vm372, %v927, 0
        %963 = vmatprep.subr.mxu0 %v942
        %964 = vmatpush1.msra.mxu0 %v941
        %965 = vmatprep.subr.mxu0 0.0
        %966 = vmatpush1.msra.mxu0 0.0
        %967 = vmatprep.subr.mxu0 0.0
        %968 = vmatpush1.msra.mxu0 0.0
        %969 = vmatprep.subr.mxu0 0.0
        %970 = vmatpush1.msra.mxu0 0.0
        %971 = vmatprep.subr.mxu0 0.0
        %972 = vmatpush1.msra.mxu0 0.0
        %973 = vmatprep.subr.mxu0 0.0
        %974 = vmatpush1.msra.mxu0 0.0
        %975 = vmatprep.subr.mxu0 0.0
        %976 = vmatpush1.msra.mxu0 0.0
        %977 = vmatprep.subr.mxu0 0.0
        %978 = vmatpush1.msra.mxu0 0.0
        %979 = vmatprep.subr.mxu0 0.0
        %980 = vmatpush1.msra.mxu0 0.0
        %981 = vmatprep.subr.mxu0 0.0
        %982 = vmatpush1.msra.mxu0 0.0
        %983 = vmatprep.subr.mxu0 0.0
        %984 = vmatpush1.msra.mxu0 0.0
        %985 = vmatprep.subr.mxu0 0.0
        %986 = vmatpush1.msra.mxu0 0.0
        %987 = vmatprep.subr.mxu0 0.0
        %988 = vmatpush1.msra.mxu0 0.0
        %989 = vmatprep.subr.mxu0 0.0
        %990 = vmatpush1.msra.mxu0 0.0
        %991 = vmatprep.subr.mxu0 0.0
        %992 = vmatpush1.msra.mxu0 0.0
        %993 = vmatprep.subr.mxu0 0.0
        %994 = vmatpush1.msra.mxu0 0.0
        %995 = vmatprep.subr.mxu0 0.0
        %996 = vmatpush1.msra.mxu0 0.0
        %997 = vmatprep.subr.mxu0 0.0
        %998 = vmatpush1.msra.mxu0 0.0
        %999 = vmatprep.subr.mxu0 0.0
        %1000 = vmatpush1.msra.mxu0 0.0
        %1001 = vmatprep.subr.mxu0 0.0
        %1002 = vmatpush1.msra.mxu0 0.0
        %1003 = vmatprep.subr.mxu0 0.0
        %1004 = vmatpush1.msra.mxu0 0.0
        %1005 = vmatprep.subr.mxu0 0.0
        %1006 = vmatpush1.msra.mxu0 0.0
        %1007 = vmatprep.subr.mxu0 0.0
        %1008 = vmatpush1.msra.mxu0 0.0
        %1009 = vmatprep.subr.mxu0 0.0
        %1010 = vmatpush1.msra.mxu0 0.0
        %1011 = vmatprep.subr.mxu0 0.0
        %1012 = vmatpush1.msra.mxu0 0.0
        %1013 = vmatprep.subr.mxu0 0.0
        %1014 = vmatpush1.msra.mxu0 0.0
        %1015 = vmatprep.subr.mxu0 0.0
        %1016 = vmatpush1.msra.mxu0 0.0
        %1017 = vmatprep.subr.mxu0 0.0
        %1018 = vmatpush1.msra.mxu0 0.0
        %1019 = vmatprep.subr.mxu0 0.0
        %1020 = vmatpush1.msra.mxu0 0.0
        %1021 = vmatprep.subr.mxu0 0.0
        %1022 = vmatpush1.msra.mxu0 0.0
        %1023 = vmatprep.subr.mxu0 0.0
        %1024 = vmatpush1.msra.mxu0 0.0
        %1025 = vmatprep.subr.mxu0 0.0
        %1026 = vmatpush1.msra.mxu0 0.0
        %1027 = vmatprep.mubr.f32.mxu0 0.0
        %1028 = vmatmul.mubr.f32.gmra.mrb[0].mxu0 %v952
        %v1029 = vpop.f32.mrb[0].mxu0
        %v1030 = vadd.f32 0.0, %v1029
        %v1031 = vpop.f32.mrb[0].mxu0
        %v1032 = vadd.f32 0.0, %v1031
        %1033 = vmatprep.mubr.f32.mxu0 0.0
        %1034 = vmatmul.mubr.f32.gmra.mrb[0].mxu0 %v955
        %v1035 = vpop.f32.mrb[0].mxu0
        %v1036 = vadd.f32 0.0, %v1035
        %v1037 = vpop.f32.mrb[0].mxu0
        %v1038 = vadd.f32 0.0, %v1037
        %1039 = vmatprep.mubr.f32.mxu0 0.0
        %1040 = vmatmul.mubr.f32.gmra.mrb[0].mxu0 %v958
        %v1041 = vpop.f32.mrb[0].mxu0
        %v1042 = vadd.f32 0.0, %v1041
        %v1043 = vpop.f32.mrb[0].mxu0
        %v1044 = vadd.f32 0.0, %v1043
        %1045 = vmatprep.mubr.f32.mxu0 0.0
        %1046 = vmatmul.mubr.f32.gmra.mrb[0].mxu0 %v961
        %v1047 = vpop.f32.mrb[0].mxu0
        %v1048 = vadd.f32 0.0, %v1047
        %v1049 = vpop.f32.mrb[0].mxu0
        %v1050 = vadd.f32 0.0, %v1049
        %1051 = vdwg.mxu0
        %1052 = vmatprep.subr.mxu0 %v944
        %1053 = vmatpush1.msra.mxu0 %v943
        %1054 = vmatprep.subr.mxu0 0.0
        %1055 = vmatpush1.msra.mxu0 0.0
        %1056 = vmatprep.subr.mxu0 0.0
        %1057 = vmatpush1.msra.mxu0 0.0
        %1058 = vmatprep.subr.mxu0 0.0
        %1059 = vmatpush1.msra.mxu0 0.0
        %1060 = vmatprep.subr.mxu0 0.0
        %1061 = vmatpush1.msra.mxu0 0.0
        %1062 = vmatprep.subr.mxu0 0.0
        %1063 = vmatpush1.msra.mxu0 0.0
        %1064 = vmatprep.subr.mxu0 0.0
        %1065 = vmatpush1.msra.mxu0 0.0
        %1066 = vmatprep.subr.mxu0 0.0
        %1067 = vmatpush1.msra.mxu0 0.0
        %1068 = vmatprep.subr.mxu0 0.0
        %1069 = vmatpush1.msra.mxu0 0.0
        %1070 = vmatprep.subr.mxu0 0.0
        %1071 = vmatpush1.msra.mxu0 0.0
        %1072 = vmatprep.subr.mxu0 0.0
        %1073 = vmatpush1.msra.mxu0 0.0
        %1074 = vmatprep.subr.mxu0 0.0
        %1075 = vmatpush1.msra.mxu0 0.0
        %1076 = vmatprep.subr.mxu0 0.0
        %1077 = vmatpush1.msra.mxu0 0.0
        %1078 = vmatprep.subr.mxu0 0.0
        %1079 = vmatpush1.msra.mxu0 0.0
        %1080 = vmatprep.subr.mxu0 0.0
        %1081 = vmatpush1.msra.mxu0 0.0
        %1082 = vmatprep.subr.mxu0 0.0
        %1083 = vmatpush1.msra.mxu0 0.0
        %1084 = vmatprep.subr.mxu0 0.0
        %1085 = vmatpush1.msra.mxu0 0.0
        %1086 = vmatprep.subr.mxu0 0.0
        %1087 = vmatpush1.msra.mxu0 0.0
        %1088 = vmatprep.subr.mxu0 0.0
        %1089 = vmatpush1.msra.mxu0 0.0
        %1090 = vmatprep.subr.mxu0 0.0
        %1091 = vmatpush1.msra.mxu0 0.0
        %1092 = vmatprep.subr.mxu0 0.0
        %1093 = vmatpush1.msra.mxu0 0.0
        %1094 = vmatprep.subr.mxu0 0.0
        %1095 = vmatpush1.msra.mxu0 0.0
        %1096 = vmatprep.subr.mxu0 0.0
        %1097 = vmatpush1.msra.mxu0 0.0
        %1098 = vmatprep.subr.mxu0 0.0
        %1099 = vmatpush1.msra.mxu0 0.0
        %1100 = vmatprep.subr.mxu0 0.0
        %1101 = vmatpush1.msra.mxu0 0.0
        %1102 = vmatprep.subr.mxu0 0.0
        %1103 = vmatpush1.msra.mxu0 0.0
        %1104 = vmatprep.subr.mxu0 0.0
        %1105 = vmatpush1.msra.mxu0 0.0
        %1106 = vmatprep.subr.mxu0 0.0
        %1107 = vmatpush1.msra.mxu0 0.0
        %1108 = vmatprep.subr.mxu0 0.0
        %1109 = vmatpush1.msra.mxu0 0.0
        %1110 = vmatprep.subr.mxu0 0.0
        %1111 = vmatpush1.msra.mxu0 0.0
        %1112 = vmatprep.subr.mxu0 0.0
        %1113 = vmatpush1.msra.mxu0 0.0
        %1114 = vmatprep.subr.mxu0 0.0
        %1115 = vmatpush1.msra.mxu0 0.0
        %1116 = vmatprep.mubr.f32.mxu0 0.0
        %1117 = vmatmul.mubr.f32.gmra.mrb[0].mxu0 %v952
        %v1118 = vpop.f32.mrb[0].mxu0
        %v1119 = vadd.f32 0.0, %v1118
        %v1120 = vpop.f32.mrb[0].mxu0
        %v1121 = vadd.f32 0.0, %v1120
        %1122 = vmatprep.mubr.f32.mxu0 0.0
        %1123 = vmatmul.mubr.f32.gmra.mrb[0].mxu0 %v955
        %v1124 = vpop.f32.mrb[0].mxu0
        %v1125 = vadd.f32 0.0, %v1124
        %v1126 = vpop.f32.mrb[0].mxu0
        %v1127 = vadd.f32 0.0, %v1126
        %1128 = vmatprep.mubr.f32.mxu0 0.0
        %1129 = vmatmul.mubr.f32.gmra.mrb[0].mxu0 %v958
        %v1130 = vpop.f32.mrb[0].mxu0
        %v1131 = vadd.f32 0.0, %v1130
        %v1132 = vpop.f32.mrb[0].mxu0
        %v1133 = vadd.f32 0.0, %v1132
        %1134 = vmatprep.mubr.f32.mxu0 0.0
        %1135 = vmatmul.mubr.f32.gmra.mrb[0].mxu0 %v961
        %v1136 = vpop.f32.mrb[0].mxu0
        %v1137 = vadd.f32 0.0, %v1136
        %v1138 = vpop.f32.mrb[0].mxu0
        %v1139 = vadd.f32 0.0, %v1138
        %1140 = vdwg.mxu0
        %1141 = vmatprep.subr.mxu0 0.0
        %1142 = vmatpush1.msra.mxu0 %v945
        %1143 = vmatprep.subr.mxu0 0.0
        %1144 = vmatpush1.msra.mxu0 0.0
        %1145 = vmatprep.subr.mxu0 0.0
        %1146 = vmatpush1.msra.mxu0 0.0
        %1147 = vmatprep.subr.mxu0 0.0
        %1148 = vmatpush1.msra.mxu0 0.0
        %1149 = vmatprep.subr.mxu0 0.0
        %1150 = vmatpush1.msra.mxu0 0.0
        %1151 = vmatprep.subr.mxu0 0.0
        %1152 = vmatpush1.msra.mxu0 0.0
        %1153 = vmatprep.subr.mxu0 0.0
        %1154 = vmatpush1.msra.mxu0 0.0
        %1155 = vmatprep.subr.mxu0 0.0
        %1156 = vmatpush1.msra.mxu0 0.0
        %1157 = vmatprep.subr.mxu0 0.0
        %1158 = vmatpush1.msra.mxu0 0.0
        %1159 = vmatprep.subr.mxu0 0.0
        %1160 = vmatpush1.msra.mxu0 0.0
        %1161 = vmatprep.subr.mxu0 0.0
        %1162 = vmatpush1.msra.mxu0 0.0
        %1163 = vmatprep.subr.mxu0 0.0
        %1164 = vmatpush1.msra.mxu0 0.0
        %1165 = vmatprep.subr.mxu0 0.0
        %1166 = vmatpush1.msra.mxu0 0.0
        %1167 = vmatprep.subr.mxu0 0.0
        %1168 = vmatpush1.msra.mxu0 0.0
        %1169 = vmatprep.subr.mxu0 0.0
        %1170 = vmatpush1.msra.mxu0 0.0
        %1171 = vmatprep.subr.mxu0 0.0
        %1172 = vmatpush1.msra.mxu0 0.0
        %1173 = vmatprep.subr.mxu0 0.0
        %1174 = vmatpush1.msra.mxu0 0.0
        %1175 = vmatprep.subr.mxu0 0.0
        %1176 = vmatpush1.msra.mxu0 0.0
        %1177 = vmatprep.subr.mxu0 0.0
        %1178 = vmatpush1.msra.mxu0 0.0
        %1179 = vmatprep.subr.mxu0 0.0
        %1180 = vmatpush1.msra.mxu0 0.0
        %1181 = vmatprep.subr.mxu0 0.0
        %1182 = vmatpush1.msra.mxu0 0.0
        %1183 = vmatprep.subr.mxu0 0.0
        %1184 = vmatpush1.msra.mxu0 0.0
        %1185 = vmatprep.subr.mxu0 0.0
        %1186 = vmatpush1.msra.mxu0 0.0
        %1187 = vmatprep.subr.mxu0 0.0
        %1188 = vmatpush1.msra.mxu0 0.0
        %1189 = vmatprep.subr.mxu0 0.0
        %1190 = vmatpush1.msra.mxu0 0.0
        %1191 = vmatprep.subr.mxu0 0.0
        %1192 = vmatpush1.msra.mxu0 0.0
        %1193 = vmatprep.subr.mxu0 0.0
        %1194 = vmatpush1.msra.mxu0 0.0
        %1195 = vmatprep.subr.mxu0 0.0
        %1196 = vmatpush1.msra.mxu0 0.0
        %1197 = vmatprep.subr.mxu0 0.0
        %1198 = vmatpush1.msra.mxu0 0.0
        %1199 = vmatprep.subr.mxu0 0.0
        %1200 = vmatpush1.msra.mxu0 0.0
        %1201 = vmatprep.subr.mxu0 0.0
        %1202 = vmatpush1.msra.mxu0 0.0
        %1203 = vmatprep.subr.mxu0 0.0
        %1204 = vmatpush1.msra.mxu0 0.0
        %1205 = vmatprep.mubr.f32.mxu0 0.0
        %1206 = vmatmul.mubr.f32.gmra.mrb[0].mxu0 %v952
        %v1207 = vpop.f32.mrb[0].mxu0
        %v1208 = vadd.f32 0.0, %v1207
        %v1209 = vpop.f32.mrb[0].mxu0
        %1210 = vmatprep.mubr.f32.mxu0 0.0
        %1211 = vmatmul.mubr.f32.gmra.mrb[0].mxu0 %v955
        %v1212 = vpop.f32.mrb[0].mxu0
        %v1213 = vadd.f32 0.0, %v1212
        %v1214 = vpop.f32.mrb[0].mxu0
        %1215 = vmatprep.mubr.f32.mxu0 0.0
        %1216 = vmatmul.mubr.f32.gmra.mrb[0].mxu0 %v958
        %v1217 = vpop.f32.mrb[0].mxu0
        %v1218 = vadd.f32 0.0, %v1217
        %v1219 = vpop.f32.mrb[0].mxu0
        %1220 = vmatprep.mubr.f32.mxu0 0.0
        %1221 = vmatmul.mubr.f32.gmra.mrb[0].mxu0 %v961
        %v1222 = vpop.f32.mrb[0].mxu0
        %v1223 = vadd.f32 0.0, %v1222
        %v1224 = vpop.f32.mrb[0].mxu0
        %1225 = vdwg.mxu0
        %v1226 = vadd.f32 %v727, %v1030
        %v1227 = vadd.f32 %v729, %v1032
        %v1228 = vadd.f32 %v816, %v1119
        %v1229 = vadd.f32 %v818, %v1121
        %v1230 = vadd.f32 %v905, %v1208
        %v1231 = vadd.f32 %v733, %v1036
        %v1232 = vadd.f32 %v735, %v1038
        %v1233 = vadd.f32 %v822, %v1125
        %v1234 = vadd.f32 %v824, %v1127
        %v1235 = vadd.f32 %v910, %v1213
        %v1236 = vadd.f32 %v739, %v1042
        %v1237 = vadd.f32 %v741, %v1044
        %v1238 = vadd.f32 %v828, %v1131
        %v1239 = vadd.f32 %v830, %v1133
        %v1240 = vadd.f32 %v915, %v1218
        %v1241 = vadd.f32 %v745, %v1048
        %v1242 = vadd.f32 %v747, %v1050
        %v1243 = vadd.f32 %v834, %v1137
        %v1244 = vadd.f32 %v836, %v1139
        %v1245 = vadd.f32 %v920, %v1223
        %s1246 = scalar_lea.vmem %s1, 96
        %v1247 = vld [vmem:[%s1246] sm:$0xff]
        %v1248 = vld [vmem:[%s1246 + $0x8] sm:$0xff]
        %v1249 = vld [vmem:[%s1246 + $0x10] sm:$0xff]
        %v1250 = vld [vmem:[%s1246 + $0x18] sm:$0xff]
        %1251 = vrot.lane.b32.xlu0 %v332, 118
        %v1252 = vpop.permute.xlu0 %1251
        %1253 = vrot.lane.b32.xlu0 %v333, 118
        %v1254 = vpop.permute.xlu0 %1253
        %1255 = vrot.lane.b32.xlu0 %v334, 118
        %v1256 = vpop.permute.xlu0 %1255
        %1257 = vrot.lane.b32.xlu0 %v335, 118
        %v1258 = vpop.permute.xlu0 %1257
        %1259 = vrot.lane.b32.xlu0 %v336, 118
        %v1260 = vpop.permute.xlu0 %1259
        %1261 = vrot.lane.b32.xlu0 %v342, 118
        %v1262 = vpop.permute.xlu0 %1261
        %vm1263 = vcmask 965632
        %v1264 = vsel %vm1263, %v1252, %v1254
        %v1265 = vsel %vm1263, %v1254, %v1256
        %v1266 = vsel %vm1263, %v1256, %v1258
        %v1267 = vsel %vm1263, %v1258, %v1260
        %v1268 = vsel %vm1263, %v1260, %v1262
        %v1275 = vsel %vm372, %v1247, 0
        %v1278 = vsel %vm372, %v1248, 0
        %v1281 = vsel %vm372, %v1249, 0
        %v1284 = vsel %vm372, %v1250, 0
        %1286 = vmatprep.subr.mxu0 %v1265
        %1287 = vmatpush1.msra.mxu0 %v1264
        %1288 = vmatprep.subr.mxu0 0.0
        %1289 = vmatpush1.msra.mxu0 0.0
        %1290 = vmatprep.subr.mxu0 0.0
        %1291 = vmatpush1.msra.mxu0 0.0
        %1292 = vmatprep.subr.mxu0 0.0
        %1293 = vmatpush1.msra.mxu0 0.0
        %1294 = vmatprep.subr.mxu0 0.0
        %1295 = vmatpush1.msra.mxu0 0.0
        %1296 = vmatprep.subr.mxu0 0.0
        %1297 = vmatpush1.msra.mxu0 0.0
        %1298 = vmatprep.subr.mxu0 0.0
        %1299 = vmatpush1.msra.mxu0 0.0
        %1300 = vmatprep.subr.mxu0 0.0
        %1301 = vmatpush1.msra.mxu0 0.0
        %1302 = vmatprep.subr.mxu0 0.0
        %1303 = vmatpush1.msra.mxu0 0.0
        %1304 = vmatprep.subr.mxu0 0.0
        %1305 = vmatpush1.msra.mxu0 0.0
        %1306 = vmatprep.subr.mxu0 0.0
        %1307 = vmatpush1.msra.mxu0 0.0
        %1308 = vmatprep.subr.mxu0 0.0
        %1309 = vmatpush1.msra.mxu0 0.0
        %1310 = vmatprep.subr.mxu0 0.0
        %1311 = vmatpush1.msra.mxu0 0.0
        %1312 = vmatprep.subr.mxu0 0.0
        %1313 = vmatpush1.msra.mxu0 0.0
        %1314 = vmatprep.subr.mxu0 0.0
        %1315 = vmatpush1.msra.mxu0 0.0
        %1316 = vmatprep.subr.mxu0 0.0
        %1317 = vmatpush1.msra.mxu0 0.0
        %1318 = vmatprep.subr.mxu0 0.0
        %1319 = vmatpush1.msra.mxu0 0.0
        %1320 = vmatprep.subr.mxu0 0.0
        %1321 = vmatpush1.msra.mxu0 0.0
        %1322 = vmatprep.subr.mxu0 0.0
        %1323 = vmatpush1.msra.mxu0 0.0
        %1324 = vmatprep.subr.mxu0 0.0
        %1325 = vmatpush1.msra.mxu0 0.0
        %1326 = vmatprep.subr.mxu0 0.0
        %1327 = vmatpush1.msra.mxu0 0.0
        %1328 = vmatprep.subr.mxu0 0.0
        %1329 = vmatpush1.msra.mxu0 0.0
        %1330 = vmatprep.subr.mxu0 0.0
        %1331 = vmatpush1.msra.mxu0 0.0
        %1332 = vmatprep.subr.mxu0 0.0
        %1333 = vmatpush1.msra.mxu0 0.0
        %1334 = vmatprep.subr.mxu0 0.0
        %1335 = vmatpush1.msra.mxu0 0.0
        %1336 = vmatprep.subr.mxu0 0.0
        %1337 = vmatpush1.msra.mxu0 0.0
        %1338 = vmatprep.subr.mxu0 0.0
        %1339 = vmatpush1.msra.mxu0 0.0
        %1340 = vmatprep.subr.mxu0 0.0
        %1341 = vmatpush1.msra.mxu0 0.0
        %1342 = vmatprep.subr.mxu0 0.0
        %1343 = vmatpush1.msra.mxu0 0.0
        %1344 = vmatprep.subr.mxu0 0.0
        %1345 = vmatpush1.msra.mxu0 0.0
        %1346 = vmatprep.subr.mxu0 0.0
        %1347 = vmatpush1.msra.mxu0 0.0
        %1348 = vmatprep.subr.mxu0 0.0
        %1349 = vmatpush1.msra.mxu0 0.0
        %1350 = vmatprep.mubr.f32.mxu0 0.0
        %1351 = vmatmul.mubr.f32.gmra.mrb[0].mxu0 %v1275
        %v1352 = vpop.f32.mrb[0].mxu0
        %v1353 = vadd.f32 0.0, %v1352
        %v1354 = vpop.f32.mrb[0].mxu0
        %v1355 = vadd.f32 0.0, %v1354
        %1356 = vmatprep.mubr.f32.mxu0 0.0
        %1357 = vmatmul.mubr.f32.gmra.mrb[0].mxu0 %v1278
        %v1358 = vpop.f32.mrb[0].mxu0
        %v1359 = vadd.f32 0.0, %v1358
        %v1360 = vpop.f32.mrb[0].mxu0
        %v1361 = vadd.f32 0.0, %v1360
        %1362 = vmatprep.mubr.f32.mxu0 0.0
        %1363 = vmatmul.mubr.f32.gmra.mrb[0].mxu0 %v1281
        %v1364 = vpop.f32.mrb[0].mxu0
        %v1365 = vadd.f32 0.0, %v1364
        %v1366 = vpop.f32.mrb[0].mxu0
        %v1367 = vadd.f32 0.0, %v1366
        %1368 = vmatprep.mubr.f32.mxu0 0.0
        %1369 = vmatmul.mubr.f32.gmra.mrb[0].mxu0 %v1284
        %v1370 = vpop.f32.mrb[0].mxu0
        %v1371 = vadd.f32 0.0, %v1370
        %v1372 = vpop.f32.mrb[0].mxu0
        %v1373 = vadd.f32 0.0, %v1372
        %1374 = vdwg.mxu0
        %1375 = vmatprep.subr.mxu0 %v1267
        %1376 = vmatpush1.msra.mxu0 %v1266
        %1377 = vmatprep.subr.mxu0 0.0
        %1378 = vmatpush1.msra.mxu0 0.0
        %1379 = vmatprep.subr.mxu0 0.0
        %1380 = vmatpush1.msra.mxu0 0.0
        %1381 = vmatprep.subr.mxu0 0.0
        %1382 = vmatpush1.msra.mxu0 0.0
        %1383 = vmatprep.subr.mxu0 0.0
        %1384 = vmatpush1.msra.mxu0 0.0
        %1385 = vmatprep.subr.mxu0 0.0
        %1386 = vmatpush1.msra.mxu0 0.0
        %1387 = vmatprep.subr.mxu0 0.0
        %1388 = vmatpush1.msra.mxu0 0.0
        %1389 = vmatprep.subr.mxu0 0.0
        %1390 = vmatpush1.msra.mxu0 0.0
        %1391 = vmatprep.subr.mxu0 0.0
        %1392 = vmatpush1.msra.mxu0 0.0
        %1393 = vmatprep.subr.mxu0 0.0
        %1394 = vmatpush1.msra.mxu0 0.0
        %1395 = vmatprep.subr.mxu0 0.0
        %1396 = vmatpush1.msra.mxu0 0.0
        %1397 = vmatprep.subr.mxu0 0.0
        %1398 = vmatpush1.msra.mxu0 0.0
        %1399 = vmatprep.subr.mxu0 0.0
        %1400 = vmatpush1.msra.mxu0 0.0
        %1401 = vmatprep.subr.mxu0 0.0
        %1402 = vmatpush1.msra.mxu0 0.0
        %1403 = vmatprep.subr.mxu0 0.0
        %1404 = vmatpush1.msra.mxu0 0.0
        %1405 = vmatprep.subr.mxu0 0.0
        %1406 = vmatpush1.msra.mxu0 0.0
        %1407 = vmatprep.subr.mxu0 0.0
        %1408 = vmatpush1.msra.mxu0 0.0
        %1409 = vmatprep.subr.mxu0 0.0
        %1410 = vmatpush1.msra.mxu0 0.0
        %1411 = vmatprep.subr.mxu0 0.0
        %1412 = vmatpush1.msra.mxu0 0.0
        %1413 = vmatprep.subr.mxu0 0.0
        %1414 = vmatpush1.msra.mxu0 0.0
        %1415 = vmatprep.subr.mxu0 0.0
        %1416 = vmatpush1.msra.mxu0 0.0
        %1417 = vmatprep.subr.mxu0 0.0
        %1418 = vmatpush1.msra.mxu0 0.0
        %1419 = vmatprep.subr.mxu0 0.0
        %1420 = vmatpush1.msra.mxu0 0.0
        %1421 = vmatprep.subr.mxu0 0.0
        %1422 = vmatpush1.msra.mxu0 0.0
        %1423 = vmatprep.subr.mxu0 0.0
        %1424 = vmatpush1.msra.mxu0 0.0
        %1425 = vmatprep.subr.mxu0 0.0
        %1426 = vmatpush1.msra.mxu0 0.0
        %1427 = vmatprep.subr.mxu0 0.0
        %1428 = vmatpush1.msra.mxu0 0.0
        %1429 = vmatprep.subr.mxu0 0.0
        %1430 = vmatpush1.msra.mxu0 0.0
        %1431 = vmatprep.subr.mxu0 0.0
        %1432 = vmatpush1.msra.mxu0 0.0
        %1433 = vmatprep.subr.mxu0 0.0
        %1434 = vmatpush1.msra.mxu0 0.0
        %1435 = vmatprep.subr.mxu0 0.0
        %1436 = vmatpush1.msra.mxu0 0.0
        %1437 = vmatprep.subr.mxu0 0.0
        %1438 = vmatpush1.msra.mxu0 0.0
        %1439 = vmatprep.mubr.f32.mxu0 0.0
        %1440 = vmatmul.mubr.f32.gmra.mrb[0].mxu0 %v1275
        %v1441 = vpop.f32.mrb[0].mxu0
        %v1442 = vadd.f32 0.0, %v1441
        %v1443 = vpop.f32.mrb[0].mxu0
        %v1444 = vadd.f32 0.0, %v1443
        %1445 = vmatprep.mubr.f32.mxu0 0.0
        %1446 = vmatmul.mubr.f32.gmra.mrb[0].mxu0 %v1278
        %v1447 = vpop.f32.mrb[0].mxu0
        %v1448 = vadd.f32 0.0, %v1447
        %v1449 = vpop.f32.mrb[0].mxu0
        %v1450 = vadd.f32 0.0, %v1449
        %1451 = vmatprep.mubr.f32.mxu0 0.0
        %1452 = vmatmul.mubr.f32.gmra.mrb[0].mxu0 %v1281
        %v1453 = vpop.f32.mrb[0].mxu0
        %v1454 = vadd.f32 0.0, %v1453
        %v1455 = vpop.f32.mrb[0].mxu0
        %v1456 = vadd.f32 0.0, %v1455
        %1457 = vmatprep.mubr.f32.mxu0 0.0
        %1458 = vmatmul.mubr.f32.gmra.mrb[0].mxu0 %v1284
        %v1459 = vpop.f32.mrb[0].mxu0
        %v1460 = vadd.f32 0.0, %v1459
        %v1461 = vpop.f32.mrb[0].mxu0
        %v1462 = vadd.f32 0.0, %v1461
        %1463 = vdwg.mxu0
        %1464 = vmatprep.subr.mxu0 0.0
        %1465 = vmatpush1.msra.mxu0 %v1268
        %1466 = vmatprep.subr.mxu0 0.0
        %1467 = vmatpush1.msra.mxu0 0.0
        %1468 = vmatprep.subr.mxu0 0.0
        %1469 = vmatpush1.msra.mxu0 0.0
        %1470 = vmatprep.subr.mxu0 0.0
        %1471 = vmatpush1.msra.mxu0 0.0
        %1472 = vmatprep.subr.mxu0 0.0
        %1473 = vmatpush1.msra.mxu0 0.0
        %1474 = vmatprep.subr.mxu0 0.0
        %1475 = vmatpush1.msra.mxu0 0.0
        %1476 = vmatprep.subr.mxu0 0.0
        %1477 = vmatpush1.msra.mxu0 0.0
        %1478 = vmatprep.subr.mxu0 0.0
        %1479 = vmatpush1.msra.mxu0 0.0
        %1480 = vmatprep.subr.mxu0 0.0
        %1481 = vmatpush1.msra.mxu0 0.0
        %1482 = vmatprep.subr.mxu0 0.0
        %1483 = vmatpush1.msra.mxu0 0.0
        %1484 = vmatprep.subr.mxu0 0.0
        %1485 = vmatpush1.msra.mxu0 0.0
        %1486 = vmatprep.subr.mxu0 0.0
        %1487 = vmatpush1.msra.mxu0 0.0
        %1488 = vmatprep.subr.mxu0 0.0
        %1489 = vmatpush1.msra.mxu0 0.0
        %1490 = vmatprep.subr.mxu0 0.0
        %1491 = vmatpush1.msra.mxu0 0.0
        %1492 = vmatprep.subr.mxu0 0.0
        %1493 = vmatpush1.msra.mxu0 0.0
        %1494 = vmatprep.subr.mxu0 0.0
        %1495 = vmatpush1.msra.mxu0 0.0
        %1496 = vmatprep.subr.mxu0 0.0
        %1497 = vmatpush1.msra.mxu0 0.0
        %1498 = vmatprep.subr.mxu0 0.0
        %1499 = vmatpush1.msra.mxu0 0.0
        %1500 = vmatprep.subr.mxu0 0.0
        %1501 = vmatpush1.msra.mxu0 0.0
        %1502 = vmatprep.subr.mxu0 0.0
        %1503 = vmatpush1.msra.mxu0 0.0
        %1504 = vmatprep.subr.mxu0 0.0
        %1505 = vmatpush1.msra.mxu0 0.0
        %1506 = vmatprep.subr.mxu0 0.0
        %1507 = vmatpush1.msra.mxu0 0.0
        %1508 = vmatprep.subr.mxu0 0.0
        %1509 = vmatpush1.msra.mxu0 0.0
        %1510 = vmatprep.subr.mxu0 0.0
        %1511 = vmatpush1.msra.mxu0 0.0
        %1512 = vmatprep.subr.mxu0 0.0
        %1513 = vmatpush1.msra.mxu0 0.0
        %1514 = vmatprep.subr.mxu0 0.0
        %1515 = vmatpush1.msra.mxu0 0.0
        %1516 = vmatprep.subr.mxu0 0.0
        %1517 = vmatpush1.msra.mxu0 0.0
        %1518 = vmatprep.subr.mxu0 0.0
        %1519 = vmatpush1.msra.mxu0 0.0
        %1520 = vmatprep.subr.mxu0 0.0
        %1521 = vmatpush1.msra.mxu0 0.0
        %1522 = vmatprep.subr.mxu0 0.0
        %1523 = vmatpush1.msra.mxu0 0.0
        %1524 = vmatprep.subr.mxu0 0.0
        %1525 = vmatpush1.msra.mxu0 0.0
        %1526 = vmatprep.subr.mxu0 0.0
        %1527 = vmatpush1.msra.mxu0 0.0
        %1528 = vmatprep.mubr.f32.mxu0 0.0
        %1529 = vmatmul.mubr.f32.gmra.mrb[0].mxu0 %v1275
        %v1530 = vpop.f32.mrb[0].mxu0
        %v1531 = vadd.f32 0.0, %v1530
        %v1532 = vpop.f32.mrb[0].mxu0
        %1533 = vmatprep.mubr.f32.mxu0 0.0
        %1534 = vmatmul.mubr.f32.gmra.mrb[0].mxu0 %v1278
        %v1535 = vpop.f32.mrb[0].mxu0
        %v1536 = vadd.f32 0.0, %v1535
        %v1537 = vpop.f32.mrb[0].mxu0
        %1538 = vmatprep.mubr.f32.mxu0 0.0
        %1539 = vmatmul.mubr.f32.gmra.mrb[0].mxu0 %v1281
        %v1540 = vpop.f32.mrb[0].mxu0
        %v1541 = vadd.f32 0.0, %v1540
        %v1542 = vpop.f32.mrb[0].mxu0
        %1543 = vmatprep.mubr.f32.mxu0 0.0
        %1544 = vmatmul.mubr.f32.gmra.mrb[0].mxu0 %v1284
        %v1545 = vpop.f32.mrb[0].mxu0
        %v1546 = vadd.f32 0.0, %v1545
        %v1547 = vpop.f32.mrb[0].mxu0
        %1548 = vdwg.mxu0
        %v1549 = vadd.f32 %v1226, %v1353
        %v1550 = vadd.f32 %v1227, %v1355
        %v1551 = vadd.f32 %v1228, %v1442
        %v1552 = vadd.f32 %v1229, %v1444
        %v1553 = vadd.f32 %v1230, %v1531
        %v1554 = vadd.f32 %v1231, %v1359
        %v1555 = vadd.f32 %v1232, %v1361
        %v1556 = vadd.f32 %v1233, %v1448
        %v1557 = vadd.f32 %v1234, %v1450
        %v1558 = vadd.f32 %v1235, %v1536
        %v1559 = vadd.f32 %v1236, %v1365
        %v1560 = vadd.f32 %v1237, %v1367
        %v1561 = vadd.f32 %v1238, %v1454
        %v1562 = vadd.f32 %v1239, %v1456
        %v1563 = vadd.f32 %v1240, %v1541
        %v1564 = vadd.f32 %v1241, %v1371
        %v1565 = vadd.f32 %v1242, %v1373
        %v1566 = vadd.f32 %v1243, %v1460
        %v1567 = vadd.f32 %v1244, %v1462
        %v1568 = vadd.f32 %v1245, %v1546
        %s1569 = scalar_lea.vmem %s1, 128
        %v1570 = vld [vmem:[%s1569] sm:$0xff]
        %v1571 = vld [vmem:[%s1569 + $0x8] sm:$0xff]
        %v1572 = vld [vmem:[%s1569 + $0x10] sm:$0xff]
        %v1573 = vld [vmem:[%s1569 + $0x18] sm:$0xff]
        %1574 = vrot.lane.b32.xlu0 %v332, 117
        %v1575 = vpop.permute.xlu0 %1574
        %1576 = vrot.lane.b32.xlu0 %v333, 117
        %v1577 = vpop.permute.xlu0 %1576
        %1578 = vrot.lane.b32.xlu0 %v334, 117
        %v1579 = vpop.permute.xlu0 %1578
        %1580 = vrot.lane.b32.xlu0 %v335, 117
        %v1581 = vpop.permute.xlu0 %1580
        %1582 = vrot.lane.b32.xlu0 %v336, 117
        %v1583 = vpop.permute.xlu0 %1582
        %1584 = vrot.lane.b32.xlu0 %v342, 117
        %v1585 = vpop.permute.xlu0 %1584
        %vm1586 = vcmask 957440
        %v1587 = vsel %vm1586, %v1575, %v1577
        %v1588 = vsel %vm1586, %v1577, %v1579
        %v1589 = vsel %vm1586, %v1579, %v1581
        %v1590 = vsel %vm1586, %v1581, %v1583
        %v1591 = vsel %vm1586, %v1583, %v1585
        %v1598 = vsel %vm372, %v1570, 0
        %v1601 = vsel %vm372, %v1571, 0
        %v1604 = vsel %vm372, %v1572, 0
        %v1607 = vsel %vm372, %v1573, 0
        %1609 = vmatprep.subr.mxu0 %v1588
        %1610 = vmatpush1.msra.mxu0 %v1587
        %1611 = vmatprep.subr.mxu0 0.0
        %1612 = vmatpush1.msra.mxu0 0.0
        %1613 = vmatprep.subr.mxu0 0.0
        %1614 = vmatpush1.msra.mxu0 0.0
        %1615 = vmatprep.subr.mxu0 0.0
        %1616 = vmatpush1.msra.mxu0 0.0
        %1617 = vmatprep.subr.mxu0 0.0
        %1618 = vmatpush1.msra.mxu0 0.0
        %1619 = vmatprep.subr.mxu0 0.0
        %1620 = vmatpush1.msra.mxu0 0.0
        %1621 = vmatprep.subr.mxu0 0.0
        %1622 = vmatpush1.msra.mxu0 0.0
        %1623 = vmatprep.subr.mxu0 0.0
        %1624 = vmatpush1.msra.mxu0 0.0
        %1625 = vmatprep.subr.mxu0 0.0
        %1626 = vmatpush1.msra.mxu0 0.0
        %1627 = vmatprep.subr.mxu0 0.0
        %1628 = vmatpush1.msra.mxu0 0.0
        %1629 = vmatprep.subr.mxu0 0.0
        %1630 = vmatpush1.msra.mxu0 0.0
        %1631 = vmatprep.subr.mxu0 0.0
        %1632 = vmatpush1.msra.mxu0 0.0
        %1633 = vmatprep.subr.mxu0 0.0
        %1634 = vmatpush1.msra.mxu0 0.0
        %1635 = vmatprep.subr.mxu0 0.0
        %1636 = vmatpush1.msra.mxu0 0.0
        %1637 = vmatprep.subr.mxu0 0.0
        %1638 = vmatpush1.msra.mxu0 0.0
        %1639 = vmatprep.subr.mxu0 0.0
        %1640 = vmatpush1.msra.mxu0 0.0
        %1641 = vmatprep.subr.mxu0 0.0
        %1642 = vmatpush1.msra.mxu0 0.0
        %1643 = vmatprep.subr.mxu0 0.0
        %1644 = vmatpush1.msra.mxu0 0.0
        %1645 = vmatprep.subr.mxu0 0.0
        %1646 = vmatpush1.msra.mxu0 0.0
        %1647 = vmatprep.subr.mxu0 0.0
        %1648 = vmatpush1.msra.mxu0 0.0
        %1649 = vmatprep.subr.mxu0 0.0
        %1650 = vmatpush1.msra.mxu0 0.0
        %1651 = vmatprep.subr.mxu0 0.0
        %1652 = vmatpush1.msra.mxu0 0.0
        %1653 = vmatprep.subr.mxu0 0.0
        %1654 = vmatpush1.msra.mxu0 0.0
        %1655 = vmatprep.subr.mxu0 0.0
        %1656 = vmatpush1.msra.mxu0 0.0
        %1657 = vmatprep.subr.mxu0 0.0
        %1658 = vmatpush1.msra.mxu0 0.0
        %1659 = vmatprep.subr.mxu0 0.0
        %1660 = vmatpush1.msra.mxu0 0.0
        %1661 = vmatprep.subr.mxu0 0.0
        %1662 = vmatpush1.msra.mxu0 0.0
        %1663 = vmatprep.subr.mxu0 0.0
        %1664 = vmatpush1.msra.mxu0 0.0
        %1665 = vmatprep.subr.mxu0 0.0
        %1666 = vmatpush1.msra.mxu0 0.0
        %1667 = vmatprep.subr.mxu0 0.0
        %1668 = vmatpush1.msra.mxu0 0.0
        %1669 = vmatprep.subr.mxu0 0.0
        %1670 = vmatpush1.msra.mxu0 0.0
        %1671 = vmatprep.subr.mxu0 0.0
        %1672 = vmatpush1.msra.mxu0 0.0
        %1673 = vmatprep.mubr.f32.mxu0 0.0
        %1674 = vmatmul.mubr.f32.gmra.mrb[0].mxu0 %v1598
        %v1675 = vpop.f32.mrb[0].mxu0
        %v1676 = vadd.f32 0.0, %v1675
        %v1677 = vpop.f32.mrb[0].mxu0
        %v1678 = vadd.f32 0.0, %v1677
        %1679 = vmatprep.mubr.f32.mxu0 0.0
        %1680 = vmatmul.mubr.f32.gmra.mrb[0].mxu0 %v1601
        %v1681 = vpop.f32.mrb[0].mxu0
        %v1682 = vadd.f32 0.0, %v1681
        %v1683 = vpop.f32.mrb[0].mxu0
        %v1684 = vadd.f32 0.0, %v1683
        %1685 = vmatprep.mubr.f32.mxu0 0.0
        %1686 = vmatmul.mubr.f32.gmra.mrb[0].mxu0 %v1604
        %v1687 = vpop.f32.mrb[0].mxu0
        %v1688 = vadd.f32 0.0, %v1687
        %v1689 = vpop.f32.mrb[0].mxu0
        %v1690 = vadd.f32 0.0, %v1689
        %1691 = vmatprep.mubr.f32.mxu0 0.0
        %1692 = vmatmul.mubr.f32.gmra.mrb[0].mxu0 %v1607
        %v1693 = vpop.f32.mrb[0].mxu0
        %v1694 = vadd.f32 0.0, %v1693
        %v1695 = vpop.f32.mrb[0].mxu0
        %v1696 = vadd.f32 0.0, %v1695
        %1697 = vdwg.mxu0
        %1698 = vmatprep.subr.mxu0 %v1590
        %1699 = vmatpush1.msra.mxu0 %v1589
        %1700 = vmatprep.subr.mxu0 0.0
        %1701 = vmatpush1.msra.mxu0 0.0
        %1702 = vmatprep.subr.mxu0 0.0
        %1703 = vmatpush1.msra.mxu0 0.0
        %1704 = vmatprep.subr.mxu0 0.0
        %1705 = vmatpush1.msra.mxu0 0.0
        %1706 = vmatprep.subr.mxu0 0.0
        %1707 = vmatpush1.msra.mxu0 0.0
        %1708 = vmatprep.subr.mxu0 0.0
        %1709 = vmatpush1.msra.mxu0 0.0
        %1710 = vmatprep.subr.mxu0 0.0
        %1711 = vmatpush1.msra.mxu0 0.0
        %1712 = vmatprep.subr.mxu0 0.0
        %1713 = vmatpush1.msra.mxu0 0.0
        %1714 = vmatprep.subr.mxu0 0.0
        %1715 = vmatpush1.msra.mxu0 0.0
        %1716 = vmatprep.subr.mxu0 0.0
        %1717 = vmatpush1.msra.mxu0 0.0
        %1718 = vmatprep.subr.mxu0 0.0
        %1719 = vmatpush1.msra.mxu0 0.0
        %1720 = vmatprep.subr.mxu0 0.0
        %1721 = vmatpush1.msra.mxu0 0.0
        %1722 = vmatprep.subr.mxu0 0.0
        %1723 = vmatpush1.msra.mxu0 0.0
        %1724 = vmatprep.subr.mxu0 0.0
        %1725 = vmatpush1.msra.mxu0 0.0
        %1726 = vmatprep.subr.mxu0 0.0
        %1727 = vmatpush1.msra.mxu0 0.0
        %1728 = vmatprep.subr.mxu0 0.0
        %1729 = vmatpush1.msra.mxu0 0.0
        %1730 = vmatprep.subr.mxu0 0.0
        %1731 = vmatpush1.msra.mxu0 0.0
        %1732 = vmatprep.subr.mxu0 0.0
        %1733 = vmatpush1.msra.mxu0 0.0
        %1734 = vmatprep.subr.mxu0 0.0
        %1735 = vmatpush1.msra.mxu0 0.0
        %1736 = vmatprep.subr.mxu0 0.0
        %1737 = vmatpush1.msra.mxu0 0.0
        %1738 = vmatprep.subr.mxu0 0.0
        %1739 = vmatpush1.msra.mxu0 0.0
        %1740 = vmatprep.subr.mxu0 0.0
        %1741 = vmatpush1.msra.mxu0 0.0
        %1742 = vmatprep.subr.mxu0 0.0
        %1743 = vmatpush1.msra.mxu0 0.0
        %1744 = vmatprep.subr.mxu0 0.0
        %1745 = vmatpush1.msra.mxu0 0.0
        %1746 = vmatprep.subr.mxu0 0.0
        %1747 = vmatpush1.msra.mxu0 0.0
        %1748 = vmatprep.subr.mxu0 0.0
        %1749 = vmatpush1.msra.mxu0 0.0
        %1750 = vmatprep.subr.mxu0 0.0
        %1751 = vmatpush1.msra.mxu0 0.0
        %1752 = vmatprep.subr.mxu0 0.0
        %1753 = vmatpush1.msra.mxu0 0.0
        %1754 = vmatprep.subr.mxu0 0.0
        %1755 = vmatpush1.msra.mxu0 0.0
        %1756 = vmatprep.subr.mxu0 0.0
        %1757 = vmatpush1.msra.mxu0 0.0
        %1758 = vmatprep.subr.mxu0 0.0
        %1759 = vmatpush1.msra.mxu0 0.0
        %1760 = vmatprep.subr.mxu0 0.0
        %1761 = vmatpush1.msra.mxu0 0.0
        %1762 = vmatprep.mubr.f32.mxu0 0.0
        %1763 = vmatmul.mubr.f32.gmra.mrb[0].mxu0 %v1598
        %v1764 = vpop.f32.mrb[0].mxu0
        %v1765 = vadd.f32 0.0, %v1764
        %v1766 = vpop.f32.mrb[0].mxu0
        %v1767 = vadd.f32 0.0, %v1766
        %1768 = vmatprep.mubr.f32.mxu0 0.0
        %1769 = vmatmul.mubr.f32.gmra.mrb[0].mxu0 %v1601
        %v1770 = vpop.f32.mrb[0].mxu0
        %v1771 = vadd.f32 0.0, %v1770
        %v1772 = vpop.f32.mrb[0].mxu0
        %v1773 = vadd.f32 0.0, %v1772
        %1774 = vmatprep.mubr.f32.mxu0 0.0
        %1775 = vmatmul.mubr.f32.gmra.mrb[0].mxu0 %v1604
        %v1776 = vpop.f32.mrb[0].mxu0
        %v1777 = vadd.f32 0.0, %v1776
        %v1778 = vpop.f32.mrb[0].mxu0
        %v1779 = vadd.f32 0.0, %v1778
        %1780 = vmatprep.mubr.f32.mxu0 0.0
        %1781 = vmatmul.mubr.f32.gmra.mrb[0].mxu0 %v1607
        %v1782 = vpop.f32.mrb[0].mxu0
        %v1783 = vadd.f32 0.0, %v1782
        %v1784 = vpop.f32.mrb[0].mxu0
        %v1785 = vadd.f32 0.0, %v1784
        %1786 = vdwg.mxu0
        %1787 = vmatprep.subr.mxu0 0.0
        %1788 = vmatpush1.msra.mxu0 %v1591
        %1789 = vmatprep.subr.mxu0 0.0
        %1790 = vmatpush1.msra.mxu0 0.0
        %1791 = vmatprep.subr.mxu0 0.0
        %1792 = vmatpush1.msra.mxu0 0.0
        %1793 = vmatprep.subr.mxu0 0.0
        %1794 = vmatpush1.msra.mxu0 0.0
        %1795 = vmatprep.subr.mxu0 0.0
        %1796 = vmatpush1.msra.mxu0 0.0
        %1797 = vmatprep.subr.mxu0 0.0
        %1798 = vmatpush1.msra.mxu0 0.0
        %1799 = vmatprep.subr.mxu0 0.0
        %1800 = vmatpush1.msra.mxu0 0.0
        %1801 = vmatprep.subr.mxu0 0.0
        %1802 = vmatpush1.msra.mxu0 0.0
        %1803 = vmatprep.subr.mxu0 0.0
        %1804 = vmatpush1.msra.mxu0 0.0
        %1805 = vmatprep.subr.mxu0 0.0
        %1806 = vmatpush1.msra.mxu0 0.0
        %1807 = vmatprep.subr.mxu0 0.0
        %1808 = vmatpush1.msra.mxu0 0.0
        %1809 = vmatprep.subr.mxu0 0.0
        %1810 = vmatpush1.msra.mxu0 0.0
        %1811 = vmatprep.subr.mxu0 0.0
        %1812 = vmatpush1.msra.mxu0 0.0
        %1813 = vmatprep.subr.mxu0 0.0
        %1814 = vmatpush1.msra.mxu0 0.0
        %1815 = vmatprep.subr.mxu0 0.0
        %1816 = vmatpush1.msra.mxu0 0.0
        %1817 = vmatprep.subr.mxu0 0.0
        %1818 = vmatpush1.msra.mxu0 0.0
        %1819 = vmatprep.subr.mxu0 0.0
        %1820 = vmatpush1.msra.mxu0 0.0
        %1821 = vmatprep.subr.mxu0 0.0
        %1822 = vmatpush1.msra.mxu0 0.0
        %1823 = vmatprep.subr.mxu0 0.0
        %1824 = vmatpush1.msra.mxu0 0.0
        %1825 = vmatprep.subr.mxu0 0.0
        %1826 = vmatpush1.msra.mxu0 0.0
        %1827 = vmatprep.subr.mxu0 0.0
        %1828 = vmatpush1.msra.mxu0 0.0
        %1829 = vmatprep.subr.mxu0 0.0
        %1830 = vmatpush1.msra.mxu0 0.0
        %1831 = vmatprep.subr.mxu0 0.0
        %1832 = vmatpush1.msra.mxu0 0.0
        %1833 = vmatprep.subr.mxu0 0.0
        %1834 = vmatpush1.msra.mxu0 0.0
        %1835 = vmatprep.subr.mxu0 0.0
        %1836 = vmatpush1.msra.mxu0 0.0
        %1837 = vmatprep.subr.mxu0 0.0
        %1838 = vmatpush1.msra.mxu0 0.0
        %1839 = vmatprep.subr.mxu0 0.0
        %1840 = vmatpush1.msra.mxu0 0.0
        %1841 = vmatprep.subr.mxu0 0.0
        %1842 = vmatpush1.msra.mxu0 0.0
        %1843 = vmatprep.subr.mxu0 0.0
        %1844 = vmatpush1.msra.mxu0 0.0
        %1845 = vmatprep.subr.mxu0 0.0
        %1846 = vmatpush1.msra.mxu0 0.0
        %1847 = vmatprep.subr.mxu0 0.0
        %1848 = vmatpush1.msra.mxu0 0.0
        %1849 = vmatprep.subr.mxu0 0.0
        %1850 = vmatpush1.msra.mxu0 0.0
        %1851 = vmatprep.mubr.f32.mxu0 0.0
        %1852 = vmatmul.mubr.f32.gmra.mrb[0].mxu0 %v1598
        %v1853 = vpop.f32.mrb[0].mxu0
        %v1854 = vadd.f32 0.0, %v1853
        %v1855 = vpop.f32.mrb[0].mxu0
        %1856 = vmatprep.mubr.f32.mxu0 0.0
        %1857 = vmatmul.mubr.f32.gmra.mrb[0].mxu0 %v1601
        %v1858 = vpop.f32.mrb[0].mxu0
        %v1859 = vadd.f32 0.0, %v1858
        %v1860 = vpop.f32.mrb[0].mxu0
        %1861 = vmatprep.mubr.f32.mxu0 0.0
        %1862 = vmatmul.mubr.f32.gmra.mrb[0].mxu0 %v1604
        %v1863 = vpop.f32.mrb[0].mxu0
        %v1864 = vadd.f32 0.0, %v1863
        %v1865 = vpop.f32.mrb[0].mxu0
        %1866 = vmatprep.mubr.f32.mxu0 0.0
        %1867 = vmatmul.mubr.f32.gmra.mrb[0].mxu0 %v1607
        %v1868 = vpop.f32.mrb[0].mxu0
        %v1869 = vadd.f32 0.0, %v1868
        %v1870 = vpop.f32.mrb[0].mxu0
        %1871 = vdwg.mxu0
        %v1872 = vadd.f32 %v1549, %v1676
        %v1873 = vadd.f32 %v1550, %v1678
        %v1874 = vadd.f32 %v1551, %v1765
        %v1875 = vadd.f32 %v1552, %v1767
        %v1876 = vadd.f32 %v1553, %v1854
        %v1877 = vadd.f32 %v1554, %v1682
        %v1878 = vadd.f32 %v1555, %v1684
        %v1879 = vadd.f32 %v1556, %v1771
        %v1880 = vadd.f32 %v1557, %v1773
        %v1881 = vadd.f32 %v1558, %v1859
        %v1882 = vadd.f32 %v1559, %v1688
        %v1883 = vadd.f32 %v1560, %v1690
        %v1884 = vadd.f32 %v1561, %v1777
        %v1885 = vadd.f32 %v1562, %v1779
        %v1886 = vadd.f32 %v1563, %v1864
        %v1887 = vadd.f32 %v1564, %v1694
        %v1888 = vadd.f32 %v1565, %v1696
        %v1889 = vadd.f32 %v1566, %v1783
        %v1890 = vadd.f32 %v1567, %v1785
        %v1891 = vadd.f32 %v1568, %v1869
        %s1892 = scalar_lea.vmem %s1, 160
        %v1893 = vld [vmem:[%s1892] sm:$0xff]
        %v1894 = vld [vmem:[%s1892 + $0x8] sm:$0xff]
        %v1895 = vld [vmem:[%s1892 + $0x10] sm:$0xff]
        %v1896 = vld [vmem:[%s1892 + $0x18] sm:$0xff]
        %1897 = vrot.lane.b32.xlu0 %v332, 116
        %v1898 = vpop.permute.xlu0 %1897
        %1899 = vrot.lane.b32.xlu0 %v333, 116
        %v1900 = vpop.permute.xlu0 %1899
        %1901 = vrot.lane.b32.xlu0 %v334, 116
        %v1902 = vpop.permute.xlu0 %1901
        %1903 = vrot.lane.b32.xlu0 %v335, 116
        %v1904 = vpop.permute.xlu0 %1903
        %1905 = vrot.lane.b32.xlu0 %v336, 116
        %v1906 = vpop.permute.xlu0 %1905
        %1907 = vrot.lane.b32.xlu0 %v342, 116
        %v1908 = vpop.permute.xlu0 %1907
        %vm1909 = vcmask 949248
        %v1910 = vsel %vm1909, %v1898, %v1900
        %v1911 = vsel %vm1909, %v1900, %v1902
        %v1912 = vsel %vm1909, %v1902, %v1904
        %v1913 = vsel %vm1909, %v1904, %v1906
        %v1914 = vsel %vm1909, %v1906, %v1908
        %v1921 = vsel %vm372, %v1893, 0
        %v1924 = vsel %vm372, %v1894, 0
        %v1927 = vsel %vm372, %v1895, 0
        %v1930 = vsel %vm372, %v1896, 0
        %1932 = vmatprep.subr.mxu0 %v1911
        %1933 = vmatpush1.msra.mxu0 %v1910
        %1934 = vmatprep.subr.mxu0 0.0
        %1935 = vmatpush1.msra.mxu0 0.0
        %1936 = vmatprep.subr.mxu0 0.0
        %1937 = vmatpush1.msra.mxu0 0.0
        %1938 = vmatprep.subr.mxu0 0.0
        %1939 = vmatpush1.msra.mxu0 0.0
        %1940 = vmatprep.subr.mxu0 0.0
        %1941 = vmatpush1.msra.mxu0 0.0
        %1942 = vmatprep.subr.mxu0 0.0
        %1943 = vmatpush1.msra.mxu0 0.0
        %1944 = vmatprep.subr.mxu0 0.0
        %1945 = vmatpush1.msra.mxu0 0.0
        %1946 = vmatprep.subr.mxu0 0.0
        %1947 = vmatpush1.msra.mxu0 0.0
        %1948 = vmatprep.subr.mxu0 0.0
        %1949 = vmatpush1.msra.mxu0 0.0
        %1950 = vmatprep.subr.mxu0 0.0
        %1951 = vmatpush1.msra.mxu0 0.0
        %1952 = vmatprep.subr.mxu0 0.0
        %1953 = vmatpush1.msra.mxu0 0.0
        %1954 = vmatprep.subr.mxu0 0.0
        %1955 = vmatpush1.msra.mxu0 0.0
        %1956 = vmatprep.subr.mxu0 0.0
        %1957 = vmatpush1.msra.mxu0 0.0
        %1958 = vmatprep.subr.mxu0 0.0
        %1959 = vmatpush1.msra.mxu0 0.0
        %1960 = vmatprep.subr.mxu0 0.0
        %1961 = vmatpush1.msra.mxu0 0.0
        %1962 = vmatprep.subr.mxu0 0.0
        %1963 = vmatpush1.msra.mxu0 0.0
        %1964 = vmatprep.subr.mxu0 0.0
        %1965 = vmatpush1.msra.mxu0 0.0
        %1966 = vmatprep.subr.mxu0 0.0
        %1967 = vmatpush1.msra.mxu0 0.0
        %1968 = vmatprep.subr.mxu0 0.0
        %1969 = vmatpush1.msra.mxu0 0.0
        %1970 = vmatprep.subr.mxu0 0.0
        %1971 = vmatpush1.msra.mxu0 0.0
        %1972 = vmatprep.subr.mxu0 0.0
        %1973 = vmatpush1.msra.mxu0 0.0
        %1974 = vmatprep.subr.mxu0 0.0
        %1975 = vmatpush1.msra.mxu0 0.0
        %1976 = vmatprep.subr.mxu0 0.0
        %1977 = vmatpush1.msra.mxu0 0.0
        %1978 = vmatprep.subr.mxu0 0.0
        %1979 = vmatpush1.msra.mxu0 0.0
        %1980 = vmatprep.subr.mxu0 0.0
        %1981 = vmatpush1.msra.mxu0 0.0
        %1982 = vmatprep.subr.mxu0 0.0
        %1983 = vmatpush1.msra.mxu0 0.0
        %1984 = vmatprep.subr.mxu0 0.0
        %1985 = vmatpush1.msra.mxu0 0.0
        %1986 = vmatprep.subr.mxu0 0.0
        %1987 = vmatpush1.msra.mxu0 0.0
        %1988 = vmatprep.subr.mxu0 0.0
        %1989 = vmatpush1.msra.mxu0 0.0
        %1990 = vmatprep.subr.mxu0 0.0
        %1991 = vmatpush1.msra.mxu0 0.0
        %1992 = vmatprep.subr.mxu0 0.0
        %1993 = vmatpush1.msra.mxu0 0.0
        %1994 = vmatprep.subr.mxu0 0.0
        %1995 = vmatpush1.msra.mxu0 0.0
        %1996 = vmatprep.mubr.f32.mxu0 0.0
        %1997 = vmatmul.mubr.f32.gmra.mrb[0].mxu0 %v1921
        %v1998 = vpop.f32.mrb[0].mxu0
        %v1999 = vadd.f32 0.0, %v1998
        %v2000 = vpop.f32.mrb[0].mxu0
        %v2001 = vadd.f32 0.0, %v2000
        %2002 = vmatprep.mubr.f32.mxu0 0.0
        %2003 = vmatmul.mubr.f32.gmra.mrb[0].mxu0 %v1924
        %v2004 = vpop.f32.mrb[0].mxu0
        %v2005 = vadd.f32 0.0, %v2004
        %v2006 = vpop.f32.mrb[0].mxu0
        %v2007 = vadd.f32 0.0, %v2006
        %2008 = vmatprep.mubr.f32.mxu0 0.0
        %2009 = vmatmul.mubr.f32.gmra.mrb[0].mxu0 %v1927
        %v2010 = vpop.f32.mrb[0].mxu0
        %v2011 = vadd.f32 0.0, %v2010
        %v2012 = vpop.f32.mrb[0].mxu0
        %v2013 = vadd.f32 0.0, %v2012
        %2014 = vmatprep.mubr.f32.mxu0 0.0
        %2015 = vmatmul.mubr.f32.gmra.mrb[0].mxu0 %v1930
        %v2016 = vpop.f32.mrb[0].mxu0
        %v2017 = vadd.f32 0.0, %v2016
        %v2018 = vpop.f32.mrb[0].mxu0
        %v2019 = vadd.f32 0.0, %v2018
        %2020 = vdwg.mxu0
        %2021 = vmatprep.subr.mxu0 %v1913
        %2022 = vmatpush1.msra.mxu0 %v1912
        %2023 = vmatprep.subr.mxu0 0.0
        %2024 = vmatpush1.msra.mxu0 0.0
        %2025 = vmatprep.subr.mxu0 0.0
        %2026 = vmatpush1.msra.mxu0 0.0
        %2027 = vmatprep.subr.mxu0 0.0
        %2028 = vmatpush1.msra.mxu0 0.0
        %2029 = vmatprep.subr.mxu0 0.0
        %2030 = vmatpush1.msra.mxu0 0.0
        %2031 = vmatprep.subr.mxu0 0.0
        %2032 = vmatpush1.msra.mxu0 0.0
        %2033 = vmatprep.subr.mxu0 0.0
        %2034 = vmatpush1.msra.mxu0 0.0
        %2035 = vmatprep.subr.mxu0 0.0
        %2036 = vmatpush1.msra.mxu0 0.0
        %2037 = vmatprep.subr.mxu0 0.0
        %2038 = vmatpush1.msra.mxu0 0.0
        %2039 = vmatprep.subr.mxu0 0.0
        %2040 = vmatpush1.msra.mxu0 0.0
        %2041 = vmatprep.subr.mxu0 0.0
        %2042 = vmatpush1.msra.mxu0 0.0
        %2043 = vmatprep.subr.mxu0 0.0
        %2044 = vmatpush1.msra.mxu0 0.0
        %2045 = vmatprep.subr.mxu0 0.0
        %2046 = vmatpush1.msra.mxu0 0.0
        %2047 = vmatprep.subr.mxu0 0.0
        %2048 = vmatpush1.msra.mxu0 0.0
        %2049 = vmatprep.subr.mxu0 0.0
        %2050 = vmatpush1.msra.mxu0 0.0
        %2051 = vmatprep.subr.mxu0 0.0
        %2052 = vmatpush1.msra.mxu0 0.0
        %2053 = vmatprep.subr.mxu0 0.0
        %2054 = vmatpush1.msra.mxu0 0.0
        %2055 = vmatprep.subr.mxu0 0.0
        %2056 = vmatpush1.msra.mxu0 0.0
        %2057 = vmatprep.subr.mxu0 0.0
        %2058 = vmatpush1.msra.mxu0 0.0
        %2059 = vmatprep.subr.mxu0 0.0
        %2060 = vmatpush1.msra.mxu0 0.0
        %2061 = vmatprep.subr.mxu0 0.0
        %2062 = vmatpush1.msra.mxu0 0.0
        %2063 = vmatprep.subr.mxu0 0.0
        %2064 = vmatpush1.msra.mxu0 0.0
        %2065 = vmatprep.subr.mxu0 0.0
        %2066 = vmatpush1.msra.mxu0 0.0
        %2067 = vmatprep.subr.mxu0 0.0
        %2068 = vmatpush1.msra.mxu0 0.0
        %2069 = vmatprep.subr.mxu0 0.0
        %2070 = vmatpush1.msra.mxu0 0.0
        %2071 = vmatprep.subr.mxu0 0.0
        %2072 = vmatpush1.msra.mxu0 0.0
        %2073 = vmatprep.subr.mxu0 0.0
        %2074 = vmatpush1.msra.mxu0 0.0
        %2075 = vmatprep.subr.mxu0 0.0
        %2076 = vmatpush1.msra.mxu0 0.0
        %2077 = vmatprep.subr.mxu0 0.0
        %2078 = vmatpush1.msra.mxu0 0.0
        %2079 = vmatprep.subr.mxu0 0.0
        %2080 = vmatpush1.msra.mxu0 0.0
        %2081 = vmatprep.subr.mxu0 0.0
        %2082 = vmatpush1.msra.mxu0 0.0
        %2083 = vmatprep.subr.mxu0 0.0
        %2084 = vmatpush1.msra.mxu0 0.0
        %2085 = vmatprep.mubr.f32.mxu0 0.0
        %2086 = vmatmul.mubr.f32.gmra.mrb[0].mxu0 %v1921
        %v2087 = vpop.f32.mrb[0].mxu0
        %v2088 = vadd.f32 0.0, %v2087
        %v2089 = vpop.f32.mrb[0].mxu0
        %v2090 = vadd.f32 0.0, %v2089
        %2091 = vmatprep.mubr.f32.mxu0 0.0
        %2092 = vmatmul.mubr.f32.gmra.mrb[0].mxu0 %v1924
        %v2093 = vpop.f32.mrb[0].mxu0
        %v2094 = vadd.f32 0.0, %v2093
        %v2095 = vpop.f32.mrb[0].mxu0
        %v2096 = vadd.f32 0.0, %v2095
        %2097 = vmatprep.mubr.f32.mxu0 0.0
        %2098 = vmatmul.mubr.f32.gmra.mrb[0].mxu0 %v1927
        %v2099 = vpop.f32.mrb[0].mxu0
        %v2100 = vadd.f32 0.0, %v2099
        %v2101 = vpop.f32.mrb[0].mxu0
        %v2102 = vadd.f32 0.0, %v2101
        %2103 = vmatprep.mubr.f32.mxu0 0.0
        %2104 = vmatmul.mubr.f32.gmra.mrb[0].mxu0 %v1930
        %v2105 = vpop.f32.mrb[0].mxu0
        %v2106 = vadd.f32 0.0, %v2105
        %v2107 = vpop.f32.mrb[0].mxu0
        %v2108 = vadd.f32 0.0, %v2107
        %2109 = vdwg.mxu0
        %2110 = vmatprep.subr.mxu0 0.0
        %2111 = vmatpush1.msra.mxu0 %v1914
        %2112 = vmatprep.subr.mxu0 0.0
        %2113 = vmatpush1.msra.mxu0 0.0
        %2114 = vmatprep.subr.mxu0 0.0
        %2115 = vmatpush1.msra.mxu0 0.0
        %2116 = vmatprep.subr.mxu0 0.0
        %2117 = vmatpush1.msra.mxu0 0.0
        %2118 = vmatprep.subr.mxu0 0.0
        %2119 = vmatpush1.msra.mxu0 0.0
        %2120 = vmatprep.subr.mxu0 0.0
        %2121 = vmatpush1.msra.mxu0 0.0
        %2122 = vmatprep.subr.mxu0 0.0
        %2123 = vmatpush1.msra.mxu0 0.0
        %2124 = vmatprep.subr.mxu0 0.0
        %2125 = vmatpush1.msra.mxu0 0.0
        %2126 = vmatprep.subr.mxu0 0.0
        %2127 = vmatpush1.msra.mxu0 0.0
        %2128 = vmatprep.subr.mxu0 0.0
        %2129 = vmatpush1.msra.mxu0 0.0
        %2130 = vmatprep.subr.mxu0 0.0
        %2131 = vmatpush1.msra.mxu0 0.0
        %2132 = vmatprep.subr.mxu0 0.0
        %2133 = vmatpush1.msra.mxu0 0.0
        %2134 = vmatprep.subr.mxu0 0.0
        %2135 = vmatpush1.msra.mxu0 0.0
        %2136 = vmatprep.subr.mxu0 0.0
        %2137 = vmatpush1.msra.mxu0 0.0
        %2138 = vmatprep.subr.mxu0 0.0
        %2139 = vmatpush1.msra.mxu0 0.0
        %2140 = vmatprep.subr.mxu0 0.0
        %2141 = vmatpush1.msra.mxu0 0.0
        %2142 = vmatprep.subr.mxu0 0.0
        %2143 = vmatpush1.msra.mxu0 0.0
        %2144 = vmatprep.subr.mxu0 0.0
        %2145 = vmatpush1.msra.mxu0 0.0
        %2146 = vmatprep.subr.mxu0 0.0
        %2147 = vmatpush1.msra.mxu0 0.0
        %2148 = vmatprep.subr.mxu0 0.0
        %2149 = vmatpush1.msra.mxu0 0.0
        %2150 = vmatprep.subr.mxu0 0.0
        %2151 = vmatpush1.msra.mxu0 0.0
        %2152 = vmatprep.subr.mxu0 0.0
        %2153 = vmatpush1.msra.mxu0 0.0
        %2154 = vmatprep.subr.mxu0 0.0
        %2155 = vmatpush1.msra.mxu0 0.0
        %2156 = vmatprep.subr.mxu0 0.0
        %2157 = vmatpush1.msra.mxu0 0.0
        %2158 = vmatprep.subr.mxu0 0.0
        %2159 = vmatpush1.msra.mxu0 0.0
        %2160 = vmatprep.subr.mxu0 0.0
        %2161 = vmatpush1.msra.mxu0 0.0
        %2162 = vmatprep.subr.mxu0 0.0
        %2163 = vmatpush1.msra.mxu0 0.0
        %2164 = vmatprep.subr.mxu0 0.0
        %2165 = vmatpush1.msra.mxu0 0.0
        %2166 = vmatprep.subr.mxu0 0.0
        %2167 = vmatpush1.msra.mxu0 0.0
        %2168 = vmatprep.subr.mxu0 0.0
        %2169 = vmatpush1.msra.mxu0 0.0
        %2170 = vmatprep.subr.mxu0 0.0
        %2171 = vmatpush1.msra.mxu0 0.0
        %2172 = vmatprep.subr.mxu0 0.0
        %2173 = vmatpush1.msra.mxu0 0.0
        %2174 = vmatprep.mubr.f32.mxu0 0.0
        %2175 = vmatmul.mubr.f32.gmra.mrb[0].mxu0 %v1921
        %v2176 = vpop.f32.mrb[0].mxu0
        %v2177 = vadd.f32 0.0, %v2176
        %v2178 = vpop.f32.mrb[0].mxu0
        %2179 = vmatprep.mubr.f32.mxu0 0.0
        %2180 = vmatmul.mubr.f32.gmra.mrb[0].mxu0 %v1924
        %v2181 = vpop.f32.mrb[0].mxu0
        %v2182 = vadd.f32 0.0, %v2181
        %v2183 = vpop.f32.mrb[0].mxu0
        %2184 = vmatprep.mubr.f32.mxu0 0.0
        %2185 = vmatmul.mubr.f32.gmra.mrb[0].mxu0 %v1927
        %v2186 = vpop.f32.mrb[0].mxu0
        %v2187 = vadd.f32 0.0, %v2186
        %v2188 = vpop.f32.mrb[0].mxu0
        %2189 = vmatprep.mubr.f32.mxu0 0.0
        %2190 = vmatmul.mubr.f32.gmra.mrb[0].mxu0 %v1930
        %v2191 = vpop.f32.mrb[0].mxu0
        %v2192 = vadd.f32 0.0, %v2191
        %v2193 = vpop.f32.mrb[0].mxu0
        %2194 = vdwg.mxu0
        %v2195 = vadd.f32 %v1872, %v1999
        %v2196 = vadd.f32 %v1873, %v2001
        %v2197 = vadd.f32 %v1874, %v2088
        %v2198 = vadd.f32 %v1875, %v2090
        %v2199 = vadd.f32 %v1876, %v2177
        %v2200 = vadd.f32 %v1877, %v2005
        %v2201 = vadd.f32 %v1878, %v2007
        %v2202 = vadd.f32 %v1879, %v2094
        %v2203 = vadd.f32 %v1880, %v2096
        %v2204 = vadd.f32 %v1881, %v2182
        %v2205 = vadd.f32 %v1882, %v2011
        %v2206 = vadd.f32 %v1883, %v2013
        %v2207 = vadd.f32 %v1884, %v2100
        %v2208 = vadd.f32 %v1885, %v2102
        %v2209 = vadd.f32 %v1886, %v2187
        %v2210 = vadd.f32 %v1887, %v2017
        %v2211 = vadd.f32 %v1888, %v2019
        %v2212 = vadd.f32 %v1889, %v2106
        %v2213 = vadd.f32 %v1890, %v2108
        %v2214 = vadd.f32 %v1891, %v2192
        %s2215 = scalar_lea.vmem %s1, 192
        %v2216 = vld [vmem:[%s2215] sm:$0xff]
        %v2217 = vld [vmem:[%s2215 + $0x8] sm:$0xff]
        %v2218 = vld [vmem:[%s2215 + $0x10] sm:$0xff]
        %v2219 = vld [vmem:[%s2215 + $0x18] sm:$0xff]
        %2220 = vrot.lane.b32.xlu0 %v332, 108
        %v2221 = vpop.permute.xlu0 %2220
        %2222 = vrot.lane.b32.xlu0 %v333, 108
        %v2223 = vpop.permute.xlu0 %2222
        %2224 = vrot.lane.b32.xlu0 %v334, 108
        %v2225 = vpop.permute.xlu0 %2224
        %2226 = vrot.lane.b32.xlu0 %v335, 108
        %v2227 = vpop.permute.xlu0 %2226
        %2228 = vrot.lane.b32.xlu0 %v336, 108
        %v2229 = vpop.permute.xlu0 %2228
        %2230 = vrot.lane.b32.xlu0 %v342, 108
        %v2231 = vpop.permute.xlu0 %2230
        %vm2232 = vcmask 883712
        %v2233 = vsel %vm2232, %v2221, %v2223
        %v2234 = vsel %vm2232, %v2223, %v2225
        %v2235 = vsel %vm2232, %v2225, %v2227
        %v2236 = vsel %vm2232, %v2227, %v2229
        %v2237 = vsel %vm2232, %v2229, %v2231
        %v2244 = vsel %vm372, %v2216, 0
        %v2247 = vsel %vm372, %v2217, 0
        %v2250 = vsel %vm372, %v2218, 0
        %v2253 = vsel %vm372, %v2219, 0
        %2255 = vmatprep.subr.mxu0 %v2234
        %2256 = vmatpush1.msra.mxu0 %v2233
        %2257 = vmatprep.subr.mxu0 0.0
        %2258 = vmatpush1.msra.mxu0 0.0
        %2259 = vmatprep.subr.mxu0 0.0
        %2260 = vmatpush1.msra.mxu0 0.0
        %2261 = vmatprep.subr.mxu0 0.0
        %2262 = vmatpush1.msra.mxu0 0.0
        %2263 = vmatprep.subr.mxu0 0.0
        %2264 = vmatpush1.msra.mxu0 0.0
        %2265 = vmatprep.subr.mxu0 0.0
        %2266 = vmatpush1.msra.mxu0 0.0
        %2267 = vmatprep.subr.mxu0 0.0
        %2268 = vmatpush1.msra.mxu0 0.0
        %2269 = vmatprep.subr.mxu0 0.0
        %2270 = vmatpush1.msra.mxu0 0.0
        %2271 = vmatprep.subr.mxu0 0.0
        %2272 = vmatpush1.msra.mxu0 0.0
        %2273 = vmatprep.subr.mxu0 0.0
        %2274 = vmatpush1.msra.mxu0 0.0
        %2275 = vmatprep.subr.mxu0 0.0
        %2276 = vmatpush1.msra.mxu0 0.0
        %2277 = vmatprep.subr.mxu0 0.0
        %2278 = vmatpush1.msra.mxu0 0.0
        %2279 = vmatprep.subr.mxu0 0.0
        %2280 = vmatpush1.msra.mxu0 0.0
        %2281 = vmatprep.subr.mxu0 0.0
        %2282 = vmatpush1.msra.mxu0 0.0
        %2283 = vmatprep.subr.mxu0 0.0
        %2284 = vmatpush1.msra.mxu0 0.0
        %2285 = vmatprep.subr.mxu0 0.0
        %2286 = vmatpush1.msra.mxu0 0.0
        %2287 = vmatprep.subr.mxu0 0.0
        %2288 = vmatpush1.msra.mxu0 0.0
        %2289 = vmatprep.subr.mxu0 0.0
        %2290 = vmatpush1.msra.mxu0 0.0
        %2291 = vmatprep.subr.mxu0 0.0
        %2292 = vmatpush1.msra.mxu0 0.0
        %2293 = vmatprep.subr.mxu0 0.0
        %2294 = vmatpush1.msra.mxu0 0.0
        %2295 = vmatprep.subr.mxu0 0.0
        %2296 = vmatpush1.msra.mxu0 0.0
        %2297 = vmatprep.subr.mxu0 0.0
        %2298 = vmatpush1.msra.mxu0 0.0
        %2299 = vmatprep.subr.mxu0 0.0
        %2300 = vmatpush1.msra.mxu0 0.0
        %2301 = vmatprep.subr.mxu0 0.0
        %2302 = vmatpush1.msra.mxu0 0.0
        %2303 = vmatprep.subr.mxu0 0.0
        %2304 = vmatpush1.msra.mxu0 0.0
        %2305 = vmatprep.subr.mxu0 0.0
        %2306 = vmatpush1.msra.mxu0 0.0
        %2307 = vmatprep.subr.mxu0 0.0
        %2308 = vmatpush1.msra.mxu0 0.0
        %2309 = vmatprep.subr.mxu0 0.0
        %2310 = vmatpush1.msra.mxu0 0.0
        %2311 = vmatprep.subr.mxu0 0.0
        %2312 = vmatpush1.msra.mxu0 0.0
        %2313 = vmatprep.subr.mxu0 0.0
        %2314 = vmatpush1.msra.mxu0 0.0
        %2315 = vmatprep.subr.mxu0 0.0
        %2316 = vmatpush1.msra.mxu0 0.0
        %2317 = vmatprep.subr.mxu0 0.0
        %2318 = vmatpush1.msra.mxu0 0.0
        %2319 = vmatprep.mubr.f32.mxu0 0.0
        %2320 = vmatmul.mubr.f32.gmra.mrb[0].mxu0 %v2244
        %v2321 = vpop.f32.mrb[0].mxu0
        %v2322 = vadd.f32 0.0, %v2321
        %v2323 = vpop.f32.mrb[0].mxu0
        %v2324 = vadd.f32 0.0, %v2323
        %2325 = vmatprep.mubr.f32.mxu0 0.0
        %2326 = vmatmul.mubr.f32.gmra.mrb[0].mxu0 %v2247
        %v2327 = vpop.f32.mrb[0].mxu0
        %v2328 = vadd.f32 0.0, %v2327
        %v2329 = vpop.f32.mrb[0].mxu0
        %v2330 = vadd.f32 0.0, %v2329
        %2331 = vmatprep.mubr.f32.mxu0 0.0
        %2332 = vmatmul.mubr.f32.gmra.mrb[0].mxu0 %v2250
        %v2333 = vpop.f32.mrb[0].mxu0
        %v2334 = vadd.f32 0.0, %v2333
        %v2335 = vpop.f32.mrb[0].mxu0
        %v2336 = vadd.f32 0.0, %v2335
        %2337 = vmatprep.mubr.f32.mxu0 0.0
        %2338 = vmatmul.mubr.f32.gmra.mrb[0].mxu0 %v2253
        %v2339 = vpop.f32.mrb[0].mxu0
        %v2340 = vadd.f32 0.0, %v2339
        %v2341 = vpop.f32.mrb[0].mxu0
        %v2342 = vadd.f32 0.0, %v2341
        %2343 = vdwg.mxu0
        %2344 = vmatprep.subr.mxu0 %v2236
        %2345 = vmatpush1.msra.mxu0 %v2235
        %2346 = vmatprep.subr.mxu0 0.0
        %2347 = vmatpush1.msra.mxu0 0.0
        %2348 = vmatprep.subr.mxu0 0.0
        %2349 = vmatpush1.msra.mxu0 0.0
        %2350 = vmatprep.subr.mxu0 0.0
        %2351 = vmatpush1.msra.mxu0 0.0
        %2352 = vmatprep.subr.mxu0 0.0
        %2353 = vmatpush1.msra.mxu0 0.0
        %2354 = vmatprep.subr.mxu0 0.0
        %2355 = vmatpush1.msra.mxu0 0.0
        %2356 = vmatprep.subr.mxu0 0.0
        %2357 = vmatpush1.msra.mxu0 0.0
        %2358 = vmatprep.subr.mxu0 0.0
        %2359 = vmatpush1.msra.mxu0 0.0
        %2360 = vmatprep.subr.mxu0 0.0
        %2361 = vmatpush1.msra.mxu0 0.0
        %2362 = vmatprep.subr.mxu0 0.0
        %2363 = vmatpush1.msra.mxu0 0.0
        %2364 = vmatprep.subr.mxu0 0.0
        %2365 = vmatpush1.msra.mxu0 0.0
        %2366 = vmatprep.subr.mxu0 0.0
        %2367 = vmatpush1.msra.mxu0 0.0
        %2368 = vmatprep.subr.mxu0 0.0
        %2369 = vmatpush1.msra.mxu0 0.0
        %2370 = vmatprep.subr.mxu0 0.0
        %2371 = vmatpush1.msra.mxu0 0.0
        %2372 = vmatprep.subr.mxu0 0.0
        %2373 = vmatpush1.msra.mxu0 0.0
        %2374 = vmatprep.subr.mxu0 0.0
        %2375 = vmatpush1.msra.mxu0 0.0
        %2376 = vmatprep.subr.mxu0 0.0
        %2377 = vmatpush1.msra.mxu0 0.0
        %2378 = vmatprep.subr.mxu0 0.0
        %2379 = vmatpush1.msra.mxu0 0.0
        %2380 = vmatprep.subr.mxu0 0.0
        %2381 = vmatpush1.msra.mxu0 0.0
        %2382 = vmatprep.subr.mxu0 0.0
        %2383 = vmatpush1.msra.mxu0 0.0
        %2384 = vmatprep.subr.mxu0 0.0
        %2385 = vmatpush1.msra.mxu0 0.0
        %2386 = vmatprep.subr.mxu0 0.0
        %2387 = vmatpush1.msra.mxu0 0.0
        %2388 = vmatprep.subr.mxu0 0.0
        %2389 = vmatpush1.msra.mxu0 0.0
        %2390 = vmatprep.subr.mxu0 0.0
        %2391 = vmatpush1.msra.mxu0 0.0
        %2392 = vmatprep.subr.mxu0 0.0
        %2393 = vmatpush1.msra.mxu0 0.0
        %2394 = vmatprep.subr.mxu0 0.0
        %2395 = vmatpush1.msra.mxu0 0.0
        %2396 = vmatprep.subr.mxu0 0.0
        %2397 = vmatpush1.msra.mxu0 0.0
        %2398 = vmatprep.subr.mxu0 0.0
        %2399 = vmatpush1.msra.mxu0 0.0
        %2400 = vmatprep.subr.mxu0 0.0
        %2401 = vmatpush1.msra.mxu0 0.0
        %2402 = vmatprep.subr.mxu0 0.0
        %2403 = vmatpush1.msra.mxu0 0.0
        %2404 = vmatprep.subr.mxu0 0.0
        %2405 = vmatpush1.msra.mxu0 0.0
        %2406 = vmatprep.subr.mxu0 0.0
        %2407 = vmatpush1.msra.mxu0 0.0
        %2408 = vmatprep.mubr.f32.mxu0 0.0
        %2409 = vmatmul.mubr.f32.gmra.mrb[0].mxu0 %v2244
        %v2410 = vpop.f32.mrb[0].mxu0
        %v2411 = vadd.f32 0.0, %v2410
        %v2412 = vpop.f32.mrb[0].mxu0
        %v2413 = vadd.f32 0.0, %v2412
        %2414 = vmatprep.mubr.f32.mxu0 0.0
        %2415 = vmatmul.mubr.f32.gmra.mrb[0].mxu0 %v2247
        %v2416 = vpop.f32.mrb[0].mxu0
        %v2417 = vadd.f32 0.0, %v2416
        %v2418 = vpop.f32.mrb[0].mxu0
        %v2419 = vadd.f32 0.0, %v2418
        %2420 = vmatprep.mubr.f32.mxu0 0.0
        %2421 = vmatmul.mubr.f32.gmra.mrb[0].mxu0 %v2250
        %v2422 = vpop.f32.mrb[0].mxu0
        %v2423 = vadd.f32 0.0, %v2422
        %v2424 = vpop.f32.mrb[0].mxu0
        %v2425 = vadd.f32 0.0, %v2424
        %2426 = vmatprep.mubr.f32.mxu0 0.0
        %2427 = vmatmul.mubr.f32.gmra.mrb[0].mxu0 %v2253
        %v2428 = vpop.f32.mrb[0].mxu0
        %v2429 = vadd.f32 0.0, %v2428
        %v2430 = vpop.f32.mrb[0].mxu0
        %v2431 = vadd.f32 0.0, %v2430
        %2432 = vdwg.mxu0
        %2433 = vmatprep.subr.mxu0 0.0
        %2434 = vmatpush1.msra.mxu0 %v2237
        %2435 = vmatprep.subr.mxu0 0.0
        %2436 = vmatpush1.msra.mxu0 0.0
        %2437 = vmatprep.subr.mxu0 0.0
        %2438 = vmatpush1.msra.mxu0 0.0
        %2439 = vmatprep.subr.mxu0 0.0
        %2440 = vmatpush1.msra.mxu0 0.0
        %2441 = vmatprep.subr.mxu0 0.0
        %2442 = vmatpush1.msra.mxu0 0.0
        %2443 = vmatprep.subr.mxu0 0.0
        %2444 = vmatpush1.msra.mxu0 0.0
        %2445 = vmatprep.subr.mxu0 0.0
        %2446 = vmatpush1.msra.mxu0 0.0
        %2447 = vmatprep.subr.mxu0 0.0
        %2448 = vmatpush1.msra.mxu0 0.0
        %2449 = vmatprep.subr.mxu0 0.0
        %2450 = vmatpush1.msra.mxu0 0.0
        %2451 = vmatprep.subr.mxu0 0.0
        %2452 = vmatpush1.msra.mxu0 0.0
        %2453 = vmatprep.subr.mxu0 0.0
        %2454 = vmatpush1.msra.mxu0 0.0
        %2455 = vmatprep.subr.mxu0 0.0
        %2456 = vmatpush1.msra.mxu0 0.0
        %2457 = vmatprep.subr.mxu0 0.0
        %2458 = vmatpush1.msra.mxu0 0.0
        %2459 = vmatprep.subr.mxu0 0.0
        %2460 = vmatpush1.msra.mxu0 0.0
        %2461 = vmatprep.subr.mxu0 0.0
        %2462 = vmatpush1.msra.mxu0 0.0
        %2463 = vmatprep.subr.mxu0 0.0
        %2464 = vmatpush1.msra.mxu0 0.0
        %2465 = vmatprep.subr.mxu0 0.0
        %2466 = vmatpush1.msra.mxu0 0.0
        %2467 = vmatprep.subr.mxu0 0.0
        %2468 = vmatpush1.msra.mxu0 0.0
        %2469 = vmatprep.subr.mxu0 0.0
        %2470 = vmatpush1.msra.mxu0 0.0
        %2471 = vmatprep.subr.mxu0 0.0
        %2472 = vmatpush1.msra.mxu0 0.0
        %2473 = vmatprep.subr.mxu0 0.0
        %2474 = vmatpush1.msra.mxu0 0.0
        %2475 = vmatprep.subr.mxu0 0.0
        %2476 = vmatpush1.msra.mxu0 0.0
        %2477 = vmatprep.subr.mxu0 0.0
        %2478 = vmatpush1.msra.mxu0 0.0
        %2479 = vmatprep.subr.mxu0 0.0
        %2480 = vmatpush1.msra.mxu0 0.0
        %2481 = vmatprep.subr.mxu0 0.0
        %2482 = vmatpush1.msra.mxu0 0.0
        %2483 = vmatprep.subr.mxu0 0.0
        %2484 = vmatpush1.msra.mxu0 0.0
        %2485 = vmatprep.subr.mxu0 0.0
        %2486 = vmatpush1.msra.mxu0 0.0
        %2487 = vmatprep.subr.mxu0 0.0
        %2488 = vmatpush1.msra.mxu0 0.0
        %2489 = vmatprep.subr.mxu0 0.0
        %2490 = vmatpush1.msra.mxu0 0.0
        %2491 = vmatprep.subr.mxu0 0.0
        %2492 = vmatpush1.msra.mxu0 0.0
        %2493 = vmatprep.subr.mxu0 0.0
        %2494 = vmatpush1.msra.mxu0 0.0
        %2495 = vmatprep.subr.mxu0 0.0
        %2496 = vmatpush1.msra.mxu0 0.0
        %2497 = vmatprep.mubr.f32.mxu0 0.0
        %2498 = vmatmul.mubr.f32.gmra.mrb[0].mxu0 %v2244
        %v2499 = vpop.f32.mrb[0].mxu0
        %v2500 = vadd.f32 0.0, %v2499
        %v2501 = vpop.f32.mrb[0].mxu0
        %2502 = vmatprep.mubr.f32.mxu0 0.0
        %2503 = vmatmul.mubr.f32.gmra.mrb[0].mxu0 %v2247
        %v2504 = vpop.f32.mrb[0].mxu0
        %v2505 = vadd.f32 0.0, %v2504
        %v2506 = vpop.f32.mrb[0].mxu0
        %2507 = vmatprep.mubr.f32.mxu0 0.0
        %2508 = vmatmul.mubr.f32.gmra.mrb[0].mxu0 %v2250
        %v2509 = vpop.f32.mrb[0].mxu0
        %v2510 = vadd.f32 0.0, %v2509
        %v2511 = vpop.f32.mrb[0].mxu0
        %2512 = vmatprep.mubr.f32.mxu0 0.0
        %2513 = vmatmul.mubr.f32.gmra.mrb[0].mxu0 %v2253
        %v2514 = vpop.f32.mrb[0].mxu0
        %v2515 = vadd.f32 0.0, %v2514
        %v2516 = vpop.f32.mrb[0].mxu0
        %2517 = vdwg.mxu0
        %v2518 = vadd.f32 %v2195, %v2322
        %v2519 = vadd.f32 %v2196, %v2324
        %v2520 = vadd.f32 %v2197, %v2411
        %v2521 = vadd.f32 %v2198, %v2413
        %v2522 = vadd.f32 %v2199, %v2500
        %v2523 = vadd.f32 %v2200, %v2328
        %v2524 = vadd.f32 %v2201, %v2330
        %v2525 = vadd.f32 %v2202, %v2417
        %v2526 = vadd.f32 %v2203, %v2419
        %v2527 = vadd.f32 %v2204, %v2505
        %v2528 = vadd.f32 %v2205, %v2334
        %v2529 = vadd.f32 %v2206, %v2336
        %v2530 = vadd.f32 %v2207, %v2423
        %v2531 = vadd.f32 %v2208, %v2425
        %v2532 = vadd.f32 %v2209, %v2510
        %v2533 = vadd.f32 %v2210, %v2340
        %v2534 = vadd.f32 %v2211, %v2342
        %v2535 = vadd.f32 %v2212, %v2429
        %v2536 = vadd.f32 %v2213, %v2431
        %v2537 = vadd.f32 %v2214, %v2515
        %s2538 = scalar_lea.vmem %s1, 224
        %v2539 = vld [vmem:[%s2538] sm:$0xff]
        %v2540 = vld [vmem:[%s2538 + $0x8] sm:$0xff]
        %v2541 = vld [vmem:[%s2538 + $0x10] sm:$0xff]
        %v2542 = vld [vmem:[%s2538 + $0x18] sm:$0xff]
        %2543 = vrot.lane.b32.xlu0 %v332, 107
        %v2544 = vpop.permute.xlu0 %2543
        %2545 = vrot.lane.b32.xlu0 %v333, 107
        %v2546 = vpop.permute.xlu0 %2545
        %2547 = vrot.lane.b32.xlu0 %v334, 107
        %v2548 = vpop.permute.xlu0 %2547
        %2549 = vrot.lane.b32.xlu0 %v335, 107
        %v2550 = vpop.permute.xlu0 %2549
        %2551 = vrot.lane.b32.xlu0 %v336, 107
        %v2552 = vpop.permute.xlu0 %2551
        %2553 = vrot.lane.b32.xlu0 %v342, 107
        %v2554 = vpop.permute.xlu0 %2553
        %vm2555 = vcmask 875520
        %v2556 = vsel %vm2555, %v2544, %v2546
        %v2557 = vsel %vm2555, %v2546, %v2548
        %v2558 = vsel %vm2555, %v2548, %v2550
        %v2559 = vsel %vm2555, %v2550, %v2552
        %v2560 = vsel %vm2555, %v2552, %v2554
        %v2567 = vsel %vm372, %v2539, 0
        %v2570 = vsel %vm372, %v2540, 0
        %v2573 = vsel %vm372, %v2541, 0
        %v2576 = vsel %vm372, %v2542, 0
        %2578 = vmatprep.subr.mxu0 %v2557
        %2579 = vmatpush1.msra.mxu0 %v2556
        %2580 = vmatprep.subr.mxu0 0.0
        %2581 = vmatpush1.msra.mxu0 0.0
        %2582 = vmatprep.subr.mxu0 0.0
        %2583 = vmatpush1.msra.mxu0 0.0
        %2584 = vmatprep.subr.mxu0 0.0
        %2585 = vmatpush1.msra.mxu0 0.0
        %2586 = vmatprep.subr.mxu0 0.0
        %2587 = vmatpush1.msra.mxu0 0.0
        %2588 = vmatprep.subr.mxu0 0.0
        %2589 = vmatpush1.msra.mxu0 0.0
        %2590 = vmatprep.subr.mxu0 0.0
        %2591 = vmatpush1.msra.mxu0 0.0
        %2592 = vmatprep.subr.mxu0 0.0
        %2593 = vmatpush1.msra.mxu0 0.0
        %2594 = vmatprep.subr.mxu0 0.0
        %2595 = vmatpush1.msra.mxu0 0.0
        %2596 = vmatprep.subr.mxu0 0.0
        %2597 = vmatpush1.msra.mxu0 0.0
        %2598 = vmatprep.subr.mxu0 0.0
        %2599 = vmatpush1.msra.mxu0 0.0
        %2600 = vmatprep.subr.mxu0 0.0
        %2601 = vmatpush1.msra.mxu0 0.0
        %2602 = vmatprep.subr.mxu0 0.0
        %2603 = vmatpush1.msra.mxu0 0.0
        %2604 = vmatprep.subr.mxu0 0.0
        %2605 = vmatpush1.msra.mxu0 0.0
        %2606 = vmatprep.subr.mxu0 0.0
        %2607 = vmatpush1.msra.mxu0 0.0
        %2608 = vmatprep.subr.mxu0 0.0
        %2609 = vmatpush1.msra.mxu0 0.0
        %2610 = vmatprep.subr.mxu0 0.0
        %2611 = vmatpush1.msra.mxu0 0.0
        %2612 = vmatprep.subr.mxu0 0.0
        %2613 = vmatpush1.msra.mxu0 0.0
        %2614 = vmatprep.subr.mxu0 0.0
        %2615 = vmatpush1.msra.mxu0 0.0
        %2616 = vmatprep.subr.mxu0 0.0
        %2617 = vmatpush1.msra.mxu0 0.0
        %2618 = vmatprep.subr.mxu0 0.0
        %2619 = vmatpush1.msra.mxu0 0.0
        %2620 = vmatprep.subr.mxu0 0.0
        %2621 = vmatpush1.msra.mxu0 0.0
        %2622 = vmatprep.subr.mxu0 0.0
        %2623 = vmatpush1.msra.mxu0 0.0
        %2624 = vmatprep.subr.mxu0 0.0
        %2625 = vmatpush1.msra.mxu0 0.0
        %2626 = vmatprep.subr.mxu0 0.0
        %2627 = vmatpush1.msra.mxu0 0.0
        %2628 = vmatprep.subr.mxu0 0.0
        %2629 = vmatpush1.msra.mxu0 0.0
        %2630 = vmatprep.subr.mxu0 0.0
        %2631 = vmatpush1.msra.mxu0 0.0
        %2632 = vmatprep.subr.mxu0 0.0
        %2633 = vmatpush1.msra.mxu0 0.0
        %2634 = vmatprep.subr.mxu0 0.0
        %2635 = vmatpush1.msra.mxu0 0.0
        %2636 = vmatprep.subr.mxu0 0.0
        %2637 = vmatpush1.msra.mxu0 0.0
        %2638 = vmatprep.subr.mxu0 0.0
        %2639 = vmatpush1.msra.mxu0 0.0
        %2640 = vmatprep.subr.mxu0 0.0
        %2641 = vmatpush1.msra.mxu0 0.0
        %2642 = vmatprep.mubr.f32.mxu0 0.0
        %2643 = vmatmul.mubr.f32.gmra.mrb[0].mxu0 %v2567
        %v2644 = vpop.f32.mrb[0].mxu0
        %v2645 = vadd.f32 0.0, %v2644
        %v2646 = vpop.f32.mrb[0].mxu0
        %v2647 = vadd.f32 0.0, %v2646
        %2648 = vmatprep.mubr.f32.mxu0 0.0
        %2649 = vmatmul.mubr.f32.gmra.mrb[0].mxu0 %v2570
        %v2650 = vpop.f32.mrb[0].mxu0
        %v2651 = vadd.f32 0.0, %v2650
        %v2652 = vpop.f32.mrb[0].mxu0
        %v2653 = vadd.f32 0.0, %v2652
        %2654 = vmatprep.mubr.f32.mxu0 0.0
        %2655 = vmatmul.mubr.f32.gmra.mrb[0].mxu0 %v2573
        %v2656 = vpop.f32.mrb[0].mxu0
        %v2657 = vadd.f32 0.0, %v2656
        %v2658 = vpop.f32.mrb[0].mxu0
        %v2659 = vadd.f32 0.0, %v2658
        %2660 = vmatprep.mubr.f32.mxu0 0.0
        %2661 = vmatmul.mubr.f32.gmra.mrb[0].mxu0 %v2576
        %v2662 = vpop.f32.mrb[0].mxu0
        %v2663 = vadd.f32 0.0, %v2662
        %v2664 = vpop.f32.mrb[0].mxu0
        %v2665 = vadd.f32 0.0, %v2664
        %2666 = vdwg.mxu0
        %2667 = vmatprep.subr.mxu0 %v2559
        %2668 = vmatpush1.msra.mxu0 %v2558
        %2669 = vmatprep.subr.mxu0 0.0
        %2670 = vmatpush1.msra.mxu0 0.0
        %2671 = vmatprep.subr.mxu0 0.0
        %2672 = vmatpush1.msra.mxu0 0.0
        %2673 = vmatprep.subr.mxu0 0.0
        %2674 = vmatpush1.msra.mxu0 0.0
        %2675 = vmatprep.subr.mxu0 0.0
        %2676 = vmatpush1.msra.mxu0 0.0
        %2677 = vmatprep.subr.mxu0 0.0
        %2678 = vmatpush1.msra.mxu0 0.0
        %2679 = vmatprep.subr.mxu0 0.0
        %2680 = vmatpush1.msra.mxu0 0.0
        %2681 = vmatprep.subr.mxu0 0.0
        %2682 = vmatpush1.msra.mxu0 0.0
        %2683 = vmatprep.subr.mxu0 0.0
        %2684 = vmatpush1.msra.mxu0 0.0
        %2685 = vmatprep.subr.mxu0 0.0
        %2686 = vmatpush1.msra.mxu0 0.0
        %2687 = vmatprep.subr.mxu0 0.0
        %2688 = vmatpush1.msra.mxu0 0.0
        %2689 = vmatprep.subr.mxu0 0.0
        %2690 = vmatpush1.msra.mxu0 0.0
        %2691 = vmatprep.subr.mxu0 0.0
        %2692 = vmatpush1.msra.mxu0 0.0
        %2693 = vmatprep.subr.mxu0 0.0
        %2694 = vmatpush1.msra.mxu0 0.0
        %2695 = vmatprep.subr.mxu0 0.0
        %2696 = vmatpush1.msra.mxu0 0.0
        %2697 = vmatprep.subr.mxu0 0.0
        %2698 = vmatpush1.msra.mxu0 0.0
        %2699 = vmatprep.subr.mxu0 0.0
        %2700 = vmatpush1.msra.mxu0 0.0
        %2701 = vmatprep.subr.mxu0 0.0
        %2702 = vmatpush1.msra.mxu0 0.0
        %2703 = vmatprep.subr.mxu0 0.0
        %2704 = vmatpush1.msra.mxu0 0.0
        %2705 = vmatprep.subr.mxu0 0.0
        %2706 = vmatpush1.msra.mxu0 0.0
        %2707 = vmatprep.subr.mxu0 0.0
        %2708 = vmatpush1.msra.mxu0 0.0
        %2709 = vmatprep.subr.mxu0 0.0
        %2710 = vmatpush1.msra.mxu0 0.0
        %2711 = vmatprep.subr.mxu0 0.0
        %2712 = vmatpush1.msra.mxu0 0.0
        %2713 = vmatprep.subr.mxu0 0.0
        %2714 = vmatpush1.msra.mxu0 0.0
        %2715 = vmatprep.subr.mxu0 0.0
        %2716 = vmatpush1.msra.mxu0 0.0
        %2717 = vmatprep.subr.mxu0 0.0
        %2718 = vmatpush1.msra.mxu0 0.0
        %2719 = vmatprep.subr.mxu0 0.0
        %2720 = vmatpush1.msra.mxu0 0.0
        %2721 = vmatprep.subr.mxu0 0.0
        %2722 = vmatpush1.msra.mxu0 0.0
        %2723 = vmatprep.subr.mxu0 0.0
        %2724 = vmatpush1.msra.mxu0 0.0
        %2725 = vmatprep.subr.mxu0 0.0
        %2726 = vmatpush1.msra.mxu0 0.0
        %2727 = vmatprep.subr.mxu0 0.0
        %2728 = vmatpush1.msra.mxu0 0.0
        %2729 = vmatprep.subr.mxu0 0.0
        %2730 = vmatpush1.msra.mxu0 0.0
        %2731 = vmatprep.mubr.f32.mxu0 0.0
        %2732 = vmatmul.mubr.f32.gmra.mrb[0].mxu0 %v2567
        %v2733 = vpop.f32.mrb[0].mxu0
        %v2734 = vadd.f32 0.0, %v2733
        %v2735 = vpop.f32.mrb[0].mxu0
        %v2736 = vadd.f32 0.0, %v2735
        %2737 = vmatprep.mubr.f32.mxu0 0.0
        %2738 = vmatmul.mubr.f32.gmra.mrb[0].mxu0 %v2570
        %v2739 = vpop.f32.mrb[0].mxu0
        %v2740 = vadd.f32 0.0, %v2739
        %v2741 = vpop.f32.mrb[0].mxu0
        %v2742 = vadd.f32 0.0, %v2741
        %2743 = vmatprep.mubr.f32.mxu0 0.0
        %2744 = vmatmul.mubr.f32.gmra.mrb[0].mxu0 %v2573
        %v2745 = vpop.f32.mrb[0].mxu0
        %v2746 = vadd.f32 0.0, %v2745
        %v2747 = vpop.f32.mrb[0].mxu0
        %v2748 = vadd.f32 0.0, %v2747
        %2749 = vmatprep.mubr.f32.mxu0 0.0
        %2750 = vmatmul.mubr.f32.gmra.mrb[0].mxu0 %v2576
        %v2751 = vpop.f32.mrb[0].mxu0
        %v2752 = vadd.f32 0.0, %v2751
        %v2753 = vpop.f32.mrb[0].mxu0
        %v2754 = vadd.f32 0.0, %v2753
        %2755 = vdwg.mxu0
        %2756 = vmatprep.subr.mxu0 0.0
        %2757 = vmatpush1.msra.mxu0 %v2560
        %2758 = vmatprep.subr.mxu0 0.0
        %2759 = vmatpush1.msra.mxu0 0.0
        %2760 = vmatprep.subr.mxu0 0.0
        %2761 = vmatpush1.msra.mxu0 0.0
        %2762 = vmatprep.subr.mxu0 0.0
        %2763 = vmatpush1.msra.mxu0 0.0
        %2764 = vmatprep.subr.mxu0 0.0
        %2765 = vmatpush1.msra.mxu0 0.0
        %2766 = vmatprep.subr.mxu0 0.0
        %2767 = vmatpush1.msra.mxu0 0.0
        %2768 = vmatprep.subr.mxu0 0.0
        %2769 = vmatpush1.msra.mxu0 0.0
        %2770 = vmatprep.subr.mxu0 0.0
        %2771 = vmatpush1.msra.mxu0 0.0
        %2772 = vmatprep.subr.mxu0 0.0
        %2773 = vmatpush1.msra.mxu0 0.0
        %2774 = vmatprep.subr.mxu0 0.0
        %2775 = vmatpush1.msra.mxu0 0.0
        %2776 = vmatprep.subr.mxu0 0.0
        %2777 = vmatpush1.msra.mxu0 0.0
        %2778 = vmatprep.subr.mxu0 0.0
        %2779 = vmatpush1.msra.mxu0 0.0
        %2780 = vmatprep.subr.mxu0 0.0
        %2781 = vmatpush1.msra.mxu0 0.0
        %2782 = vmatprep.subr.mxu0 0.0
        %2783 = vmatpush1.msra.mxu0 0.0
        %2784 = vmatprep.subr.mxu0 0.0
        %2785 = vmatpush1.msra.mxu0 0.0
        %2786 = vmatprep.subr.mxu0 0.0
        %2787 = vmatpush1.msra.mxu0 0.0
        %2788 = vmatprep.subr.mxu0 0.0
        %2789 = vmatpush1.msra.mxu0 0.0
        %2790 = vmatprep.subr.mxu0 0.0
        %2791 = vmatpush1.msra.mxu0 0.0
        %2792 = vmatprep.subr.mxu0 0.0
        %2793 = vmatpush1.msra.mxu0 0.0
        %2794 = vmatprep.subr.mxu0 0.0
        %2795 = vmatpush1.msra.mxu0 0.0
        %2796 = vmatprep.subr.mxu0 0.0
        %2797 = vmatpush1.msra.mxu0 0.0
        %2798 = vmatprep.subr.mxu0 0.0
        %2799 = vmatpush1.msra.mxu0 0.0
        %2800 = vmatprep.subr.mxu0 0.0
        %2801 = vmatpush1.msra.mxu0 0.0
        %2802 = vmatprep.subr.mxu0 0.0
        %2803 = vmatpush1.msra.mxu0 0.0
        %2804 = vmatprep.subr.mxu0 0.0
        %2805 = vmatpush1.msra.mxu0 0.0
        %2806 = vmatprep.subr.mxu0 0.0
        %2807 = vmatpush1.msra.mxu0 0.0
        %2808 = vmatprep.subr.mxu0 0.0
        %2809 = vmatpush1.msra.mxu0 0.0
        %2810 = vmatprep.subr.mxu0 0.0
        %2811 = vmatpush1.msra.mxu0 0.0
        %2812 = vmatprep.subr.mxu0 0.0
        %2813 = vmatpush1.msra.mxu0 0.0
        %2814 = vmatprep.subr.mxu0 0.0
        %2815 = vmatpush1.msra.mxu0 0.0
        %2816 = vmatprep.subr.mxu0 0.0
        %2817 = vmatpush1.msra.mxu0 0.0
        %2818 = vmatprep.subr.mxu0 0.0
        %2819 = vmatpush1.msra.mxu0 0.0
        %2820 = vmatprep.mubr.f32.mxu0 0.0
        %2821 = vmatmul.mubr.f32.gmra.mrb[0].mxu0 %v2567
        %v2822 = vpop.f32.mrb[0].mxu0
        %v2823 = vadd.f32 0.0, %v2822
        %v2824 = vpop.f32.mrb[0].mxu0
        %2825 = vmatprep.mubr.f32.mxu0 0.0
        %2826 = vmatmul.mubr.f32.gmra.mrb[0].mxu0 %v2570
        %v2827 = vpop.f32.mrb[0].mxu0
        %v2828 = vadd.f32 0.0, %v2827
        %v2829 = vpop.f32.mrb[0].mxu0
        %2830 = vmatprep.mubr.f32.mxu0 0.0
        %2831 = vmatmul.mubr.f32.gmra.mrb[0].mxu0 %v2573
        %v2832 = vpop.f32.mrb[0].mxu0
        %v2833 = vadd.f32 0.0, %v2832
        %v2834 = vpop.f32.mrb[0].mxu0
        %2835 = vmatprep.mubr.f32.mxu0 0.0
        %2836 = vmatmul.mubr.f32.gmra.mrb[0].mxu0 %v2576
        %v2837 = vpop.f32.mrb[0].mxu0
        %v2838 = vadd.f32 0.0, %v2837
        %v2839 = vpop.f32.mrb[0].mxu0
        %2840 = vdwg.mxu0
        %v2841 = vadd.f32 %v2518, %v2645
        %v2842 = vadd.f32 %v2519, %v2647
        %v2843 = vadd.f32 %v2520, %v2734
        %v2844 = vadd.f32 %v2521, %v2736
        %v2845 = vadd.f32 %v2522, %v2823
        %v2846 = vadd.f32 %v2523, %v2651
        %v2847 = vadd.f32 %v2524, %v2653
        %v2848 = vadd.f32 %v2525, %v2740
        %v2849 = vadd.f32 %v2526, %v2742
        %v2850 = vadd.f32 %v2527, %v2828
        %v2851 = vadd.f32 %v2528, %v2657
        %v2852 = vadd.f32 %v2529, %v2659
        %v2853 = vadd.f32 %v2530, %v2746
        %v2854 = vadd.f32 %v2531, %v2748
        %v2855 = vadd.f32 %v2532, %v2833
        %v2856 = vadd.f32 %v2533, %v2663
        %v2857 = vadd.f32 %v2534, %v2665
        %v2858 = vadd.f32 %v2535, %v2752
        %v2859 = vadd.f32 %v2536, %v2754
        %v2860 = vadd.f32 %v2537, %v2838
        %s2861 = scalar_lea.vmem %s1, 256
        %v2862 = vld [vmem:[%s2861] sm:$0xff]
        %v2863 = vld [vmem:[%s2861 + $0x8] sm:$0xff]
        %v2864 = vld [vmem:[%s2861 + $0x10] sm:$0xff]
        %v2865 = vld [vmem:[%s2861 + $0x18] sm:$0xff]
        %2866 = vrot.lane.b32.xlu0 %v332, 106
        %v2867 = vpop.permute.xlu0 %2866
        %2868 = vrot.lane.b32.xlu0 %v333, 106
        %v2869 = vpop.permute.xlu0 %2868
        %2870 = vrot.lane.b32.xlu0 %v334, 106
        %v2871 = vpop.permute.xlu0 %2870
        %2872 = vrot.lane.b32.xlu0 %v335, 106
        %v2873 = vpop.permute.xlu0 %2872
        %2874 = vrot.lane.b32.xlu0 %v336, 106
        %v2875 = vpop.permute.xlu0 %2874
        %2876 = vrot.lane.b32.xlu0 %v342, 106
        %v2877 = vpop.permute.xlu0 %2876
        %vm2878 = vcmask 867328
        %v2879 = vsel %vm2878, %v2867, %v2869
        %v2880 = vsel %vm2878, %v2869, %v2871
        %v2881 = vsel %vm2878, %v2871, %v2873
        %v2882 = vsel %vm2878, %v2873, %v2875
        %v2883 = vsel %vm2878, %v2875, %v2877
        %v2890 = vsel %vm372, %v2862, 0
        %v2893 = vsel %vm372, %v2863, 0
        %v2896 = vsel %vm372, %v2864, 0
        %v2899 = vsel %vm372, %v2865, 0
        %2901 = vmatprep.subr.mxu0 %v2880
        %2902 = vmatpush1.msra.mxu0 %v2879
        %2903 = vmatprep.subr.mxu0 0.0
        %2904 = vmatpush1.msra.mxu0 0.0
        %2905 = vmatprep.subr.mxu0 0.0
        %2906 = vmatpush1.msra.mxu0 0.0
        %2907 = vmatprep.subr.mxu0 0.0
        %2908 = vmatpush1.msra.mxu0 0.0
        %2909 = vmatprep.subr.mxu0 0.0
        %2910 = vmatpush1.msra.mxu0 0.0
        %2911 = vmatprep.subr.mxu0 0.0
        %2912 = vmatpush1.msra.mxu0 0.0
        %2913 = vmatprep.subr.mxu0 0.0
        %2914 = vmatpush1.msra.mxu0 0.0
        %2915 = vmatprep.subr.mxu0 0.0
        %2916 = vmatpush1.msra.mxu0 0.0
        %2917 = vmatprep.subr.mxu0 0.0
        %2918 = vmatpush1.msra.mxu0 0.0
        %2919 = vmatprep.subr.mxu0 0.0
        %2920 = vmatpush1.msra.mxu0 0.0
        %2921 = vmatprep.subr.mxu0 0.0
        %2922 = vmatpush1.msra.mxu0 0.0
        %2923 = vmatprep.subr.mxu0 0.0
        %2924 = vmatpush1.msra.mxu0 0.0
        %2925 = vmatprep.subr.mxu0 0.0
        %2926 = vmatpush1.msra.mxu0 0.0
        %2927 = vmatprep.subr.mxu0 0.0
        %2928 = vmatpush1.msra.mxu0 0.0
        %2929 = vmatprep.subr.mxu0 0.0
        %2930 = vmatpush1.msra.mxu0 0.0
        %2931 = vmatprep.subr.mxu0 0.0
        %2932 = vmatpush1.msra.mxu0 0.0
        %2933 = vmatprep.subr.mxu0 0.0
        %2934 = vmatpush1.msra.mxu0 0.0
        %2935 = vmatprep.subr.mxu0 0.0
        %2936 = vmatpush1.msra.mxu0 0.0
        %2937 = vmatprep.subr.mxu0 0.0
        %2938 = vmatpush1.msra.mxu0 0.0
        %2939 = vmatprep.subr.mxu0 0.0
        %2940 = vmatpush1.msra.mxu0 0.0
        %2941 = vmatprep.subr.mxu0 0.0
        %2942 = vmatpush1.msra.mxu0 0.0
        %2943 = vmatprep.subr.mxu0 0.0
        %2944 = vmatpush1.msra.mxu0 0.0
        %2945 = vmatprep.subr.mxu0 0.0
        %2946 = vmatpush1.msra.mxu0 0.0
        %2947 = vmatprep.subr.mxu0 0.0
        %2948 = vmatpush1.msra.mxu0 0.0
        %2949 = vmatprep.subr.mxu0 0.0
        %2950 = vmatpush1.msra.mxu0 0.0
        %2951 = vmatprep.subr.mxu0 0.0
        %2952 = vmatpush1.msra.mxu0 0.0
        %2953 = vmatprep.subr.mxu0 0.0
        %2954 = vmatpush1.msra.mxu0 0.0
        %2955 = vmatprep.subr.mxu0 0.0
        %2956 = vmatpush1.msra.mxu0 0.0
        %2957 = vmatprep.subr.mxu0 0.0
        %2958 = vmatpush1.msra.mxu0 0.0
        %2959 = vmatprep.subr.mxu0 0.0
        %2960 = vmatpush1.msra.mxu0 0.0
        %2961 = vmatprep.subr.mxu0 0.0
        %2962 = vmatpush1.msra.mxu0 0.0
        %2963 = vmatprep.subr.mxu0 0.0
        %2964 = vmatpush1.msra.mxu0 0.0
        %2965 = vmatprep.mubr.f32.mxu0 0.0
        %2966 = vmatmul.mubr.f32.gmra.mrb[0].mxu0 %v2890
        %v2967 = vpop.f32.mrb[0].mxu0
        %v2968 = vadd.f32 0.0, %v2967
        %v2969 = vpop.f32.mrb[0].mxu0
        %v2970 = vadd.f32 0.0, %v2969
        %2971 = vmatprep.mubr.f32.mxu0 0.0
        %2972 = vmatmul.mubr.f32.gmra.mrb[0].mxu0 %v2893
        %v2973 = vpop.f32.mrb[0].mxu0
        %v2974 = vadd.f32 0.0, %v2973
        %v2975 = vpop.f32.mrb[0].mxu0
        %v2976 = vadd.f32 0.0, %v2975
        %2977 = vmatprep.mubr.f32.mxu0 0.0
        %2978 = vmatmul.mubr.f32.gmra.mrb[0].mxu0 %v2896
        %v2979 = vpop.f32.mrb[0].mxu0
        %v2980 = vadd.f32 0.0, %v2979
        %v2981 = vpop.f32.mrb[0].mxu0
        %v2982 = vadd.f32 0.0, %v2981
        %2983 = vmatprep.mubr.f32.mxu0 0.0
        %2984 = vmatmul.mubr.f32.gmra.mrb[0].mxu0 %v2899
        %v2985 = vpop.f32.mrb[0].mxu0
        %v2986 = vadd.f32 0.0, %v2985
        %v2987 = vpop.f32.mrb[0].mxu0
        %v2988 = vadd.f32 0.0, %v2987
        %2989 = vdwg.mxu0
        %2990 = vmatprep.subr.mxu0 %v2882
        %2991 = vmatpush1.msra.mxu0 %v2881
        %2992 = vmatprep.subr.mxu0 0.0
        %2993 = vmatpush1.msra.mxu0 0.0
        %2994 = vmatprep.subr.mxu0 0.0
        %2995 = vmatpush1.msra.mxu0 0.0
        %2996 = vmatprep.subr.mxu0 0.0
        %2997 = vmatpush1.msra.mxu0 0.0
        %2998 = vmatprep.subr.mxu0 0.0
        %2999 = vmatpush1.msra.mxu0 0.0
        %3000 = vmatprep.subr.mxu0 0.0
        %3001 = vmatpush1.msra.mxu0 0.0
        %3002 = vmatprep.subr.mxu0 0.0
        %3003 = vmatpush1.msra.mxu0 0.0
        %3004 = vmatprep.subr.mxu0 0.0
        %3005 = vmatpush1.msra.mxu0 0.0
        %3006 = vmatprep.subr.mxu0 0.0
        %3007 = vmatpush1.msra.mxu0 0.0
        %3008 = vmatprep.subr.mxu0 0.0
        %3009 = vmatpush1.msra.mxu0 0.0
        %3010 = vmatprep.subr.mxu0 0.0
        %3011 = vmatpush1.msra.mxu0 0.0
        %3012 = vmatprep.subr.mxu0 0.0
        %3013 = vmatpush1.msra.mxu0 0.0
        %3014 = vmatprep.subr.mxu0 0.0
        %3015 = vmatpush1.msra.mxu0 0.0
        %3016 = vmatprep.subr.mxu0 0.0
        %3017 = vmatpush1.msra.mxu0 0.0
        %3018 = vmatprep.subr.mxu0 0.0
        %3019 = vmatpush1.msra.mxu0 0.0
        %3020 = vmatprep.subr.mxu0 0.0
        %3021 = vmatpush1.msra.mxu0 0.0
        %3022 = vmatprep.subr.mxu0 0.0
        %3023 = vmatpush1.msra.mxu0 0.0
        %3024 = vmatprep.subr.mxu0 0.0
        %3025 = vmatpush1.msra.mxu0 0.0
        %3026 = vmatprep.subr.mxu0 0.0
        %3027 = vmatpush1.msra.mxu0 0.0
        %3028 = vmatprep.subr.mxu0 0.0
        %3029 = vmatpush1.msra.mxu0 0.0
        %3030 = vmatprep.subr.mxu0 0.0
        %3031 = vmatpush1.msra.mxu0 0.0
        %3032 = vmatprep.subr.mxu0 0.0
        %3033 = vmatpush1.msra.mxu0 0.0
        %3034 = vmatprep.subr.mxu0 0.0
        %3035 = vmatpush1.msra.mxu0 0.0
        %3036 = vmatprep.subr.mxu0 0.0
        %3037 = vmatpush1.msra.mxu0 0.0
        %3038 = vmatprep.subr.mxu0 0.0
        %3039 = vmatpush1.msra.mxu0 0.0
        %3040 = vmatprep.subr.mxu0 0.0
        %3041 = vmatpush1.msra.mxu0 0.0
        %3042 = vmatprep.subr.mxu0 0.0
        %3043 = vmatpush1.msra.mxu0 0.0
        %3044 = vmatprep.subr.mxu0 0.0
        %3045 = vmatpush1.msra.mxu0 0.0
        %3046 = vmatprep.subr.mxu0 0.0
        %3047 = vmatpush1.msra.mxu0 0.0
        %3048 = vmatprep.subr.mxu0 0.0
        %3049 = vmatpush1.msra.mxu0 0.0
        %3050 = vmatprep.subr.mxu0 0.0
        %3051 = vmatpush1.msra.mxu0 0.0
        %3052 = vmatprep.subr.mxu0 0.0
        %3053 = vmatpush1.msra.mxu0 0.0
        %3054 = vmatprep.mubr.f32.mxu0 0.0
        %3055 = vmatmul.mubr.f32.gmra.mrb[0].mxu0 %v2890
        %v3056 = vpop.f32.mrb[0].mxu0
        %v3057 = vadd.f32 0.0, %v3056
        %v3058 = vpop.f32.mrb[0].mxu0
        %v3059 = vadd.f32 0.0, %v3058
        %3060 = vmatprep.mubr.f32.mxu0 0.0
        %3061 = vmatmul.mubr.f32.gmra.mrb[0].mxu0 %v2893
        %v3062 = vpop.f32.mrb[0].mxu0
        %v3063 = vadd.f32 0.0, %v3062
        %v3064 = vpop.f32.mrb[0].mxu0
        %v3065 = vadd.f32 0.0, %v3064
        %3066 = vmatprep.mubr.f32.mxu0 0.0
        %3067 = vmatmul.mubr.f32.gmra.mrb[0].mxu0 %v2896
        %v3068 = vpop.f32.mrb[0].mxu0
        %v3069 = vadd.f32 0.0, %v3068
        %v3070 = vpop.f32.mrb[0].mxu0
        %v3071 = vadd.f32 0.0, %v3070
        %3072 = vmatprep.mubr.f32.mxu0 0.0
        %3073 = vmatmul.mubr.f32.gmra.mrb[0].mxu0 %v2899
        %v3074 = vpop.f32.mrb[0].mxu0
        %v3075 = vadd.f32 0.0, %v3074
        %v3076 = vpop.f32.mrb[0].mxu0
        %v3077 = vadd.f32 0.0, %v3076
        %3078 = vdwg.mxu0
        %3079 = vmatprep.subr.mxu0 0.0
        %3080 = vmatpush1.msra.mxu0 %v2883
        %3081 = vmatprep.subr.mxu0 0.0
        %3082 = vmatpush1.msra.mxu0 0.0
        %3083 = vmatprep.subr.mxu0 0.0
        %3084 = vmatpush1.msra.mxu0 0.0
        %3085 = vmatprep.subr.mxu0 0.0
        %3086 = vmatpush1.msra.mxu0 0.0
        %3087 = vmatprep.subr.mxu0 0.0
        %3088 = vmatpush1.msra.mxu0 0.0
        %3089 = vmatprep.subr.mxu0 0.0
        %3090 = vmatpush1.msra.mxu0 0.0
        %3091 = vmatprep.subr.mxu0 0.0
        %3092 = vmatpush1.msra.mxu0 0.0
        %3093 = vmatprep.subr.mxu0 0.0
        %3094 = vmatpush1.msra.mxu0 0.0
        %3095 = vmatprep.subr.mxu0 0.0
        %3096 = vmatpush1.msra.mxu0 0.0
        %3097 = vmatprep.subr.mxu0 0.0
        %3098 = vmatpush1.msra.mxu0 0.0
        %3099 = vmatprep.subr.mxu0 0.0
        %3100 = vmatpush1.msra.mxu0 0.0
        %3101 = vmatprep.subr.mxu0 0.0
        %3102 = vmatpush1.msra.mxu0 0.0
        %3103 = vmatprep.subr.mxu0 0.0
        %3104 = vmatpush1.msra.mxu0 0.0
        %3105 = vmatprep.subr.mxu0 0.0
        %3106 = vmatpush1.msra.mxu0 0.0
        %3107 = vmatprep.subr.mxu0 0.0
        %3108 = vmatpush1.msra.mxu0 0.0
        %3109 = vmatprep.subr.mxu0 0.0
        %3110 = vmatpush1.msra.mxu0 0.0
        %3111 = vmatprep.subr.mxu0 0.0
        %3112 = vmatpush1.msra.mxu0 0.0
        %3113 = vmatprep.subr.mxu0 0.0
        %3114 = vmatpush1.msra.mxu0 0.0
        %3115 = vmatprep.subr.mxu0 0.0
        %3116 = vmatpush1.msra.mxu0 0.0
        %3117 = vmatprep.subr.mxu0 0.0
        %3118 = vmatpush1.msra.mxu0 0.0
        %3119 = vmatprep.subr.mxu0 0.0
        %3120 = vmatpush1.msra.mxu0 0.0
        %3121 = vmatprep.subr.mxu0 0.0
        %3122 = vmatpush1.msra.mxu0 0.0
        %3123 = vmatprep.subr.mxu0 0.0
        %3124 = vmatpush1.msra.mxu0 0.0
        %3125 = vmatprep.subr.mxu0 0.0
        %3126 = vmatpush1.msra.mxu0 0.0
        %3127 = vmatprep.subr.mxu0 0.0
        %3128 = vmatpush1.msra.mxu0 0.0
        %3129 = vmatprep.subr.mxu0 0.0
        %3130 = vmatpush1.msra.mxu0 0.0
        %3131 = vmatprep.subr.mxu0 0.0
        %3132 = vmatpush1.msra.mxu0 0.0
        %3133 = vmatprep.subr.mxu0 0.0
        %3134 = vmatpush1.msra.mxu0 0.0
        %3135 = vmatprep.subr.mxu0 0.0
        %3136 = vmatpush1.msra.mxu0 0.0
        %3137 = vmatprep.subr.mxu0 0.0
        %3138 = vmatpush1.msra.mxu0 0.0
        %3139 = vmatprep.subr.mxu0 0.0
        %3140 = vmatpush1.msra.mxu0 0.0
        %3141 = vmatprep.subr.mxu0 0.0
        %3142 = vmatpush1.msra.mxu0 0.0
        %3143 = vmatprep.mubr.f32.mxu0 0.0
        %3144 = vmatmul.mubr.f32.gmra.mrb[0].mxu0 %v2890
        %v3145 = vpop.f32.mrb[0].mxu0
        %v3146 = vadd.f32 0.0, %v3145
        %v3147 = vpop.f32.mrb[0].mxu0
        %3148 = vmatprep.mubr.f32.mxu0 0.0
        %3149 = vmatmul.mubr.f32.gmra.mrb[0].mxu0 %v2893
        %v3150 = vpop.f32.mrb[0].mxu0
        %v3151 = vadd.f32 0.0, %v3150
        %v3152 = vpop.f32.mrb[0].mxu0
        %3153 = vmatprep.mubr.f32.mxu0 0.0
        %3154 = vmatmul.mubr.f32.gmra.mrb[0].mxu0 %v2896
        %v3155 = vpop.f32.mrb[0].mxu0
        %v3156 = vadd.f32 0.0, %v3155
        %v3157 = vpop.f32.mrb[0].mxu0
        %3158 = vmatprep.mubr.f32.mxu0 0.0
        %3159 = vmatmul.mubr.f32.gmra.mrb[0].mxu0 %v2899
        %v3160 = vpop.f32.mrb[0].mxu0
        %v3161 = vadd.f32 0.0, %v3160
        %v3162 = vpop.f32.mrb[0].mxu0
        %3163 = vdwg.mxu0
        %v3164 = vadd.f32 %v2841, %v2968
        %v3165 = vadd.f32 %v2842, %v2970
        %v3166 = vadd.f32 %v2843, %v3057
        %v3167 = vadd.f32 %v2844, %v3059
        %v3168 = vadd.f32 %v2845, %v3146
        %v3169 = vadd.f32 %v2846, %v2974
        %v3170 = vadd.f32 %v2847, %v2976
        %v3171 = vadd.f32 %v2848, %v3063
        %v3172 = vadd.f32 %v2849, %v3065
        %v3173 = vadd.f32 %v2850, %v3151
        %v3174 = vadd.f32 %v2851, %v2980
        %v3175 = vadd.f32 %v2852, %v2982
        %v3176 = vadd.f32 %v2853, %v3069
        %v3177 = vadd.f32 %v2854, %v3071
        %v3178 = vadd.f32 %v2855, %v3156
        %v3179 = vadd.f32 %v2856, %v2986
        %v3180 = vadd.f32 %v2857, %v2988
        %v3181 = vadd.f32 %v2858, %v3075
        %v3182 = vadd.f32 %v2859, %v3077
        %v3183 = vadd.f32 %v2860, %v3161
        %s3184 = scalar_lea.vmem %s1, 288
        %v3185 = vld [vmem:[%s3184] sm:$0xff]
        %v3186 = vld [vmem:[%s3184 + $0x8] sm:$0xff]
        %v3187 = vld [vmem:[%s3184 + $0x10] sm:$0xff]
        %v3188 = vld [vmem:[%s3184 + $0x18] sm:$0xff]
        %3189 = vrot.lane.b32.xlu0 %v332, 28
        %v3190 = vpop.permute.xlu0 %3189
        %3191 = vrot.lane.b32.xlu0 %v333, 28
        %v3192 = vpop.permute.xlu0 %3191
        %3193 = vrot.lane.b32.xlu0 %v334, 28
        %v3194 = vpop.permute.xlu0 %3193
        %3195 = vrot.lane.b32.xlu0 %v335, 28
        %v3196 = vpop.permute.xlu0 %3195
        %3197 = vrot.lane.b32.xlu0 %v336, 28
        %v3198 = vpop.permute.xlu0 %3197
        %3199 = vrot.lane.b32.xlu0 %v342, 28
        %v3200 = vpop.permute.xlu0 %3199
        %vm3201 = vcmask 228352
        %v3202 = vsel %vm3201, %v3190, %v3192
        %v3203 = vsel %vm3201, %v3192, %v3194
        %v3204 = vsel %vm3201, %v3194, %v3196
        %v3205 = vsel %vm3201, %v3196, %v3198
        %v3206 = vsel %vm3201, %v3198, %v3200
        %v3213 = vsel %vm372, %v3185, 0
        %v3216 = vsel %vm372, %v3186, 0
        %v3219 = vsel %vm372, %v3187, 0
        %v3222 = vsel %vm372, %v3188, 0
        %3224 = vmatprep.subr.mxu0 %v3203
        %3225 = vmatpush1.msra.mxu0 %v3202
        %3226 = vmatprep.subr.mxu0 0.0
        %3227 = vmatpush1.msra.mxu0 0.0
        %3228 = vmatprep.subr.mxu0 0.0
        %3229 = vmatpush1.msra.mxu0 0.0
        %3230 = vmatprep.subr.mxu0 0.0
        %3231 = vmatpush1.msra.mxu0 0.0
        %3232 = vmatprep.subr.mxu0 0.0
        %3233 = vmatpush1.msra.mxu0 0.0
        %3234 = vmatprep.subr.mxu0 0.0
        %3235 = vmatpush1.msra.mxu0 0.0
        %3236 = vmatprep.subr.mxu0 0.0
        %3237 = vmatpush1.msra.mxu0 0.0
        %3238 = vmatprep.subr.mxu0 0.0
        %3239 = vmatpush1.msra.mxu0 0.0
        %3240 = vmatprep.subr.mxu0 0.0
        %3241 = vmatpush1.msra.mxu0 0.0
        %3242 = vmatprep.subr.mxu0 0.0
        %3243 = vmatpush1.msra.mxu0 0.0
        %3244 = vmatprep.subr.mxu0 0.0
        %3245 = vmatpush1.msra.mxu0 0.0
        %3246 = vmatprep.subr.mxu0 0.0
        %3247 = vmatpush1.msra.mxu0 0.0
        %3248 = vmatprep.subr.mxu0 0.0
        %3249 = vmatpush1.msra.mxu0 0.0
        %3250 = vmatprep.subr.mxu0 0.0
        %3251 = vmatpush1.msra.mxu0 0.0
        %3252 = vmatprep.subr.mxu0 0.0
        %3253 = vmatpush1.msra.mxu0 0.0
        %3254 = vmatprep.subr.mxu0 0.0
        %3255 = vmatpush1.msra.mxu0 0.0
        %3256 = vmatprep.subr.mxu0 0.0
        %3257 = vmatpush1.msra.mxu0 0.0
        %3258 = vmatprep.subr.mxu0 0.0
        %3259 = vmatpush1.msra.mxu0 0.0
        %3260 = vmatprep.subr.mxu0 0.0
        %3261 = vmatpush1.msra.mxu0 0.0
        %3262 = vmatprep.subr.mxu0 0.0
        %3263 = vmatpush1.msra.mxu0 0.0
        %3264 = vmatprep.subr.mxu0 0.0
        %3265 = vmatpush1.msra.mxu0 0.0
        %3266 = vmatprep.subr.mxu0 0.0
        %3267 = vmatpush1.msra.mxu0 0.0
        %3268 = vmatprep.subr.mxu0 0.0
        %3269 = vmatpush1.msra.mxu0 0.0
        %3270 = vmatprep.subr.mxu0 0.0
        %3271 = vmatpush1.msra.mxu0 0.0
        %3272 = vmatprep.subr.mxu0 0.0
        %3273 = vmatpush1.msra.mxu0 0.0
        %3274 = vmatprep.subr.mxu0 0.0
        %3275 = vmatpush1.msra.mxu0 0.0
        %3276 = vmatprep.subr.mxu0 0.0
        %3277 = vmatpush1.msra.mxu0 0.0
        %3278 = vmatprep.subr.mxu0 0.0
        %3279 = vmatpush1.msra.mxu0 0.0
        %3280 = vmatprep.subr.mxu0 0.0
        %3281 = vmatpush1.msra.mxu0 0.0
        %3282 = vmatprep.subr.mxu0 0.0
        %3283 = vmatpush1.msra.mxu0 0.0
        %3284 = vmatprep.subr.mxu0 0.0
        %3285 = vmatpush1.msra.mxu0 0.0
        %3286 = vmatprep.subr.mxu0 0.0
        %3287 = vmatpush1.msra.mxu0 0.0
        %3288 = vmatprep.mubr.f32.mxu0 0.0
        %3289 = vmatmul.mubr.f32.gmra.mrb[0].mxu0 %v3213
        %v3290 = vpop.f32.mrb[0].mxu0
        %v3291 = vadd.f32 0.0, %v3290
        %v3292 = vpop.f32.mrb[0].mxu0
        %v3293 = vadd.f32 0.0, %v3292
        %3294 = vmatprep.mubr.f32.mxu0 0.0
        %3295 = vmatmul.mubr.f32.gmra.mrb[0].mxu0 %v3216
        %v3296 = vpop.f32.mrb[0].mxu0
        %v3297 = vadd.f32 0.0, %v3296
        %v3298 = vpop.f32.mrb[0].mxu0
        %v3299 = vadd.f32 0.0, %v3298
        %3300 = vmatprep.mubr.f32.mxu0 0.0
        %3301 = vmatmul.mubr.f32.gmra.mrb[0].mxu0 %v3219
        %v3302 = vpop.f32.mrb[0].mxu0
        %v3303 = vadd.f32 0.0, %v3302
        %v3304 = vpop.f32.mrb[0].mxu0
        %v3305 = vadd.f32 0.0, %v3304
        %3306 = vmatprep.mubr.f32.mxu0 0.0
        %3307 = vmatmul.mubr.f32.gmra.mrb[0].mxu0 %v3222
        %v3308 = vpop.f32.mrb[0].mxu0
        %v3309 = vadd.f32 0.0, %v3308
        %v3310 = vpop.f32.mrb[0].mxu0
        %v3311 = vadd.f32 0.0, %v3310
        %3312 = vdwg.mxu0
        %3313 = vmatprep.subr.mxu0 %v3205
        %3314 = vmatpush1.msra.mxu0 %v3204
        %3315 = vmatprep.subr.mxu0 0.0
        %3316 = vmatpush1.msra.mxu0 0.0
        %3317 = vmatprep.subr.mxu0 0.0
        %3318 = vmatpush1.msra.mxu0 0.0
        %3319 = vmatprep.subr.mxu0 0.0
        %3320 = vmatpush1.msra.mxu0 0.0
        %3321 = vmatprep.subr.mxu0 0.0
        %3322 = vmatpush1.msra.mxu0 0.0
        %3323 = vmatprep.subr.mxu0 0.0
        %3324 = vmatpush1.msra.mxu0 0.0
        %3325 = vmatprep.subr.mxu0 0.0
        %3326 = vmatpush1.msra.mxu0 0.0
        %3327 = vmatprep.subr.mxu0 0.0
        %3328 = vmatpush1.msra.mxu0 0.0
        %3329 = vmatprep.subr.mxu0 0.0
        %3330 = vmatpush1.msra.mxu0 0.0
        %3331 = vmatprep.subr.mxu0 0.0
        %3332 = vmatpush1.msra.mxu0 0.0
        %3333 = vmatprep.subr.mxu0 0.0
        %3334 = vmatpush1.msra.mxu0 0.0
        %3335 = vmatprep.subr.mxu0 0.0
        %3336 = vmatpush1.msra.mxu0 0.0
        %3337 = vmatprep.subr.mxu0 0.0
        %3338 = vmatpush1.msra.mxu0 0.0
        %3339 = vmatprep.subr.mxu0 0.0
        %3340 = vmatpush1.msra.mxu0 0.0
        %3341 = vmatprep.subr.mxu0 0.0
        %3342 = vmatpush1.msra.mxu0 0.0
        %3343 = vmatprep.subr.mxu0 0.0
        %3344 = vmatpush1.msra.mxu0 0.0
        %3345 = vmatprep.subr.mxu0 0.0
        %3346 = vmatpush1.msra.mxu0 0.0
        %3347 = vmatprep.subr.mxu0 0.0
        %3348 = vmatpush1.msra.mxu0 0.0
        %3349 = vmatprep.subr.mxu0 0.0
        %3350 = vmatpush1.msra.mxu0 0.0
        %3351 = vmatprep.subr.mxu0 0.0
        %3352 = vmatpush1.msra.mxu0 0.0
        %3353 = vmatprep.subr.mxu0 0.0
        %3354 = vmatpush1.msra.mxu0 0.0
        %3355 = vmatprep.subr.mxu0 0.0
        %3356 = vmatpush1.msra.mxu0 0.0
        %3357 = vmatprep.subr.mxu0 0.0
        %3358 = vmatpush1.msra.mxu0 0.0
        %3359 = vmatprep.subr.mxu0 0.0
        %3360 = vmatpush1.msra.mxu0 0.0
        %3361 = vmatprep.subr.mxu0 0.0
        %3362 = vmatpush1.msra.mxu0 0.0
        %3363 = vmatprep.subr.mxu0 0.0
        %3364 = vmatpush1.msra.mxu0 0.0
        %3365 = vmatprep.subr.mxu0 0.0
        %3366 = vmatpush1.msra.mxu0 0.0
        %3367 = vmatprep.subr.mxu0 0.0
        %3368 = vmatpush1.msra.mxu0 0.0
        %3369 = vmatprep.subr.mxu0 0.0
        %3370 = vmatpush1.msra.mxu0 0.0
        %3371 = vmatprep.subr.mxu0 0.0
        %3372 = vmatpush1.msra.mxu0 0.0
        %3373 = vmatprep.subr.mxu0 0.0
        %3374 = vmatpush1.msra.mxu0 0.0
        %3375 = vmatprep.subr.mxu0 0.0
        %3376 = vmatpush1.msra.mxu0 0.0
        %3377 = vmatprep.mubr.f32.mxu0 0.0
        %3378 = vmatmul.mubr.f32.gmra.mrb[0].mxu0 %v3213
        %v3379 = vpop.f32.mrb[0].mxu0
        %v3380 = vadd.f32 0.0, %v3379
        %v3381 = vpop.f32.mrb[0].mxu0
        %v3382 = vadd.f32 0.0, %v3381
        %3383 = vmatprep.mubr.f32.mxu0 0.0
        %3384 = vmatmul.mubr.f32.gmra.mrb[0].mxu0 %v3216
        %v3385 = vpop.f32.mrb[0].mxu0
        %v3386 = vadd.f32 0.0, %v3385
        %v3387 = vpop.f32.mrb[0].mxu0
        %v3388 = vadd.f32 0.0, %v3387
        %3389 = vmatprep.mubr.f32.mxu0 0.0
        %3390 = vmatmul.mubr.f32.gmra.mrb[0].mxu0 %v3219
        %v3391 = vpop.f32.mrb[0].mxu0
        %v3392 = vadd.f32 0.0, %v3391
        %v3393 = vpop.f32.mrb[0].mxu0
        %v3394 = vadd.f32 0.0, %v3393
        %3395 = vmatprep.mubr.f32.mxu0 0.0
        %3396 = vmatmul.mubr.f32.gmra.mrb[0].mxu0 %v3222
        %v3397 = vpop.f32.mrb[0].mxu0
        %v3398 = vadd.f32 0.0, %v3397
        %v3399 = vpop.f32.mrb[0].mxu0
        %v3400 = vadd.f32 0.0, %v3399
        %3401 = vdwg.mxu0
        %3402 = vmatprep.subr.mxu0 0.0
        %3403 = vmatpush1.msra.mxu0 %v3206
        %3404 = vmatprep.subr.mxu0 0.0
        %3405 = vmatpush1.msra.mxu0 0.0
        %3406 = vmatprep.subr.mxu0 0.0
        %3407 = vmatpush1.msra.mxu0 0.0
        %3408 = vmatprep.subr.mxu0 0.0
        %3409 = vmatpush1.msra.mxu0 0.0
        %3410 = vmatprep.subr.mxu0 0.0
        %3411 = vmatpush1.msra.mxu0 0.0
        %3412 = vmatprep.subr.mxu0 0.0
        %3413 = vmatpush1.msra.mxu0 0.0
        %3414 = vmatprep.subr.mxu0 0.0
        %3415 = vmatpush1.msra.mxu0 0.0
        %3416 = vmatprep.subr.mxu0 0.0
        %3417 = vmatpush1.msra.mxu0 0.0
        %3418 = vmatprep.subr.mxu0 0.0
        %3419 = vmatpush1.msra.mxu0 0.0
        %3420 = vmatprep.subr.mxu0 0.0
        %3421 = vmatpush1.msra.mxu0 0.0
        %3422 = vmatprep.subr.mxu0 0.0
        %3423 = vmatpush1.msra.mxu0 0.0
        %3424 = vmatprep.subr.mxu0 0.0
        %3425 = vmatpush1.msra.mxu0 0.0
        %3426 = vmatprep.subr.mxu0 0.0
        %3427 = vmatpush1.msra.mxu0 0.0
        %3428 = vmatprep.subr.mxu0 0.0
        %3429 = vmatpush1.msra.mxu0 0.0
        %3430 = vmatprep.subr.mxu0 0.0
        %3431 = vmatpush1.msra.mxu0 0.0
        %3432 = vmatprep.subr.mxu0 0.0
        %3433 = vmatpush1.msra.mxu0 0.0
        %3434 = vmatprep.subr.mxu0 0.0
        %3435 = vmatpush1.msra.mxu0 0.0
        %3436 = vmatprep.subr.mxu0 0.0
        %3437 = vmatpush1.msra.mxu0 0.0
        %3438 = vmatprep.subr.mxu0 0.0
        %3439 = vmatpush1.msra.mxu0 0.0
        %3440 = vmatprep.subr.mxu0 0.0
        %3441 = vmatpush1.msra.mxu0 0.0
        %3442 = vmatprep.subr.mxu0 0.0
        %3443 = vmatpush1.msra.mxu0 0.0
        %3444 = vmatprep.subr.mxu0 0.0
        %3445 = vmatpush1.msra.mxu0 0.0
        %3446 = vmatprep.subr.mxu0 0.0
        %3447 = vmatpush1.msra.mxu0 0.0
        %3448 = vmatprep.subr.mxu0 0.0
        %3449 = vmatpush1.msra.mxu0 0.0
        %3450 = vmatprep.subr.mxu0 0.0
        %3451 = vmatpush1.msra.mxu0 0.0
        %3452 = vmatprep.subr.mxu0 0.0
        %3453 = vmatpush1.msra.mxu0 0.0
        %3454 = vmatprep.subr.mxu0 0.0
        %3455 = vmatpush1.msra.mxu0 0.0
        %3456 = vmatprep.subr.mxu0 0.0
        %3457 = vmatpush1.msra.mxu0 0.0
        %3458 = vmatprep.subr.mxu0 0.0
        %3459 = vmatpush1.msra.mxu0 0.0
        %3460 = vmatprep.subr.mxu0 0.0
        %3461 = vmatpush1.msra.mxu0 0.0
        %3462 = vmatprep.subr.mxu0 0.0
        %3463 = vmatpush1.msra.mxu0 0.0
        %3464 = vmatprep.subr.mxu0 0.0
        %3465 = vmatpush1.msra.mxu0 0.0
        %3466 = vmatprep.mubr.f32.mxu0 0.0
        %3467 = vmatmul.mubr.f32.gmra.mrb[0].mxu0 %v3213
        %v3468 = vpop.f32.mrb[0].mxu0
        %v3469 = vadd.f32 0.0, %v3468
        %v3470 = vpop.f32.mrb[0].mxu0
        %3471 = vmatprep.mubr.f32.mxu0 0.0
        %3472 = vmatmul.mubr.f32.gmra.mrb[0].mxu0 %v3216
        %v3473 = vpop.f32.mrb[0].mxu0
        %v3474 = vadd.f32 0.0, %v3473
        %v3475 = vpop.f32.mrb[0].mxu0
        %3476 = vmatprep.mubr.f32.mxu0 0.0
        %3477 = vmatmul.mubr.f32.gmra.mrb[0].mxu0 %v3219
        %v3478 = vpop.f32.mrb[0].mxu0
        %v3479 = vadd.f32 0.0, %v3478
        %v3480 = vpop.f32.mrb[0].mxu0
        %3481 = vmatprep.mubr.f32.mxu0 0.0
        %3482 = vmatmul.mubr.f32.gmra.mrb[0].mxu0 %v3222
        %v3483 = vpop.f32.mrb[0].mxu0
        %v3484 = vadd.f32 0.0, %v3483
        %v3485 = vpop.f32.mrb[0].mxu0
        %3486 = vdwg.mxu0
        %v3487 = vadd.f32 %v3164, %v3291
        %v3488 = vadd.f32 %v3165, %v3293
        %v3489 = vadd.f32 %v3166, %v3380
        %v3490 = vadd.f32 %v3167, %v3382
        %v3491 = vadd.f32 %v3168, %v3469
        %v3492 = vadd.f32 %v3169, %v3297
        %v3493 = vadd.f32 %v3170, %v3299
        %v3494 = vadd.f32 %v3171, %v3386
        %v3495 = vadd.f32 %v3172, %v3388
        %v3496 = vadd.f32 %v3173, %v3474
        %v3497 = vadd.f32 %v3174, %v3303
        %v3498 = vadd.f32 %v3175, %v3305
        %v3499 = vadd.f32 %v3176, %v3392
        %v3500 = vadd.f32 %v3177, %v3394
        %v3501 = vadd.f32 %v3178, %v3479
        %v3502 = vadd.f32 %v3179, %v3309
        %v3503 = vadd.f32 %v3180, %v3311
        %v3504 = vadd.f32 %v3181, %v3398
        %v3505 = vadd.f32 %v3182, %v3400
        %v3506 = vadd.f32 %v3183, %v3484
        %s3507 = scalar_lea.vmem %s1, 320
        %v3508 = vld [vmem:[%s3507] sm:$0xff]
        %v3509 = vld [vmem:[%s3507 + $0x8] sm:$0xff]
        %v3510 = vld [vmem:[%s3507 + $0x10] sm:$0xff]
        %v3511 = vld [vmem:[%s3507 + $0x18] sm:$0xff]
        %3512 = vrot.lane.b32.xlu0 %v332, 27
        %v3513 = vpop.permute.xlu0 %3512
        %3514 = vrot.lane.b32.xlu0 %v333, 27
        %v3515 = vpop.permute.xlu0 %3514
        %3516 = vrot.lane.b32.xlu0 %v334, 27
        %v3517 = vpop.permute.xlu0 %3516
        %3518 = vrot.lane.b32.xlu0 %v335, 27
        %v3519 = vpop.permute.xlu0 %3518
        %3520 = vrot.lane.b32.xlu0 %v336, 27
        %v3521 = vpop.permute.xlu0 %3520
        %3522 = vrot.lane.b32.xlu0 %v342, 27
        %v3523 = vpop.permute.xlu0 %3522
        %vm3524 = vcmask 220160
        %v3525 = vsel %vm3524, %v3513, %v3515
        %v3526 = vsel %vm3524, %v3515, %v3517
        %v3527 = vsel %vm3524, %v3517, %v3519
        %v3528 = vsel %vm3524, %v3519, %v3521
        %v3529 = vsel %vm3524, %v3521, %v3523
        %v3536 = vsel %vm372, %v3508, 0
        %v3539 = vsel %vm372, %v3509, 0
        %v3542 = vsel %vm372, %v3510, 0
        %v3545 = vsel %vm372, %v3511, 0
        %3547 = vmatprep.subr.mxu0 %v3526
        %3548 = vmatpush1.msra.mxu0 %v3525
        %3549 = vmatprep.subr.mxu0 0.0
        %3550 = vmatpush1.msra.mxu0 0.0
        %3551 = vmatprep.subr.mxu0 0.0
        %3552 = vmatpush1.msra.mxu0 0.0
        %3553 = vmatprep.subr.mxu0 0.0
        %3554 = vmatpush1.msra.mxu0 0.0
        %3555 = vmatprep.subr.mxu0 0.0
        %3556 = vmatpush1.msra.mxu0 0.0
        %3557 = vmatprep.subr.mxu0 0.0
        %3558 = vmatpush1.msra.mxu0 0.0
        %3559 = vmatprep.subr.mxu0 0.0
        %3560 = vmatpush1.msra.mxu0 0.0
        %3561 = vmatprep.subr.mxu0 0.0
        %3562 = vmatpush1.msra.mxu0 0.0
        %3563 = vmatprep.subr.mxu0 0.0
        %3564 = vmatpush1.msra.mxu0 0.0
        %3565 = vmatprep.subr.mxu0 0.0
        %3566 = vmatpush1.msra.mxu0 0.0
        %3567 = vmatprep.subr.mxu0 0.0
        %3568 = vmatpush1.msra.mxu0 0.0
        %3569 = vmatprep.subr.mxu0 0.0
        %3570 = vmatpush1.msra.mxu0 0.0
        %3571 = vmatprep.subr.mxu0 0.0
        %3572 = vmatpush1.msra.mxu0 0.0
        %3573 = vmatprep.subr.mxu0 0.0
        %3574 = vmatpush1.msra.mxu0 0.0
        %3575 = vmatprep.subr.mxu0 0.0
        %3576 = vmatpush1.msra.mxu0 0.0
        %3577 = vmatprep.subr.mxu0 0.0
        %3578 = vmatpush1.msra.mxu0 0.0
        %3579 = vmatprep.subr.mxu0 0.0
        %3580 = vmatpush1.msra.mxu0 0.0
        %3581 = vmatprep.subr.mxu0 0.0
        %3582 = vmatpush1.msra.mxu0 0.0
        %3583 = vmatprep.subr.mxu0 0.0
        %3584 = vmatpush1.msra.mxu0 0.0
        %3585 = vmatprep.subr.mxu0 0.0
        %3586 = vmatpush1.msra.mxu0 0.0
        %3587 = vmatprep.subr.mxu0 0.0
        %3588 = vmatpush1.msra.mxu0 0.0
        %3589 = vmatprep.subr.mxu0 0.0
        %3590 = vmatpush1.msra.mxu0 0.0
        %3591 = vmatprep.subr.mxu0 0.0
        %3592 = vmatpush1.msra.mxu0 0.0
        %3593 = vmatprep.subr.mxu0 0.0
        %3594 = vmatpush1.msra.mxu0 0.0
        %3595 = vmatprep.subr.mxu0 0.0
        %3596 = vmatpush1.msra.mxu0 0.0
        %3597 = vmatprep.subr.mxu0 0.0
        %3598 = vmatpush1.msra.mxu0 0.0
        %3599 = vmatprep.subr.mxu0 0.0
        %3600 = vmatpush1.msra.mxu0 0.0
        %3601 = vmatprep.subr.mxu0 0.0
        %3602 = vmatpush1.msra.mxu0 0.0
        %3603 = vmatprep.subr.mxu0 0.0
        %3604 = vmatpush1.msra.mxu0 0.0
        %3605 = vmatprep.subr.mxu0 0.0
        %3606 = vmatpush1.msra.mxu0 0.0
        %3607 = vmatprep.subr.mxu0 0.0
        %3608 = vmatpush1.msra.mxu0 0.0
        %3609 = vmatprep.subr.mxu0 0.0
        %3610 = vmatpush1.msra.mxu0 0.0
        %3611 = vmatprep.mubr.f32.mxu0 0.0
        %3612 = vmatmul.mubr.f32.gmra.mrb[0].mxu0 %v3536
        %v3613 = vpop.f32.mrb[0].mxu0
        %v3614 = vadd.f32 0.0, %v3613
        %v3615 = vpop.f32.mrb[0].mxu0
        %v3616 = vadd.f32 0.0, %v3615
        %3617 = vmatprep.mubr.f32.mxu0 0.0
        %3618 = vmatmul.mubr.f32.gmra.mrb[0].mxu0 %v3539
        %v3619 = vpop.f32.mrb[0].mxu0
        %v3620 = vadd.f32 0.0, %v3619
        %v3621 = vpop.f32.mrb[0].mxu0
        %v3622 = vadd.f32 0.0, %v3621
        %3623 = vmatprep.mubr.f32.mxu0 0.0
        %3624 = vmatmul.mubr.f32.gmra.mrb[0].mxu0 %v3542
        %v3625 = vpop.f32.mrb[0].mxu0
        %v3626 = vadd.f32 0.0, %v3625
        %v3627 = vpop.f32.mrb[0].mxu0
        %v3628 = vadd.f32 0.0, %v3627
        %3629 = vmatprep.mubr.f32.mxu0 0.0
        %3630 = vmatmul.mubr.f32.gmra.mrb[0].mxu0 %v3545
        %v3631 = vpop.f32.mrb[0].mxu0
        %v3632 = vadd.f32 0.0, %v3631
        %v3633 = vpop.f32.mrb[0].mxu0
        %v3634 = vadd.f32 0.0, %v3633
        %3635 = vdwg.mxu0
        %3636 = vmatprep.subr.mxu0 %v3528
        %3637 = vmatpush1.msra.mxu0 %v3527
        %3638 = vmatprep.subr.mxu0 0.0
        %3639 = vmatpush1.msra.mxu0 0.0
        %3640 = vmatprep.subr.mxu0 0.0
        %3641 = vmatpush1.msra.mxu0 0.0
        %3642 = vmatprep.subr.mxu0 0.0
        %3643 = vmatpush1.msra.mxu0 0.0
        %3644 = vmatprep.subr.mxu0 0.0
        %3645 = vmatpush1.msra.mxu0 0.0
        %3646 = vmatprep.subr.mxu0 0.0
        %3647 = vmatpush1.msra.mxu0 0.0
        %3648 = vmatprep.subr.mxu0 0.0
        %3649 = vmatpush1.msra.mxu0 0.0
        %3650 = vmatprep.subr.mxu0 0.0
        %3651 = vmatpush1.msra.mxu0 0.0
        %3652 = vmatprep.subr.mxu0 0.0
        %3653 = vmatpush1.msra.mxu0 0.0
        %3654 = vmatprep.subr.mxu0 0.0
        %3655 = vmatpush1.msra.mxu0 0.0
        %3656 = vmatprep.subr.mxu0 0.0
        %3657 = vmatpush1.msra.mxu0 0.0
        %3658 = vmatprep.subr.mxu0 0.0
        %3659 = vmatpush1.msra.mxu0 0.0
        %3660 = vmatprep.subr.mxu0 0.0
        %3661 = vmatpush1.msra.mxu0 0.0
        %3662 = vmatprep.subr.mxu0 0.0
        %3663 = vmatpush1.msra.mxu0 0.0
        %3664 = vmatprep.subr.mxu0 0.0
        %3665 = vmatpush1.msra.mxu0 0.0
        %3666 = vmatprep.subr.mxu0 0.0
        %3667 = vmatpush1.msra.mxu0 0.0
        %3668 = vmatprep.subr.mxu0 0.0
        %3669 = vmatpush1.msra.mxu0 0.0
        %3670 = vmatprep.subr.mxu0 0.0
        %3671 = vmatpush1.msra.mxu0 0.0
        %3672 = vmatprep.subr.mxu0 0.0
        %3673 = vmatpush1.msra.mxu0 0.0
        %3674 = vmatprep.subr.mxu0 0.0
        %3675 = vmatpush1.msra.mxu0 0.0
        %3676 = vmatprep.subr.mxu0 0.0
        %3677 = vmatpush1.msra.mxu0 0.0
        %3678 = vmatprep.subr.mxu0 0.0
        %3679 = vmatpush1.msra.mxu0 0.0
        %3680 = vmatprep.subr.mxu0 0.0
        %3681 = vmatpush1.msra.mxu0 0.0
        %3682 = vmatprep.subr.mxu0 0.0
        %3683 = vmatpush1.msra.mxu0 0.0
        %3684 = vmatprep.subr.mxu0 0.0
        %3685 = vmatpush1.msra.mxu0 0.0
        %3686 = vmatprep.subr.mxu0 0.0
        %3687 = vmatpush1.msra.mxu0 0.0
        %3688 = vmatprep.subr.mxu0 0.0
        %3689 = vmatpush1.msra.mxu0 0.0
        %3690 = vmatprep.subr.mxu0 0.0
        %3691 = vmatpush1.msra.mxu0 0.0
        %3692 = vmatprep.subr.mxu0 0.0
        %3693 = vmatpush1.msra.mxu0 0.0
        %3694 = vmatprep.subr.mxu0 0.0
        %3695 = vmatpush1.msra.mxu0 0.0
        %3696 = vmatprep.subr.mxu0 0.0
        %3697 = vmatpush1.msra.mxu0 0.0
        %3698 = vmatprep.subr.mxu0 0.0
        %3699 = vmatpush1.msra.mxu0 0.0
        %3700 = vmatprep.mubr.f32.mxu0 0.0
        %3701 = vmatmul.mubr.f32.gmra.mrb[0].mxu0 %v3536
        %v3702 = vpop.f32.mrb[0].mxu0
        %v3703 = vadd.f32 0.0, %v3702
        %v3704 = vpop.f32.mrb[0].mxu0
        %v3705 = vadd.f32 0.0, %v3704
        %3706 = vmatprep.mubr.f32.mxu0 0.0
        %3707 = vmatmul.mubr.f32.gmra.mrb[0].mxu0 %v3539
        %v3708 = vpop.f32.mrb[0].mxu0
        %v3709 = vadd.f32 0.0, %v3708
        %v3710 = vpop.f32.mrb[0].mxu0
        %v3711 = vadd.f32 0.0, %v3710
        %3712 = vmatprep.mubr.f32.mxu0 0.0
        %3713 = vmatmul.mubr.f32.gmra.mrb[0].mxu0 %v3542
        %v3714 = vpop.f32.mrb[0].mxu0
        %v3715 = vadd.f32 0.0, %v3714
        %v3716 = vpop.f32.mrb[0].mxu0
        %v3717 = vadd.f32 0.0, %v3716
        %3718 = vmatprep.mubr.f32.mxu0 0.0
        %3719 = vmatmul.mubr.f32.gmra.mrb[0].mxu0 %v3545
        %v3720 = vpop.f32.mrb[0].mxu0
        %v3721 = vadd.f32 0.0, %v3720
        %v3722 = vpop.f32.mrb[0].mxu0
        %v3723 = vadd.f32 0.0, %v3722
        %3724 = vdwg.mxu0
        %3725 = vmatprep.subr.mxu0 0.0
        %3726 = vmatpush1.msra.mxu0 %v3529
        %3727 = vmatprep.subr.mxu0 0.0
        %3728 = vmatpush1.msra.mxu0 0.0
        %3729 = vmatprep.subr.mxu0 0.0
        %3730 = vmatpush1.msra.mxu0 0.0
        %3731 = vmatprep.subr.mxu0 0.0
        %3732 = vmatpush1.msra.mxu0 0.0
        %3733 = vmatprep.subr.mxu0 0.0
        %3734 = vmatpush1.msra.mxu0 0.0
        %3735 = vmatprep.subr.mxu0 0.0
        %3736 = vmatpush1.msra.mxu0 0.0
        %3737 = vmatprep.subr.mxu0 0.0
        %3738 = vmatpush1.msra.mxu0 0.0
        %3739 = vmatprep.subr.mxu0 0.0
        %3740 = vmatpush1.msra.mxu0 0.0
        %3741 = vmatprep.subr.mxu0 0.0
        %3742 = vmatpush1.msra.mxu0 0.0
        %3743 = vmatprep.subr.mxu0 0.0
        %3744 = vmatpush1.msra.mxu0 0.0
        %3745 = vmatprep.subr.mxu0 0.0
        %3746 = vmatpush1.msra.mxu0 0.0
        %3747 = vmatprep.subr.mxu0 0.0
        %3748 = vmatpush1.msra.mxu0 0.0
        %3749 = vmatprep.subr.mxu0 0.0
        %3750 = vmatpush1.msra.mxu0 0.0
        %3751 = vmatprep.subr.mxu0 0.0
        %3752 = vmatpush1.msra.mxu0 0.0
        %3753 = vmatprep.subr.mxu0 0.0
        %3754 = vmatpush1.msra.mxu0 0.0
        %3755 = vmatprep.subr.mxu0 0.0
        %3756 = vmatpush1.msra.mxu0 0.0
        %3757 = vmatprep.subr.mxu0 0.0
        %3758 = vmatpush1.msra.mxu0 0.0
        %3759 = vmatprep.subr.mxu0 0.0
        %3760 = vmatpush1.msra.mxu0 0.0
        %3761 = vmatprep.subr.mxu0 0.0
        %3762 = vmatpush1.msra.mxu0 0.0
        %3763 = vmatprep.subr.mxu0 0.0
        %3764 = vmatpush1.msra.mxu0 0.0
        %3765 = vmatprep.subr.mxu0 0.0
        %3766 = vmatpush1.msra.mxu0 0.0
        %3767 = vmatprep.subr.mxu0 0.0
        %3768 = vmatpush1.msra.mxu0 0.0
        %3769 = vmatprep.subr.mxu0 0.0
        %3770 = vmatpush1.msra.mxu0 0.0
        %3771 = vmatprep.subr.mxu0 0.0
        %3772 = vmatpush1.msra.mxu0 0.0
        %3773 = vmatprep.subr.mxu0 0.0
        %3774 = vmatpush1.msra.mxu0 0.0
        %3775 = vmatprep.subr.mxu0 0.0
        %3776 = vmatpush1.msra.mxu0 0.0
        %3777 = vmatprep.subr.mxu0 0.0
        %3778 = vmatpush1.msra.mxu0 0.0
        %3779 = vmatprep.subr.mxu0 0.0
        %3780 = vmatpush1.msra.mxu0 0.0
        %3781 = vmatprep.subr.mxu0 0.0
        %3782 = vmatpush1.msra.mxu0 0.0
        %3783 = vmatprep.subr.mxu0 0.0
        %3784 = vmatpush1.msra.mxu0 0.0
        %3785 = vmatprep.subr.mxu0 0.0
        %3786 = vmatpush1.msra.mxu0 0.0
        %3787 = vmatprep.subr.mxu0 0.0
        %3788 = vmatpush1.msra.mxu0 0.0
        %3789 = vmatprep.mubr.f32.mxu0 0.0
        %3790 = vmatmul.mubr.f32.gmra.mrb[0].mxu0 %v3536
        %v3791 = vpop.f32.mrb[0].mxu0
        %v3792 = vadd.f32 0.0, %v3791
        %v3793 = vpop.f32.mrb[0].mxu0
        %3794 = vmatprep.mubr.f32.mxu0 0.0
        %3795 = vmatmul.mubr.f32.gmra.mrb[0].mxu0 %v3539
        %v3796 = vpop.f32.mrb[0].mxu0
        %v3797 = vadd.f32 0.0, %v3796
        %v3798 = vpop.f32.mrb[0].mxu0
        %3799 = vmatprep.mubr.f32.mxu0 0.0
        %3800 = vmatmul.mubr.f32.gmra.mrb[0].mxu0 %v3542
        %v3801 = vpop.f32.mrb[0].mxu0
        %v3802 = vadd.f32 0.0, %v3801
        %v3803 = vpop.f32.mrb[0].mxu0
        %3804 = vmatprep.mubr.f32.mxu0 0.0
        %3805 = vmatmul.mubr.f32.gmra.mrb[0].mxu0 %v3545
        %v3806 = vpop.f32.mrb[0].mxu0
        %v3807 = vadd.f32 0.0, %v3806
        %v3808 = vpop.f32.mrb[0].mxu0
        %3809 = vdwg.mxu0
        %v3810 = vadd.f32 %v3487, %v3614
        %v3811 = vadd.f32 %v3488, %v3616
        %v3812 = vadd.f32 %v3489, %v3703
        %v3813 = vadd.f32 %v3490, %v3705
        %v3814 = vadd.f32 %v3491, %v3792
        %v3815 = vadd.f32 %v3492, %v3620
        %v3816 = vadd.f32 %v3493, %v3622
        %v3817 = vadd.f32 %v3494, %v3709
        %v3818 = vadd.f32 %v3495, %v3711
        %v3819 = vadd.f32 %v3496, %v3797
        %v3820 = vadd.f32 %v3497, %v3626
        %v3821 = vadd.f32 %v3498, %v3628
        %v3822 = vadd.f32 %v3499, %v3715
        %v3823 = vadd.f32 %v3500, %v3717
        %v3824 = vadd.f32 %v3501, %v3802
        %v3825 = vadd.f32 %v3502, %v3632
        %v3826 = vadd.f32 %v3503, %v3634
        %v3827 = vadd.f32 %v3504, %v3721
        %v3828 = vadd.f32 %v3505, %v3723
        %v3829 = vadd.f32 %v3506, %v3807
        %s3830 = scalar_lea.vmem %s1, 352
        %v3831 = vld [vmem:[%s3830] sm:$0xff]
        %v3832 = vld [vmem:[%s3830 + $0x8] sm:$0xff]
        %v3833 = vld [vmem:[%s3830 + $0x10] sm:$0xff]
        %v3834 = vld [vmem:[%s3830 + $0x18] sm:$0xff]
        %3835 = vrot.lane.b32.xlu0 %v332, 26
        %v3836 = vpop.permute.xlu0 %3835
        %3837 = vrot.lane.b32.xlu0 %v333, 26
        %v3838 = vpop.permute.xlu0 %3837
        %3839 = vrot.lane.b32.xlu0 %v334, 26
        %v3840 = vpop.permute.xlu0 %3839
        %3841 = vrot.lane.b32.xlu0 %v335, 26
        %v3842 = vpop.permute.xlu0 %3841
        %3843 = vrot.lane.b32.xlu0 %v336, 26
        %v3844 = vpop.permute.xlu0 %3843
        %3845 = vrot.lane.b32.xlu0 %v342, 26
        %v3846 = vpop.permute.xlu0 %3845
        %vm3847 = vcmask 211968
        %v3848 = vsel %vm3847, %v3836, %v3838
        %v3849 = vsel %vm3847, %v3838, %v3840
        %v3850 = vsel %vm3847, %v3840, %v3842
        %v3851 = vsel %vm3847, %v3842, %v3844
        %v3852 = vsel %vm3847, %v3844, %v3846
        %v3859 = vsel %vm372, %v3831, 0
        %v3862 = vsel %vm372, %v3832, 0
        %v3865 = vsel %vm372, %v3833, 0
        %v3868 = vsel %vm372, %v3834, 0
        %3870 = vmatprep.subr.mxu0 %v3849
        %3871 = vmatpush1.msra.mxu0 %v3848
        %3872 = vmatprep.subr.mxu0 0.0
        %3873 = vmatpush1.msra.mxu0 0.0
        %3874 = vmatprep.subr.mxu0 0.0
        %3875 = vmatpush1.msra.mxu0 0.0
        %3876 = vmatprep.subr.mxu0 0.0
        %3877 = vmatpush1.msra.mxu0 0.0
        %3878 = vmatprep.subr.mxu0 0.0
        %3879 = vmatpush1.msra.mxu0 0.0
        %3880 = vmatprep.subr.mxu0 0.0
        %3881 = vmatpush1.msra.mxu0 0.0
        %3882 = vmatprep.subr.mxu0 0.0
        %3883 = vmatpush1.msra.mxu0 0.0
        %3884 = vmatprep.subr.mxu0 0.0
        %3885 = vmatpush1.msra.mxu0 0.0
        %3886 = vmatprep.subr.mxu0 0.0
        %3887 = vmatpush1.msra.mxu0 0.0
        %3888 = vmatprep.subr.mxu0 0.0
        %3889 = vmatpush1.msra.mxu0 0.0
        %3890 = vmatprep.subr.mxu0 0.0
        %3891 = vmatpush1.msra.mxu0 0.0
        %3892 = vmatprep.subr.mxu0 0.0
        %3893 = vmatpush1.msra.mxu0 0.0
        %3894 = vmatprep.subr.mxu0 0.0
        %3895 = vmatpush1.msra.mxu0 0.0
        %3896 = vmatprep.subr.mxu0 0.0
        %3897 = vmatpush1.msra.mxu0 0.0
        %3898 = vmatprep.subr.mxu0 0.0
        %3899 = vmatpush1.msra.mxu0 0.0
        %3900 = vmatprep.subr.mxu0 0.0
        %3901 = vmatpush1.msra.mxu0 0.0
        %3902 = vmatprep.subr.mxu0 0.0
        %3903 = vmatpush1.msra.mxu0 0.0
        %3904 = vmatprep.subr.mxu0 0.0
        %3905 = vmatpush1.msra.mxu0 0.0
        %3906 = vmatprep.subr.mxu0 0.0
        %3907 = vmatpush1.msra.mxu0 0.0
        %3908 = vmatprep.subr.mxu0 0.0
        %3909 = vmatpush1.msra.mxu0 0.0
        %3910 = vmatprep.subr.mxu0 0.0
        %3911 = vmatpush1.msra.mxu0 0.0
        %3912 = vmatprep.subr.mxu0 0.0
        %3913 = vmatpush1.msra.mxu0 0.0
        %3914 = vmatprep.subr.mxu0 0.0
        %3915 = vmatpush1.msra.mxu0 0.0
        %3916 = vmatprep.subr.mxu0 0.0
        %3917 = vmatpush1.msra.mxu0 0.0
        %3918 = vmatprep.subr.mxu0 0.0
        %3919 = vmatpush1.msra.mxu0 0.0
        %3920 = vmatprep.subr.mxu0 0.0
        %3921 = vmatpush1.msra.mxu0 0.0
        %3922 = vmatprep.subr.mxu0 0.0
        %3923 = vmatpush1.msra.mxu0 0.0
        %3924 = vmatprep.subr.mxu0 0.0
        %3925 = vmatpush1.msra.mxu0 0.0
        %3926 = vmatprep.subr.mxu0 0.0
        %3927 = vmatpush1.msra.mxu0 0.0
        %3928 = vmatprep.subr.mxu0 0.0
        %3929 = vmatpush1.msra.mxu0 0.0
        %3930 = vmatprep.subr.mxu0 0.0
        %3931 = vmatpush1.msra.mxu0 0.0
        %3932 = vmatprep.subr.mxu0 0.0
        %3933 = vmatpush1.msra.mxu0 0.0
        %3934 = vmatprep.mubr.f32.mxu0 0.0
        %3935 = vmatmul.mubr.f32.gmra.mrb[0].mxu0 %v3859
        %v3936 = vpop.f32.mrb[0].mxu0
        %v3937 = vadd.f32 0.0, %v3936
        %v3938 = vpop.f32.mrb[0].mxu0
        %v3939 = vadd.f32 0.0, %v3938
        %3940 = vmatprep.mubr.f32.mxu0 0.0
        %3941 = vmatmul.mubr.f32.gmra.mrb[0].mxu0 %v3862
        %v3942 = vpop.f32.mrb[0].mxu0
        %v3943 = vadd.f32 0.0, %v3942
        %v3944 = vpop.f32.mrb[0].mxu0
        %v3945 = vadd.f32 0.0, %v3944
        %3946 = vmatprep.mubr.f32.mxu0 0.0
        %3947 = vmatmul.mubr.f32.gmra.mrb[0].mxu0 %v3865
        %v3948 = vpop.f32.mrb[0].mxu0
        %v3949 = vadd.f32 0.0, %v3948
        %v3950 = vpop.f32.mrb[0].mxu0
        %v3951 = vadd.f32 0.0, %v3950
        %3952 = vmatprep.mubr.f32.mxu0 0.0
        %3953 = vmatmul.mubr.f32.gmra.mrb[0].mxu0 %v3868
        %v3954 = vpop.f32.mrb[0].mxu0
        %v3955 = vadd.f32 0.0, %v3954
        %v3956 = vpop.f32.mrb[0].mxu0
        %v3957 = vadd.f32 0.0, %v3956
        %3958 = vdwg.mxu0
        %3959 = vmatprep.subr.mxu0 %v3851
        %3960 = vmatpush1.msra.mxu0 %v3850
        %3961 = vmatprep.subr.mxu0 0.0
        %3962 = vmatpush1.msra.mxu0 0.0
        %3963 = vmatprep.subr.mxu0 0.0
        %3964 = vmatpush1.msra.mxu0 0.0
        %3965 = vmatprep.subr.mxu0 0.0
        %3966 = vmatpush1.msra.mxu0 0.0
        %3967 = vmatprep.subr.mxu0 0.0
        %3968 = vmatpush1.msra.mxu0 0.0
        %3969 = vmatprep.subr.mxu0 0.0
        %3970 = vmatpush1.msra.mxu0 0.0
        %3971 = vmatprep.subr.mxu0 0.0
        %3972 = vmatpush1.msra.mxu0 0.0
        %3973 = vmatprep.subr.mxu0 0.0
        %3974 = vmatpush1.msra.mxu0 0.0
        %3975 = vmatprep.subr.mxu0 0.0
        %3976 = vmatpush1.msra.mxu0 0.0
        %3977 = vmatprep.subr.mxu0 0.0
        %3978 = vmatpush1.msra.mxu0 0.0
        %3979 = vmatprep.subr.mxu0 0.0
        %3980 = vmatpush1.msra.mxu0 0.0
        %3981 = vmatprep.subr.mxu0 0.0
        %3982 = vmatpush1.msra.mxu0 0.0
        %3983 = vmatprep.subr.mxu0 0.0
        %3984 = vmatpush1.msra.mxu0 0.0
        %3985 = vmatprep.subr.mxu0 0.0
        %3986 = vmatpush1.msra.mxu0 0.0
        %3987 = vmatprep.subr.mxu0 0.0
        %3988 = vmatpush1.msra.mxu0 0.0
        %3989 = vmatprep.subr.mxu0 0.0
        %3990 = vmatpush1.msra.mxu0 0.0
        %3991 = vmatprep.subr.mxu0 0.0
        %3992 = vmatpush1.msra.mxu0 0.0
        %3993 = vmatprep.subr.mxu0 0.0
        %3994 = vmatpush1.msra.mxu0 0.0
        %3995 = vmatprep.subr.mxu0 0.0
        %3996 = vmatpush1.msra.mxu0 0.0
        %3997 = vmatprep.subr.mxu0 0.0
        %3998 = vmatpush1.msra.mxu0 0.0
        %3999 = vmatprep.subr.mxu0 0.0
        %4000 = vmatpush1.msra.mxu0 0.0
        %4001 = vmatprep.subr.mxu0 0.0
        %4002 = vmatpush1.msra.mxu0 0.0
        %4003 = vmatprep.subr.mxu0 0.0
        %4004 = vmatpush1.msra.mxu0 0.0
        %4005 = vmatprep.subr.mxu0 0.0
        %4006 = vmatpush1.msra.mxu0 0.0
        %4007 = vmatprep.subr.mxu0 0.0
        %4008 = vmatpush1.msra.mxu0 0.0
        %4009 = vmatprep.subr.mxu0 0.0
        %4010 = vmatpush1.msra.mxu0 0.0
        %4011 = vmatprep.subr.mxu0 0.0
        %4012 = vmatpush1.msra.mxu0 0.0
        %4013 = vmatprep.subr.mxu0 0.0
        %4014 = vmatpush1.msra.mxu0 0.0
        %4015 = vmatprep.subr.mxu0 0.0
        %4016 = vmatpush1.msra.mxu0 0.0
        %4017 = vmatprep.subr.mxu0 0.0
        %4018 = vmatpush1.msra.mxu0 0.0
        %4019 = vmatprep.subr.mxu0 0.0
        %4020 = vmatpush1.msra.mxu0 0.0
        %4021 = vmatprep.subr.mxu0 0.0
        %4022 = vmatpush1.msra.mxu0 0.0
        %4023 = vmatprep.mubr.f32.mxu0 0.0
        %4024 = vmatmul.mubr.f32.gmra.mrb[0].mxu0 %v3859
        %v4025 = vpop.f32.mrb[0].mxu0
        %v4026 = vadd.f32 0.0, %v4025
        %v4027 = vpop.f32.mrb[0].mxu0
        %v4028 = vadd.f32 0.0, %v4027
        %4029 = vmatprep.mubr.f32.mxu0 0.0
        %4030 = vmatmul.mubr.f32.gmra.mrb[0].mxu0 %v3862
        %v4031 = vpop.f32.mrb[0].mxu0
        %v4032 = vadd.f32 0.0, %v4031
        %v4033 = vpop.f32.mrb[0].mxu0
        %v4034 = vadd.f32 0.0, %v4033
        %4035 = vmatprep.mubr.f32.mxu0 0.0
        %4036 = vmatmul.mubr.f32.gmra.mrb[0].mxu0 %v3865
        %v4037 = vpop.f32.mrb[0].mxu0
        %v4038 = vadd.f32 0.0, %v4037
        %v4039 = vpop.f32.mrb[0].mxu0
        %v4040 = vadd.f32 0.0, %v4039
        %4041 = vmatprep.mubr.f32.mxu0 0.0
        %4042 = vmatmul.mubr.f32.gmra.mrb[0].mxu0 %v3868
        %v4043 = vpop.f32.mrb[0].mxu0
        %v4044 = vadd.f32 0.0, %v4043
        %v4045 = vpop.f32.mrb[0].mxu0
        %v4046 = vadd.f32 0.0, %v4045
        %4047 = vdwg.mxu0
        %4048 = vmatprep.subr.mxu0 0.0
        %4049 = vmatpush1.msra.mxu0 %v3852
        %4050 = vmatprep.subr.mxu0 0.0
        %4051 = vmatpush1.msra.mxu0 0.0
        %4052 = vmatprep.subr.mxu0 0.0
        %4053 = vmatpush1.msra.mxu0 0.0
        %4054 = vmatprep.subr.mxu0 0.0
        %4055 = vmatpush1.msra.mxu0 0.0
        %4056 = vmatprep.subr.mxu0 0.0
        %4057 = vmatpush1.msra.mxu0 0.0
        %4058 = vmatprep.subr.mxu0 0.0
        %4059 = vmatpush1.msra.mxu0 0.0
        %4060 = vmatprep.subr.mxu0 0.0
        %4061 = vmatpush1.msra.mxu0 0.0
        %4062 = vmatprep.subr.mxu0 0.0
        %4063 = vmatpush1.msra.mxu0 0.0
        %4064 = vmatprep.subr.mxu0 0.0
        %4065 = vmatpush1.msra.mxu0 0.0
        %4066 = vmatprep.subr.mxu0 0.0
        %4067 = vmatpush1.msra.mxu0 0.0
        %4068 = vmatprep.subr.mxu0 0.0
        %4069 = vmatpush1.msra.mxu0 0.0
        %4070 = vmatprep.subr.mxu0 0.0
        %4071 = vmatpush1.msra.mxu0 0.0
        %4072 = vmatprep.subr.mxu0 0.0
        %4073 = vmatpush1.msra.mxu0 0.0
        %4074 = vmatprep.subr.mxu0 0.0
        %4075 = vmatpush1.msra.mxu0 0.0
        %4076 = vmatprep.subr.mxu0 0.0
        %4077 = vmatpush1.msra.mxu0 0.0
        %4078 = vmatprep.subr.mxu0 0.0
        %4079 = vmatpush1.msra.mxu0 0.0
        %4080 = vmatprep.subr.mxu0 0.0
        %4081 = vmatpush1.msra.mxu0 0.0
        %4082 = vmatprep.subr.mxu0 0.0
        %4083 = vmatpush1.msra.mxu0 0.0
        %4084 = vmatprep.subr.mxu0 0.0
        %4085 = vmatpush1.msra.mxu0 0.0
        %4086 = vmatprep.subr.mxu0 0.0
        %4087 = vmatpush1.msra.mxu0 0.0
        %4088 = vmatprep.subr.mxu0 0.0
        %4089 = vmatpush1.msra.mxu0 0.0
        %4090 = vmatprep.subr.mxu0 0.0
        %4091 = vmatpush1.msra.mxu0 0.0
        %4092 = vmatprep.subr.mxu0 0.0
        %4093 = vmatpush1.msra.mxu0 0.0
        %4094 = vmatprep.subr.mxu0 0.0
        %4095 = vmatpush1.msra.mxu0 0.0
        %4096 = vmatprep.subr.mxu0 0.0
        %4097 = vmatpush1.msra.mxu0 0.0
        %4098 = vmatprep.subr.mxu0 0.0
        %4099 = vmatpush1.msra.mxu0 0.0
        %4100 = vmatprep.subr.mxu0 0.0
        %4101 = vmatpush1.msra.mxu0 0.0
        %4102 = vmatprep.subr.mxu0 0.0
        %4103 = vmatpush1.msra.mxu0 0.0
        %4104 = vmatprep.subr.mxu0 0.0
        %4105 = vmatpush1.msra.mxu0 0.0
        %4106 = vmatprep.subr.mxu0 0.0
        %4107 = vmatpush1.msra.mxu0 0.0
        %4108 = vmatprep.subr.mxu0 0.0
        %4109 = vmatpush1.msra.mxu0 0.0
        %4110 = vmatprep.subr.mxu0 0.0
        %4111 = vmatpush1.msra.mxu0 0.0
        %4112 = vmatprep.mubr.f32.mxu0 0.0
        %4113 = vmatmul.mubr.f32.gmra.mrb[0].mxu0 %v3859
        %v4114 = vpop.f32.mrb[0].mxu0
        %v4115 = vadd.f32 0.0, %v4114
        %v4116 = vpop.f32.mrb[0].mxu0
        %4117 = vmatprep.mubr.f32.mxu0 0.0
        %4118 = vmatmul.mubr.f32.gmra.mrb[0].mxu0 %v3862
        %v4119 = vpop.f32.mrb[0].mxu0
        %v4120 = vadd.f32 0.0, %v4119
        %v4121 = vpop.f32.mrb[0].mxu0
        %4122 = vmatprep.mubr.f32.mxu0 0.0
        %4123 = vmatmul.mubr.f32.gmra.mrb[0].mxu0 %v3865
        %v4124 = vpop.f32.mrb[0].mxu0
        %v4125 = vadd.f32 0.0, %v4124
        %v4126 = vpop.f32.mrb[0].mxu0
        %4127 = vmatprep.mubr.f32.mxu0 0.0
        %4128 = vmatmul.mubr.f32.gmra.mrb[0].mxu0 %v3868
        %v4129 = vpop.f32.mrb[0].mxu0
        %v4130 = vadd.f32 0.0, %v4129
        %v4131 = vpop.f32.mrb[0].mxu0
        %4132 = vdwg.mxu0
        %v4133 = vadd.f32 %v3810, %v3937
        %v4134 = vadd.f32 %v3811, %v3939
        %v4135 = vadd.f32 %v3812, %v4026
        %v4136 = vadd.f32 %v3813, %v4028
        %v4137 = vadd.f32 %v3814, %v4115
        %v4138 = vadd.f32 %v3815, %v3943
        %v4139 = vadd.f32 %v3816, %v3945
        %v4140 = vadd.f32 %v3817, %v4032
        %v4141 = vadd.f32 %v3818, %v4034
        %v4142 = vadd.f32 %v3819, %v4120
        %v4143 = vadd.f32 %v3820, %v3949
        %v4144 = vadd.f32 %v3821, %v3951
        %v4145 = vadd.f32 %v3822, %v4038
        %v4146 = vadd.f32 %v3823, %v4040
        %v4147 = vadd.f32 %v3824, %v4125
        %v4148 = vadd.f32 %v3825, %v3955
        %v4149 = vadd.f32 %v3826, %v3957
        %v4150 = vadd.f32 %v3827, %v4044
        %v4151 = vadd.f32 %v3828, %v4046
        %v4152 = vadd.f32 %v3829, %v4130
        %s4153 = scalar_lea.vmem %s1, 384
        %v4154 = vld [vmem:[%s4153] sm:$0xff]
        %v4155 = vld [vmem:[%s4153 + $0x8] sm:$0xff]
        %v4156 = vld [vmem:[%s4153 + $0x10] sm:$0xff]
        %v4157 = vld [vmem:[%s4153 + $0x18] sm:$0xff]
        %4158 = vrot.lane.b32.xlu0 %v332, 18
        %v4159 = vpop.permute.xlu0 %4158
        %4160 = vrot.lane.b32.xlu0 %v333, 18
        %v4161 = vpop.permute.xlu0 %4160
        %4162 = vrot.lane.b32.xlu0 %v334, 18
        %v4163 = vpop.permute.xlu0 %4162
        %4164 = vrot.lane.b32.xlu0 %v335, 18
        %v4165 = vpop.permute.xlu0 %4164
        %4166 = vrot.lane.b32.xlu0 %v336, 18
        %v4167 = vpop.permute.xlu0 %4166
        %4168 = vrot.lane.b32.xlu0 %v342, 18
        %v4169 = vpop.permute.xlu0 %4168
        %vm4170 = vcmask 146432
        %v4171 = vsel %vm4170, %v4159, %v4161
        %v4172 = vsel %vm4170, %v4161, %v4163
        %v4173 = vsel %vm4170, %v4163, %v4165
        %v4174 = vsel %vm4170, %v4165, %v4167
        %v4175 = vsel %vm4170, %v4167, %v4169
        %v4182 = vsel %vm372, %v4154, 0
        %v4185 = vsel %vm372, %v4155, 0
        %v4188 = vsel %vm372, %v4156, 0
        %v4191 = vsel %vm372, %v4157, 0
        %4193 = vmatprep.subr.mxu0 %v4172
        %4194 = vmatpush1.msra.mxu0 %v4171
        %4195 = vmatprep.subr.mxu0 0.0
        %4196 = vmatpush1.msra.mxu0 0.0
        %4197 = vmatprep.subr.mxu0 0.0
        %4198 = vmatpush1.msra.mxu0 0.0
        %4199 = vmatprep.subr.mxu0 0.0
        %4200 = vmatpush1.msra.mxu0 0.0
        %4201 = vmatprep.subr.mxu0 0.0
        %4202 = vmatpush1.msra.mxu0 0.0
        %4203 = vmatprep.subr.mxu0 0.0
        %4204 = vmatpush1.msra.mxu0 0.0
        %4205 = vmatprep.subr.mxu0 0.0
        %4206 = vmatpush1.msra.mxu0 0.0
        %4207 = vmatprep.subr.mxu0 0.0
        %4208 = vmatpush1.msra.mxu0 0.0
        %4209 = vmatprep.subr.mxu0 0.0
        %4210 = vmatpush1.msra.mxu0 0.0
        %4211 = vmatprep.subr.mxu0 0.0
        %4212 = vmatpush1.msra.mxu0 0.0
        %4213 = vmatprep.subr.mxu0 0.0
        %4214 = vmatpush1.msra.mxu0 0.0
        %4215 = vmatprep.subr.mxu0 0.0
        %4216 = vmatpush1.msra.mxu0 0.0
        %4217 = vmatprep.subr.mxu0 0.0
        %4218 = vmatpush1.msra.mxu0 0.0
        %4219 = vmatprep.subr.mxu0 0.0
        %4220 = vmatpush1.msra.mxu0 0.0
        %4221 = vmatprep.subr.mxu0 0.0
        %4222 = vmatpush1.msra.mxu0 0.0
        %4223 = vmatprep.subr.mxu0 0.0
        %4224 = vmatpush1.msra.mxu0 0.0
        %4225 = vmatprep.subr.mxu0 0.0
        %4226 = vmatpush1.msra.mxu0 0.0
        %4227 = vmatprep.subr.mxu0 0.0
        %4228 = vmatpush1.msra.mxu0 0.0
        %4229 = vmatprep.subr.mxu0 0.0
        %4230 = vmatpush1.msra.mxu0 0.0
        %4231 = vmatprep.subr.mxu0 0.0
        %4232 = vmatpush1.msra.mxu0 0.0
        %4233 = vmatprep.subr.mxu0 0.0
        %4234 = vmatpush1.msra.mxu0 0.0
        %4235 = vmatprep.subr.mxu0 0.0
        %4236 = vmatpush1.msra.mxu0 0.0
        %4237 = vmatprep.subr.mxu0 0.0
        %4238 = vmatpush1.msra.mxu0 0.0
        %4239 = vmatprep.subr.mxu0 0.0
        %4240 = vmatpush1.msra.mxu0 0.0
        %4241 = vmatprep.subr.mxu0 0.0
        %4242 = vmatpush1.msra.mxu0 0.0
        %4243 = vmatprep.subr.mxu0 0.0
        %4244 = vmatpush1.msra.mxu0 0.0
        %4245 = vmatprep.subr.mxu0 0.0
        %4246 = vmatpush1.msra.mxu0 0.0
        %4247 = vmatprep.subr.mxu0 0.0
        %4248 = vmatpush1.msra.mxu0 0.0
        %4249 = vmatprep.subr.mxu0 0.0
        %4250 = vmatpush1.msra.mxu0 0.0
        %4251 = vmatprep.subr.mxu0 0.0
        %4252 = vmatpush1.msra.mxu0 0.0
        %4253 = vmatprep.subr.mxu0 0.0
        %4254 = vmatpush1.msra.mxu0 0.0
        %4255 = vmatprep.subr.mxu0 0.0
        %4256 = vmatpush1.msra.mxu0 0.0
        %4257 = vmatprep.mubr.f32.mxu0 0.0
        %4258 = vmatmul.mubr.f32.gmra.mrb[0].mxu0 %v4182
        %v4259 = vpop.f32.mrb[0].mxu0
        %v4260 = vadd.f32 0.0, %v4259
        %v4261 = vpop.f32.mrb[0].mxu0
        %v4262 = vadd.f32 0.0, %v4261
        %4263 = vmatprep.mubr.f32.mxu0 0.0
        %4264 = vmatmul.mubr.f32.gmra.mrb[0].mxu0 %v4185
        %v4265 = vpop.f32.mrb[0].mxu0
        %v4266 = vadd.f32 0.0, %v4265
        %v4267 = vpop.f32.mrb[0].mxu0
        %v4268 = vadd.f32 0.0, %v4267
        %4269 = vmatprep.mubr.f32.mxu0 0.0
        %4270 = vmatmul.mubr.f32.gmra.mrb[0].mxu0 %v4188
        %v4271 = vpop.f32.mrb[0].mxu0
        %v4272 = vadd.f32 0.0, %v4271
        %v4273 = vpop.f32.mrb[0].mxu0
        %v4274 = vadd.f32 0.0, %v4273
        %4275 = vmatprep.mubr.f32.mxu0 0.0
        %4276 = vmatmul.mubr.f32.gmra.mrb[0].mxu0 %v4191
        %v4277 = vpop.f32.mrb[0].mxu0
        %v4278 = vadd.f32 0.0, %v4277
        %v4279 = vpop.f32.mrb[0].mxu0
        %v4280 = vadd.f32 0.0, %v4279
        %4281 = vdwg.mxu0
        %4282 = vmatprep.subr.mxu0 %v4174
        %4283 = vmatpush1.msra.mxu0 %v4173
        %4284 = vmatprep.subr.mxu0 0.0
        %4285 = vmatpush1.msra.mxu0 0.0
        %4286 = vmatprep.subr.mxu0 0.0
        %4287 = vmatpush1.msra.mxu0 0.0
        %4288 = vmatprep.subr.mxu0 0.0
        %4289 = vmatpush1.msra.mxu0 0.0
        %4290 = vmatprep.subr.mxu0 0.0
        %4291 = vmatpush1.msra.mxu0 0.0
        %4292 = vmatprep.subr.mxu0 0.0
        %4293 = vmatpush1.msra.mxu0 0.0
        %4294 = vmatprep.subr.mxu0 0.0
        %4295 = vmatpush1.msra.mxu0 0.0
        %4296 = vmatprep.subr.mxu0 0.0
        %4297 = vmatpush1.msra.mxu0 0.0
        %4298 = vmatprep.subr.mxu0 0.0
        %4299 = vmatpush1.msra.mxu0 0.0
        %4300 = vmatprep.subr.mxu0 0.0
        %4301 = vmatpush1.msra.mxu0 0.0
        %4302 = vmatprep.subr.mxu0 0.0
        %4303 = vmatpush1.msra.mxu0 0.0
        %4304 = vmatprep.subr.mxu0 0.0
        %4305 = vmatpush1.msra.mxu0 0.0
        %4306 = vmatprep.subr.mxu0 0.0
        %4307 = vmatpush1.msra.mxu0 0.0
        %4308 = vmatprep.subr.mxu0 0.0
        %4309 = vmatpush1.msra.mxu0 0.0
        %4310 = vmatprep.subr.mxu0 0.0
        %4311 = vmatpush1.msra.mxu0 0.0
        %4312 = vmatprep.subr.mxu0 0.0
        %4313 = vmatpush1.msra.mxu0 0.0
        %4314 = vmatprep.subr.mxu0 0.0
        %4315 = vmatpush1.msra.mxu0 0.0
        %4316 = vmatprep.subr.mxu0 0.0
        %4317 = vmatpush1.msra.mxu0 0.0
        %4318 = vmatprep.subr.mxu0 0.0
        %4319 = vmatpush1.msra.mxu0 0.0
        %4320 = vmatprep.subr.mxu0 0.0
        %4321 = vmatpush1.msra.mxu0 0.0
        %4322 = vmatprep.subr.mxu0 0.0
        %4323 = vmatpush1.msra.mxu0 0.0
        %4324 = vmatprep.subr.mxu0 0.0
        %4325 = vmatpush1.msra.mxu0 0.0
        %4326 = vmatprep.subr.mxu0 0.0
        %4327 = vmatpush1.msra.mxu0 0.0
        %4328 = vmatprep.subr.mxu0 0.0
        %4329 = vmatpush1.msra.mxu0 0.0
        %4330 = vmatprep.subr.mxu0 0.0
        %4331 = vmatpush1.msra.mxu0 0.0
        %4332 = vmatprep.subr.mxu0 0.0
        %4333 = vmatpush1.msra.mxu0 0.0
        %4334 = vmatprep.subr.mxu0 0.0
        %4335 = vmatpush1.msra.mxu0 0.0
        %4336 = vmatprep.subr.mxu0 0.0
        %4337 = vmatpush1.msra.mxu0 0.0
        %4338 = vmatprep.subr.mxu0 0.0
        %4339 = vmatpush1.msra.mxu0 0.0
        %4340 = vmatprep.subr.mxu0 0.0
        %4341 = vmatpush1.msra.mxu0 0.0
        %4342 = vmatprep.subr.mxu0 0.0
        %4343 = vmatpush1.msra.mxu0 0.0
        %4344 = vmatprep.subr.mxu0 0.0
        %4345 = vmatpush1.msra.mxu0 0.0
        %4346 = vmatprep.mubr.f32.mxu0 0.0
        %4347 = vmatmul.mubr.f32.gmra.mrb[0].mxu0 %v4182
        %v4348 = vpop.f32.mrb[0].mxu0
        %v4349 = vadd.f32 0.0, %v4348
        %v4350 = vpop.f32.mrb[0].mxu0
        %v4351 = vadd.f32 0.0, %v4350
        %4352 = vmatprep.mubr.f32.mxu0 0.0
        %4353 = vmatmul.mubr.f32.gmra.mrb[0].mxu0 %v4185
        %v4354 = vpop.f32.mrb[0].mxu0
        %v4355 = vadd.f32 0.0, %v4354
        %v4356 = vpop.f32.mrb[0].mxu0
        %v4357 = vadd.f32 0.0, %v4356
        %4358 = vmatprep.mubr.f32.mxu0 0.0
        %4359 = vmatmul.mubr.f32.gmra.mrb[0].mxu0 %v4188
        %v4360 = vpop.f32.mrb[0].mxu0
        %v4361 = vadd.f32 0.0, %v4360
        %v4362 = vpop.f32.mrb[0].mxu0
        %v4363 = vadd.f32 0.0, %v4362
        %4364 = vmatprep.mubr.f32.mxu0 0.0
        %4365 = vmatmul.mubr.f32.gmra.mrb[0].mxu0 %v4191
        %v4366 = vpop.f32.mrb[0].mxu0
        %v4367 = vadd.f32 0.0, %v4366
        %v4368 = vpop.f32.mrb[0].mxu0
        %v4369 = vadd.f32 0.0, %v4368
        %4370 = vdwg.mxu0
        %4371 = vmatprep.subr.mxu0 0.0
        %4372 = vmatpush1.msra.mxu0 %v4175
        %4373 = vmatprep.subr.mxu0 0.0
        %4374 = vmatpush1.msra.mxu0 0.0
        %4375 = vmatprep.subr.mxu0 0.0
        %4376 = vmatpush1.msra.mxu0 0.0
        %4377 = vmatprep.subr.mxu0 0.0
        %4378 = vmatpush1.msra.mxu0 0.0
        %4379 = vmatprep.subr.mxu0 0.0
        %4380 = vmatpush1.msra.mxu0 0.0
        %4381 = vmatprep.subr.mxu0 0.0
        %4382 = vmatpush1.msra.mxu0 0.0
        %4383 = vmatprep.subr.mxu0 0.0
        %4384 = vmatpush1.msra.mxu0 0.0
        %4385 = vmatprep.subr.mxu0 0.0
        %4386 = vmatpush1.msra.mxu0 0.0
        %4387 = vmatprep.subr.mxu0 0.0
        %4388 = vmatpush1.msra.mxu0 0.0
        %4389 = vmatprep.subr.mxu0 0.0
        %4390 = vmatpush1.msra.mxu0 0.0
        %4391 = vmatprep.subr.mxu0 0.0
        %4392 = vmatpush1.msra.mxu0 0.0
        %4393 = vmatprep.subr.mxu0 0.0
        %4394 = vmatpush1.msra.mxu0 0.0
        %4395 = vmatprep.subr.mxu0 0.0
        %4396 = vmatpush1.msra.mxu0 0.0
        %4397 = vmatprep.subr.mxu0 0.0
        %4398 = vmatpush1.msra.mxu0 0.0
        %4399 = vmatprep.subr.mxu0 0.0
        %4400 = vmatpush1.msra.mxu0 0.0
        %4401 = vmatprep.subr.mxu0 0.0
        %4402 = vmatpush1.msra.mxu0 0.0
        %4403 = vmatprep.subr.mxu0 0.0
        %4404 = vmatpush1.msra.mxu0 0.0
        %4405 = vmatprep.subr.mxu0 0.0
        %4406 = vmatpush1.msra.mxu0 0.0
        %4407 = vmatprep.subr.mxu0 0.0
        %4408 = vmatpush1.msra.mxu0 0.0
        %4409 = vmatprep.subr.mxu0 0.0
        %4410 = vmatpush1.msra.mxu0 0.0
        %4411 = vmatprep.subr.mxu0 0.0
        %4412 = vmatpush1.msra.mxu0 0.0
        %4413 = vmatprep.subr.mxu0 0.0
        %4414 = vmatpush1.msra.mxu0 0.0
        %4415 = vmatprep.subr.mxu0 0.0
        %4416 = vmatpush1.msra.mxu0 0.0
        %4417 = vmatprep.subr.mxu0 0.0
        %4418 = vmatpush1.msra.mxu0 0.0
        %4419 = vmatprep.subr.mxu0 0.0
        %4420 = vmatpush1.msra.mxu0 0.0
        %4421 = vmatprep.subr.mxu0 0.0
        %4422 = vmatpush1.msra.mxu0 0.0
        %4423 = vmatprep.subr.mxu0 0.0
        %4424 = vmatpush1.msra.mxu0 0.0
        %4425 = vmatprep.subr.mxu0 0.0
        %4426 = vmatpush1.msra.mxu0 0.0
        %4427 = vmatprep.subr.mxu0 0.0
        %4428 = vmatpush1.msra.mxu0 0.0
        %4429 = vmatprep.subr.mxu0 0.0
        %4430 = vmatpush1.msra.mxu0 0.0
        %4431 = vmatprep.subr.mxu0 0.0
        %4432 = vmatpush1.msra.mxu0 0.0
        %4433 = vmatprep.subr.mxu0 0.0
        %4434 = vmatpush1.msra.mxu0 0.0
        %4435 = vmatprep.mubr.f32.mxu0 0.0
        %4436 = vmatmul.mubr.f32.gmra.mrb[0].mxu0 %v4182
        %v4437 = vpop.f32.mrb[0].mxu0
        %v4438 = vadd.f32 0.0, %v4437
        %v4439 = vpop.f32.mrb[0].mxu0
        %4440 = vmatprep.mubr.f32.mxu0 0.0
        %4441 = vmatmul.mubr.f32.gmra.mrb[0].mxu0 %v4185
        %v4442 = vpop.f32.mrb[0].mxu0
        %v4443 = vadd.f32 0.0, %v4442
        %v4444 = vpop.f32.mrb[0].mxu0
        %4445 = vmatprep.mubr.f32.mxu0 0.0
        %4446 = vmatmul.mubr.f32.gmra.mrb[0].mxu0 %v4188
        %v4447 = vpop.f32.mrb[0].mxu0
        %v4448 = vadd.f32 0.0, %v4447
        %v4449 = vpop.f32.mrb[0].mxu0
        %4450 = vmatprep.mubr.f32.mxu0 0.0
        %4451 = vmatmul.mubr.f32.gmra.mrb[0].mxu0 %v4191
        %v4452 = vpop.f32.mrb[0].mxu0
        %v4453 = vadd.f32 0.0, %v4452
        %v4454 = vpop.f32.mrb[0].mxu0
        %4455 = vdwg.mxu0
        %v4456 = vadd.f32 %v4133, %v4260
        %v4457 = vadd.f32 %v4134, %v4262
        %v4458 = vadd.f32 %v4135, %v4349
        %v4459 = vadd.f32 %v4136, %v4351
        %v4460 = vadd.f32 %v4137, %v4438
        %v4461 = vadd.f32 %v4138, %v4266
        %v4462 = vadd.f32 %v4139, %v4268
        %v4463 = vadd.f32 %v4140, %v4355
        %v4464 = vadd.f32 %v4141, %v4357
        %v4465 = vadd.f32 %v4142, %v4443
        %v4466 = vadd.f32 %v4143, %v4272
        %v4467 = vadd.f32 %v4144, %v4274
        %v4468 = vadd.f32 %v4145, %v4361
        %v4469 = vadd.f32 %v4146, %v4363
        %v4470 = vadd.f32 %v4147, %v4448
        %v4471 = vadd.f32 %v4148, %v4278
        %v4472 = vadd.f32 %v4149, %v4280
        %v4473 = vadd.f32 %v4150, %v4367
        %v4474 = vadd.f32 %v4151, %v4369
        %v4475 = vadd.f32 %v4152, %v4453
        %s4476 = scalar_lea.vmem %s1, 416
        %v4477 = vld [vmem:[%s4476] sm:$0xff]
        %v4478 = vld [vmem:[%s4476 + $0x8] sm:$0xff]
        %v4479 = vld [vmem:[%s4476 + $0x10] sm:$0xff]
        %v4480 = vld [vmem:[%s4476 + $0x18] sm:$0xff]
        %4481 = vrot.lane.b32.xlu0 %v332, 17
        %v4482 = vpop.permute.xlu0 %4481
        %4483 = vrot.lane.b32.xlu0 %v333, 17
        %v4484 = vpop.permute.xlu0 %4483
        %4485 = vrot.lane.b32.xlu0 %v334, 17
        %v4486 = vpop.permute.xlu0 %4485
        %4487 = vrot.lane.b32.xlu0 %v335, 17
        %v4488 = vpop.permute.xlu0 %4487
        %4489 = vrot.lane.b32.xlu0 %v336, 17
        %v4490 = vpop.permute.xlu0 %4489
        %4491 = vrot.lane.b32.xlu0 %v342, 17
        %v4492 = vpop.permute.xlu0 %4491
        %vm4493 = vcmask 138240
        %v4494 = vsel %vm4493, %v4482, %v4484
        %v4495 = vsel %vm4493, %v4484, %v4486
        %v4496 = vsel %vm4493, %v4486, %v4488
        %v4497 = vsel %vm4493, %v4488, %v4490
        %v4498 = vsel %vm4493, %v4490, %v4492
        %v4505 = vsel %vm372, %v4477, 0
        %v4508 = vsel %vm372, %v4478, 0
        %v4511 = vsel %vm372, %v4479, 0
        %v4514 = vsel %vm372, %v4480, 0
        %4516 = vmatprep.subr.mxu0 %v4495
        %4517 = vmatpush1.msra.mxu0 %v4494
        %4518 = vmatprep.subr.mxu0 0.0
        %4519 = vmatpush1.msra.mxu0 0.0
        %4520 = vmatprep.subr.mxu0 0.0
        %4521 = vmatpush1.msra.mxu0 0.0
        %4522 = vmatprep.subr.mxu0 0.0
        %4523 = vmatpush1.msra.mxu0 0.0
        %4524 = vmatprep.subr.mxu0 0.0
        %4525 = vmatpush1.msra.mxu0 0.0
        %4526 = vmatprep.subr.mxu0 0.0
        %4527 = vmatpush1.msra.mxu0 0.0
        %4528 = vmatprep.subr.mxu0 0.0
        %4529 = vmatpush1.msra.mxu0 0.0
        %4530 = vmatprep.subr.mxu0 0.0
        %4531 = vmatpush1.msra.mxu0 0.0
        %4532 = vmatprep.subr.mxu0 0.0
        %4533 = vmatpush1.msra.mxu0 0.0
        %4534 = vmatprep.subr.mxu0 0.0
        %4535 = vmatpush1.msra.mxu0 0.0
        %4536 = vmatprep.subr.mxu0 0.0
        %4537 = vmatpush1.msra.mxu0 0.0
        %4538 = vmatprep.subr.mxu0 0.0
        %4539 = vmatpush1.msra.mxu0 0.0
        %4540 = vmatprep.subr.mxu0 0.0
        %4541 = vmatpush1.msra.mxu0 0.0
        %4542 = vmatprep.subr.mxu0 0.0
        %4543 = vmatpush1.msra.mxu0 0.0
        %4544 = vmatprep.subr.mxu0 0.0
        %4545 = vmatpush1.msra.mxu0 0.0
        %4546 = vmatprep.subr.mxu0 0.0
        %4547 = vmatpush1.msra.mxu0 0.0
        %4548 = vmatprep.subr.mxu0 0.0
        %4549 = vmatpush1.msra.mxu0 0.0
        %4550 = vmatprep.subr.mxu0 0.0
        %4551 = vmatpush1.msra.mxu0 0.0
        %4552 = vmatprep.subr.mxu0 0.0
        %4553 = vmatpush1.msra.mxu0 0.0
        %4554 = vmatprep.subr.mxu0 0.0
        %4555 = vmatpush1.msra.mxu0 0.0
        %4556 = vmatprep.subr.mxu0 0.0
        %4557 = vmatpush1.msra.mxu0 0.0
        %4558 = vmatprep.subr.mxu0 0.0
        %4559 = vmatpush1.msra.mxu0 0.0
        %4560 = vmatprep.subr.mxu0 0.0
        %4561 = vmatpush1.msra.mxu0 0.0
        %4562 = vmatprep.subr.mxu0 0.0
        %4563 = vmatpush1.msra.mxu0 0.0
        %4564 = vmatprep.subr.mxu0 0.0
        %4565 = vmatpush1.msra.mxu0 0.0
        %4566 = vmatprep.subr.mxu0 0.0
        %4567 = vmatpush1.msra.mxu0 0.0
        %4568 = vmatprep.subr.mxu0 0.0
        %4569 = vmatpush1.msra.mxu0 0.0
        %4570 = vmatprep.subr.mxu0 0.0
        %4571 = vmatpush1.msra.mxu0 0.0
        %4572 = vmatprep.subr.mxu0 0.0
        %4573 = vmatpush1.msra.mxu0 0.0
        %4574 = vmatprep.subr.mxu0 0.0
        %4575 = vmatpush1.msra.mxu0 0.0
        %4576 = vmatprep.subr.mxu0 0.0
        %4577 = vmatpush1.msra.mxu0 0.0
        %4578 = vmatprep.subr.mxu0 0.0
        %4579 = vmatpush1.msra.mxu0 0.0
        %4580 = vmatprep.mubr.f32.mxu0 0.0
        %4581 = vmatmul.mubr.f32.gmra.mrb[0].mxu0 %v4505
        %v4582 = vpop.f32.mrb[0].mxu0
        %v4583 = vadd.f32 0.0, %v4582
        %v4584 = vpop.f32.mrb[0].mxu0
        %v4585 = vadd.f32 0.0, %v4584
        %4586 = vmatprep.mubr.f32.mxu0 0.0
        %4587 = vmatmul.mubr.f32.gmra.mrb[0].mxu0 %v4508
        %v4588 = vpop.f32.mrb[0].mxu0
        %v4589 = vadd.f32 0.0, %v4588
        %v4590 = vpop.f32.mrb[0].mxu0
        %v4591 = vadd.f32 0.0, %v4590
        %4592 = vmatprep.mubr.f32.mxu0 0.0
        %4593 = vmatmul.mubr.f32.gmra.mrb[0].mxu0 %v4511
        %v4594 = vpop.f32.mrb[0].mxu0
        %v4595 = vadd.f32 0.0, %v4594
        %v4596 = vpop.f32.mrb[0].mxu0
        %v4597 = vadd.f32 0.0, %v4596
        %4598 = vmatprep.mubr.f32.mxu0 0.0
        %4599 = vmatmul.mubr.f32.gmra.mrb[0].mxu0 %v4514
        %v4600 = vpop.f32.mrb[0].mxu0
        %v4601 = vadd.f32 0.0, %v4600
        %v4602 = vpop.f32.mrb[0].mxu0
        %v4603 = vadd.f32 0.0, %v4602
        %4604 = vdwg.mxu0
        %4605 = vmatprep.subr.mxu0 %v4497
        %4606 = vmatpush1.msra.mxu0 %v4496
        %4607 = vmatprep.subr.mxu0 0.0
        %4608 = vmatpush1.msra.mxu0 0.0
        %4609 = vmatprep.subr.mxu0 0.0
        %4610 = vmatpush1.msra.mxu0 0.0
        %4611 = vmatprep.subr.mxu0 0.0
        %4612 = vmatpush1.msra.mxu0 0.0
        %4613 = vmatprep.subr.mxu0 0.0
        %4614 = vmatpush1.msra.mxu0 0.0
        %4615 = vmatprep.subr.mxu0 0.0
        %4616 = vmatpush1.msra.mxu0 0.0
        %4617 = vmatprep.subr.mxu0 0.0
        %4618 = vmatpush1.msra.mxu0 0.0
        %4619 = vmatprep.subr.mxu0 0.0
        %4620 = vmatpush1.msra.mxu0 0.0
        %4621 = vmatprep.subr.mxu0 0.0
        %4622 = vmatpush1.msra.mxu0 0.0
        %4623 = vmatprep.subr.mxu0 0.0
        %4624 = vmatpush1.msra.mxu0 0.0
        %4625 = vmatprep.subr.mxu0 0.0
        %4626 = vmatpush1.msra.mxu0 0.0
        %4627 = vmatprep.subr.mxu0 0.0
        %4628 = vmatpush1.msra.mxu0 0.0
        %4629 = vmatprep.subr.mxu0 0.0
        %4630 = vmatpush1.msra.mxu0 0.0
        %4631 = vmatprep.subr.mxu0 0.0
        %4632 = vmatpush1.msra.mxu0 0.0
        %4633 = vmatprep.subr.mxu0 0.0
        %4634 = vmatpush1.msra.mxu0 0.0
        %4635 = vmatprep.subr.mxu0 0.0
        %4636 = vmatpush1.msra.mxu0 0.0
        %4637 = vmatprep.subr.mxu0 0.0
        %4638 = vmatpush1.msra.mxu0 0.0
        %4639 = vmatprep.subr.mxu0 0.0
        %4640 = vmatpush1.msra.mxu0 0.0
        %4641 = vmatprep.subr.mxu0 0.0
        %4642 = vmatpush1.msra.mxu0 0.0
        %4643 = vmatprep.subr.mxu0 0.0
        %4644 = vmatpush1.msra.mxu0 0.0
        %4645 = vmatprep.subr.mxu0 0.0
        %4646 = vmatpush1.msra.mxu0 0.0
        %4647 = vmatprep.subr.mxu0 0.0
        %4648 = vmatpush1.msra.mxu0 0.0
        %4649 = vmatprep.subr.mxu0 0.0
        %4650 = vmatpush1.msra.mxu0 0.0
        %4651 = vmatprep.subr.mxu0 0.0
        %4652 = vmatpush1.msra.mxu0 0.0
        %4653 = vmatprep.subr.mxu0 0.0
        %4654 = vmatpush1.msra.mxu0 0.0
        %4655 = vmatprep.subr.mxu0 0.0
        %4656 = vmatpush1.msra.mxu0 0.0
        %4657 = vmatprep.subr.mxu0 0.0
        %4658 = vmatpush1.msra.mxu0 0.0
        %4659 = vmatprep.subr.mxu0 0.0
        %4660 = vmatpush1.msra.mxu0 0.0
        %4661 = vmatprep.subr.mxu0 0.0
        %4662 = vmatpush1.msra.mxu0 0.0
        %4663 = vmatprep.subr.mxu0 0.0
        %4664 = vmatpush1.msra.mxu0 0.0
        %4665 = vmatprep.subr.mxu0 0.0
        %4666 = vmatpush1.msra.mxu0 0.0
        %4667 = vmatprep.subr.mxu0 0.0
        %4668 = vmatpush1.msra.mxu0 0.0
        %4669 = vmatprep.mubr.f32.mxu0 0.0
        %4670 = vmatmul.mubr.f32.gmra.mrb[0].mxu0 %v4505
        %v4671 = vpop.f32.mrb[0].mxu0
        %v4672 = vadd.f32 0.0, %v4671
        %v4673 = vpop.f32.mrb[0].mxu0
        %v4674 = vadd.f32 0.0, %v4673
        %4675 = vmatprep.mubr.f32.mxu0 0.0
        %4676 = vmatmul.mubr.f32.gmra.mrb[0].mxu0 %v4508
        %v4677 = vpop.f32.mrb[0].mxu0
        %v4678 = vadd.f32 0.0, %v4677
        %v4679 = vpop.f32.mrb[0].mxu0
        %v4680 = vadd.f32 0.0, %v4679
        %4681 = vmatprep.mubr.f32.mxu0 0.0
        %4682 = vmatmul.mubr.f32.gmra.mrb[0].mxu0 %v4511
        %v4683 = vpop.f32.mrb[0].mxu0
        %v4684 = vadd.f32 0.0, %v4683
        %v4685 = vpop.f32.mrb[0].mxu0
        %v4686 = vadd.f32 0.0, %v4685
        %4687 = vmatprep.mubr.f32.mxu0 0.0
        %4688 = vmatmul.mubr.f32.gmra.mrb[0].mxu0 %v4514
        %v4689 = vpop.f32.mrb[0].mxu0
        %v4690 = vadd.f32 0.0, %v4689
        %v4691 = vpop.f32.mrb[0].mxu0
        %v4692 = vadd.f32 0.0, %v4691
        %4693 = vdwg.mxu0
        %4694 = vmatprep.subr.mxu0 0.0
        %4695 = vmatpush1.msra.mxu0 %v4498
        %4696 = vmatprep.subr.mxu0 0.0
        %4697 = vmatpush1.msra.mxu0 0.0
        %4698 = vmatprep.subr.mxu0 0.0
        %4699 = vmatpush1.msra.mxu0 0.0
        %4700 = vmatprep.subr.mxu0 0.0
        %4701 = vmatpush1.msra.mxu0 0.0
        %4702 = vmatprep.subr.mxu0 0.0
        %4703 = vmatpush1.msra.mxu0 0.0
        %4704 = vmatprep.subr.mxu0 0.0
        %4705 = vmatpush1.msra.mxu0 0.0
        %4706 = vmatprep.subr.mxu0 0.0
        %4707 = vmatpush1.msra.mxu0 0.0
        %4708 = vmatprep.subr.mxu0 0.0
        %4709 = vmatpush1.msra.mxu0 0.0
        %4710 = vmatprep.subr.mxu0 0.0
        %4711 = vmatpush1.msra.mxu0 0.0
        %4712 = vmatprep.subr.mxu0 0.0
        %4713 = vmatpush1.msra.mxu0 0.0
        %4714 = vmatprep.subr.mxu0 0.0
        %4715 = vmatpush1.msra.mxu0 0.0
        %4716 = vmatprep.subr.mxu0 0.0
        %4717 = vmatpush1.msra.mxu0 0.0
        %4718 = vmatprep.subr.mxu0 0.0
        %4719 = vmatpush1.msra.mxu0 0.0
        %4720 = vmatprep.subr.mxu0 0.0
        %4721 = vmatpush1.msra.mxu0 0.0
        %4722 = vmatprep.subr.mxu0 0.0
        %4723 = vmatpush1.msra.mxu0 0.0
        %4724 = vmatprep.subr.mxu0 0.0
        %4725 = vmatpush1.msra.mxu0 0.0
        %4726 = vmatprep.subr.mxu0 0.0
        %4727 = vmatpush1.msra.mxu0 0.0
        %4728 = vmatprep.subr.mxu0 0.0
        %4729 = vmatpush1.msra.mxu0 0.0
        %4730 = vmatprep.subr.mxu0 0.0
        %4731 = vmatpush1.msra.mxu0 0.0
        %4732 = vmatprep.subr.mxu0 0.0
        %4733 = vmatpush1.msra.mxu0 0.0
        %4734 = vmatprep.subr.mxu0 0.0
        %4735 = vmatpush1.msra.mxu0 0.0
        %4736 = vmatprep.subr.mxu0 0.0
        %4737 = vmatpush1.msra.mxu0 0.0
        %4738 = vmatprep.subr.mxu0 0.0
        %4739 = vmatpush1.msra.mxu0 0.0
        %4740 = vmatprep.subr.mxu0 0.0
        %4741 = vmatpush1.msra.mxu0 0.0
        %4742 = vmatprep.subr.mxu0 0.0
        %4743 = vmatpush1.msra.mxu0 0.0
        %4744 = vmatprep.subr.mxu0 0.0
        %4745 = vmatpush1.msra.mxu0 0.0
        %4746 = vmatprep.subr.mxu0 0.0
        %4747 = vmatpush1.msra.mxu0 0.0
        %4748 = vmatprep.subr.mxu0 0.0
        %4749 = vmatpush1.msra.mxu0 0.0
        %4750 = vmatprep.subr.mxu0 0.0
        %4751 = vmatpush1.msra.mxu0 0.0
        %4752 = vmatprep.subr.mxu0 0.0
        %4753 = vmatpush1.msra.mxu0 0.0
        %4754 = vmatprep.subr.mxu0 0.0
        %4755 = vmatpush1.msra.mxu0 0.0
        %4756 = vmatprep.subr.mxu0 0.0
        %4757 = vmatpush1.msra.mxu0 0.0
        %4758 = vmatprep.mubr.f32.mxu0 0.0
        %4759 = vmatmul.mubr.f32.gmra.mrb[0].mxu0 %v4505
        %v4760 = vpop.f32.mrb[0].mxu0
        %v4761 = vadd.f32 0.0, %v4760
        %v4762 = vpop.f32.mrb[0].mxu0
        %4763 = vmatprep.mubr.f32.mxu0 0.0
        %4764 = vmatmul.mubr.f32.gmra.mrb[0].mxu0 %v4508
        %v4765 = vpop.f32.mrb[0].mxu0
        %v4766 = vadd.f32 0.0, %v4765
        %v4767 = vpop.f32.mrb[0].mxu0
        %4768 = vmatprep.mubr.f32.mxu0 0.0
        %4769 = vmatmul.mubr.f32.gmra.mrb[0].mxu0 %v4511
        %v4770 = vpop.f32.mrb[0].mxu0
        %v4771 = vadd.f32 0.0, %v4770
        %v4772 = vpop.f32.mrb[0].mxu0
        %4773 = vmatprep.mubr.f32.mxu0 0.0
        %4774 = vmatmul.mubr.f32.gmra.mrb[0].mxu0 %v4514
        %v4775 = vpop.f32.mrb[0].mxu0
        %v4776 = vadd.f32 0.0, %v4775
        %v4777 = vpop.f32.mrb[0].mxu0
        %4778 = vdwg.mxu0
        %v4779 = vadd.f32 %v4456, %v4583
        %v4780 = vadd.f32 %v4457, %v4585
        %v4781 = vadd.f32 %v4458, %v4672
        %v4782 = vadd.f32 %v4459, %v4674
        %v4783 = vadd.f32 %v4460, %v4761
        %v4784 = vadd.f32 %v4461, %v4589
        %v4785 = vadd.f32 %v4462, %v4591
        %v4786 = vadd.f32 %v4463, %v4678
        %v4787 = vadd.f32 %v4464, %v4680
        %v4788 = vadd.f32 %v4465, %v4766
        %v4789 = vadd.f32 %v4466, %v4595
        %v4790 = vadd.f32 %v4467, %v4597
        %v4791 = vadd.f32 %v4468, %v4684
        %v4792 = vadd.f32 %v4469, %v4686
        %v4793 = vadd.f32 %v4470, %v4771
        %v4794 = vadd.f32 %v4471, %v4601
        %v4795 = vadd.f32 %v4472, %v4603
        %v4796 = vadd.f32 %v4473, %v4690
        %v4797 = vadd.f32 %v4474, %v4692
        %v4798 = vadd.f32 %v4475, %v4776
        %s4799 = scalar_lea.vmem %s1, 448
        %v4800 = vld [vmem:[%s4799] sm:$0xff]
        %v4801 = vld [vmem:[%s4799 + $0x8] sm:$0xff]
        %v4802 = vld [vmem:[%s4799 + $0x10] sm:$0xff]
        %v4803 = vld [vmem:[%s4799 + $0x18] sm:$0xff]
        %4804 = vrot.lane.b32.xlu0 %v332, 16
        %v4805 = vpop.permute.xlu0 %4804
        %4806 = vrot.lane.b32.xlu0 %v333, 16
        %v4807 = vpop.permute.xlu0 %4806
        %4808 = vrot.lane.b32.xlu0 %v334, 16
        %v4809 = vpop.permute.xlu0 %4808
        %4810 = vrot.lane.b32.xlu0 %v335, 16
        %v4811 = vpop.permute.xlu0 %4810
        %4812 = vrot.lane.b32.xlu0 %v336, 16
        %v4813 = vpop.permute.xlu0 %4812
        %4814 = vrot.lane.b32.xlu0 %v342, 16
        %v4815 = vpop.permute.xlu0 %4814
        %vm4816 = vcmask 130048
        %v4817 = vsel %vm4816, %v4805, %v4807
        %v4818 = vsel %vm4816, %v4807, %v4809
        %v4819 = vsel %vm4816, %v4809, %v4811
        %v4820 = vsel %vm4816, %v4811, %v4813
        %v4821 = vsel %vm4816, %v4813, %v4815
        %v4828 = vsel %vm372, %v4800, 0
        %v4831 = vsel %vm372, %v4801, 0
        %v4834 = vsel %vm372, %v4802, 0
        %v4837 = vsel %vm372, %v4803, 0
        %4839 = vmatprep.subr.mxu0 %v4818
        %4840 = vmatpush1.msra.mxu0 %v4817
        %4841 = vmatprep.subr.mxu0 0.0
        %4842 = vmatpush1.msra.mxu0 0.0
        %4843 = vmatprep.subr.mxu0 0.0
        %4844 = vmatpush1.msra.mxu0 0.0
        %4845 = vmatprep.subr.mxu0 0.0
        %4846 = vmatpush1.msra.mxu0 0.0
        %4847 = vmatprep.subr.mxu0 0.0
        %4848 = vmatpush1.msra.mxu0 0.0
        %4849 = vmatprep.subr.mxu0 0.0
        %4850 = vmatpush1.msra.mxu0 0.0
        %4851 = vmatprep.subr.mxu0 0.0
        %4852 = vmatpush1.msra.mxu0 0.0
        %4853 = vmatprep.subr.mxu0 0.0
        %4854 = vmatpush1.msra.mxu0 0.0
        %4855 = vmatprep.subr.mxu0 0.0
        %4856 = vmatpush1.msra.mxu0 0.0
        %4857 = vmatprep.subr.mxu0 0.0
        %4858 = vmatpush1.msra.mxu0 0.0
        %4859 = vmatprep.subr.mxu0 0.0
        %4860 = vmatpush1.msra.mxu0 0.0
        %4861 = vmatprep.subr.mxu0 0.0
        %4862 = vmatpush1.msra.mxu0 0.0
        %4863 = vmatprep.subr.mxu0 0.0
        %4864 = vmatpush1.msra.mxu0 0.0
        %4865 = vmatprep.subr.mxu0 0.0
        %4866 = vmatpush1.msra.mxu0 0.0
        %4867 = vmatprep.subr.mxu0 0.0
        %4868 = vmatpush1.msra.mxu0 0.0
        %4869 = vmatprep.subr.mxu0 0.0
        %4870 = vmatpush1.msra.mxu0 0.0
        %4871 = vmatprep.subr.mxu0 0.0
        %4872 = vmatpush1.msra.mxu0 0.0
        %4873 = vmatprep.subr.mxu0 0.0
        %4874 = vmatpush1.msra.mxu0 0.0
        %4875 = vmatprep.subr.mxu0 0.0
        %4876 = vmatpush1.msra.mxu0 0.0
        %4877 = vmatprep.subr.mxu0 0.0
        %4878 = vmatpush1.msra.mxu0 0.0
        %4879 = vmatprep.subr.mxu0 0.0
        %4880 = vmatpush1.msra.mxu0 0.0
        %4881 = vmatprep.subr.mxu0 0.0
        %4882 = vmatpush1.msra.mxu0 0.0
        %4883 = vmatprep.subr.mxu0 0.0
        %4884 = vmatpush1.msra.mxu0 0.0
        %4885 = vmatprep.subr.mxu0 0.0
        %4886 = vmatpush1.msra.mxu0 0.0
        %4887 = vmatprep.subr.mxu0 0.0
        %4888 = vmatpush1.msra.mxu0 0.0
        %4889 = vmatprep.subr.mxu0 0.0
        %4890 = vmatpush1.msra.mxu0 0.0
        %4891 = vmatprep.subr.mxu0 0.0
        %4892 = vmatpush1.msra.mxu0 0.0
        %4893 = vmatprep.subr.mxu0 0.0
        %4894 = vmatpush1.msra.mxu0 0.0
        %4895 = vmatprep.subr.mxu0 0.0
        %4896 = vmatpush1.msra.mxu0 0.0
        %4897 = vmatprep.subr.mxu0 0.0
        %4898 = vmatpush1.msra.mxu0 0.0
        %4899 = vmatprep.subr.mxu0 0.0
        %4900 = vmatpush1.msra.mxu0 0.0
        %4901 = vmatprep.subr.mxu0 0.0
        %4902 = vmatpush1.msra.mxu0 0.0
        %4903 = vmatprep.mubr.f32.mxu0 0.0
        %4904 = vmatmul.mubr.f32.gmra.mrb[0].mxu0 %v4828
        %v4905 = vpop.f32.mrb[0].mxu0
        %v4906 = vadd.f32 0.0, %v4905
        %v4907 = vpop.f32.mrb[0].mxu0
        %v4908 = vadd.f32 0.0, %v4907
        %4909 = vmatprep.mubr.f32.mxu0 0.0
        %4910 = vmatmul.mubr.f32.gmra.mrb[0].mxu0 %v4831
        %v4911 = vpop.f32.mrb[0].mxu0
        %v4912 = vadd.f32 0.0, %v4911
        %v4913 = vpop.f32.mrb[0].mxu0
        %v4914 = vadd.f32 0.0, %v4913
        %4915 = vmatprep.mubr.f32.mxu0 0.0
        %4916 = vmatmul.mubr.f32.gmra.mrb[0].mxu0 %v4834
        %v4917 = vpop.f32.mrb[0].mxu0
        %v4918 = vadd.f32 0.0, %v4917
        %v4919 = vpop.f32.mrb[0].mxu0
        %v4920 = vadd.f32 0.0, %v4919
        %4921 = vmatprep.mubr.f32.mxu0 0.0
        %4922 = vmatmul.mubr.f32.gmra.mrb[0].mxu0 %v4837
        %v4923 = vpop.f32.mrb[0].mxu0
        %v4924 = vadd.f32 0.0, %v4923
        %v4925 = vpop.f32.mrb[0].mxu0
        %v4926 = vadd.f32 0.0, %v4925
        %4927 = vdwg.mxu0
        %4928 = vmatprep.subr.mxu0 %v4820
        %4929 = vmatpush1.msra.mxu0 %v4819
        %4930 = vmatprep.subr.mxu0 0.0
        %4931 = vmatpush1.msra.mxu0 0.0
        %4932 = vmatprep.subr.mxu0 0.0
        %4933 = vmatpush1.msra.mxu0 0.0
        %4934 = vmatprep.subr.mxu0 0.0
        %4935 = vmatpush1.msra.mxu0 0.0
        %4936 = vmatprep.subr.mxu0 0.0
        %4937 = vmatpush1.msra.mxu0 0.0
        %4938 = vmatprep.subr.mxu0 0.0
        %4939 = vmatpush1.msra.mxu0 0.0
        %4940 = vmatprep.subr.mxu0 0.0
        %4941 = vmatpush1.msra.mxu0 0.0
        %4942 = vmatprep.subr.mxu0 0.0
        %4943 = vmatpush1.msra.mxu0 0.0
        %4944 = vmatprep.subr.mxu0 0.0
        %4945 = vmatpush1.msra.mxu0 0.0
        %4946 = vmatprep.subr.mxu0 0.0
        %4947 = vmatpush1.msra.mxu0 0.0
        %4948 = vmatprep.subr.mxu0 0.0
        %4949 = vmatpush1.msra.mxu0 0.0
        %4950 = vmatprep.subr.mxu0 0.0
        %4951 = vmatpush1.msra.mxu0 0.0
        %4952 = vmatprep.subr.mxu0 0.0
        %4953 = vmatpush1.msra.mxu0 0.0
        %4954 = vmatprep.subr.mxu0 0.0
        %4955 = vmatpush1.msra.mxu0 0.0
        %4956 = vmatprep.subr.mxu0 0.0
        %4957 = vmatpush1.msra.mxu0 0.0
        %4958 = vmatprep.subr.mxu0 0.0
        %4959 = vmatpush1.msra.mxu0 0.0
        %4960 = vmatprep.subr.mxu0 0.0
        %4961 = vmatpush1.msra.mxu0 0.0
        %4962 = vmatprep.subr.mxu0 0.0
        %4963 = vmatpush1.msra.mxu0 0.0
        %4964 = vmatprep.subr.mxu0 0.0
        %4965 = vmatpush1.msra.mxu0 0.0
        %4966 = vmatprep.subr.mxu0 0.0
        %4967 = vmatpush1.msra.mxu0 0.0
        %4968 = vmatprep.subr.mxu0 0.0
        %4969 = vmatpush1.msra.mxu0 0.0
        %4970 = vmatprep.subr.mxu0 0.0
        %4971 = vmatpush1.msra.mxu0 0.0
        %4972 = vmatprep.subr.mxu0 0.0
        %4973 = vmatpush1.msra.mxu0 0.0
        %4974 = vmatprep.subr.mxu0 0.0
        %4975 = vmatpush1.msra.mxu0 0.0
        %4976 = vmatprep.subr.mxu0 0.0
        %4977 = vmatpush1.msra.mxu0 0.0
        %4978 = vmatprep.subr.mxu0 0.0
        %4979 = vmatpush1.msra.mxu0 0.0
        %4980 = vmatprep.subr.mxu0 0.0
        %4981 = vmatpush1.msra.mxu0 0.0
        %4982 = vmatprep.subr.mxu0 0.0
        %4983 = vmatpush1.msra.mxu0 0.0
        %4984 = vmatprep.subr.mxu0 0.0
        %4985 = vmatpush1.msra.mxu0 0.0
        %4986 = vmatprep.subr.mxu0 0.0
        %4987 = vmatpush1.msra.mxu0 0.0
        %4988 = vmatprep.subr.mxu0 0.0
        %4989 = vmatpush1.msra.mxu0 0.0
        %4990 = vmatprep.subr.mxu0 0.0
        %4991 = vmatpush1.msra.mxu0 0.0
        %4992 = vmatprep.mubr.f32.mxu0 0.0
        %4993 = vmatmul.mubr.f32.gmra.mrb[0].mxu0 %v4828
        %v4994 = vpop.f32.mrb[0].mxu0
        %v4995 = vadd.f32 0.0, %v4994
        %v4996 = vpop.f32.mrb[0].mxu0
        %v4997 = vadd.f32 0.0, %v4996
        %4998 = vmatprep.mubr.f32.mxu0 0.0
        %4999 = vmatmul.mubr.f32.gmra.mrb[0].mxu0 %v4831
        %v5000 = vpop.f32.mrb[0].mxu0
        %v5001 = vadd.f32 0.0, %v5000
        %v5002 = vpop.f32.mrb[0].mxu0
        %v5003 = vadd.f32 0.0, %v5002
        %5004 = vmatprep.mubr.f32.mxu0 0.0
        %5005 = vmatmul.mubr.f32.gmra.mrb[0].mxu0 %v4834
        %v5006 = vpop.f32.mrb[0].mxu0
        %v5007 = vadd.f32 0.0, %v5006
        %v5008 = vpop.f32.mrb[0].mxu0
        %v5009 = vadd.f32 0.0, %v5008
        %5010 = vmatprep.mubr.f32.mxu0 0.0
        %5011 = vmatmul.mubr.f32.gmra.mrb[0].mxu0 %v4837
        %v5012 = vpop.f32.mrb[0].mxu0
        %v5013 = vadd.f32 0.0, %v5012
        %v5014 = vpop.f32.mrb[0].mxu0
        %v5015 = vadd.f32 0.0, %v5014
        %5016 = vdwg.mxu0
        %5017 = vmatprep.subr.mxu0 0.0
        %5018 = vmatpush1.msra.mxu0 %v4821
        %5019 = vmatprep.subr.mxu0 0.0
        %5020 = vmatpush1.msra.mxu0 0.0
        %5021 = vmatprep.subr.mxu0 0.0
        %5022 = vmatpush1.msra.mxu0 0.0
        %5023 = vmatprep.subr.mxu0 0.0
        %5024 = vmatpush1.msra.mxu0 0.0
        %5025 = vmatprep.subr.mxu0 0.0
        %5026 = vmatpush1.msra.mxu0 0.0
        %5027 = vmatprep.subr.mxu0 0.0
        %5028 = vmatpush1.msra.mxu0 0.0
        %5029 = vmatprep.subr.mxu0 0.0
        %5030 = vmatpush1.msra.mxu0 0.0
        %5031 = vmatprep.subr.mxu0 0.0
        %5032 = vmatpush1.msra.mxu0 0.0
        %5033 = vmatprep.subr.mxu0 0.0
        %5034 = vmatpush1.msra.mxu0 0.0
        %5035 = vmatprep.subr.mxu0 0.0
        %5036 = vmatpush1.msra.mxu0 0.0
        %5037 = vmatprep.subr.mxu0 0.0
        %5038 = vmatpush1.msra.mxu0 0.0
        %5039 = vmatprep.subr.mxu0 0.0
        %5040 = vmatpush1.msra.mxu0 0.0
        %5041 = vmatprep.subr.mxu0 0.0
        %5042 = vmatpush1.msra.mxu0 0.0
        %5043 = vmatprep.subr.mxu0 0.0
        %5044 = vmatpush1.msra.mxu0 0.0
        %5045 = vmatprep.subr.mxu0 0.0
        %5046 = vmatpush1.msra.mxu0 0.0
        %5047 = vmatprep.subr.mxu0 0.0
        %5048 = vmatpush1.msra.mxu0 0.0
        %5049 = vmatprep.subr.mxu0 0.0
        %5050 = vmatpush1.msra.mxu0 0.0
        %5051 = vmatprep.subr.mxu0 0.0
        %5052 = vmatpush1.msra.mxu0 0.0
        %5053 = vmatprep.subr.mxu0 0.0
        %5054 = vmatpush1.msra.mxu0 0.0
        %5055 = vmatprep.subr.mxu0 0.0
        %5056 = vmatpush1.msra.mxu0 0.0
        %5057 = vmatprep.subr.mxu0 0.0
        %5058 = vmatpush1.msra.mxu0 0.0
        %5059 = vmatprep.subr.mxu0 0.0
        %5060 = vmatpush1.msra.mxu0 0.0
        %5061 = vmatprep.subr.mxu0 0.0
        %5062 = vmatpush1.msra.mxu0 0.0
        %5063 = vmatprep.subr.mxu0 0.0
        %5064 = vmatpush1.msra.mxu0 0.0
        %5065 = vmatprep.subr.mxu0 0.0
        %5066 = vmatpush1.msra.mxu0 0.0
        %5067 = vmatprep.subr.mxu0 0.0
        %5068 = vmatpush1.msra.mxu0 0.0
        %5069 = vmatprep.subr.mxu0 0.0
        %5070 = vmatpush1.msra.mxu0 0.0
        %5071 = vmatprep.subr.mxu0 0.0
        %5072 = vmatpush1.msra.mxu0 0.0
        %5073 = vmatprep.subr.mxu0 0.0
        %5074 = vmatpush1.msra.mxu0 0.0
        %5075 = vmatprep.subr.mxu0 0.0
        %5076 = vmatpush1.msra.mxu0 0.0
        %5077 = vmatprep.subr.mxu0 0.0
        %5078 = vmatpush1.msra.mxu0 0.0
        %5079 = vmatprep.subr.mxu0 0.0
        %5080 = vmatpush1.msra.mxu0 0.0
        %5081 = vmatprep.mubr.f32.mxu0 0.0
        %5082 = vmatmul.mubr.f32.gmra.mrb[0].mxu0 %v4828
        %v5083 = vpop.f32.mrb[0].mxu0
        %v5084 = vadd.f32 0.0, %v5083
        %v5085 = vpop.f32.mrb[0].mxu0
        %5086 = vmatprep.mubr.f32.mxu0 0.0
        %5087 = vmatmul.mubr.f32.gmra.mrb[0].mxu0 %v4831
        %v5088 = vpop.f32.mrb[0].mxu0
        %v5089 = vadd.f32 0.0, %v5088
        %v5090 = vpop.f32.mrb[0].mxu0
        %5091 = vmatprep.mubr.f32.mxu0 0.0
        %5092 = vmatmul.mubr.f32.gmra.mrb[0].mxu0 %v4834
        %v5093 = vpop.f32.mrb[0].mxu0
        %v5094 = vadd.f32 0.0, %v5093
        %v5095 = vpop.f32.mrb[0].mxu0
        %5096 = vmatprep.mubr.f32.mxu0 0.0
        %5097 = vmatmul.mubr.f32.gmra.mrb[0].mxu0 %v4837
        %v5098 = vpop.f32.mrb[0].mxu0
        %v5099 = vadd.f32 0.0, %v5098
        %v5100 = vpop.f32.mrb[0].mxu0
        %5101 = vdwg.mxu0
        %v5102 = vadd.f32 %v4779, %v4906
        %v5103 = vadd.f32 %v4780, %v4908
        %v5104 = vadd.f32 %v4781, %v4995
        %v5105 = vadd.f32 %v4782, %v4997
        %v5106 = vadd.f32 %v4783, %v5084
        %v5107 = vadd.f32 %v4784, %v4912
        %v5108 = vadd.f32 %v4785, %v4914
        %v5109 = vadd.f32 %v4786, %v5001
        %v5110 = vadd.f32 %v4787, %v5003
        %v5111 = vadd.f32 %v4788, %v5089
        %v5112 = vadd.f32 %v4789, %v4918
        %v5113 = vadd.f32 %v4790, %v4920
        %v5114 = vadd.f32 %v4791, %v5007
        %v5115 = vadd.f32 %v4792, %v5009
        %v5116 = vadd.f32 %v4793, %v5094
        %v5117 = vadd.f32 %v4794, %v4924
        %v5118 = vadd.f32 %v4795, %v4926
        %v5119 = vadd.f32 %v4796, %v5013
        %v5120 = vadd.f32 %v4797, %v5015
        %v5121 = vadd.f32 %v4798, %v5099
        %s5122 = scalar_lea.vmem %s1, 480
        %v5123 = vld [vmem:[%s5122] sm:$0xff]
        %v5124 = vld [vmem:[%s5122 + $0x8] sm:$0xff]
        %v5125 = vld [vmem:[%s5122 + $0x10] sm:$0xff]
        %v5126 = vld [vmem:[%s5122 + $0x18] sm:$0xff]
        %5127 = vrot.lane.b32.xlu0 %v332, 8
        %v5128 = vpop.permute.xlu0 %5127
        %5129 = vrot.lane.b32.xlu0 %v333, 8
        %v5130 = vpop.permute.xlu0 %5129
        %5131 = vrot.lane.b32.xlu0 %v334, 8
        %v5132 = vpop.permute.xlu0 %5131
        %5133 = vrot.lane.b32.xlu0 %v335, 8
        %v5134 = vpop.permute.xlu0 %5133
        %5135 = vrot.lane.b32.xlu0 %v336, 8
        %v5136 = vpop.permute.xlu0 %5135
        %5137 = vrot.lane.b32.xlu0 %v342, 8
        %v5138 = vpop.permute.xlu0 %5137
        %v5139 = vsel %vm372, %v5128, %v5130
        %v5140 = vsel %vm372, %v5130, %v5132
        %v5141 = vsel %vm372, %v5132, %v5134
        %v5142 = vsel %vm372, %v5134, %v5136
        %v5143 = vsel %vm372, %v5136, %v5138
        %v5150 = vsel %vm372, %v5123, 0
        %v5153 = vsel %vm372, %v5124, 0
        %v5156 = vsel %vm372, %v5125, 0
        %v5159 = vsel %vm372, %v5126, 0
        %5161 = vmatprep.subr.mxu0 %v5140
        %5162 = vmatpush1.msra.mxu0 %v5139
        %5163 = vmatprep.subr.mxu0 0.0
        %5164 = vmatpush1.msra.mxu0 0.0
        %5165 = vmatprep.subr.mxu0 0.0
        %5166 = vmatpush1.msra.mxu0 0.0
        %5167 = vmatprep.subr.mxu0 0.0
        %5168 = vmatpush1.msra.mxu0 0.0
        %5169 = vmatprep.subr.mxu0 0.0
        %5170 = vmatpush1.msra.mxu0 0.0
        %5171 = vmatprep.subr.mxu0 0.0
        %5172 = vmatpush1.msra.mxu0 0.0
        %5173 = vmatprep.subr.mxu0 0.0
        %5174 = vmatpush1.msra.mxu0 0.0
        %5175 = vmatprep.subr.mxu0 0.0
        %5176 = vmatpush1.msra.mxu0 0.0
        %5177 = vmatprep.subr.mxu0 0.0
        %5178 = vmatpush1.msra.mxu0 0.0
        %5179 = vmatprep.subr.mxu0 0.0
        %5180 = vmatpush1.msra.mxu0 0.0
        %5181 = vmatprep.subr.mxu0 0.0
        %5182 = vmatpush1.msra.mxu0 0.0
        %5183 = vmatprep.subr.mxu0 0.0
        %5184 = vmatpush1.msra.mxu0 0.0
        %5185 = vmatprep.subr.mxu0 0.0
        %5186 = vmatpush1.msra.mxu0 0.0
        %5187 = vmatprep.subr.mxu0 0.0
        %5188 = vmatpush1.msra.mxu0 0.0
        %5189 = vmatprep.subr.mxu0 0.0
        %5190 = vmatpush1.msra.mxu0 0.0
        %5191 = vmatprep.subr.mxu0 0.0
        %5192 = vmatpush1.msra.mxu0 0.0
        %5193 = vmatprep.subr.mxu0 0.0
        %5194 = vmatpush1.msra.mxu0 0.0
        %5195 = vmatprep.subr.mxu0 0.0
        %5196 = vmatpush1.msra.mxu0 0.0
        %5197 = vmatprep.subr.mxu0 0.0
        %5198 = vmatpush1.msra.mxu0 0.0
        %5199 = vmatprep.subr.mxu0 0.0
        %5200 = vmatpush1.msra.mxu0 0.0
        %5201 = vmatprep.subr.mxu0 0.0
        %5202 = vmatpush1.msra.mxu0 0.0
        %5203 = vmatprep.subr.mxu0 0.0
        %5204 = vmatpush1.msra.mxu0 0.0
        %5205 = vmatprep.subr.mxu0 0.0
        %5206 = vmatpush1.msra.mxu0 0.0
        %5207 = vmatprep.subr.mxu0 0.0
        %5208 = vmatpush1.msra.mxu0 0.0
        %5209 = vmatprep.subr.mxu0 0.0
        %5210 = vmatpush1.msra.mxu0 0.0
        %5211 = vmatprep.subr.mxu0 0.0
        %5212 = vmatpush1.msra.mxu0 0.0
        %5213 = vmatprep.subr.mxu0 0.0
        %5214 = vmatpush1.msra.mxu0 0.0
        %5215 = vmatprep.subr.mxu0 0.0
        %5216 = vmatpush1.msra.mxu0 0.0
        %5217 = vmatprep.subr.mxu0 0.0
        %5218 = vmatpush1.msra.mxu0 0.0
        %5219 = vmatprep.subr.mxu0 0.0
        %5220 = vmatpush1.msra.mxu0 0.0
        %5221 = vmatprep.subr.mxu0 0.0
        %5222 = vmatpush1.msra.mxu0 0.0
        %5223 = vmatprep.subr.mxu0 0.0
        %5224 = vmatpush1.msra.mxu0 0.0
        %5225 = vmatprep.mubr.f32.mxu0 0.0
        %5226 = vmatmul.mubr.f32.gmra.mrb[0].mxu0 %v5150
        %v5227 = vpop.f32.mrb[0].mxu0
        %v5228 = vadd.f32 0.0, %v5227
        %v5229 = vpop.f32.mrb[0].mxu0
        %v5230 = vadd.f32 0.0, %v5229
        %5231 = vmatprep.mubr.f32.mxu0 0.0
        %5232 = vmatmul.mubr.f32.gmra.mrb[0].mxu0 %v5153
        %v5233 = vpop.f32.mrb[0].mxu0
        %v5234 = vadd.f32 0.0, %v5233
        %v5235 = vpop.f32.mrb[0].mxu0
        %v5236 = vadd.f32 0.0, %v5235
        %5237 = vmatprep.mubr.f32.mxu0 0.0
        %5238 = vmatmul.mubr.f32.gmra.mrb[0].mxu0 %v5156
        %v5239 = vpop.f32.mrb[0].mxu0
        %v5240 = vadd.f32 0.0, %v5239
        %v5241 = vpop.f32.mrb[0].mxu0
        %v5242 = vadd.f32 0.0, %v5241
        %5243 = vmatprep.mubr.f32.mxu0 0.0
        %5244 = vmatmul.mubr.f32.gmra.mrb[0].mxu0 %v5159
        %v5245 = vpop.f32.mrb[0].mxu0
        %v5246 = vadd.f32 0.0, %v5245
        %v5247 = vpop.f32.mrb[0].mxu0
        %v5248 = vadd.f32 0.0, %v5247
        %5249 = vdwg.mxu0
        %5250 = vmatprep.subr.mxu0 %v5142
        %5251 = vmatpush1.msra.mxu0 %v5141
        %5252 = vmatprep.subr.mxu0 0.0
        %5253 = vmatpush1.msra.mxu0 0.0
        %5254 = vmatprep.subr.mxu0 0.0
        %5255 = vmatpush1.msra.mxu0 0.0
        %5256 = vmatprep.subr.mxu0 0.0
        %5257 = vmatpush1.msra.mxu0 0.0
        %5258 = vmatprep.subr.mxu0 0.0
        %5259 = vmatpush1.msra.mxu0 0.0
        %5260 = vmatprep.subr.mxu0 0.0
        %5261 = vmatpush1.msra.mxu0 0.0
        %5262 = vmatprep.subr.mxu0 0.0
        %5263 = vmatpush1.msra.mxu0 0.0
        %5264 = vmatprep.subr.mxu0 0.0
        %5265 = vmatpush1.msra.mxu0 0.0
        %5266 = vmatprep.subr.mxu0 0.0
        %5267 = vmatpush1.msra.mxu0 0.0
        %5268 = vmatprep.subr.mxu0 0.0
        %5269 = vmatpush1.msra.mxu0 0.0
        %5270 = vmatprep.subr.mxu0 0.0
        %5271 = vmatpush1.msra.mxu0 0.0
        %5272 = vmatprep.subr.mxu0 0.0
        %5273 = vmatpush1.msra.mxu0 0.0
        %5274 = vmatprep.subr.mxu0 0.0
        %5275 = vmatpush1.msra.mxu0 0.0
        %5276 = vmatprep.subr.mxu0 0.0
        %5277 = vmatpush1.msra.mxu0 0.0
        %5278 = vmatprep.subr.mxu0 0.0
        %5279 = vmatpush1.msra.mxu0 0.0
        %5280 = vmatprep.subr.mxu0 0.0
        %5281 = vmatpush1.msra.mxu0 0.0
        %5282 = vmatprep.subr.mxu0 0.0
        %5283 = vmatpush1.msra.mxu0 0.0
        %5284 = vmatprep.subr.mxu0 0.0
        %5285 = vmatpush1.msra.mxu0 0.0
        %5286 = vmatprep.subr.mxu0 0.0
        %5287 = vmatpush1.msra.mxu0 0.0
        %5288 = vmatprep.subr.mxu0 0.0
        %5289 = vmatpush1.msra.mxu0 0.0
        %5290 = vmatprep.subr.mxu0 0.0
        %5291 = vmatpush1.msra.mxu0 0.0
        %5292 = vmatprep.subr.mxu0 0.0
        %5293 = vmatpush1.msra.mxu0 0.0
        %5294 = vmatprep.subr.mxu0 0.0
        %5295 = vmatpush1.msra.mxu0 0.0
        %5296 = vmatprep.subr.mxu0 0.0
        %5297 = vmatpush1.msra.mxu0 0.0
        %5298 = vmatprep.subr.mxu0 0.0
        %5299 = vmatpush1.msra.mxu0 0.0
        %5300 = vmatprep.subr.mxu0 0.0
        %5301 = vmatpush1.msra.mxu0 0.0
        %5302 = vmatprep.subr.mxu0 0.0
        %5303 = vmatpush1.msra.mxu0 0.0
        %5304 = vmatprep.subr.mxu0 0.0
        %5305 = vmatpush1.msra.mxu0 0.0
        %5306 = vmatprep.subr.mxu0 0.0
        %5307 = vmatpush1.msra.mxu0 0.0
        %5308 = vmatprep.subr.mxu0 0.0
        %5309 = vmatpush1.msra.mxu0 0.0
        %5310 = vmatprep.subr.mxu0 0.0
        %5311 = vmatpush1.msra.mxu0 0.0
        %5312 = vmatprep.subr.mxu0 0.0
        %5313 = vmatpush1.msra.mxu0 0.0
        %5314 = vmatprep.mubr.f32.mxu0 0.0
        %5315 = vmatmul.mubr.f32.gmra.mrb[0].mxu0 %v5150
        %v5316 = vpop.f32.mrb[0].mxu0
        %v5317 = vadd.f32 0.0, %v5316
        %v5318 = vpop.f32.mrb[0].mxu0
        %v5319 = vadd.f32 0.0, %v5318
        %5320 = vmatprep.mubr.f32.mxu0 0.0
        %5321 = vmatmul.mubr.f32.gmra.mrb[0].mxu0 %v5153
        %v5322 = vpop.f32.mrb[0].mxu0
        %v5323 = vadd.f32 0.0, %v5322
        %v5324 = vpop.f32.mrb[0].mxu0
        %v5325 = vadd.f32 0.0, %v5324
        %5326 = vmatprep.mubr.f32.mxu0 0.0
        %5327 = vmatmul.mubr.f32.gmra.mrb[0].mxu0 %v5156
        %v5328 = vpop.f32.mrb[0].mxu0
        %v5329 = vadd.f32 0.0, %v5328
        %v5330 = vpop.f32.mrb[0].mxu0
        %v5331 = vadd.f32 0.0, %v5330
        %5332 = vmatprep.mubr.f32.mxu0 0.0
        %5333 = vmatmul.mubr.f32.gmra.mrb[0].mxu0 %v5159
        %v5334 = vpop.f32.mrb[0].mxu0
        %v5335 = vadd.f32 0.0, %v5334
        %v5336 = vpop.f32.mrb[0].mxu0
        %v5337 = vadd.f32 0.0, %v5336
        %5338 = vdwg.mxu0
        %5339 = vmatprep.subr.mxu0 0.0
        %5340 = vmatpush1.msra.mxu0 %v5143
        %5341 = vmatprep.subr.mxu0 0.0
        %5342 = vmatpush1.msra.mxu0 0.0
        %5343 = vmatprep.subr.mxu0 0.0
        %5344 = vmatpush1.msra.mxu0 0.0
        %5345 = vmatprep.subr.mxu0 0.0
        %5346 = vmatpush1.msra.mxu0 0.0
        %5347 = vmatprep.subr.mxu0 0.0
        %5348 = vmatpush1.msra.mxu0 0.0
        %5349 = vmatprep.subr.mxu0 0.0
        %5350 = vmatpush1.msra.mxu0 0.0
        %5351 = vmatprep.subr.mxu0 0.0
        %5352 = vmatpush1.msra.mxu0 0.0
        %5353 = vmatprep.subr.mxu0 0.0
        %5354 = vmatpush1.msra.mxu0 0.0
        %5355 = vmatprep.subr.mxu0 0.0
        %5356 = vmatpush1.msra.mxu0 0.0
        %5357 = vmatprep.subr.mxu0 0.0
        %5358 = vmatpush1.msra.mxu0 0.0
        %5359 = vmatprep.subr.mxu0 0.0
        %5360 = vmatpush1.msra.mxu0 0.0
        %5361 = vmatprep.subr.mxu0 0.0
        %5362 = vmatpush1.msra.mxu0 0.0
        %5363 = vmatprep.subr.mxu0 0.0
        %5364 = vmatpush1.msra.mxu0 0.0
        %5365 = vmatprep.subr.mxu0 0.0
        %5366 = vmatpush1.msra.mxu0 0.0
        %5367 = vmatprep.subr.mxu0 0.0
        %5368 = vmatpush1.msra.mxu0 0.0
        %5369 = vmatprep.subr.mxu0 0.0
        %5370 = vmatpush1.msra.mxu0 0.0
        %5371 = vmatprep.subr.mxu0 0.0
        %5372 = vmatpush1.msra.mxu0 0.0
        %5373 = vmatprep.subr.mxu0 0.0
        %5374 = vmatpush1.msra.mxu0 0.0
        %5375 = vmatprep.subr.mxu0 0.0
        %5376 = vmatpush1.msra.mxu0 0.0
        %5377 = vmatprep.subr.mxu0 0.0
        %5378 = vmatpush1.msra.mxu0 0.0
        %5379 = vmatprep.subr.mxu0 0.0
        %5380 = vmatpush1.msra.mxu0 0.0
        %5381 = vmatprep.subr.mxu0 0.0
        %5382 = vmatpush1.msra.mxu0 0.0
        %5383 = vmatprep.subr.mxu0 0.0
        %5384 = vmatpush1.msra.mxu0 0.0
        %5385 = vmatprep.subr.mxu0 0.0
        %5386 = vmatpush1.msra.mxu0 0.0
        %5387 = vmatprep.subr.mxu0 0.0
        %5388 = vmatpush1.msra.mxu0 0.0
        %5389 = vmatprep.subr.mxu0 0.0
        %5390 = vmatpush1.msra.mxu0 0.0
        %5391 = vmatprep.subr.mxu0 0.0
        %5392 = vmatpush1.msra.mxu0 0.0
        %5393 = vmatprep.subr.mxu0 0.0
        %5394 = vmatpush1.msra.mxu0 0.0
        %5395 = vmatprep.subr.mxu0 0.0
        %5396 = vmatpush1.msra.mxu0 0.0
        %5397 = vmatprep.subr.mxu0 0.0
        %5398 = vmatpush1.msra.mxu0 0.0
        %5399 = vmatprep.subr.mxu0 0.0
        %5400 = vmatpush1.msra.mxu0 0.0
        %5401 = vmatprep.subr.mxu0 0.0
        %5402 = vmatpush1.msra.mxu0 0.0
        %5403 = vmatprep.mubr.f32.mxu0 0.0
        %5404 = vmatmul.mubr.f32.gmra.mrb[0].mxu0 %v5150
        %v5405 = vpop.f32.mrb[0].mxu0
        %v5406 = vadd.f32 0.0, %v5405
        %v5407 = vpop.f32.mrb[0].mxu0
        %5408 = vmatprep.mubr.f32.mxu0 0.0
        %5409 = vmatmul.mubr.f32.gmra.mrb[0].mxu0 %v5153
        %v5410 = vpop.f32.mrb[0].mxu0
        %v5411 = vadd.f32 0.0, %v5410
        %v5412 = vpop.f32.mrb[0].mxu0
        %5413 = vmatprep.mubr.f32.mxu0 0.0
        %5414 = vmatmul.mubr.f32.gmra.mrb[0].mxu0 %v5156
        %v5415 = vpop.f32.mrb[0].mxu0
        %v5416 = vadd.f32 0.0, %v5415
        %v5417 = vpop.f32.mrb[0].mxu0
        %5418 = vmatprep.mubr.f32.mxu0 0.0
        %5419 = vmatmul.mubr.f32.gmra.mrb[0].mxu0 %v5159
        %v5420 = vpop.f32.mrb[0].mxu0
        %v5421 = vadd.f32 0.0, %v5420
        %v5422 = vpop.f32.mrb[0].mxu0
        %5423 = vdwg.mxu0
        %v5424 = vadd.f32 %v5102, %v5228
        %v5425 = vadd.f32 %v5103, %v5230
        %v5426 = vadd.f32 %v5104, %v5317
        %v5427 = vadd.f32 %v5105, %v5319
        %v5428 = vadd.f32 %v5106, %v5406
        %v5429 = vadd.f32 %v5107, %v5234
        %v5430 = vadd.f32 %v5108, %v5236
        %v5431 = vadd.f32 %v5109, %v5323
        %v5432 = vadd.f32 %v5110, %v5325
        %v5433 = vadd.f32 %v5111, %v5411
        %v5434 = vadd.f32 %v5112, %v5240
        %v5435 = vadd.f32 %v5113, %v5242
        %v5436 = vadd.f32 %v5114, %v5329
        %v5437 = vadd.f32 %v5115, %v5331
        %v5438 = vadd.f32 %v5116, %v5416
        %v5439 = vadd.f32 %v5117, %v5246
        %v5440 = vadd.f32 %v5118, %v5248
        %v5441 = vadd.f32 %v5119, %v5335
        %v5442 = vadd.f32 %v5120, %v5337
        %v5443 = vadd.f32 %v5121, %v5421
        %s5444 = scalar_lea.vmem %s1, 512
        %v5445 = vld [vmem:[%s5444] sm:$0xff]
        %v5446 = vld [vmem:[%s5444 + $0x8] sm:$0xff]
        %v5447 = vld [vmem:[%s5444 + $0x10] sm:$0xff]
        %v5448 = vld [vmem:[%s5444 + $0x18] sm:$0xff]
        %5449 = vrot.lane.b32.xlu0 %v332, 7
        %v5450 = vpop.permute.xlu0 %5449
        %5451 = vrot.lane.b32.xlu0 %v333, 7
        %v5452 = vpop.permute.xlu0 %5451
        %5453 = vrot.lane.b32.xlu0 %v334, 7
        %v5454 = vpop.permute.xlu0 %5453
        %5455 = vrot.lane.b32.xlu0 %v335, 7
        %v5456 = vpop.permute.xlu0 %5455
        %5457 = vrot.lane.b32.xlu0 %v336, 7
        %v5458 = vpop.permute.xlu0 %5457
        %5459 = vrot.lane.b32.xlu0 %v342, 7
        %v5460 = vpop.permute.xlu0 %5459
        %vm5461 = vcmask 56320
        %v5462 = vsel %vm5461, %v5450, %v5452
        %v5463 = vsel %vm5461, %v5452, %v5454
        %v5464 = vsel %vm5461, %v5454, %v5456
        %v5465 = vsel %vm5461, %v5456, %v5458
        %v5466 = vsel %vm5461, %v5458, %v5460
        %v5473 = vsel %vm372, %v5445, 0
        %v5476 = vsel %vm372, %v5446, 0
        %v5479 = vsel %vm372, %v5447, 0
        %v5482 = vsel %vm372, %v5448, 0
        %5484 = vmatprep.subr.mxu0 %v5463
        %5485 = vmatpush1.msra.mxu0 %v5462
        %5486 = vmatprep.subr.mxu0 0.0
        %5487 = vmatpush1.msra.mxu0 0.0
        %5488 = vmatprep.subr.mxu0 0.0
        %5489 = vmatpush1.msra.mxu0 0.0
        %5490 = vmatprep.subr.mxu0 0.0
        %5491 = vmatpush1.msra.mxu0 0.0
        %5492 = vmatprep.subr.mxu0 0.0
        %5493 = vmatpush1.msra.mxu0 0.0
        %5494 = vmatprep.subr.mxu0 0.0
        %5495 = vmatpush1.msra.mxu0 0.0
        %5496 = vmatprep.subr.mxu0 0.0
        %5497 = vmatpush1.msra.mxu0 0.0
        %5498 = vmatprep.subr.mxu0 0.0
        %5499 = vmatpush1.msra.mxu0 0.0
        %5500 = vmatprep.subr.mxu0 0.0
        %5501 = vmatpush1.msra.mxu0 0.0
        %5502 = vmatprep.subr.mxu0 0.0
        %5503 = vmatpush1.msra.mxu0 0.0
        %5504 = vmatprep.subr.mxu0 0.0
        %5505 = vmatpush1.msra.mxu0 0.0
        %5506 = vmatprep.subr.mxu0 0.0
        %5507 = vmatpush1.msra.mxu0 0.0
        %5508 = vmatprep.subr.mxu0 0.0
        %5509 = vmatpush1.msra.mxu0 0.0
        %5510 = vmatprep.subr.mxu0 0.0
        %5511 = vmatpush1.msra.mxu0 0.0
        %5512 = vmatprep.subr.mxu0 0.0
        %5513 = vmatpush1.msra.mxu0 0.0
        %5514 = vmatprep.subr.mxu0 0.0
        %5515 = vmatpush1.msra.mxu0 0.0
        %5516 = vmatprep.subr.mxu0 0.0
        %5517 = vmatpush1.msra.mxu0 0.0
        %5518 = vmatprep.subr.mxu0 0.0
        %5519 = vmatpush1.msra.mxu0 0.0
        %5520 = vmatprep.subr.mxu0 0.0
        %5521 = vmatpush1.msra.mxu0 0.0
        %5522 = vmatprep.subr.mxu0 0.0
        %5523 = vmatpush1.msra.mxu0 0.0
        %5524 = vmatprep.subr.mxu0 0.0
        %5525 = vmatpush1.msra.mxu0 0.0
        %5526 = vmatprep.subr.mxu0 0.0
        %5527 = vmatpush1.msra.mxu0 0.0
        %5528 = vmatprep.subr.mxu0 0.0
        %5529 = vmatpush1.msra.mxu0 0.0
        %5530 = vmatprep.subr.mxu0 0.0
        %5531 = vmatpush1.msra.mxu0 0.0
        %5532 = vmatprep.subr.mxu0 0.0
        %5533 = vmatpush1.msra.mxu0 0.0
        %5534 = vmatprep.subr.mxu0 0.0
        %5535 = vmatpush1.msra.mxu0 0.0
        %5536 = vmatprep.subr.mxu0 0.0
        %5537 = vmatpush1.msra.mxu0 0.0
        %5538 = vmatprep.subr.mxu0 0.0
        %5539 = vmatpush1.msra.mxu0 0.0
        %5540 = vmatprep.subr.mxu0 0.0
        %5541 = vmatpush1.msra.mxu0 0.0
        %5542 = vmatprep.subr.mxu0 0.0
        %5543 = vmatpush1.msra.mxu0 0.0
        %5544 = vmatprep.subr.mxu0 0.0
        %5545 = vmatpush1.msra.mxu0 0.0
        %5546 = vmatprep.subr.mxu0 0.0
        %5547 = vmatpush1.msra.mxu0 0.0
        %5548 = vmatprep.mubr.f32.mxu0 0.0
        %5549 = vmatmul.mubr.f32.gmra.mrb[0].mxu0 %v5473
        %v5550 = vpop.f32.mrb[0].mxu0
        %v5551 = vadd.f32 0.0, %v5550
        %v5552 = vpop.f32.mrb[0].mxu0
        %v5553 = vadd.f32 0.0, %v5552
        %5554 = vmatprep.mubr.f32.mxu0 0.0
        %5555 = vmatmul.mubr.f32.gmra.mrb[0].mxu0 %v5476
        %v5556 = vpop.f32.mrb[0].mxu0
        %v5557 = vadd.f32 0.0, %v5556
        %v5558 = vpop.f32.mrb[0].mxu0
        %v5559 = vadd.f32 0.0, %v5558
        %5560 = vmatprep.mubr.f32.mxu0 0.0
        %5561 = vmatmul.mubr.f32.gmra.mrb[0].mxu0 %v5479
        %v5562 = vpop.f32.mrb[0].mxu0
        %v5563 = vadd.f32 0.0, %v5562
        %v5564 = vpop.f32.mrb[0].mxu0
        %v5565 = vadd.f32 0.0, %v5564
        %5566 = vmatprep.mubr.f32.mxu0 0.0
        %5567 = vmatmul.mubr.f32.gmra.mrb[0].mxu0 %v5482
        %v5568 = vpop.f32.mrb[0].mxu0
        %v5569 = vadd.f32 0.0, %v5568
        %v5570 = vpop.f32.mrb[0].mxu0
        %v5571 = vadd.f32 0.0, %v5570
        %5572 = vdwg.mxu0
        %5573 = vmatprep.subr.mxu0 %v5465
        %5574 = vmatpush1.msra.mxu0 %v5464
        %5575 = vmatprep.subr.mxu0 0.0
        %5576 = vmatpush1.msra.mxu0 0.0
        %5577 = vmatprep.subr.mxu0 0.0
        %5578 = vmatpush1.msra.mxu0 0.0
        %5579 = vmatprep.subr.mxu0 0.0
        %5580 = vmatpush1.msra.mxu0 0.0
        %5581 = vmatprep.subr.mxu0 0.0
        %5582 = vmatpush1.msra.mxu0 0.0
        %5583 = vmatprep.subr.mxu0 0.0
        %5584 = vmatpush1.msra.mxu0 0.0
        %5585 = vmatprep.subr.mxu0 0.0
        %5586 = vmatpush1.msra.mxu0 0.0
        %5587 = vmatprep.subr.mxu0 0.0
        %5588 = vmatpush1.msra.mxu0 0.0
        %5589 = vmatprep.subr.mxu0 0.0
        %5590 = vmatpush1.msra.mxu0 0.0
        %5591 = vmatprep.subr.mxu0 0.0
        %5592 = vmatpush1.msra.mxu0 0.0
        %5593 = vmatprep.subr.mxu0 0.0
        %5594 = vmatpush1.msra.mxu0 0.0
        %5595 = vmatprep.subr.mxu0 0.0
        %5596 = vmatpush1.msra.mxu0 0.0
        %5597 = vmatprep.subr.mxu0 0.0
        %5598 = vmatpush1.msra.mxu0 0.0
        %5599 = vmatprep.subr.mxu0 0.0
        %5600 = vmatpush1.msra.mxu0 0.0
        %5601 = vmatprep.subr.mxu0 0.0
        %5602 = vmatpush1.msra.mxu0 0.0
        %5603 = vmatprep.subr.mxu0 0.0
        %5604 = vmatpush1.msra.mxu0 0.0
        %5605 = vmatprep.subr.mxu0 0.0
        %5606 = vmatpush1.msra.mxu0 0.0
        %5607 = vmatprep.subr.mxu0 0.0
        %5608 = vmatpush1.msra.mxu0 0.0
        %5609 = vmatprep.subr.mxu0 0.0
        %5610 = vmatpush1.msra.mxu0 0.0
        %5611 = vmatprep.subr.mxu0 0.0
        %5612 = vmatpush1.msra.mxu0 0.0
        %5613 = vmatprep.subr.mxu0 0.0
        %5614 = vmatpush1.msra.mxu0 0.0
        %5615 = vmatprep.subr.mxu0 0.0
        %5616 = vmatpush1.msra.mxu0 0.0
        %5617 = vmatprep.subr.mxu0 0.0
        %5618 = vmatpush1.msra.mxu0 0.0
        %5619 = vmatprep.subr.mxu0 0.0
        %5620 = vmatpush1.msra.mxu0 0.0
        %5621 = vmatprep.subr.mxu0 0.0
        %5622 = vmatpush1.msra.mxu0 0.0
        %5623 = vmatprep.subr.mxu0 0.0
        %5624 = vmatpush1.msra.mxu0 0.0
        %5625 = vmatprep.subr.mxu0 0.0
        %5626 = vmatpush1.msra.mxu0 0.0
        %5627 = vmatprep.subr.mxu0 0.0
        %5628 = vmatpush1.msra.mxu0 0.0
        %5629 = vmatprep.subr.mxu0 0.0
        %5630 = vmatpush1.msra.mxu0 0.0
        %5631 = vmatprep.subr.mxu0 0.0
        %5632 = vmatpush1.msra.mxu0 0.0
        %5633 = vmatprep.subr.mxu0 0.0
        %5634 = vmatpush1.msra.mxu0 0.0
        %5635 = vmatprep.subr.mxu0 0.0
        %5636 = vmatpush1.msra.mxu0 0.0
        %5637 = vmatprep.mubr.f32.mxu0 0.0
        %5638 = vmatmul.mubr.f32.gmra.mrb[0].mxu0 %v5473
        %v5639 = vpop.f32.mrb[0].mxu0
        %v5640 = vadd.f32 0.0, %v5639
        %v5641 = vpop.f32.mrb[0].mxu0
        %v5642 = vadd.f32 0.0, %v5641
        %5643 = vmatprep.mubr.f32.mxu0 0.0
        %5644 = vmatmul.mubr.f32.gmra.mrb[0].mxu0 %v5476
        %v5645 = vpop.f32.mrb[0].mxu0
        %v5646 = vadd.f32 0.0, %v5645
        %v5647 = vpop.f32.mrb[0].mxu0
        %v5648 = vadd.f32 0.0, %v5647
        %5649 = vmatprep.mubr.f32.mxu0 0.0
        %5650 = vmatmul.mubr.f32.gmra.mrb[0].mxu0 %v5479
        %v5651 = vpop.f32.mrb[0].mxu0
        %v5652 = vadd.f32 0.0, %v5651
        %v5653 = vpop.f32.mrb[0].mxu0
        %v5654 = vadd.f32 0.0, %v5653
        %5655 = vmatprep.mubr.f32.mxu0 0.0
        %5656 = vmatmul.mubr.f32.gmra.mrb[0].mxu0 %v5482
        %v5657 = vpop.f32.mrb[0].mxu0
        %v5658 = vadd.f32 0.0, %v5657
        %v5659 = vpop.f32.mrb[0].mxu0
        %v5660 = vadd.f32 0.0, %v5659
        %5661 = vdwg.mxu0
        %5662 = vmatprep.subr.mxu0 0.0
        %5663 = vmatpush1.msra.mxu0 %v5466
        %5664 = vmatprep.subr.mxu0 0.0
        %5665 = vmatpush1.msra.mxu0 0.0
        %5666 = vmatprep.subr.mxu0 0.0
        %5667 = vmatpush1.msra.mxu0 0.0
        %5668 = vmatprep.subr.mxu0 0.0
        %5669 = vmatpush1.msra.mxu0 0.0
        %5670 = vmatprep.subr.mxu0 0.0
        %5671 = vmatpush1.msra.mxu0 0.0
        %5672 = vmatprep.subr.mxu0 0.0
        %5673 = vmatpush1.msra.mxu0 0.0
        %5674 = vmatprep.subr.mxu0 0.0
        %5675 = vmatpush1.msra.mxu0 0.0
        %5676 = vmatprep.subr.mxu0 0.0
        %5677 = vmatpush1.msra.mxu0 0.0
        %5678 = vmatprep.subr.mxu0 0.0
        %5679 = vmatpush1.msra.mxu0 0.0
        %5680 = vmatprep.subr.mxu0 0.0
        %5681 = vmatpush1.msra.mxu0 0.0
        %5682 = vmatprep.subr.mxu0 0.0
        %5683 = vmatpush1.msra.mxu0 0.0
        %5684 = vmatprep.subr.mxu0 0.0
        %5685 = vmatpush1.msra.mxu0 0.0
        %5686 = vmatprep.subr.mxu0 0.0
        %5687 = vmatpush1.msra.mxu0 0.0
        %5688 = vmatprep.subr.mxu0 0.0
        %5689 = vmatpush1.msra.mxu0 0.0
        %5690 = vmatprep.subr.mxu0 0.0
        %5691 = vmatpush1.msra.mxu0 0.0
        %5692 = vmatprep.subr.mxu0 0.0
        %5693 = vmatpush1.msra.mxu0 0.0
        %5694 = vmatprep.subr.mxu0 0.0
        %5695 = vmatpush1.msra.mxu0 0.0
        %5696 = vmatprep.subr.mxu0 0.0
        %5697 = vmatpush1.msra.mxu0 0.0
        %5698 = vmatprep.subr.mxu0 0.0
        %5699 = vmatpush1.msra.mxu0 0.0
        %5700 = vmatprep.subr.mxu0 0.0
        %5701 = vmatpush1.msra.mxu0 0.0
        %5702 = vmatprep.subr.mxu0 0.0
        %5703 = vmatpush1.msra.mxu0 0.0
        %5704 = vmatprep.subr.mxu0 0.0
        %5705 = vmatpush1.msra.mxu0 0.0
        %5706 = vmatprep.subr.mxu0 0.0
        %5707 = vmatpush1.msra.mxu0 0.0
        %5708 = vmatprep.subr.mxu0 0.0
        %5709 = vmatpush1.msra.mxu0 0.0
        %5710 = vmatprep.subr.mxu0 0.0
        %5711 = vmatpush1.msra.mxu0 0.0
        %5712 = vmatprep.subr.mxu0 0.0
        %5713 = vmatpush1.msra.mxu0 0.0
        %5714 = vmatprep.subr.mxu0 0.0
        %5715 = vmatpush1.msra.mxu0 0.0
        %5716 = vmatprep.subr.mxu0 0.0
        %5717 = vmatpush1.msra.mxu0 0.0
        %5718 = vmatprep.subr.mxu0 0.0
        %5719 = vmatpush1.msra.mxu0 0.0
        %5720 = vmatprep.subr.mxu0 0.0
        %5721 = vmatpush1.msra.mxu0 0.0
        %5722 = vmatprep.subr.mxu0 0.0
        %5723 = vmatpush1.msra.mxu0 0.0
        %5724 = vmatprep.subr.mxu0 0.0
        %5725 = vmatpush1.msra.mxu0 0.0
        %5726 = vmatprep.mubr.f32.mxu0 0.0
        %5727 = vmatmul.mubr.f32.gmra.mrb[0].mxu0 %v5473
        %v5728 = vpop.f32.mrb[0].mxu0
        %v5729 = vadd.f32 0.0, %v5728
        %v5730 = vpop.f32.mrb[0].mxu0
        %5731 = vmatprep.mubr.f32.mxu0 0.0
        %5732 = vmatmul.mubr.f32.gmra.mrb[0].mxu0 %v5476
        %v5733 = vpop.f32.mrb[0].mxu0
        %v5734 = vadd.f32 0.0, %v5733
        %v5735 = vpop.f32.mrb[0].mxu0
        %5736 = vmatprep.mubr.f32.mxu0 0.0
        %5737 = vmatmul.mubr.f32.gmra.mrb[0].mxu0 %v5479
        %v5738 = vpop.f32.mrb[0].mxu0
        %v5739 = vadd.f32 0.0, %v5738
        %v5740 = vpop.f32.mrb[0].mxu0
        %5741 = vmatprep.mubr.f32.mxu0 0.0
        %5742 = vmatmul.mubr.f32.gmra.mrb[0].mxu0 %v5482
        %v5743 = vpop.f32.mrb[0].mxu0
        %v5744 = vadd.f32 0.0, %v5743
        %v5745 = vpop.f32.mrb[0].mxu0
        %5746 = vdwg.mxu0
        %v5747 = vadd.f32 %v5424, %v5551
        %v5748 = vadd.f32 %v5425, %v5553
        %v5749 = vadd.f32 %v5426, %v5640
        %v5750 = vadd.f32 %v5427, %v5642
        %v5751 = vadd.f32 %v5428, %v5729
        %v5752 = vadd.f32 %v5429, %v5557
        %v5753 = vadd.f32 %v5430, %v5559
        %v5754 = vadd.f32 %v5431, %v5646
        %v5755 = vadd.f32 %v5432, %v5648
        %v5756 = vadd.f32 %v5433, %v5734
        %v5757 = vadd.f32 %v5434, %v5563
        %v5758 = vadd.f32 %v5435, %v5565
        %v5759 = vadd.f32 %v5436, %v5652
        %v5760 = vadd.f32 %v5437, %v5654
        %v5761 = vadd.f32 %v5438, %v5739
        %v5762 = vadd.f32 %v5439, %v5569
        %v5763 = vadd.f32 %v5440, %v5571
        %v5764 = vadd.f32 %v5441, %v5658
        %v5765 = vadd.f32 %v5442, %v5660
        %v5766 = vadd.f32 %v5443, %v5744
        %s5767 = scalar_lea.vmem %s1, 544
        %v5768 = vld [vmem:[%s5767] sm:$0xff]
        %v5769 = vld [vmem:[%s5767 + $0x8] sm:$0xff]
        %v5770 = vld [vmem:[%s5767 + $0x10] sm:$0xff]
        %v5771 = vld [vmem:[%s5767 + $0x18] sm:$0xff]
        %5772 = vrot.lane.b32.xlu0 %v332, 6
        %v5773 = vpop.permute.xlu0 %5772
        %5774 = vrot.lane.b32.xlu0 %v333, 6
        %v5775 = vpop.permute.xlu0 %5774
        %5776 = vrot.lane.b32.xlu0 %v334, 6
        %v5777 = vpop.permute.xlu0 %5776
        %5778 = vrot.lane.b32.xlu0 %v335, 6
        %v5779 = vpop.permute.xlu0 %5778
        %5780 = vrot.lane.b32.xlu0 %v336, 6
        %v5781 = vpop.permute.xlu0 %5780
        %5782 = vrot.lane.b32.xlu0 %v342, 6
        %v5783 = vpop.permute.xlu0 %5782
        %vm5784 = vcmask 48128
        %v5785 = vsel %vm5784, %v5773, %v5775
        %v5786 = vsel %vm5784, %v5775, %v5777
        %v5787 = vsel %vm5784, %v5777, %v5779
        %v5788 = vsel %vm5784, %v5779, %v5781
        %v5789 = vsel %vm5784, %v5781, %v5783
        %v5796 = vsel %vm372, %v5768, 0
        %v5799 = vsel %vm372, %v5769, 0
        %v5802 = vsel %vm372, %v5770, 0
        %v5805 = vsel %vm372, %v5771, 0
        %5807 = vmatprep.subr.mxu0 %v5786
        %5808 = vmatpush1.msra.mxu0 %v5785
        %5809 = vmatprep.subr.mxu0 0.0
        %5810 = vmatpush1.msra.mxu0 0.0
        %5811 = vmatprep.subr.mxu0 0.0
        %5812 = vmatpush1.msra.mxu0 0.0
        %5813 = vmatprep.subr.mxu0 0.0
        %5814 = vmatpush1.msra.mxu0 0.0
        %5815 = vmatprep.subr.mxu0 0.0
        %5816 = vmatpush1.msra.mxu0 0.0
        %5817 = vmatprep.subr.mxu0 0.0
        %5818 = vmatpush1.msra.mxu0 0.0
        %5819 = vmatprep.subr.mxu0 0.0
        %5820 = vmatpush1.msra.mxu0 0.0
        %5821 = vmatprep.subr.mxu0 0.0
        %5822 = vmatpush1.msra.mxu0 0.0
        %5823 = vmatprep.subr.mxu0 0.0
        %5824 = vmatpush1.msra.mxu0 0.0
        %5825 = vmatprep.subr.mxu0 0.0
        %5826 = vmatpush1.msra.mxu0 0.0
        %5827 = vmatprep.subr.mxu0 0.0
        %5828 = vmatpush1.msra.mxu0 0.0
        %5829 = vmatprep.subr.mxu0 0.0
        %5830 = vmatpush1.msra.mxu0 0.0
        %5831 = vmatprep.subr.mxu0 0.0
        %5832 = vmatpush1.msra.mxu0 0.0
        %5833 = vmatprep.subr.mxu0 0.0
        %5834 = vmatpush1.msra.mxu0 0.0
        %5835 = vmatprep.subr.mxu0 0.0
        %5836 = vmatpush1.msra.mxu0 0.0
        %5837 = vmatprep.subr.mxu0 0.0
        %5838 = vmatpush1.msra.mxu0 0.0
        %5839 = vmatprep.subr.mxu0 0.0
        %5840 = vmatpush1.msra.mxu0 0.0
        %5841 = vmatprep.subr.mxu0 0.0
        %5842 = vmatpush1.msra.mxu0 0.0
        %5843 = vmatprep.subr.mxu0 0.0
        %5844 = vmatpush1.msra.mxu0 0.0
        %5845 = vmatprep.subr.mxu0 0.0
        %5846 = vmatpush1.msra.mxu0 0.0
        %5847 = vmatprep.subr.mxu0 0.0
        %5848 = vmatpush1.msra.mxu0 0.0
        %5849 = vmatprep.subr.mxu0 0.0
        %5850 = vmatpush1.msra.mxu0 0.0
        %5851 = vmatprep.subr.mxu0 0.0
        %5852 = vmatpush1.msra.mxu0 0.0
        %5853 = vmatprep.subr.mxu0 0.0
        %5854 = vmatpush1.msra.mxu0 0.0
        %5855 = vmatprep.subr.mxu0 0.0
        %5856 = vmatpush1.msra.mxu0 0.0
        %5857 = vmatprep.subr.mxu0 0.0
        %5858 = vmatpush1.msra.mxu0 0.0
        %5859 = vmatprep.subr.mxu0 0.0
        %5860 = vmatpush1.msra.mxu0 0.0
        %5861 = vmatprep.subr.mxu0 0.0
        %5862 = vmatpush1.msra.mxu0 0.0
        %5863 = vmatprep.subr.mxu0 0.0
        %5864 = vmatpush1.msra.mxu0 0.0
        %5865 = vmatprep.subr.mxu0 0.0
        %5866 = vmatpush1.msra.mxu0 0.0
        %5867 = vmatprep.subr.mxu0 0.0
        %5868 = vmatpush1.msra.mxu0 0.0
        %5869 = vmatprep.subr.mxu0 0.0
        %5870 = vmatpush1.msra.mxu0 0.0
        %5871 = vmatprep.mubr.f32.mxu0 0.0
        %5872 = vmatmul.mubr.f32.gmra.mrb[0].mxu0 %v5796
        %v5873 = vpop.f32.mrb[0].mxu0
        %v5874 = vadd.f32 0.0, %v5873
        %v5875 = vpop.f32.mrb[0].mxu0
        %v5876 = vadd.f32 0.0, %v5875
        %5877 = vmatprep.mubr.f32.mxu0 0.0
        %5878 = vmatmul.mubr.f32.gmra.mrb[0].mxu0 %v5799
        %v5879 = vpop.f32.mrb[0].mxu0
        %v5880 = vadd.f32 0.0, %v5879
        %v5881 = vpop.f32.mrb[0].mxu0
        %v5882 = vadd.f32 0.0, %v5881
        %5883 = vmatprep.mubr.f32.mxu0 0.0
        %5884 = vmatmul.mubr.f32.gmra.mrb[0].mxu0 %v5802
        %v5885 = vpop.f32.mrb[0].mxu0
        %v5886 = vadd.f32 0.0, %v5885
        %v5887 = vpop.f32.mrb[0].mxu0
        %v5888 = vadd.f32 0.0, %v5887
        %5889 = vmatprep.mubr.f32.mxu0 0.0
        %5890 = vmatmul.mubr.f32.gmra.mrb[0].mxu0 %v5805
        %v5891 = vpop.f32.mrb[0].mxu0
        %v5892 = vadd.f32 0.0, %v5891
        %v5893 = vpop.f32.mrb[0].mxu0
        %v5894 = vadd.f32 0.0, %v5893
        %5895 = vdwg.mxu0
        %5896 = vmatprep.subr.mxu0 %v5788
        %5897 = vmatpush1.msra.mxu0 %v5787
        %5898 = vmatprep.subr.mxu0 0.0
        %5899 = vmatpush1.msra.mxu0 0.0
        %5900 = vmatprep.subr.mxu0 0.0
        %5901 = vmatpush1.msra.mxu0 0.0
        %5902 = vmatprep.subr.mxu0 0.0
        %5903 = vmatpush1.msra.mxu0 0.0
        %5904 = vmatprep.subr.mxu0 0.0
        %5905 = vmatpush1.msra.mxu0 0.0
        %5906 = vmatprep.subr.mxu0 0.0
        %5907 = vmatpush1.msra.mxu0 0.0
        %5908 = vmatprep.subr.mxu0 0.0
        %5909 = vmatpush1.msra.mxu0 0.0
        %5910 = vmatprep.subr.mxu0 0.0
        %5911 = vmatpush1.msra.mxu0 0.0
        %5912 = vmatprep.subr.mxu0 0.0
        %5913 = vmatpush1.msra.mxu0 0.0
        %5914 = vmatprep.subr.mxu0 0.0
        %5915 = vmatpush1.msra.mxu0 0.0
        %5916 = vmatprep.subr.mxu0 0.0
        %5917 = vmatpush1.msra.mxu0 0.0
        %5918 = vmatprep.subr.mxu0 0.0
        %5919 = vmatpush1.msra.mxu0 0.0
        %5920 = vmatprep.subr.mxu0 0.0
        %5921 = vmatpush1.msra.mxu0 0.0
        %5922 = vmatprep.subr.mxu0 0.0
        %5923 = vmatpush1.msra.mxu0 0.0
        %5924 = vmatprep.subr.mxu0 0.0
        %5925 = vmatpush1.msra.mxu0 0.0
        %5926 = vmatprep.subr.mxu0 0.0
        %5927 = vmatpush1.msra.mxu0 0.0
        %5928 = vmatprep.subr.mxu0 0.0
        %5929 = vmatpush1.msra.mxu0 0.0
        %5930 = vmatprep.subr.mxu0 0.0
        %5931 = vmatpush1.msra.mxu0 0.0
        %5932 = vmatprep.subr.mxu0 0.0
        %5933 = vmatpush1.msra.mxu0 0.0
        %5934 = vmatprep.subr.mxu0 0.0
        %5935 = vmatpush1.msra.mxu0 0.0
        %5936 = vmatprep.subr.mxu0 0.0
        %5937 = vmatpush1.msra.mxu0 0.0
        %5938 = vmatprep.subr.mxu0 0.0
        %5939 = vmatpush1.msra.mxu0 0.0
        %5940 = vmatprep.subr.mxu0 0.0
        %5941 = vmatpush1.msra.mxu0 0.0
        %5942 = vmatprep.subr.mxu0 0.0
        %5943 = vmatpush1.msra.mxu0 0.0
        %5944 = vmatprep.subr.mxu0 0.0
        %5945 = vmatpush1.msra.mxu0 0.0
        %5946 = vmatprep.subr.mxu0 0.0
        %5947 = vmatpush1.msra.mxu0 0.0
        %5948 = vmatprep.subr.mxu0 0.0
        %5949 = vmatpush1.msra.mxu0 0.0
        %5950 = vmatprep.subr.mxu0 0.0
        %5951 = vmatpush1.msra.mxu0 0.0
        %5952 = vmatprep.subr.mxu0 0.0
        %5953 = vmatpush1.msra.mxu0 0.0
        %5954 = vmatprep.subr.mxu0 0.0
        %5955 = vmatpush1.msra.mxu0 0.0
        %5956 = vmatprep.subr.mxu0 0.0
        %5957 = vmatpush1.msra.mxu0 0.0
        %5958 = vmatprep.subr.mxu0 0.0
        %5959 = vmatpush1.msra.mxu0 0.0
        %5960 = vmatprep.mubr.f32.mxu0 0.0
        %5961 = vmatmul.mubr.f32.gmra.mrb[0].mxu0 %v5796
        %v5962 = vpop.f32.mrb[0].mxu0
        %v5963 = vadd.f32 0.0, %v5962
        %v5964 = vpop.f32.mrb[0].mxu0
        %v5965 = vadd.f32 0.0, %v5964
        %5966 = vmatprep.mubr.f32.mxu0 0.0
        %5967 = vmatmul.mubr.f32.gmra.mrb[0].mxu0 %v5799
        %v5968 = vpop.f32.mrb[0].mxu0
        %v5969 = vadd.f32 0.0, %v5968
        %v5970 = vpop.f32.mrb[0].mxu0
        %v5971 = vadd.f32 0.0, %v5970
        %5972 = vmatprep.mubr.f32.mxu0 0.0
        %5973 = vmatmul.mubr.f32.gmra.mrb[0].mxu0 %v5802
        %v5974 = vpop.f32.mrb[0].mxu0
        %v5975 = vadd.f32 0.0, %v5974
        %v5976 = vpop.f32.mrb[0].mxu0
        %v5977 = vadd.f32 0.0, %v5976
        %5978 = vmatprep.mubr.f32.mxu0 0.0
        %5979 = vmatmul.mubr.f32.gmra.mrb[0].mxu0 %v5805
        %v5980 = vpop.f32.mrb[0].mxu0
        %v5981 = vadd.f32 0.0, %v5980
        %v5982 = vpop.f32.mrb[0].mxu0
        %v5983 = vadd.f32 0.0, %v5982
        %5984 = vdwg.mxu0
        %5985 = vmatprep.subr.mxu0 0.0
        %5986 = vmatpush1.msra.mxu0 %v5789
        %5987 = vmatprep.subr.mxu0 0.0
        %5988 = vmatpush1.msra.mxu0 0.0
        %5989 = vmatprep.subr.mxu0 0.0
        %5990 = vmatpush1.msra.mxu0 0.0
        %5991 = vmatprep.subr.mxu0 0.0
        %5992 = vmatpush1.msra.mxu0 0.0
        %5993 = vmatprep.subr.mxu0 0.0
        %5994 = vmatpush1.msra.mxu0 0.0
        %5995 = vmatprep.subr.mxu0 0.0
        %5996 = vmatpush1.msra.mxu0 0.0
        %5997 = vmatprep.subr.mxu0 0.0
        %5998 = vmatpush1.msra.mxu0 0.0
        %5999 = vmatprep.subr.mxu0 0.0
        %6000 = vmatpush1.msra.mxu0 0.0
        %6001 = vmatprep.subr.mxu0 0.0
        %6002 = vmatpush1.msra.mxu0 0.0
        %6003 = vmatprep.subr.mxu0 0.0
        %6004 = vmatpush1.msra.mxu0 0.0
        %6005 = vmatprep.subr.mxu0 0.0
        %6006 = vmatpush1.msra.mxu0 0.0
        %6007 = vmatprep.subr.mxu0 0.0
        %6008 = vmatpush1.msra.mxu0 0.0
        %6009 = vmatprep.subr.mxu0 0.0
        %6010 = vmatpush1.msra.mxu0 0.0
        %6011 = vmatprep.subr.mxu0 0.0
        %6012 = vmatpush1.msra.mxu0 0.0
        %6013 = vmatprep.subr.mxu0 0.0
        %6014 = vmatpush1.msra.mxu0 0.0
        %6015 = vmatprep.subr.mxu0 0.0
        %6016 = vmatpush1.msra.mxu0 0.0
        %6017 = vmatprep.subr.mxu0 0.0
        %6018 = vmatpush1.msra.mxu0 0.0
        %6019 = vmatprep.subr.mxu0 0.0
        %6020 = vmatpush1.msra.mxu0 0.0
        %6021 = vmatprep.subr.mxu0 0.0
        %6022 = vmatpush1.msra.mxu0 0.0
        %6023 = vmatprep.subr.mxu0 0.0
        %6024 = vmatpush1.msra.mxu0 0.0
        %6025 = vmatprep.subr.mxu0 0.0
        %6026 = vmatpush1.msra.mxu0 0.0
        %6027 = vmatprep.subr.mxu0 0.0
        %6028 = vmatpush1.msra.mxu0 0.0
        %6029 = vmatprep.subr.mxu0 0.0
        %6030 = vmatpush1.msra.mxu0 0.0
        %6031 = vmatprep.subr.mxu0 0.0
        %6032 = vmatpush1.msra.mxu0 0.0
        %6033 = vmatprep.subr.mxu0 0.0
        %6034 = vmatpush1.msra.mxu0 0.0
        %6035 = vmatprep.subr.mxu0 0.0
        %6036 = vmatpush1.msra.mxu0 0.0
        %6037 = vmatprep.subr.mxu0 0.0
        %6038 = vmatpush1.msra.mxu0 0.0
        %6039 = vmatprep.subr.mxu0 0.0
        %6040 = vmatpush1.msra.mxu0 0.0
        %6041 = vmatprep.subr.mxu0 0.0
        %6042 = vmatpush1.msra.mxu0 0.0
        %6043 = vmatprep.subr.mxu0 0.0
        %6044 = vmatpush1.msra.mxu0 0.0
        %6045 = vmatprep.subr.mxu0 0.0
        %6046 = vmatpush1.msra.mxu0 0.0
        %6047 = vmatprep.subr.mxu0 0.0
        %6048 = vmatpush1.msra.mxu0 0.0
        %6049 = vmatprep.mubr.f32.mxu0 0.0
        %6050 = vmatmul.mubr.f32.gmra.mrb[0].mxu0 %v5796
        %v6051 = vpop.f32.mrb[0].mxu0
        %v6052 = vadd.f32 0.0, %v6051
        %v6053 = vpop.f32.mrb[0].mxu0
        %6054 = vmatprep.mubr.f32.mxu0 0.0
        %6055 = vmatmul.mubr.f32.gmra.mrb[0].mxu0 %v5799
        %v6056 = vpop.f32.mrb[0].mxu0
        %v6057 = vadd.f32 0.0, %v6056
        %v6058 = vpop.f32.mrb[0].mxu0
        %6059 = vmatprep.mubr.f32.mxu0 0.0
        %6060 = vmatmul.mubr.f32.gmra.mrb[0].mxu0 %v5802
        %v6061 = vpop.f32.mrb[0].mxu0
        %v6062 = vadd.f32 0.0, %v6061
        %v6063 = vpop.f32.mrb[0].mxu0
        %6064 = vmatprep.mubr.f32.mxu0 0.0
        %6065 = vmatmul.mubr.f32.gmra.mrb[0].mxu0 %v5805
        %v6066 = vpop.f32.mrb[0].mxu0
        %v6067 = vadd.f32 0.0, %v6066
        %v6068 = vpop.f32.mrb[0].mxu0
        %6069 = vdwg.mxu0
        %v6070 = vadd.f32 %v5747, %v5874
        %v6071 = vadd.f32 %v5748, %v5876
        %v6072 = vadd.f32 %v5749, %v5963
        %v6073 = vadd.f32 %v5750, %v5965
        %v6074 = vadd.f32 %v5751, %v6052
        %v6075 = vadd.f32 %v5752, %v5880
        %v6076 = vadd.f32 %v5753, %v5882
        %v6077 = vadd.f32 %v5754, %v5969
        %v6078 = vadd.f32 %v5755, %v5971
        %v6079 = vadd.f32 %v5756, %v6057
        %v6080 = vadd.f32 %v5757, %v5886
        %v6081 = vadd.f32 %v5758, %v5888
        %v6082 = vadd.f32 %v5759, %v5975
        %v6083 = vadd.f32 %v5760, %v5977
        %v6084 = vadd.f32 %v5761, %v6062
        %v6085 = vadd.f32 %v5762, %v5892
        %v6086 = vadd.f32 %v5763, %v5894
        %v6087 = vadd.f32 %v5764, %v5981
        %v6088 = vadd.f32 %v5765, %v5983
        %v6089 = vadd.f32 %v5766, %v6067
        %s6090 = scalar_lea.vmem %s1, 576
        %v6091 = vld [vmem:[%s6090] sm:$0xff]
        %v6092 = vld [vmem:[%s6090 + $0x8] sm:$0xff]
        %v6093 = vld [vmem:[%s6090 + $0x10] sm:$0xff]
        %v6094 = vld [vmem:[%s6090 + $0x18] sm:$0xff]
        %v6095 = vld [vmem:[#allocation2 + $0x8] sm:$0xff]
        %v6096 = vld [vmem:[#allocation2 + $0x10] sm:$0xff]
        %v6097 = vld [vmem:[#allocation2 + $0x18] sm:$0xff]
        %v6098 = vld [vmem:[#allocation2 + $0x20] sm:$0xff]
        %v6099 = vld [vmem:[#allocation2 + $0x28] sm:$0xff]
        %v6100 = vld [vmem:[#allocation2 + $0x30] sm:$0xff]
        %6107 = vrot.lane.b32.xlu0 %v6095, 56
        %v6108 = vpop.permute.xlu0 %6107
        %6109 = vrot.lane.b32.xlu0 %v6096, 56
        %v6110 = vpop.permute.xlu0 %6109
        %6111 = vrot.lane.b32.xlu0 %v6097, 56
        %v6112 = vpop.permute.xlu0 %6111
        %6113 = vrot.lane.b32.xlu0 %v6098, 56
        %v6114 = vpop.permute.xlu0 %6113
        %6115 = vrot.lane.b32.xlu0 %v6099, 56
        %v6116 = vpop.permute.xlu0 %6115
        %6117 = vrot.lane.b32.xlu0 %v6100, 56
        %v6118 = vpop.permute.xlu0 %6117
        %vm6119 = vcmask 457728
        %v6120 = vsel %vm6119, %v6108, %v6110
        %v6121 = vsel %vm6119, %v6110, %v6112
        %v6122 = vsel %vm6119, %v6112, %v6114
        %v6123 = vsel %vm6119, %v6114, %v6116
        %v6124 = vsel %vm6119, %v6116, %v6118
        %v6131 = vsel %vm372, %v6091, 0
        %v6134 = vsel %vm372, %v6092, 0
        %v6137 = vsel %vm372, %v6093, 0
        %v6140 = vsel %vm372, %v6094, 0
        %6142 = vmatprep.subr.mxu0 %v6121
        %6143 = vmatpush1.msra.mxu0 %v6120
        %6144 = vmatprep.subr.mxu0 0.0
        %6145 = vmatpush1.msra.mxu0 0.0
        %6146 = vmatprep.subr.mxu0 0.0
        %6147 = vmatpush1.msra.mxu0 0.0
        %6148 = vmatprep.subr.mxu0 0.0
        %6149 = vmatpush1.msra.mxu0 0.0
        %6150 = vmatprep.subr.mxu0 0.0
        %6151 = vmatpush1.msra.mxu0 0.0
        %6152 = vmatprep.subr.mxu0 0.0
        %6153 = vmatpush1.msra.mxu0 0.0
        %6154 = vmatprep.subr.mxu0 0.0
        %6155 = vmatpush1.msra.mxu0 0.0
        %6156 = vmatprep.subr.mxu0 0.0
        %6157 = vmatpush1.msra.mxu0 0.0
        %6158 = vmatprep.subr.mxu0 0.0
        %6159 = vmatpush1.msra.mxu0 0.0
        %6160 = vmatprep.subr.mxu0 0.0
        %6161 = vmatpush1.msra.mxu0 0.0
        %6162 = vmatprep.subr.mxu0 0.0
        %6163 = vmatpush1.msra.mxu0 0.0
        %6164 = vmatprep.subr.mxu0 0.0
        %6165 = vmatpush1.msra.mxu0 0.0
        %6166 = vmatprep.subr.mxu0 0.0
        %6167 = vmatpush1.msra.mxu0 0.0
        %6168 = vmatprep.subr.mxu0 0.0
        %6169 = vmatpush1.msra.mxu0 0.0
        %6170 = vmatprep.subr.mxu0 0.0
        %6171 = vmatpush1.msra.mxu0 0.0
        %6172 = vmatprep.subr.mxu0 0.0
        %6173 = vmatpush1.msra.mxu0 0.0
        %6174 = vmatprep.subr.mxu0 0.0
        %6175 = vmatpush1.msra.mxu0 0.0
        %6176 = vmatprep.subr.mxu0 0.0
        %6177 = vmatpush1.msra.mxu0 0.0
        %6178 = vmatprep.subr.mxu0 0.0
        %6179 = vmatpush1.msra.mxu0 0.0
        %6180 = vmatprep.subr.mxu0 0.0
        %6181 = vmatpush1.msra.mxu0 0.0
        %6182 = vmatprep.subr.mxu0 0.0
        %6183 = vmatpush1.msra.mxu0 0.0
        %6184 = vmatprep.subr.mxu0 0.0
        %6185 = vmatpush1.msra.mxu0 0.0
        %6186 = vmatprep.subr.mxu0 0.0
        %6187 = vmatpush1.msra.mxu0 0.0
        %6188 = vmatprep.subr.mxu0 0.0
        %6189 = vmatpush1.msra.mxu0 0.0
        %6190 = vmatprep.subr.mxu0 0.0
        %6191 = vmatpush1.msra.mxu0 0.0
        %6192 = vmatprep.subr.mxu0 0.0
        %6193 = vmatpush1.msra.mxu0 0.0
        %6194 = vmatprep.subr.mxu0 0.0
        %6195 = vmatpush1.msra.mxu0 0.0
        %6196 = vmatprep.subr.mxu0 0.0
        %6197 = vmatpush1.msra.mxu0 0.0
        %6198 = vmatprep.subr.mxu0 0.0
        %6199 = vmatpush1.msra.mxu0 0.0
        %6200 = vmatprep.subr.mxu0 0.0
        %6201 = vmatpush1.msra.mxu0 0.0
        %6202 = vmatprep.subr.mxu0 0.0
        %6203 = vmatpush1.msra.mxu0 0.0
        %6204 = vmatprep.subr.mxu0 0.0
        %6205 = vmatpush1.msra.mxu0 0.0
        %6206 = vmatprep.mubr.f32.mxu0 0.0
        %6207 = vmatmul.mubr.f32.gmra.mrb[0].mxu0 %v6131
        %v6208 = vpop.f32.mrb[0].mxu0
        %v6209 = vadd.f32 0.0, %v6208
        %v6210 = vpop.f32.mrb[0].mxu0
        %v6211 = vadd.f32 0.0, %v6210
        %6212 = vmatprep.mubr.f32.mxu0 0.0
        %6213 = vmatmul.mubr.f32.gmra.mrb[0].mxu0 %v6134
        %v6214 = vpop.f32.mrb[0].mxu0
        %v6215 = vadd.f32 0.0, %v6214
        %v6216 = vpop.f32.mrb[0].mxu0
        %v6217 = vadd.f32 0.0, %v6216
        %6218 = vmatprep.mubr.f32.mxu0 0.0
        %6219 = vmatmul.mubr.f32.gmra.mrb[0].mxu0 %v6137
        %v6220 = vpop.f32.mrb[0].mxu0
        %v6221 = vadd.f32 0.0, %v6220
        %v6222 = vpop.f32.mrb[0].mxu0
        %v6223 = vadd.f32 0.0, %v6222
        %6224 = vmatprep.mubr.f32.mxu0 0.0
        %6225 = vmatmul.mubr.f32.gmra.mrb[0].mxu0 %v6140
        %v6226 = vpop.f32.mrb[0].mxu0
        %v6227 = vadd.f32 0.0, %v6226
        %v6228 = vpop.f32.mrb[0].mxu0
        %v6229 = vadd.f32 0.0, %v6228
        %6230 = vdwg.mxu0
        %6231 = vmatprep.subr.mxu0 %v6123
        %6232 = vmatpush1.msra.mxu0 %v6122
        %6233 = vmatprep.subr.mxu0 0.0
        %6234 = vmatpush1.msra.mxu0 0.0
        %6235 = vmatprep.subr.mxu0 0.0
        %6236 = vmatpush1.msra.mxu0 0.0
        %6237 = vmatprep.subr.mxu0 0.0
        %6238 = vmatpush1.msra.mxu0 0.0
        %6239 = vmatprep.subr.mxu0 0.0
        %6240 = vmatpush1.msra.mxu0 0.0
        %6241 = vmatprep.subr.mxu0 0.0
        %6242 = vmatpush1.msra.mxu0 0.0
        %6243 = vmatprep.subr.mxu0 0.0
        %6244 = vmatpush1.msra.mxu0 0.0
        %6245 = vmatprep.subr.mxu0 0.0
        %6246 = vmatpush1.msra.mxu0 0.0
        %6247 = vmatprep.subr.mxu0 0.0
        %6248 = vmatpush1.msra.mxu0 0.0
        %6249 = vmatprep.subr.mxu0 0.0
        %6250 = vmatpush1.msra.mxu0 0.0
        %6251 = vmatprep.subr.mxu0 0.0
        %6252 = vmatpush1.msra.mxu0 0.0
        %6253 = vmatprep.subr.mxu0 0.0
        %6254 = vmatpush1.msra.mxu0 0.0
        %6255 = vmatprep.subr.mxu0 0.0
        %6256 = vmatpush1.msra.mxu0 0.0
        %6257 = vmatprep.subr.mxu0 0.0
        %6258 = vmatpush1.msra.mxu0 0.0
        %6259 = vmatprep.subr.mxu0 0.0
        %6260 = vmatpush1.msra.mxu0 0.0
        %6261 = vmatprep.subr.mxu0 0.0
        %6262 = vmatpush1.msra.mxu0 0.0
        %6263 = vmatprep.subr.mxu0 0.0
        %6264 = vmatpush1.msra.mxu0 0.0
        %6265 = vmatprep.subr.mxu0 0.0
        %6266 = vmatpush1.msra.mxu0 0.0
        %6267 = vmatprep.subr.mxu0 0.0
        %6268 = vmatpush1.msra.mxu0 0.0
        %6269 = vmatprep.subr.mxu0 0.0
        %6270 = vmatpush1.msra.mxu0 0.0
        %6271 = vmatprep.subr.mxu0 0.0
        %6272 = vmatpush1.msra.mxu0 0.0
        %6273 = vmatprep.subr.mxu0 0.0
        %6274 = vmatpush1.msra.mxu0 0.0
        %6275 = vmatprep.subr.mxu0 0.0
        %6276 = vmatpush1.msra.mxu0 0.0
        %6277 = vmatprep.subr.mxu0 0.0
        %6278 = vmatpush1.msra.mxu0 0.0
        %6279 = vmatprep.subr.mxu0 0.0
        %6280 = vmatpush1.msra.mxu0 0.0
        %6281 = vmatprep.subr.mxu0 0.0
        %6282 = vmatpush1.msra.mxu0 0.0
        %6283 = vmatprep.subr.mxu0 0.0
        %6284 = vmatpush1.msra.mxu0 0.0
        %6285 = vmatprep.subr.mxu0 0.0
        %6286 = vmatpush1.msra.mxu0 0.0
        %6287 = vmatprep.subr.mxu0 0.0
        %6288 = vmatpush1.msra.mxu0 0.0
        %6289 = vmatprep.subr.mxu0 0.0
        %6290 = vmatpush1.msra.mxu0 0.0
        %6291 = vmatprep.subr.mxu0 0.0
        %6292 = vmatpush1.msra.mxu0 0.0
        %6293 = vmatprep.subr.mxu0 0.0
        %6294 = vmatpush1.msra.mxu0 0.0
        %6295 = vmatprep.mubr.f32.mxu0 0.0
        %6296 = vmatmul.mubr.f32.gmra.mrb[0].mxu0 %v6131
        %v6297 = vpop.f32.mrb[0].mxu0
        %v6298 = vadd.f32 0.0, %v6297
        %v6299 = vpop.f32.mrb[0].mxu0
        %v6300 = vadd.f32 0.0, %v6299
        %6301 = vmatprep.mubr.f32.mxu0 0.0
        %6302 = vmatmul.mubr.f32.gmra.mrb[0].mxu0 %v6134
        %v6303 = vpop.f32.mrb[0].mxu0
        %v6304 = vadd.f32 0.0, %v6303
        %v6305 = vpop.f32.mrb[0].mxu0
        %v6306 = vadd.f32 0.0, %v6305
        %6307 = vmatprep.mubr.f32.mxu0 0.0
        %6308 = vmatmul.mubr.f32.gmra.mrb[0].mxu0 %v6137
        %v6309 = vpop.f32.mrb[0].mxu0
        %v6310 = vadd.f32 0.0, %v6309
        %v6311 = vpop.f32.mrb[0].mxu0
        %v6312 = vadd.f32 0.0, %v6311
        %6313 = vmatprep.mubr.f32.mxu0 0.0
        %6314 = vmatmul.mubr.f32.gmra.mrb[0].mxu0 %v6140
        %v6315 = vpop.f32.mrb[0].mxu0
        %v6316 = vadd.f32 0.0, %v6315
        %v6317 = vpop.f32.mrb[0].mxu0
        %v6318 = vadd.f32 0.0, %v6317
        %6319 = vdwg.mxu0
        %6320 = vmatprep.subr.mxu0 0.0
        %6321 = vmatpush1.msra.mxu0 %v6124
        %6322 = vmatprep.subr.mxu0 0.0
        %6323 = vmatpush1.msra.mxu0 0.0
        %6324 = vmatprep.subr.mxu0 0.0
        %6325 = vmatpush1.msra.mxu0 0.0
        %6326 = vmatprep.subr.mxu0 0.0
        %6327 = vmatpush1.msra.mxu0 0.0
        %6328 = vmatprep.subr.mxu0 0.0
        %6329 = vmatpush1.msra.mxu0 0.0
        %6330 = vmatprep.subr.mxu0 0.0
        %6331 = vmatpush1.msra.mxu0 0.0
        %6332 = vmatprep.subr.mxu0 0.0
        %6333 = vmatpush1.msra.mxu0 0.0
        %6334 = vmatprep.subr.mxu0 0.0
        %6335 = vmatpush1.msra.mxu0 0.0
        %6336 = vmatprep.subr.mxu0 0.0
        %6337 = vmatpush1.msra.mxu0 0.0
        %6338 = vmatprep.subr.mxu0 0.0
        %6339 = vmatpush1.msra.mxu0 0.0
        %6340 = vmatprep.subr.mxu0 0.0
        %6341 = vmatpush1.msra.mxu0 0.0
        %6342 = vmatprep.subr.mxu0 0.0
        %6343 = vmatpush1.msra.mxu0 0.0
        %6344 = vmatprep.subr.mxu0 0.0
        %6345 = vmatpush1.msra.mxu0 0.0
        %6346 = vmatprep.subr.mxu0 0.0
        %6347 = vmatpush1.msra.mxu0 0.0
        %6348 = vmatprep.subr.mxu0 0.0
        %6349 = vmatpush1.msra.mxu0 0.0
        %6350 = vmatprep.subr.mxu0 0.0
        %6351 = vmatpush1.msra.mxu0 0.0
        %6352 = vmatprep.subr.mxu0 0.0
        %6353 = vmatpush1.msra.mxu0 0.0
        %6354 = vmatprep.subr.mxu0 0.0
        %6355 = vmatpush1.msra.mxu0 0.0
        %6356 = vmatprep.subr.mxu0 0.0
        %6357 = vmatpush1.msra.mxu0 0.0
        %6358 = vmatprep.subr.mxu0 0.0
        %6359 = vmatpush1.msra.mxu0 0.0
        %6360 = vmatprep.subr.mxu0 0.0
        %6361 = vmatpush1.msra.mxu0 0.0
        %6362 = vmatprep.subr.mxu0 0.0
        %6363 = vmatpush1.msra.mxu0 0.0
        %6364 = vmatprep.subr.mxu0 0.0
        %6365 = vmatpush1.msra.mxu0 0.0
        %6366 = vmatprep.subr.mxu0 0.0
        %6367 = vmatpush1.msra.mxu0 0.0
        %6368 = vmatprep.subr.mxu0 0.0
        %6369 = vmatpush1.msra.mxu0 0.0
        %6370 = vmatprep.subr.mxu0 0.0
        %6371 = vmatpush1.msra.mxu0 0.0
        %6372 = vmatprep.subr.mxu0 0.0
        %6373 = vmatpush1.msra.mxu0 0.0
        %6374 = vmatprep.subr.mxu0 0.0
        %6375 = vmatpush1.msra.mxu0 0.0
        %6376 = vmatprep.subr.mxu0 0.0
        %6377 = vmatpush1.msra.mxu0 0.0
        %6378 = vmatprep.subr.mxu0 0.0
        %6379 = vmatpush1.msra.mxu0 0.0
        %6380 = vmatprep.subr.mxu0 0.0
        %6381 = vmatpush1.msra.mxu0 0.0
        %6382 = vmatprep.subr.mxu0 0.0
        %6383 = vmatpush1.msra.mxu0 0.0
        %6384 = vmatprep.mubr.f32.mxu0 0.0
        %6385 = vmatmul.mubr.f32.gmra.mrb[0].mxu0 %v6131
        %v6386 = vpop.f32.mrb[0].mxu0
        %v6387 = vadd.f32 0.0, %v6386
        %v6388 = vpop.f32.mrb[0].mxu0
        %6389 = vmatprep.mubr.f32.mxu0 0.0
        %6390 = vmatmul.mubr.f32.gmra.mrb[0].mxu0 %v6134
        %v6391 = vpop.f32.mrb[0].mxu0
        %v6392 = vadd.f32 0.0, %v6391
        %v6393 = vpop.f32.mrb[0].mxu0
        %6394 = vmatprep.mubr.f32.mxu0 0.0
        %6395 = vmatmul.mubr.f32.gmra.mrb[0].mxu0 %v6137
        %v6396 = vpop.f32.mrb[0].mxu0
        %v6397 = vadd.f32 0.0, %v6396
        %v6398 = vpop.f32.mrb[0].mxu0
        %6399 = vmatprep.mubr.f32.mxu0 0.0
        %6400 = vmatmul.mubr.f32.gmra.mrb[0].mxu0 %v6140
        %v6401 = vpop.f32.mrb[0].mxu0
        %v6402 = vadd.f32 0.0, %v6401
        %v6403 = vpop.f32.mrb[0].mxu0
        %6404 = vdwg.mxu0
        %v6405 = vadd.f32 %v6070, %v6209
        %v6406 = vadd.f32 %v6071, %v6211
        %v6407 = vadd.f32 %v6072, %v6298
        %v6408 = vadd.f32 %v6073, %v6300
        %v6409 = vadd.f32 %v6074, %v6387
        %v6410 = vadd.f32 %v6075, %v6215
        %v6411 = vadd.f32 %v6076, %v6217
        %v6412 = vadd.f32 %v6077, %v6304
        %v6413 = vadd.f32 %v6078, %v6306
        %v6414 = vadd.f32 %v6079, %v6392
        %v6415 = vadd.f32 %v6080, %v6221
        %v6416 = vadd.f32 %v6081, %v6223
        %v6417 = vadd.f32 %v6082, %v6310
        %v6418 = vadd.f32 %v6083, %v6312
        %v6419 = vadd.f32 %v6084, %v6397
        %v6420 = vadd.f32 %v6085, %v6227
        %v6421 = vadd.f32 %v6086, %v6229
        %v6422 = vadd.f32 %v6087, %v6316
        %v6423 = vadd.f32 %v6088, %v6318
        %v6424 = vadd.f32 %v6089, %v6402
        %s6425 = scalar_lea.vmem %s1, 608
        %v6426 = vld [vmem:[%s6425] sm:$0xff]
        %v6427 = vld [vmem:[%s6425 + $0x8] sm:$0xff]
        %v6428 = vld [vmem:[%s6425 + $0x10] sm:$0xff]
        %v6429 = vld [vmem:[%s6425 + $0x18] sm:$0xff]
        %6430 = vrot.lane.b32.xlu0 %v6095, 55
        %v6431 = vpop.permute.xlu0 %6430
        %6432 = vrot.lane.b32.xlu0 %v6096, 55
        %v6433 = vpop.permute.xlu0 %6432
        %6434 = vrot.lane.b32.xlu0 %v6097, 55
        %v6435 = vpop.permute.xlu0 %6434
        %6436 = vrot.lane.b32.xlu0 %v6098, 55
        %v6437 = vpop.permute.xlu0 %6436
        %6438 = vrot.lane.b32.xlu0 %v6099, 55
        %v6439 = vpop.permute.xlu0 %6438
        %6440 = vrot.lane.b32.xlu0 %v6100, 55
        %v6441 = vpop.permute.xlu0 %6440
        %vm6442 = vcmask 449536
        %v6443 = vsel %vm6442, %v6431, %v6433
        %v6444 = vsel %vm6442, %v6433, %v6435
        %v6445 = vsel %vm6442, %v6435, %v6437
        %v6446 = vsel %vm6442, %v6437, %v6439
        %v6447 = vsel %vm6442, %v6439, %v6441
        %v6454 = vsel %vm372, %v6426, 0
        %v6457 = vsel %vm372, %v6427, 0
        %v6460 = vsel %vm372, %v6428, 0
        %v6463 = vsel %vm372, %v6429, 0
        %6465 = vmatprep.subr.mxu0 %v6444
        %6466 = vmatpush1.msra.mxu0 %v6443
        %6467 = vmatprep.subr.mxu0 0.0
        %6468 = vmatpush1.msra.mxu0 0.0
        %6469 = vmatprep.subr.mxu0 0.0
        %6470 = vmatpush1.msra.mxu0 0.0
        %6471 = vmatprep.subr.mxu0 0.0
        %6472 = vmatpush1.msra.mxu0 0.0
        %6473 = vmatprep.subr.mxu0 0.0
        %6474 = vmatpush1.msra.mxu0 0.0
        %6475 = vmatprep.subr.mxu0 0.0
        %6476 = vmatpush1.msra.mxu0 0.0
        %6477 = vmatprep.subr.mxu0 0.0
        %6478 = vmatpush1.msra.mxu0 0.0
        %6479 = vmatprep.subr.mxu0 0.0
        %6480 = vmatpush1.msra.mxu0 0.0
        %6481 = vmatprep.subr.mxu0 0.0
        %6482 = vmatpush1.msra.mxu0 0.0
        %6483 = vmatprep.subr.mxu0 0.0
        %6484 = vmatpush1.msra.mxu0 0.0
        %6485 = vmatprep.subr.mxu0 0.0
        %6486 = vmatpush1.msra.mxu0 0.0
        %6487 = vmatprep.subr.mxu0 0.0
        %6488 = vmatpush1.msra.mxu0 0.0
        %6489 = vmatprep.subr.mxu0 0.0
        %6490 = vmatpush1.msra.mxu0 0.0
        %6491 = vmatprep.subr.mxu0 0.0
        %6492 = vmatpush1.msra.mxu0 0.0
        %6493 = vmatprep.subr.mxu0 0.0
        %6494 = vmatpush1.msra.mxu0 0.0
        %6495 = vmatprep.subr.mxu0 0.0
        %6496 = vmatpush1.msra.mxu0 0.0
        %6497 = vmatprep.subr.mxu0 0.0
        %6498 = vmatpush1.msra.mxu0 0.0
        %6499 = vmatprep.subr.mxu0 0.0
        %6500 = vmatpush1.msra.mxu0 0.0
        %6501 = vmatprep.subr.mxu0 0.0
        %6502 = vmatpush1.msra.mxu0 0.0
        %6503 = vmatprep.subr.mxu0 0.0
        %6504 = vmatpush1.msra.mxu0 0.0
        %6505 = vmatprep.subr.mxu0 0.0
        %6506 = vmatpush1.msra.mxu0 0.0
        %6507 = vmatprep.subr.mxu0 0.0
        %6508 = vmatpush1.msra.mxu0 0.0
        %6509 = vmatprep.subr.mxu0 0.0
        %6510 = vmatpush1.msra.mxu0 0.0
        %6511 = vmatprep.subr.mxu0 0.0
        %6512 = vmatpush1.msra.mxu0 0.0
        %6513 = vmatprep.subr.mxu0 0.0
        %6514 = vmatpush1.msra.mxu0 0.0
        %6515 = vmatprep.subr.mxu0 0.0
        %6516 = vmatpush1.msra.mxu0 0.0
        %6517 = vmatprep.subr.mxu0 0.0
        %6518 = vmatpush1.msra.mxu0 0.0
        %6519 = vmatprep.subr.mxu0 0.0
        %6520 = vmatpush1.msra.mxu0 0.0
        %6521 = vmatprep.subr.mxu0 0.0
        %6522 = vmatpush1.msra.mxu0 0.0
        %6523 = vmatprep.subr.mxu0 0.0
        %6524 = vmatpush1.msra.mxu0 0.0
        %6525 = vmatprep.subr.mxu0 0.0
        %6526 = vmatpush1.msra.mxu0 0.0
        %6527 = vmatprep.subr.mxu0 0.0
        %6528 = vmatpush1.msra.mxu0 0.0
        %6529 = vmatprep.mubr.f32.mxu0 0.0
        %6530 = vmatmul.mubr.f32.gmra.mrb[0].mxu0 %v6454
        %v6531 = vpop.f32.mrb[0].mxu0
        %v6532 = vadd.f32 0.0, %v6531
        %v6533 = vpop.f32.mrb[0].mxu0
        %v6534 = vadd.f32 0.0, %v6533
        %6535 = vmatprep.mubr.f32.mxu0 0.0
        %6536 = vmatmul.mubr.f32.gmra.mrb[0].mxu0 %v6457
        %v6537 = vpop.f32.mrb[0].mxu0
        %v6538 = vadd.f32 0.0, %v6537
        %v6539 = vpop.f32.mrb[0].mxu0
        %v6540 = vadd.f32 0.0, %v6539
        %6541 = vmatprep.mubr.f32.mxu0 0.0
        %6542 = vmatmul.mubr.f32.gmra.mrb[0].mxu0 %v6460
        %v6543 = vpop.f32.mrb[0].mxu0
        %v6544 = vadd.f32 0.0, %v6543
        %v6545 = vpop.f32.mrb[0].mxu0
        %v6546 = vadd.f32 0.0, %v6545
        %6547 = vmatprep.mubr.f32.mxu0 0.0
        %6548 = vmatmul.mubr.f32.gmra.mrb[0].mxu0 %v6463
        %v6549 = vpop.f32.mrb[0].mxu0
        %v6550 = vadd.f32 0.0, %v6549
        %v6551 = vpop.f32.mrb[0].mxu0
        %v6552 = vadd.f32 0.0, %v6551
        %6553 = vdwg.mxu0
        %6554 = vmatprep.subr.mxu0 %v6446
        %6555 = vmatpush1.msra.mxu0 %v6445
        %6556 = vmatprep.subr.mxu0 0.0
        %6557 = vmatpush1.msra.mxu0 0.0
        %6558 = vmatprep.subr.mxu0 0.0
        %6559 = vmatpush1.msra.mxu0 0.0
        %6560 = vmatprep.subr.mxu0 0.0
        %6561 = vmatpush1.msra.mxu0 0.0
        %6562 = vmatprep.subr.mxu0 0.0
        %6563 = vmatpush1.msra.mxu0 0.0
        %6564 = vmatprep.subr.mxu0 0.0
        %6565 = vmatpush1.msra.mxu0 0.0
        %6566 = vmatprep.subr.mxu0 0.0
        %6567 = vmatpush1.msra.mxu0 0.0
        %6568 = vmatprep.subr.mxu0 0.0
        %6569 = vmatpush1.msra.mxu0 0.0
        %6570 = vmatprep.subr.mxu0 0.0
        %6571 = vmatpush1.msra.mxu0 0.0
        %6572 = vmatprep.subr.mxu0 0.0
        %6573 = vmatpush1.msra.mxu0 0.0
        %6574 = vmatprep.subr.mxu0 0.0
        %6575 = vmatpush1.msra.mxu0 0.0
        %6576 = vmatprep.subr.mxu0 0.0
        %6577 = vmatpush1.msra.mxu0 0.0
        %6578 = vmatprep.subr.mxu0 0.0
        %6579 = vmatpush1.msra.mxu0 0.0
        %6580 = vmatprep.subr.mxu0 0.0
        %6581 = vmatpush1.msra.mxu0 0.0
        %6582 = vmatprep.subr.mxu0 0.0
        %6583 = vmatpush1.msra.mxu0 0.0
        %6584 = vmatprep.subr.mxu0 0.0
        %6585 = vmatpush1.msra.mxu0 0.0
        %6586 = vmatprep.subr.mxu0 0.0
        %6587 = vmatpush1.msra.mxu0 0.0
        %6588 = vmatprep.subr.mxu0 0.0
        %6589 = vmatpush1.msra.mxu0 0.0
        %6590 = vmatprep.subr.mxu0 0.0
        %6591 = vmatpush1.msra.mxu0 0.0
        %6592 = vmatprep.subr.mxu0 0.0
        %6593 = vmatpush1.msra.mxu0 0.0
        %6594 = vmatprep.subr.mxu0 0.0
        %6595 = vmatpush1.msra.mxu0 0.0
        %6596 = vmatprep.subr.mxu0 0.0
        %6597 = vmatpush1.msra.mxu0 0.0
        %6598 = vmatprep.subr.mxu0 0.0
        %6599 = vmatpush1.msra.mxu0 0.0
        %6600 = vmatprep.subr.mxu0 0.0
        %6601 = vmatpush1.msra.mxu0 0.0
        %6602 = vmatprep.subr.mxu0 0.0
        %6603 = vmatpush1.msra.mxu0 0.0
        %6604 = vmatprep.subr.mxu0 0.0
        %6605 = vmatpush1.msra.mxu0 0.0
        %6606 = vmatprep.subr.mxu0 0.0
        %6607 = vmatpush1.msra.mxu0 0.0
        %6608 = vmatprep.subr.mxu0 0.0
        %6609 = vmatpush1.msra.mxu0 0.0
        %6610 = vmatprep.subr.mxu0 0.0
        %6611 = vmatpush1.msra.mxu0 0.0
        %6612 = vmatprep.subr.mxu0 0.0
        %6613 = vmatpush1.msra.mxu0 0.0
        %6614 = vmatprep.subr.mxu0 0.0
        %6615 = vmatpush1.msra.mxu0 0.0
        %6616 = vmatprep.subr.mxu0 0.0
        %6617 = vmatpush1.msra.mxu0 0.0
        %6618 = vmatprep.mubr.f32.mxu0 0.0
        %6619 = vmatmul.mubr.f32.gmra.mrb[0].mxu0 %v6454
        %v6620 = vpop.f32.mrb[0].mxu0
        %v6621 = vadd.f32 0.0, %v6620
        %v6622 = vpop.f32.mrb[0].mxu0
        %v6623 = vadd.f32 0.0, %v6622
        %6624 = vmatprep.mubr.f32.mxu0 0.0
        %6625 = vmatmul.mubr.f32.gmra.mrb[0].mxu0 %v6457
        %v6626 = vpop.f32.mrb[0].mxu0
        %v6627 = vadd.f32 0.0, %v6626
        %v6628 = vpop.f32.mrb[0].mxu0
        %v6629 = vadd.f32 0.0, %v6628
        %6630 = vmatprep.mubr.f32.mxu0 0.0
        %6631 = vmatmul.mubr.f32.gmra.mrb[0].mxu0 %v6460
        %v6632 = vpop.f32.mrb[0].mxu0
        %v6633 = vadd.f32 0.0, %v6632
        %v6634 = vpop.f32.mrb[0].mxu0
        %v6635 = vadd.f32 0.0, %v6634
        %6636 = vmatprep.mubr.f32.mxu0 0.0
        %6637 = vmatmul.mubr.f32.gmra.mrb[0].mxu0 %v6463
        %v6638 = vpop.f32.mrb[0].mxu0
        %v6639 = vadd.f32 0.0, %v6638
        %v6640 = vpop.f32.mrb[0].mxu0
        %v6641 = vadd.f32 0.0, %v6640
        %6642 = vdwg.mxu0
        %6643 = vmatprep.subr.mxu0 0.0
        %6644 = vmatpush1.msra.mxu0 %v6447
        %6645 = vmatprep.subr.mxu0 0.0
        %6646 = vmatpush1.msra.mxu0 0.0
        %6647 = vmatprep.subr.mxu0 0.0
        %6648 = vmatpush1.msra.mxu0 0.0
        %6649 = vmatprep.subr.mxu0 0.0
        %6650 = vmatpush1.msra.mxu0 0.0
        %6651 = vmatprep.subr.mxu0 0.0
        %6652 = vmatpush1.msra.mxu0 0.0
        %6653 = vmatprep.subr.mxu0 0.0
        %6654 = vmatpush1.msra.mxu0 0.0
        %6655 = vmatprep.subr.mxu0 0.0
        %6656 = vmatpush1.msra.mxu0 0.0
        %6657 = vmatprep.subr.mxu0 0.0
        %6658 = vmatpush1.msra.mxu0 0.0
        %6659 = vmatprep.subr.mxu0 0.0
        %6660 = vmatpush1.msra.mxu0 0.0
        %6661 = vmatprep.subr.mxu0 0.0
        %6662 = vmatpush1.msra.mxu0 0.0
        %6663 = vmatprep.subr.mxu0 0.0
        %6664 = vmatpush1.msra.mxu0 0.0
        %6665 = vmatprep.subr.mxu0 0.0
        %6666 = vmatpush1.msra.mxu0 0.0
        %6667 = vmatprep.subr.mxu0 0.0
        %6668 = vmatpush1.msra.mxu0 0.0
        %6669 = vmatprep.subr.mxu0 0.0
        %6670 = vmatpush1.msra.mxu0 0.0
        %6671 = vmatprep.subr.mxu0 0.0
        %6672 = vmatpush1.msra.mxu0 0.0
        %6673 = vmatprep.subr.mxu0 0.0
        %6674 = vmatpush1.msra.mxu0 0.0
        %6675 = vmatprep.subr.mxu0 0.0
        %6676 = vmatpush1.msra.mxu0 0.0
        %6677 = vmatprep.subr.mxu0 0.0
        %6678 = vmatpush1.msra.mxu0 0.0
        %6679 = vmatprep.subr.mxu0 0.0
        %6680 = vmatpush1.msra.mxu0 0.0
        %6681 = vmatprep.subr.mxu0 0.0
        %6682 = vmatpush1.msra.mxu0 0.0
        %6683 = vmatprep.subr.mxu0 0.0
        %6684 = vmatpush1.msra.mxu0 0.0
        %6685 = vmatprep.subr.mxu0 0.0
        %6686 = vmatpush1.msra.mxu0 0.0
        %6687 = vmatprep.subr.mxu0 0.0
        %6688 = vmatpush1.msra.mxu0 0.0
        %6689 = vmatprep.subr.mxu0 0.0
        %6690 = vmatpush1.msra.mxu0 0.0
        %6691 = vmatprep.subr.mxu0 0.0
        %6692 = vmatpush1.msra.mxu0 0.0
        %6693 = vmatprep.subr.mxu0 0.0
        %6694 = vmatpush1.msra.mxu0 0.0
        %6695 = vmatprep.subr.mxu0 0.0
        %6696 = vmatpush1.msra.mxu0 0.0
        %6697 = vmatprep.subr.mxu0 0.0
        %6698 = vmatpush1.msra.mxu0 0.0
        %6699 = vmatprep.subr.mxu0 0.0
        %6700 = vmatpush1.msra.mxu0 0.0
        %6701 = vmatprep.subr.mxu0 0.0
        %6702 = vmatpush1.msra.mxu0 0.0
        %6703 = vmatprep.subr.mxu0 0.0
        %6704 = vmatpush1.msra.mxu0 0.0
        %6705 = vmatprep.subr.mxu0 0.0
        %6706 = vmatpush1.msra.mxu0 0.0
        %6707 = vmatprep.mubr.f32.mxu0 0.0
        %6708 = vmatmul.mubr.f32.gmra.mrb[0].mxu0 %v6454
        %v6709 = vpop.f32.mrb[0].mxu0
        %v6710 = vadd.f32 0.0, %v6709
        %v6711 = vpop.f32.mrb[0].mxu0
        %6712 = vmatprep.mubr.f32.mxu0 0.0
        %6713 = vmatmul.mubr.f32.gmra.mrb[0].mxu0 %v6457
        %v6714 = vpop.f32.mrb[0].mxu0
        %v6715 = vadd.f32 0.0, %v6714
        %v6716 = vpop.f32.mrb[0].mxu0
        %6717 = vmatprep.mubr.f32.mxu0 0.0
        %6718 = vmatmul.mubr.f32.gmra.mrb[0].mxu0 %v6460
        %v6719 = vpop.f32.mrb[0].mxu0
        %v6720 = vadd.f32 0.0, %v6719
        %v6721 = vpop.f32.mrb[0].mxu0
        %6722 = vmatprep.mubr.f32.mxu0 0.0
        %6723 = vmatmul.mubr.f32.gmra.mrb[0].mxu0 %v6463
        %v6724 = vpop.f32.mrb[0].mxu0
        %v6725 = vadd.f32 0.0, %v6724
        %v6726 = vpop.f32.mrb[0].mxu0
        %6727 = vdwg.mxu0
        %v6728 = vadd.f32 %v6405, %v6532
        %v6729 = vadd.f32 %v6406, %v6534
        %v6730 = vadd.f32 %v6407, %v6621
        %v6731 = vadd.f32 %v6408, %v6623
        %v6732 = vadd.f32 %v6409, %v6710
        %v6733 = vadd.f32 %v6410, %v6538
        %v6734 = vadd.f32 %v6411, %v6540
        %v6735 = vadd.f32 %v6412, %v6627
        %v6736 = vadd.f32 %v6413, %v6629
        %v6737 = vadd.f32 %v6414, %v6715
        %v6738 = vadd.f32 %v6415, %v6544
        %v6739 = vadd.f32 %v6416, %v6546
        %v6740 = vadd.f32 %v6417, %v6633
        %v6741 = vadd.f32 %v6418, %v6635
        %v6742 = vadd.f32 %v6419, %v6720
        %v6743 = vadd.f32 %v6420, %v6550
        %v6744 = vadd.f32 %v6421, %v6552
        %v6745 = vadd.f32 %v6422, %v6639
        %v6746 = vadd.f32 %v6423, %v6641
        %v6747 = vadd.f32 %v6424, %v6725
        %s6748 = scalar_lea.vmem %s1, 640
        %v6749 = vld [vmem:[%s6748] sm:$0xff]
        %v6750 = vld [vmem:[%s6748 + $0x8] sm:$0xff]
        %v6751 = vld [vmem:[%s6748 + $0x10] sm:$0xff]
        %v6752 = vld [vmem:[%s6748 + $0x18] sm:$0xff]
        %6753 = vrot.lane.b32.xlu0 %v6095, 54
        %v6754 = vpop.permute.xlu0 %6753
        %6755 = vrot.lane.b32.xlu0 %v6096, 54
        %v6756 = vpop.permute.xlu0 %6755
        %6757 = vrot.lane.b32.xlu0 %v6097, 54
        %v6758 = vpop.permute.xlu0 %6757
        %6759 = vrot.lane.b32.xlu0 %v6098, 54
        %v6760 = vpop.permute.xlu0 %6759
        %6761 = vrot.lane.b32.xlu0 %v6099, 54
        %v6762 = vpop.permute.xlu0 %6761
        %6763 = vrot.lane.b32.xlu0 %v6100, 54
        %v6764 = vpop.permute.xlu0 %6763
        %vm6765 = vcmask 441344
        %v6766 = vsel %vm6765, %v6754, %v6756
        %v6767 = vsel %vm6765, %v6756, %v6758
        %v6768 = vsel %vm6765, %v6758, %v6760
        %v6769 = vsel %vm6765, %v6760, %v6762
        %v6770 = vsel %vm6765, %v6762, %v6764
        %v6777 = vsel %vm372, %v6749, 0
        %v6780 = vsel %vm372, %v6750, 0
        %v6783 = vsel %vm372, %v6751, 0
        %v6786 = vsel %vm372, %v6752, 0
        %6788 = vmatprep.subr.mxu0 %v6767
        %6789 = vmatpush1.msra.mxu0 %v6766
        %6790 = vmatprep.subr.mxu0 0.0
        %6791 = vmatpush1.msra.mxu0 0.0
        %6792 = vmatprep.subr.mxu0 0.0
        %6793 = vmatpush1.msra.mxu0 0.0
        %6794 = vmatprep.subr.mxu0 0.0
        %6795 = vmatpush1.msra.mxu0 0.0
        %6796 = vmatprep.subr.mxu0 0.0
        %6797 = vmatpush1.msra.mxu0 0.0
        %6798 = vmatprep.subr.mxu0 0.0
        %6799 = vmatpush1.msra.mxu0 0.0
        %6800 = vmatprep.subr.mxu0 0.0
        %6801 = vmatpush1.msra.mxu0 0.0
        %6802 = vmatprep.subr.mxu0 0.0
        %6803 = vmatpush1.msra.mxu0 0.0
        %6804 = vmatprep.subr.mxu0 0.0
        %6805 = vmatpush1.msra.mxu0 0.0
        %6806 = vmatprep.subr.mxu0 0.0
        %6807 = vmatpush1.msra.mxu0 0.0
        %6808 = vmatprep.subr.mxu0 0.0
        %6809 = vmatpush1.msra.mxu0 0.0
        %6810 = vmatprep.subr.mxu0 0.0
        %6811 = vmatpush1.msra.mxu0 0.0
        %6812 = vmatprep.subr.mxu0 0.0
        %6813 = vmatpush1.msra.mxu0 0.0
        %6814 = vmatprep.subr.mxu0 0.0
        %6815 = vmatpush1.msra.mxu0 0.0
        %6816 = vmatprep.subr.mxu0 0.0
        %6817 = vmatpush1.msra.mxu0 0.0
        %6818 = vmatprep.subr.mxu0 0.0
        %6819 = vmatpush1.msra.mxu0 0.0
        %6820 = vmatprep.subr.mxu0 0.0
        %6821 = vmatpush1.msra.mxu0 0.0
        %6822 = vmatprep.subr.mxu0 0.0
        %6823 = vmatpush1.msra.mxu0 0.0
        %6824 = vmatprep.subr.mxu0 0.0
        %6825 = vmatpush1.msra.mxu0 0.0
        %6826 = vmatprep.subr.mxu0 0.0
        %6827 = vmatpush1.msra.mxu0 0.0
        %6828 = vmatprep.subr.mxu0 0.0
        %6829 = vmatpush1.msra.mxu0 0.0
        %6830 = vmatprep.subr.mxu0 0.0
        %6831 = vmatpush1.msra.mxu0 0.0
        %6832 = vmatprep.subr.mxu0 0.0
        %6833 = vmatpush1.msra.mxu0 0.0
        %6834 = vmatprep.subr.mxu0 0.0
        %6835 = vmatpush1.msra.mxu0 0.0
        %6836 = vmatprep.subr.mxu0 0.0
        %6837 = vmatpush1.msra.mxu0 0.0
        %6838 = vmatprep.subr.mxu0 0.0
        %6839 = vmatpush1.msra.mxu0 0.0
        %6840 = vmatprep.subr.mxu0 0.0
        %6841 = vmatpush1.msra.mxu0 0.0
        %6842 = vmatprep.subr.mxu0 0.0
        %6843 = vmatpush1.msra.mxu0 0.0
        %6844 = vmatprep.subr.mxu0 0.0
        %6845 = vmatpush1.msra.mxu0 0.0
        %6846 = vmatprep.subr.mxu0 0.0
        %6847 = vmatpush1.msra.mxu0 0.0
        %6848 = vmatprep.subr.mxu0 0.0
        %6849 = vmatpush1.msra.mxu0 0.0
        %6850 = vmatprep.subr.mxu0 0.0
        %6851 = vmatpush1.msra.mxu0 0.0
        %6852 = vmatprep.mubr.f32.mxu0 0.0
        %6853 = vmatmul.mubr.f32.gmra.mrb[0].mxu0 %v6777
        %v6854 = vpop.f32.mrb[0].mxu0
        %v6855 = vadd.f32 0.0, %v6854
        %v6856 = vpop.f32.mrb[0].mxu0
        %v6857 = vadd.f32 0.0, %v6856
        %6858 = vmatprep.mubr.f32.mxu0 0.0
        %6859 = vmatmul.mubr.f32.gmra.mrb[0].mxu0 %v6780
        %v6860 = vpop.f32.mrb[0].mxu0
        %v6861 = vadd.f32 0.0, %v6860
        %v6862 = vpop.f32.mrb[0].mxu0
        %v6863 = vadd.f32 0.0, %v6862
        %6864 = vmatprep.mubr.f32.mxu0 0.0
        %6865 = vmatmul.mubr.f32.gmra.mrb[0].mxu0 %v6783
        %v6866 = vpop.f32.mrb[0].mxu0
        %v6867 = vadd.f32 0.0, %v6866
        %v6868 = vpop.f32.mrb[0].mxu0
        %v6869 = vadd.f32 0.0, %v6868
        %6870 = vmatprep.mubr.f32.mxu0 0.0
        %6871 = vmatmul.mubr.f32.gmra.mrb[0].mxu0 %v6786
        %v6872 = vpop.f32.mrb[0].mxu0
        %v6873 = vadd.f32 0.0, %v6872
        %v6874 = vpop.f32.mrb[0].mxu0
        %v6875 = vadd.f32 0.0, %v6874
        %6876 = vdwg.mxu0
        %6877 = vmatprep.subr.mxu0 %v6769
        %6878 = vmatpush1.msra.mxu0 %v6768
        %6879 = vmatprep.subr.mxu0 0.0
        %6880 = vmatpush1.msra.mxu0 0.0
        %6881 = vmatprep.subr.mxu0 0.0
        %6882 = vmatpush1.msra.mxu0 0.0
        %6883 = vmatprep.subr.mxu0 0.0
        %6884 = vmatpush1.msra.mxu0 0.0
        %6885 = vmatprep.subr.mxu0 0.0
        %6886 = vmatpush1.msra.mxu0 0.0
        %6887 = vmatprep.subr.mxu0 0.0
        %6888 = vmatpush1.msra.mxu0 0.0
        %6889 = vmatprep.subr.mxu0 0.0
        %6890 = vmatpush1.msra.mxu0 0.0
        %6891 = vmatprep.subr.mxu0 0.0
        %6892 = vmatpush1.msra.mxu0 0.0
        %6893 = vmatprep.subr.mxu0 0.0
        %6894 = vmatpush1.msra.mxu0 0.0
        %6895 = vmatprep.subr.mxu0 0.0
        %6896 = vmatpush1.msra.mxu0 0.0
        %6897 = vmatprep.subr.mxu0 0.0
        %6898 = vmatpush1.msra.mxu0 0.0
        %6899 = vmatprep.subr.mxu0 0.0
        %6900 = vmatpush1.msra.mxu0 0.0
        %6901 = vmatprep.subr.mxu0 0.0
        %6902 = vmatpush1.msra.mxu0 0.0
        %6903 = vmatprep.subr.mxu0 0.0
        %6904 = vmatpush1.msra.mxu0 0.0
        %6905 = vmatprep.subr.mxu0 0.0
        %6906 = vmatpush1.msra.mxu0 0.0
        %6907 = vmatprep.subr.mxu0 0.0
        %6908 = vmatpush1.msra.mxu0 0.0
        %6909 = vmatprep.subr.mxu0 0.0
        %6910 = vmatpush1.msra.mxu0 0.0
        %6911 = vmatprep.subr.mxu0 0.0
        %6912 = vmatpush1.msra.mxu0 0.0
        %6913 = vmatprep.subr.mxu0 0.0
        %6914 = vmatpush1.msra.mxu0 0.0
        %6915 = vmatprep.subr.mxu0 0.0
        %6916 = vmatpush1.msra.mxu0 0.0
        %6917 = vmatprep.subr.mxu0 0.0
        %6918 = vmatpush1.msra.mxu0 0.0
        %6919 = vmatprep.subr.mxu0 0.0
        %6920 = vmatpush1.msra.mxu0 0.0
        %6921 = vmatprep.subr.mxu0 0.0
        %6922 = vmatpush1.msra.mxu0 0.0
        %6923 = vmatprep.subr.mxu0 0.0
        %6924 = vmatpush1.msra.mxu0 0.0
        %6925 = vmatprep.subr.mxu0 0.0
        %6926 = vmatpush1.msra.mxu0 0.0
        %6927 = vmatprep.subr.mxu0 0.0
        %6928 = vmatpush1.msra.mxu0 0.0
        %6929 = vmatprep.subr.mxu0 0.0
        %6930 = vmatpush1.msra.mxu0 0.0
        %6931 = vmatprep.subr.mxu0 0.0
        %6932 = vmatpush1.msra.mxu0 0.0
        %6933 = vmatprep.subr.mxu0 0.0
        %6934 = vmatpush1.msra.mxu0 0.0
        %6935 = vmatprep.subr.mxu0 0.0
        %6936 = vmatpush1.msra.mxu0 0.0
        %6937 = vmatprep.subr.mxu0 0.0
        %6938 = vmatpush1.msra.mxu0 0.0
        %6939 = vmatprep.subr.mxu0 0.0
        %6940 = vmatpush1.msra.mxu0 0.0
        %6941 = vmatprep.mubr.f32.mxu0 0.0
        %6942 = vmatmul.mubr.f32.gmra.mrb[0].mxu0 %v6777
        %v6943 = vpop.f32.mrb[0].mxu0
        %v6944 = vadd.f32 0.0, %v6943
        %v6945 = vpop.f32.mrb[0].mxu0
        %v6946 = vadd.f32 0.0, %v6945
        %6947 = vmatprep.mubr.f32.mxu0 0.0
        %6948 = vmatmul.mubr.f32.gmra.mrb[0].mxu0 %v6780
        %v6949 = vpop.f32.mrb[0].mxu0
        %v6950 = vadd.f32 0.0, %v6949
        %v6951 = vpop.f32.mrb[0].mxu0
        %v6952 = vadd.f32 0.0, %v6951
        %6953 = vmatprep.mubr.f32.mxu0 0.0
        %6954 = vmatmul.mubr.f32.gmra.mrb[0].mxu0 %v6783
        %v6955 = vpop.f32.mrb[0].mxu0
        %v6956 = vadd.f32 0.0, %v6955
        %v6957 = vpop.f32.mrb[0].mxu0
        %v6958 = vadd.f32 0.0, %v6957
        %6959 = vmatprep.mubr.f32.mxu0 0.0
        %6960 = vmatmul.mubr.f32.gmra.mrb[0].mxu0 %v6786
        %v6961 = vpop.f32.mrb[0].mxu0
        %v6962 = vadd.f32 0.0, %v6961
        %v6963 = vpop.f32.mrb[0].mxu0
        %v6964 = vadd.f32 0.0, %v6963
        %6965 = vdwg.mxu0
        %6966 = vmatprep.subr.mxu0 0.0
        %6967 = vmatpush1.msra.mxu0 %v6770
        %6968 = vmatprep.subr.mxu0 0.0
        %6969 = vmatpush1.msra.mxu0 0.0
        %6970 = vmatprep.subr.mxu0 0.0
        %6971 = vmatpush1.msra.mxu0 0.0
        %6972 = vmatprep.subr.mxu0 0.0
        %6973 = vmatpush1.msra.mxu0 0.0
        %6974 = vmatprep.subr.mxu0 0.0
        %6975 = vmatpush1.msra.mxu0 0.0
        %6976 = vmatprep.subr.mxu0 0.0
        %6977 = vmatpush1.msra.mxu0 0.0
        %6978 = vmatprep.subr.mxu0 0.0
        %6979 = vmatpush1.msra.mxu0 0.0
        %6980 = vmatprep.subr.mxu0 0.0
        %6981 = vmatpush1.msra.mxu0 0.0
        %6982 = vmatprep.subr.mxu0 0.0
        %6983 = vmatpush1.msra.mxu0 0.0
        %6984 = vmatprep.subr.mxu0 0.0
        %6985 = vmatpush1.msra.mxu0 0.0
        %6986 = vmatprep.subr.mxu0 0.0
        %6987 = vmatpush1.msra.mxu0 0.0
        %6988 = vmatprep.subr.mxu0 0.0
        %6989 = vmatpush1.msra.mxu0 0.0
        %6990 = vmatprep.subr.mxu0 0.0
        %6991 = vmatpush1.msra.mxu0 0.0
        %6992 = vmatprep.subr.mxu0 0.0
        %6993 = vmatpush1.msra.mxu0 0.0
        %6994 = vmatprep.subr.mxu0 0.0
        %6995 = vmatpush1.msra.mxu0 0.0
        %6996 = vmatprep.subr.mxu0 0.0
        %6997 = vmatpush1.msra.mxu0 0.0
        %6998 = vmatprep.subr.mxu0 0.0
        %6999 = vmatpush1.msra.mxu0 0.0
        %7000 = vmatprep.subr.mxu0 0.0
        %7001 = vmatpush1.msra.mxu0 0.0
        %7002 = vmatprep.subr.mxu0 0.0
        %7003 = vmatpush1.msra.mxu0 0.0
        %7004 = vmatprep.subr.mxu0 0.0
        %7005 = vmatpush1.msra.mxu0 0.0
        %7006 = vmatprep.subr.mxu0 0.0
        %7007 = vmatpush1.msra.mxu0 0.0
        %7008 = vmatprep.subr.mxu0 0.0
        %7009 = vmatpush1.msra.mxu0 0.0
        %7010 = vmatprep.subr.mxu0 0.0
        %7011 = vmatpush1.msra.mxu0 0.0
        %7012 = vmatprep.subr.mxu0 0.0
        %7013 = vmatpush1.msra.mxu0 0.0
        %7014 = vmatprep.subr.mxu0 0.0
        %7015 = vmatpush1.msra.mxu0 0.0
        %7016 = vmatprep.subr.mxu0 0.0
        %7017 = vmatpush1.msra.mxu0 0.0
        %7018 = vmatprep.subr.mxu0 0.0
        %7019 = vmatpush1.msra.mxu0 0.0
        %7020 = vmatprep.subr.mxu0 0.0
        %7021 = vmatpush1.msra.mxu0 0.0
        %7022 = vmatprep.subr.mxu0 0.0
        %7023 = vmatpush1.msra.mxu0 0.0
        %7024 = vmatprep.subr.mxu0 0.0
        %7025 = vmatpush1.msra.mxu0 0.0
        %7026 = vmatprep.subr.mxu0 0.0
        %7027 = vmatpush1.msra.mxu0 0.0
        %7028 = vmatprep.subr.mxu0 0.0
        %7029 = vmatpush1.msra.mxu0 0.0
        %7030 = vmatprep.mubr.f32.mxu0 0.0
        %7031 = vmatmul.mubr.f32.gmra.mrb[0].mxu0 %v6777
        %v7032 = vpop.f32.mrb[0].mxu0
        %v7033 = vadd.f32 0.0, %v7032
        %v7034 = vpop.f32.mrb[0].mxu0
        %7035 = vmatprep.mubr.f32.mxu0 0.0
        %7036 = vmatmul.mubr.f32.gmra.mrb[0].mxu0 %v6780
        %v7037 = vpop.f32.mrb[0].mxu0
        %v7038 = vadd.f32 0.0, %v7037
        %v7039 = vpop.f32.mrb[0].mxu0
        %7040 = vmatprep.mubr.f32.mxu0 0.0
        %7041 = vmatmul.mubr.f32.gmra.mrb[0].mxu0 %v6783
        %v7042 = vpop.f32.mrb[0].mxu0
        %v7043 = vadd.f32 0.0, %v7042
        %v7044 = vpop.f32.mrb[0].mxu0
        %7045 = vmatprep.mubr.f32.mxu0 0.0
        %7046 = vmatmul.mubr.f32.gmra.mrb[0].mxu0 %v6786
        %v7047 = vpop.f32.mrb[0].mxu0
        %v7048 = vadd.f32 0.0, %v7047
        %v7049 = vpop.f32.mrb[0].mxu0
        %7050 = vdwg.mxu0
        %v7051 = vadd.f32 %v6728, %v6855
        %v7052 = vadd.f32 %v6729, %v6857
        %v7053 = vadd.f32 %v6730, %v6944
        %v7054 = vadd.f32 %v6731, %v6946
        %v7055 = vadd.f32 %v6732, %v7033
        %v7056 = vadd.f32 %v6733, %v6861
        %v7057 = vadd.f32 %v6734, %v6863
        %v7058 = vadd.f32 %v6735, %v6950
        %v7059 = vadd.f32 %v6736, %v6952
        %v7060 = vadd.f32 %v6737, %v7038
        %v7061 = vadd.f32 %v6738, %v6867
        %v7062 = vadd.f32 %v6739, %v6869
        %v7063 = vadd.f32 %v6740, %v6956
        %v7064 = vadd.f32 %v6741, %v6958
        %v7065 = vadd.f32 %v6742, %v7043
        %v7066 = vadd.f32 %v6743, %v6873
        %v7067 = vadd.f32 %v6744, %v6875
        %v7068 = vadd.f32 %v6745, %v6962
        %v7069 = vadd.f32 %v6746, %v6964
        %v7070 = vadd.f32 %v6747, %v7048
        %s7071 = scalar_lea.vmem %s1, 672
        %v7072 = vld [vmem:[%s7071] sm:$0xff]
        %v7073 = vld [vmem:[%s7071 + $0x8] sm:$0xff]
        %v7074 = vld [vmem:[%s7071 + $0x10] sm:$0xff]
        %v7075 = vld [vmem:[%s7071 + $0x18] sm:$0xff]
        %7076 = vrot.lane.b32.xlu0 %v6095, 46
        %v7077 = vpop.permute.xlu0 %7076
        %7078 = vrot.lane.b32.xlu0 %v6096, 46
        %v7079 = vpop.permute.xlu0 %7078
        %7080 = vrot.lane.b32.xlu0 %v6097, 46
        %v7081 = vpop.permute.xlu0 %7080
        %7082 = vrot.lane.b32.xlu0 %v6098, 46
        %v7083 = vpop.permute.xlu0 %7082
        %7084 = vrot.lane.b32.xlu0 %v6099, 46
        %v7085 = vpop.permute.xlu0 %7084
        %7086 = vrot.lane.b32.xlu0 %v6100, 46
        %v7087 = vpop.permute.xlu0 %7086
        %vm7088 = vcmask 375808
        %v7089 = vsel %vm7088, %v7077, %v7079
        %v7090 = vsel %vm7088, %v7079, %v7081
        %v7091 = vsel %vm7088, %v7081, %v7083
        %v7092 = vsel %vm7088, %v7083, %v7085
        %v7093 = vsel %vm7088, %v7085, %v7087
        %v7100 = vsel %vm372, %v7072, 0
        %v7103 = vsel %vm372, %v7073, 0
        %v7106 = vsel %vm372, %v7074, 0
        %v7109 = vsel %vm372, %v7075, 0
        %7111 = vmatprep.subr.mxu0 %v7090
        %7112 = vmatpush1.msra.mxu0 %v7089
        %7113 = vmatprep.subr.mxu0 0.0
        %7114 = vmatpush1.msra.mxu0 0.0
        %7115 = vmatprep.subr.mxu0 0.0
        %7116 = vmatpush1.msra.mxu0 0.0
        %7117 = vmatprep.subr.mxu0 0.0
        %7118 = vmatpush1.msra.mxu0 0.0
        %7119 = vmatprep.subr.mxu0 0.0
        %7120 = vmatpush1.msra.mxu0 0.0
        %7121 = vmatprep.subr.mxu0 0.0
        %7122 = vmatpush1.msra.mxu0 0.0
        %7123 = vmatprep.subr.mxu0 0.0
        %7124 = vmatpush1.msra.mxu0 0.0
        %7125 = vmatprep.subr.mxu0 0.0
        %7126 = vmatpush1.msra.mxu0 0.0
        %7127 = vmatprep.subr.mxu0 0.0
        %7128 = vmatpush1.msra.mxu0 0.0
        %7129 = vmatprep.subr.mxu0 0.0
        %7130 = vmatpush1.msra.mxu0 0.0
        %7131 = vmatprep.subr.mxu0 0.0
        %7132 = vmatpush1.msra.mxu0 0.0
        %7133 = vmatprep.subr.mxu0 0.0
        %7134 = vmatpush1.msra.mxu0 0.0
        %7135 = vmatprep.subr.mxu0 0.0
        %7136 = vmatpush1.msra.mxu0 0.0
        %7137 = vmatprep.subr.mxu0 0.0
        %7138 = vmatpush1.msra.mxu0 0.0
        %7139 = vmatprep.subr.mxu0 0.0
        %7140 = vmatpush1.msra.mxu0 0.0
        %7141 = vmatprep.subr.mxu0 0.0
        %7142 = vmatpush1.msra.mxu0 0.0
        %7143 = vmatprep.subr.mxu0 0.0
        %7144 = vmatpush1.msra.mxu0 0.0
        %7145 = vmatprep.subr.mxu0 0.0
        %7146 = vmatpush1.msra.mxu0 0.0
        %7147 = vmatprep.subr.mxu0 0.0
        %7148 = vmatpush1.msra.mxu0 0.0
        %7149 = vmatprep.subr.mxu0 0.0
        %7150 = vmatpush1.msra.mxu0 0.0
        %7151 = vmatprep.subr.mxu0 0.0
        %7152 = vmatpush1.msra.mxu0 0.0
        %7153 = vmatprep.subr.mxu0 0.0
        %7154 = vmatpush1.msra.mxu0 0.0
        %7155 = vmatprep.subr.mxu0 0.0
        %7156 = vmatpush1.msra.mxu0 0.0
        %7157 = vmatprep.subr.mxu0 0.0
        %7158 = vmatpush1.msra.mxu0 0.0
        %7159 = vmatprep.subr.mxu0 0.0
        %7160 = vmatpush1.msra.mxu0 0.0
        %7161 = vmatprep.subr.mxu0 0.0
        %7162 = vmatpush1.msra.mxu0 0.0
        %7163 = vmatprep.subr.mxu0 0.0
        %7164 = vmatpush1.msra.mxu0 0.0
        %7165 = vmatprep.subr.mxu0 0.0
        %7166 = vmatpush1.msra.mxu0 0.0
        %7167 = vmatprep.subr.mxu0 0.0
        %7168 = vmatpush1.msra.mxu0 0.0
        %7169 = vmatprep.subr.mxu0 0.0
        %7170 = vmatpush1.msra.mxu0 0.0
        %7171 = vmatprep.subr.mxu0 0.0
        %7172 = vmatpush1.msra.mxu0 0.0
        %7173 = vmatprep.subr.mxu0 0.0
        %7174 = vmatpush1.msra.mxu0 0.0
        %7175 = vmatprep.mubr.f32.mxu0 0.0
        %7176 = vmatmul.mubr.f32.gmra.mrb[0].mxu0 %v7100
        %v7177 = vpop.f32.mrb[0].mxu0
        %v7178 = vadd.f32 0.0, %v7177
        %v7179 = vpop.f32.mrb[0].mxu0
        %v7180 = vadd.f32 0.0, %v7179
        %7181 = vmatprep.mubr.f32.mxu0 0.0
        %7182 = vmatmul.mubr.f32.gmra.mrb[0].mxu0 %v7103
        %v7183 = vpop.f32.mrb[0].mxu0
        %v7184 = vadd.f32 0.0, %v7183
        %v7185 = vpop.f32.mrb[0].mxu0
        %v7186 = vadd.f32 0.0, %v7185
        %7187 = vmatprep.mubr.f32.mxu0 0.0
        %7188 = vmatmul.mubr.f32.gmra.mrb[0].mxu0 %v7106
        %v7189 = vpop.f32.mrb[0].mxu0
        %v7190 = vadd.f32 0.0, %v7189
        %v7191 = vpop.f32.mrb[0].mxu0
        %v7192 = vadd.f32 0.0, %v7191
        %7193 = vmatprep.mubr.f32.mxu0 0.0
        %7194 = vmatmul.mubr.f32.gmra.mrb[0].mxu0 %v7109
        %v7195 = vpop.f32.mrb[0].mxu0
        %v7196 = vadd.f32 0.0, %v7195
        %v7197 = vpop.f32.mrb[0].mxu0
        %v7198 = vadd.f32 0.0, %v7197
        %7199 = vdwg.mxu0
        %7200 = vmatprep.subr.mxu0 %v7092
        %7201 = vmatpush1.msra.mxu0 %v7091
        %7202 = vmatprep.subr.mxu0 0.0
        %7203 = vmatpush1.msra.mxu0 0.0
        %7204 = vmatprep.subr.mxu0 0.0
        %7205 = vmatpush1.msra.mxu0 0.0
        %7206 = vmatprep.subr.mxu0 0.0
        %7207 = vmatpush1.msra.mxu0 0.0
        %7208 = vmatprep.subr.mxu0 0.0
        %7209 = vmatpush1.msra.mxu0 0.0
        %7210 = vmatprep.subr.mxu0 0.0
        %7211 = vmatpush1.msra.mxu0 0.0
        %7212 = vmatprep.subr.mxu0 0.0
        %7213 = vmatpush1.msra.mxu0 0.0
        %7214 = vmatprep.subr.mxu0 0.0
        %7215 = vmatpush1.msra.mxu0 0.0
        %7216 = vmatprep.subr.mxu0 0.0
        %7217 = vmatpush1.msra.mxu0 0.0
        %7218 = vmatprep.subr.mxu0 0.0
        %7219 = vmatpush1.msra.mxu0 0.0
        %7220 = vmatprep.subr.mxu0 0.0
        %7221 = vmatpush1.msra.mxu0 0.0
        %7222 = vmatprep.subr.mxu0 0.0
        %7223 = vmatpush1.msra.mxu0 0.0
        %7224 = vmatprep.subr.mxu0 0.0
        %7225 = vmatpush1.msra.mxu0 0.0
        %7226 = vmatprep.subr.mxu0 0.0
        %7227 = vmatpush1.msra.mxu0 0.0
        %7228 = vmatprep.subr.mxu0 0.0
        %7229 = vmatpush1.msra.mxu0 0.0
        %7230 = vmatprep.subr.mxu0 0.0
        %7231 = vmatpush1.msra.mxu0 0.0
        %7232 = vmatprep.subr.mxu0 0.0
        %7233 = vmatpush1.msra.mxu0 0.0
        %7234 = vmatprep.subr.mxu0 0.0
        %7235 = vmatpush1.msra.mxu0 0.0
        %7236 = vmatprep.subr.mxu0 0.0
        %7237 = vmatpush1.msra.mxu0 0.0
        %7238 = vmatprep.subr.mxu0 0.0
        %7239 = vmatpush1.msra.mxu0 0.0
        %7240 = vmatprep.subr.mxu0 0.0
        %7241 = vmatpush1.msra.mxu0 0.0
        %7242 = vmatprep.subr.mxu0 0.0
        %7243 = vmatpush1.msra.mxu0 0.0
        %7244 = vmatprep.subr.mxu0 0.0
        %7245 = vmatpush1.msra.mxu0 0.0
        %7246 = vmatprep.subr.mxu0 0.0
        %7247 = vmatpush1.msra.mxu0 0.0
        %7248 = vmatprep.subr.mxu0 0.0
        %7249 = vmatpush1.msra.mxu0 0.0
        %7250 = vmatprep.subr.mxu0 0.0
        %7251 = vmatpush1.msra.mxu0 0.0
        %7252 = vmatprep.subr.mxu0 0.0
        %7253 = vmatpush1.msra.mxu0 0.0
        %7254 = vmatprep.subr.mxu0 0.0
        %7255 = vmatpush1.msra.mxu0 0.0
        %7256 = vmatprep.subr.mxu0 0.0
        %7257 = vmatpush1.msra.mxu0 0.0
        %7258 = vmatprep.subr.mxu0 0.0
        %7259 = vmatpush1.msra.mxu0 0.0
        %7260 = vmatprep.subr.mxu0 0.0
        %7261 = vmatpush1.msra.mxu0 0.0
        %7262 = vmatprep.subr.mxu0 0.0
        %7263 = vmatpush1.msra.mxu0 0.0
        %7264 = vmatprep.mubr.f32.mxu0 0.0
        %7265 = vmatmul.mubr.f32.gmra.mrb[0].mxu0 %v7100
        %v7266 = vpop.f32.mrb[0].mxu0
        %v7267 = vadd.f32 0.0, %v7266
        %v7268 = vpop.f32.mrb[0].mxu0
        %v7269 = vadd.f32 0.0, %v7268
        %7270 = vmatprep.mubr.f32.mxu0 0.0
        %7271 = vmatmul.mubr.f32.gmra.mrb[0].mxu0 %v7103
        %v7272 = vpop.f32.mrb[0].mxu0
        %v7273 = vadd.f32 0.0, %v7272
        %v7274 = vpop.f32.mrb[0].mxu0
        %v7275 = vadd.f32 0.0, %v7274
        %7276 = vmatprep.mubr.f32.mxu0 0.0
        %7277 = vmatmul.mubr.f32.gmra.mrb[0].mxu0 %v7106
        %v7278 = vpop.f32.mrb[0].mxu0
        %v7279 = vadd.f32 0.0, %v7278
        %v7280 = vpop.f32.mrb[0].mxu0
        %v7281 = vadd.f32 0.0, %v7280
        %7282 = vmatprep.mubr.f32.mxu0 0.0
        %7283 = vmatmul.mubr.f32.gmra.mrb[0].mxu0 %v7109
        %v7284 = vpop.f32.mrb[0].mxu0
        %v7285 = vadd.f32 0.0, %v7284
        %v7286 = vpop.f32.mrb[0].mxu0
        %v7287 = vadd.f32 0.0, %v7286
        %7288 = vdwg.mxu0
        %7289 = vmatprep.subr.mxu0 0.0
        %7290 = vmatpush1.msra.mxu0 %v7093
        %7291 = vmatprep.subr.mxu0 0.0
        %7292 = vmatpush1.msra.mxu0 0.0
        %7293 = vmatprep.subr.mxu0 0.0
        %7294 = vmatpush1.msra.mxu0 0.0
        %7295 = vmatprep.subr.mxu0 0.0
        %7296 = vmatpush1.msra.mxu0 0.0
        %7297 = vmatprep.subr.mxu0 0.0
        %7298 = vmatpush1.msra.mxu0 0.0
        %7299 = vmatprep.subr.mxu0 0.0
        %7300 = vmatpush1.msra.mxu0 0.0
        %7301 = vmatprep.subr.mxu0 0.0
        %7302 = vmatpush1.msra.mxu0 0.0
        %7303 = vmatprep.subr.mxu0 0.0
        %7304 = vmatpush1.msra.mxu0 0.0
        %7305 = vmatprep.subr.mxu0 0.0
        %7306 = vmatpush1.msra.mxu0 0.0
        %7307 = vmatprep.subr.mxu0 0.0
        %7308 = vmatpush1.msra.mxu0 0.0
        %7309 = vmatprep.subr.mxu0 0.0
        %7310 = vmatpush1.msra.mxu0 0.0
        %7311 = vmatprep.subr.mxu0 0.0
        %7312 = vmatpush1.msra.mxu0 0.0
        %7313 = vmatprep.subr.mxu0 0.0
        %7314 = vmatpush1.msra.mxu0 0.0
        %7315 = vmatprep.subr.mxu0 0.0
        %7316 = vmatpush1.msra.mxu0 0.0
        %7317 = vmatprep.subr.mxu0 0.0
        %7318 = vmatpush1.msra.mxu0 0.0
        %7319 = vmatprep.subr.mxu0 0.0
        %7320 = vmatpush1.msra.mxu0 0.0
        %7321 = vmatprep.subr.mxu0 0.0
        %7322 = vmatpush1.msra.mxu0 0.0
        %7323 = vmatprep.subr.mxu0 0.0
        %7324 = vmatpush1.msra.mxu0 0.0
        %7325 = vmatprep.subr.mxu0 0.0
        %7326 = vmatpush1.msra.mxu0 0.0
        %7327 = vmatprep.subr.mxu0 0.0
        %7328 = vmatpush1.msra.mxu0 0.0
        %7329 = vmatprep.subr.mxu0 0.0
        %7330 = vmatpush1.msra.mxu0 0.0
        %7331 = vmatprep.subr.mxu0 0.0
        %7332 = vmatpush1.msra.mxu0 0.0
        %7333 = vmatprep.subr.mxu0 0.0
        %7334 = vmatpush1.msra.mxu0 0.0
        %7335 = vmatprep.subr.mxu0 0.0
        %7336 = vmatpush1.msra.mxu0 0.0
        %7337 = vmatprep.subr.mxu0 0.0
        %7338 = vmatpush1.msra.mxu0 0.0
        %7339 = vmatprep.subr.mxu0 0.0
        %7340 = vmatpush1.msra.mxu0 0.0
        %7341 = vmatprep.subr.mxu0 0.0
        %7342 = vmatpush1.msra.mxu0 0.0
        %7343 = vmatprep.subr.mxu0 0.0
        %7344 = vmatpush1.msra.mxu0 0.0
        %7345 = vmatprep.subr.mxu0 0.0
        %7346 = vmatpush1.msra.mxu0 0.0
        %7347 = vmatprep.subr.mxu0 0.0
        %7348 = vmatpush1.msra.mxu0 0.0
        %7349 = vmatprep.subr.mxu0 0.0
        %7350 = vmatpush1.msra.mxu0 0.0
        %7351 = vmatprep.subr.mxu0 0.0
        %7352 = vmatpush1.msra.mxu0 0.0
        %7353 = vmatprep.mubr.f32.mxu0 0.0
        %7354 = vmatmul.mubr.f32.gmra.mrb[0].mxu0 %v7100
        %v7355 = vpop.f32.mrb[0].mxu0
        %v7356 = vadd.f32 0.0, %v7355
        %v7357 = vpop.f32.mrb[0].mxu0
        %7358 = vmatprep.mubr.f32.mxu0 0.0
        %7359 = vmatmul.mubr.f32.gmra.mrb[0].mxu0 %v7103
        %v7360 = vpop.f32.mrb[0].mxu0
        %v7361 = vadd.f32 0.0, %v7360
        %v7362 = vpop.f32.mrb[0].mxu0
        %7363 = vmatprep.mubr.f32.mxu0 0.0
        %7364 = vmatmul.mubr.f32.gmra.mrb[0].mxu0 %v7106
        %v7365 = vpop.f32.mrb[0].mxu0
        %v7366 = vadd.f32 0.0, %v7365
        %v7367 = vpop.f32.mrb[0].mxu0
        %7368 = vmatprep.mubr.f32.mxu0 0.0
        %7369 = vmatmul.mubr.f32.gmra.mrb[0].mxu0 %v7109
        %v7370 = vpop.f32.mrb[0].mxu0
        %v7371 = vadd.f32 0.0, %v7370
        %v7372 = vpop.f32.mrb[0].mxu0
        %7373 = vdwg.mxu0
        %v7374 = vadd.f32 %v7051, %v7178
        %v7375 = vadd.f32 %v7052, %v7180
        %v7376 = vadd.f32 %v7053, %v7267
        %v7377 = vadd.f32 %v7054, %v7269
        %v7378 = vadd.f32 %v7055, %v7356
        %v7379 = vadd.f32 %v7056, %v7184
        %v7380 = vadd.f32 %v7057, %v7186
        %v7381 = vadd.f32 %v7058, %v7273
        %v7382 = vadd.f32 %v7059, %v7275
        %v7383 = vadd.f32 %v7060, %v7361
        %v7384 = vadd.f32 %v7061, %v7190
        %v7385 = vadd.f32 %v7062, %v7192
        %v7386 = vadd.f32 %v7063, %v7279
        %v7387 = vadd.f32 %v7064, %v7281
        %v7388 = vadd.f32 %v7065, %v7366
        %v7389 = vadd.f32 %v7066, %v7196
        %v7390 = vadd.f32 %v7067, %v7198
        %v7391 = vadd.f32 %v7068, %v7285
        %v7392 = vadd.f32 %v7069, %v7287
        %v7393 = vadd.f32 %v7070, %v7371
        %s7394 = scalar_lea.vmem %s1, 704
        %v7395 = vld [vmem:[%s7394] sm:$0xff]
        %v7396 = vld [vmem:[%s7394 + $0x8] sm:$0xff]
        %v7397 = vld [vmem:[%s7394 + $0x10] sm:$0xff]
        %v7398 = vld [vmem:[%s7394 + $0x18] sm:$0xff]
        %7399 = vrot.lane.b32.xlu0 %v6095, 45
        %v7400 = vpop.permute.xlu0 %7399
        %7401 = vrot.lane.b32.xlu0 %v6096, 45
        %v7402 = vpop.permute.xlu0 %7401
        %7403 = vrot.lane.b32.xlu0 %v6097, 45
        %v7404 = vpop.permute.xlu0 %7403
        %7405 = vrot.lane.b32.xlu0 %v6098, 45
        %v7406 = vpop.permute.xlu0 %7405
        %7407 = vrot.lane.b32.xlu0 %v6099, 45
        %v7408 = vpop.permute.xlu0 %7407
        %7409 = vrot.lane.b32.xlu0 %v6100, 45
        %v7410 = vpop.permute.xlu0 %7409
        %vm7411 = vcmask 367616
        %v7412 = vsel %vm7411, %v7400, %v7402
        %v7413 = vsel %vm7411, %v7402, %v7404
        %v7414 = vsel %vm7411, %v7404, %v7406
        %v7415 = vsel %vm7411, %v7406, %v7408
        %v7416 = vsel %vm7411, %v7408, %v7410
        %v7423 = vsel %vm372, %v7395, 0
        %v7426 = vsel %vm372, %v7396, 0
        %v7429 = vsel %vm372, %v7397, 0
        %v7432 = vsel %vm372, %v7398, 0
        %7434 = vmatprep.subr.mxu0 %v7413
        %7435 = vmatpush1.msra.mxu0 %v7412
        %7436 = vmatprep.subr.mxu0 0.0
        %7437 = vmatpush1.msra.mxu0 0.0
        %7438 = vmatprep.subr.mxu0 0.0
        %7439 = vmatpush1.msra.mxu0 0.0
        %7440 = vmatprep.subr.mxu0 0.0
        %7441 = vmatpush1.msra.mxu0 0.0
        %7442 = vmatprep.subr.mxu0 0.0
        %7443 = vmatpush1.msra.mxu0 0.0
        %7444 = vmatprep.subr.mxu0 0.0
        %7445 = vmatpush1.msra.mxu0 0.0
        %7446 = vmatprep.subr.mxu0 0.0
        %7447 = vmatpush1.msra.mxu0 0.0
        %7448 = vmatprep.subr.mxu0 0.0
        %7449 = vmatpush1.msra.mxu0 0.0
        %7450 = vmatprep.subr.mxu0 0.0
        %7451 = vmatpush1.msra.mxu0 0.0
        %7452 = vmatprep.subr.mxu0 0.0
        %7453 = vmatpush1.msra.mxu0 0.0
        %7454 = vmatprep.subr.mxu0 0.0
        %7455 = vmatpush1.msra.mxu0 0.0
        %7456 = vmatprep.subr.mxu0 0.0
        %7457 = vmatpush1.msra.mxu0 0.0
        %7458 = vmatprep.subr.mxu0 0.0
        %7459 = vmatpush1.msra.mxu0 0.0
        %7460 = vmatprep.subr.mxu0 0.0
        %7461 = vmatpush1.msra.mxu0 0.0
        %7462 = vmatprep.subr.mxu0 0.0
        %7463 = vmatpush1.msra.mxu0 0.0
        %7464 = vmatprep.subr.mxu0 0.0
        %7465 = vmatpush1.msra.mxu0 0.0
        %7466 = vmatprep.subr.mxu0 0.0
        %7467 = vmatpush1.msra.mxu0 0.0
        %7468 = vmatprep.subr.mxu0 0.0
        %7469 = vmatpush1.msra.mxu0 0.0
        %7470 = vmatprep.subr.mxu0 0.0
        %7471 = vmatpush1.msra.mxu0 0.0
        %7472 = vmatprep.subr.mxu0 0.0
        %7473 = vmatpush1.msra.mxu0 0.0
        %7474 = vmatprep.subr.mxu0 0.0
        %7475 = vmatpush1.msra.mxu0 0.0
        %7476 = vmatprep.subr.mxu0 0.0
        %7477 = vmatpush1.msra.mxu0 0.0
        %7478 = vmatprep.subr.mxu0 0.0
        %7479 = vmatpush1.msra.mxu0 0.0
        %7480 = vmatprep.subr.mxu0 0.0
        %7481 = vmatpush1.msra.mxu0 0.0
        %7482 = vmatprep.subr.mxu0 0.0
        %7483 = vmatpush1.msra.mxu0 0.0
        %7484 = vmatprep.subr.mxu0 0.0
        %7485 = vmatpush1.msra.mxu0 0.0
        %7486 = vmatprep.subr.mxu0 0.0
        %7487 = vmatpush1.msra.mxu0 0.0
        %7488 = vmatprep.subr.mxu0 0.0
        %7489 = vmatpush1.msra.mxu0 0.0
        %7490 = vmatprep.subr.mxu0 0.0
        %7491 = vmatpush1.msra.mxu0 0.0
        %7492 = vmatprep.subr.mxu0 0.0
        %7493 = vmatpush1.msra.mxu0 0.0
        %7494 = vmatprep.subr.mxu0 0.0
        %7495 = vmatpush1.msra.mxu0 0.0
        %7496 = vmatprep.subr.mxu0 0.0
        %7497 = vmatpush1.msra.mxu0 0.0
        %7498 = vmatprep.mubr.f32.mxu0 0.0
        %7499 = vmatmul.mubr.f32.gmra.mrb[0].mxu0 %v7423
        %v7500 = vpop.f32.mrb[0].mxu0
        %v7501 = vadd.f32 0.0, %v7500
        %v7502 = vpop.f32.mrb[0].mxu0
        %v7503 = vadd.f32 0.0, %v7502
        %7504 = vmatprep.mubr.f32.mxu0 0.0
        %7505 = vmatmul.mubr.f32.gmra.mrb[0].mxu0 %v7426
        %v7506 = vpop.f32.mrb[0].mxu0
        %v7507 = vadd.f32 0.0, %v7506
        %v7508 = vpop.f32.mrb[0].mxu0
        %v7509 = vadd.f32 0.0, %v7508
        %7510 = vmatprep.mubr.f32.mxu0 0.0
        %7511 = vmatmul.mubr.f32.gmra.mrb[0].mxu0 %v7429
        %v7512 = vpop.f32.mrb[0].mxu0
        %v7513 = vadd.f32 0.0, %v7512
        %v7514 = vpop.f32.mrb[0].mxu0
        %v7515 = vadd.f32 0.0, %v7514
        %7516 = vmatprep.mubr.f32.mxu0 0.0
        %7517 = vmatmul.mubr.f32.gmra.mrb[0].mxu0 %v7432
        %v7518 = vpop.f32.mrb[0].mxu0
        %v7519 = vadd.f32 0.0, %v7518
        %v7520 = vpop.f32.mrb[0].mxu0
        %v7521 = vadd.f32 0.0, %v7520
        %7522 = vdwg.mxu0
        %7523 = vmatprep.subr.mxu0 %v7415
        %7524 = vmatpush1.msra.mxu0 %v7414
        %7525 = vmatprep.subr.mxu0 0.0
        %7526 = vmatpush1.msra.mxu0 0.0
        %7527 = vmatprep.subr.mxu0 0.0
        %7528 = vmatpush1.msra.mxu0 0.0
        %7529 = vmatprep.subr.mxu0 0.0
        %7530 = vmatpush1.msra.mxu0 0.0
        %7531 = vmatprep.subr.mxu0 0.0
        %7532 = vmatpush1.msra.mxu0 0.0
        %7533 = vmatprep.subr.mxu0 0.0
        %7534 = vmatpush1.msra.mxu0 0.0
        %7535 = vmatprep.subr.mxu0 0.0
        %7536 = vmatpush1.msra.mxu0 0.0
        %7537 = vmatprep.subr.mxu0 0.0
        %7538 = vmatpush1.msra.mxu0 0.0
        %7539 = vmatprep.subr.mxu0 0.0
        %7540 = vmatpush1.msra.mxu0 0.0
        %7541 = vmatprep.subr.mxu0 0.0
        %7542 = vmatpush1.msra.mxu0 0.0
        %7543 = vmatprep.subr.mxu0 0.0
        %7544 = vmatpush1.msra.mxu0 0.0
        %7545 = vmatprep.subr.mxu0 0.0
        %7546 = vmatpush1.msra.mxu0 0.0
        %7547 = vmatprep.subr.mxu0 0.0
        %7548 = vmatpush1.msra.mxu0 0.0
        %7549 = vmatprep.subr.mxu0 0.0
        %7550 = vmatpush1.msra.mxu0 0.0
        %7551 = vmatprep.subr.mxu0 0.0
        %7552 = vmatpush1.msra.mxu0 0.0
        %7553 = vmatprep.subr.mxu0 0.0
        %7554 = vmatpush1.msra.mxu0 0.0
        %7555 = vmatprep.subr.mxu0 0.0
        %7556 = vmatpush1.msra.mxu0 0.0
        %7557 = vmatprep.subr.mxu0 0.0
        %7558 = vmatpush1.msra.mxu0 0.0
        %7559 = vmatprep.subr.mxu0 0.0
        %7560 = vmatpush1.msra.mxu0 0.0
        %7561 = vmatprep.subr.mxu0 0.0
        %7562 = vmatpush1.msra.mxu0 0.0
        %7563 = vmatprep.subr.mxu0 0.0
        %7564 = vmatpush1.msra.mxu0 0.0
        %7565 = vmatprep.subr.mxu0 0.0
        %7566 = vmatpush1.msra.mxu0 0.0
        %7567 = vmatprep.subr.mxu0 0.0
        %7568 = vmatpush1.msra.mxu0 0.0
        %7569 = vmatprep.subr.mxu0 0.0
        %7570 = vmatpush1.msra.mxu0 0.0
        %7571 = vmatprep.subr.mxu0 0.0
        %7572 = vmatpush1.msra.mxu0 0.0
        %7573 = vmatprep.subr.mxu0 0.0
        %7574 = vmatpush1.msra.mxu0 0.0
        %7575 = vmatprep.subr.mxu0 0.0
        %7576 = vmatpush1.msra.mxu0 0.0
        %7577 = vmatprep.subr.mxu0 0.0
        %7578 = vmatpush1.msra.mxu0 0.0
        %7579 = vmatprep.subr.mxu0 0.0
        %7580 = vmatpush1.msra.mxu0 0.0
        %7581 = vmatprep.subr.mxu0 0.0
        %7582 = vmatpush1.msra.mxu0 0.0
        %7583 = vmatprep.subr.mxu0 0.0
        %7584 = vmatpush1.msra.mxu0 0.0
        %7585 = vmatprep.subr.mxu0 0.0
        %7586 = vmatpush1.msra.mxu0 0.0
        %7587 = vmatprep.mubr.f32.mxu0 0.0
        %7588 = vmatmul.mubr.f32.gmra.mrb[0].mxu0 %v7423
        %v7589 = vpop.f32.mrb[0].mxu0
        %v7590 = vadd.f32 0.0, %v7589
        %v7591 = vpop.f32.mrb[0].mxu0
        %v7592 = vadd.f32 0.0, %v7591
        %7593 = vmatprep.mubr.f32.mxu0 0.0
        %7594 = vmatmul.mubr.f32.gmra.mrb[0].mxu0 %v7426
        %v7595 = vpop.f32.mrb[0].mxu0
        %v7596 = vadd.f32 0.0, %v7595
        %v7597 = vpop.f32.mrb[0].mxu0
        %v7598 = vadd.f32 0.0, %v7597
        %7599 = vmatprep.mubr.f32.mxu0 0.0
        %7600 = vmatmul.mubr.f32.gmra.mrb[0].mxu0 %v7429
        %v7601 = vpop.f32.mrb[0].mxu0
        %v7602 = vadd.f32 0.0, %v7601
        %v7603 = vpop.f32.mrb[0].mxu0
        %v7604 = vadd.f32 0.0, %v7603
        %7605 = vmatprep.mubr.f32.mxu0 0.0
        %7606 = vmatmul.mubr.f32.gmra.mrb[0].mxu0 %v7432
        %v7607 = vpop.f32.mrb[0].mxu0
        %v7608 = vadd.f32 0.0, %v7607
        %v7609 = vpop.f32.mrb[0].mxu0
        %v7610 = vadd.f32 0.0, %v7609
        %7611 = vdwg.mxu0
        %7612 = vmatprep.subr.mxu0 0.0
        %7613 = vmatpush1.msra.mxu0 %v7416
        %7614 = vmatprep.subr.mxu0 0.0
        %7615 = vmatpush1.msra.mxu0 0.0
        %7616 = vmatprep.subr.mxu0 0.0
        %7617 = vmatpush1.msra.mxu0 0.0
        %7618 = vmatprep.subr.mxu0 0.0
        %7619 = vmatpush1.msra.mxu0 0.0
        %7620 = vmatprep.subr.mxu0 0.0
        %7621 = vmatpush1.msra.mxu0 0.0
        %7622 = vmatprep.subr.mxu0 0.0
        %7623 = vmatpush1.msra.mxu0 0.0
        %7624 = vmatprep.subr.mxu0 0.0
        %7625 = vmatpush1.msra.mxu0 0.0
        %7626 = vmatprep.subr.mxu0 0.0
        %7627 = vmatpush1.msra.mxu0 0.0
        %7628 = vmatprep.subr.mxu0 0.0
        %7629 = vmatpush1.msra.mxu0 0.0
        %7630 = vmatprep.subr.mxu0 0.0
        %7631 = vmatpush1.msra.mxu0 0.0
        %7632 = vmatprep.subr.mxu0 0.0
        %7633 = vmatpush1.msra.mxu0 0.0
        %7634 = vmatprep.subr.mxu0 0.0
        %7635 = vmatpush1.msra.mxu0 0.0
        %7636 = vmatprep.subr.mxu0 0.0
        %7637 = vmatpush1.msra.mxu0 0.0
        %7638 = vmatprep.subr.mxu0 0.0
        %7639 = vmatpush1.msra.mxu0 0.0
        %7640 = vmatprep.subr.mxu0 0.0
        %7641 = vmatpush1.msra.mxu0 0.0
        %7642 = vmatprep.subr.mxu0 0.0
        %7643 = vmatpush1.msra.mxu0 0.0
        %7644 = vmatprep.subr.mxu0 0.0
        %7645 = vmatpush1.msra.mxu0 0.0
        %7646 = vmatprep.subr.mxu0 0.0
        %7647 = vmatpush1.msra.mxu0 0.0
        %7648 = vmatprep.subr.mxu0 0.0
        %7649 = vmatpush1.msra.mxu0 0.0
        %7650 = vmatprep.subr.mxu0 0.0
        %7651 = vmatpush1.msra.mxu0 0.0
        %7652 = vmatprep.subr.mxu0 0.0
        %7653 = vmatpush1.msra.mxu0 0.0
        %7654 = vmatprep.subr.mxu0 0.0
        %7655 = vmatpush1.msra.mxu0 0.0
        %7656 = vmatprep.subr.mxu0 0.0
        %7657 = vmatpush1.msra.mxu0 0.0
        %7658 = vmatprep.subr.mxu0 0.0
        %7659 = vmatpush1.msra.mxu0 0.0
        %7660 = vmatprep.subr.mxu0 0.0
        %7661 = vmatpush1.msra.mxu0 0.0
        %7662 = vmatprep.subr.mxu0 0.0
        %7663 = vmatpush1.msra.mxu0 0.0
        %7664 = vmatprep.subr.mxu0 0.0
        %7665 = vmatpush1.msra.mxu0 0.0
        %7666 = vmatprep.subr.mxu0 0.0
        %7667 = vmatpush1.msra.mxu0 0.0
        %7668 = vmatprep.subr.mxu0 0.0
        %7669 = vmatpush1.msra.mxu0 0.0
        %7670 = vmatprep.subr.mxu0 0.0
        %7671 = vmatpush1.msra.mxu0 0.0
        %7672 = vmatprep.subr.mxu0 0.0
        %7673 = vmatpush1.msra.mxu0 0.0
        %7674 = vmatprep.subr.mxu0 0.0
        %7675 = vmatpush1.msra.mxu0 0.0
        %7676 = vmatprep.mubr.f32.mxu0 0.0
        %7677 = vmatmul.mubr.f32.gmra.mrb[0].mxu0 %v7423
        %v7678 = vpop.f32.mrb[0].mxu0
        %v7679 = vadd.f32 0.0, %v7678
        %v7680 = vpop.f32.mrb[0].mxu0
        %7681 = vmatprep.mubr.f32.mxu0 0.0
        %7682 = vmatmul.mubr.f32.gmra.mrb[0].mxu0 %v7426
        %v7683 = vpop.f32.mrb[0].mxu0
        %v7684 = vadd.f32 0.0, %v7683
        %v7685 = vpop.f32.mrb[0].mxu0
        %7686 = vmatprep.mubr.f32.mxu0 0.0
        %7687 = vmatmul.mubr.f32.gmra.mrb[0].mxu0 %v7429
        %v7688 = vpop.f32.mrb[0].mxu0
        %v7689 = vadd.f32 0.0, %v7688
        %v7690 = vpop.f32.mrb[0].mxu0
        %7691 = vmatprep.mubr.f32.mxu0 0.0
        %7692 = vmatmul.mubr.f32.gmra.mrb[0].mxu0 %v7432
        %v7693 = vpop.f32.mrb[0].mxu0
        %v7694 = vadd.f32 0.0, %v7693
        %v7695 = vpop.f32.mrb[0].mxu0
        %7696 = vdwg.mxu0
        %v7697 = vadd.f32 %v7374, %v7501
        %v7698 = vadd.f32 %v7375, %v7503
        %v7699 = vadd.f32 %v7376, %v7590
        %v7700 = vadd.f32 %v7377, %v7592
        %v7701 = vadd.f32 %v7378, %v7679
        %v7702 = vadd.f32 %v7379, %v7507
        %v7703 = vadd.f32 %v7380, %v7509
        %v7704 = vadd.f32 %v7381, %v7596
        %v7705 = vadd.f32 %v7382, %v7598
        %v7706 = vadd.f32 %v7383, %v7684
        %v7707 = vadd.f32 %v7384, %v7513
        %v7708 = vadd.f32 %v7385, %v7515
        %v7709 = vadd.f32 %v7386, %v7602
        %v7710 = vadd.f32 %v7387, %v7604
        %v7711 = vadd.f32 %v7388, %v7689
        %v7712 = vadd.f32 %v7389, %v7519
        %v7713 = vadd.f32 %v7390, %v7521
        %v7714 = vadd.f32 %v7391, %v7608
        %v7715 = vadd.f32 %v7392, %v7610
        %v7716 = vadd.f32 %v7393, %v7694
        %s7717 = scalar_lea.vmem %s1, 736
        %v7718 = vld [vmem:[%s7717] sm:$0xff]
        %v7719 = vld [vmem:[%s7717 + $0x8] sm:$0xff]
        %v7720 = vld [vmem:[%s7717 + $0x10] sm:$0xff]
        %v7721 = vld [vmem:[%s7717 + $0x18] sm:$0xff]
        %7722 = vrot.lane.b32.xlu0 %v6095, 44
        %v7723 = vpop.permute.xlu0 %7722
        %7724 = vrot.lane.b32.xlu0 %v6096, 44
        %v7725 = vpop.permute.xlu0 %7724
        %7726 = vrot.lane.b32.xlu0 %v6097, 44
        %v7727 = vpop.permute.xlu0 %7726
        %7728 = vrot.lane.b32.xlu0 %v6098, 44
        %v7729 = vpop.permute.xlu0 %7728
        %7730 = vrot.lane.b32.xlu0 %v6099, 44
        %v7731 = vpop.permute.xlu0 %7730
        %7732 = vrot.lane.b32.xlu0 %v6100, 44
        %v7733 = vpop.permute.xlu0 %7732
        %vm7734 = vcmask 359424
        %v7735 = vsel %vm7734, %v7723, %v7725
        %v7736 = vsel %vm7734, %v7725, %v7727
        %v7737 = vsel %vm7734, %v7727, %v7729
        %v7738 = vsel %vm7734, %v7729, %v7731
        %v7739 = vsel %vm7734, %v7731, %v7733
        %v7746 = vsel %vm372, %v7718, 0
        %v7749 = vsel %vm372, %v7719, 0
        %v7752 = vsel %vm372, %v7720, 0
        %v7755 = vsel %vm372, %v7721, 0
        %7757 = vmatprep.subr.mxu0 %v7736
        %7758 = vmatpush1.msra.mxu0 %v7735
        %7759 = vmatprep.subr.mxu0 0.0
        %7760 = vmatpush1.msra.mxu0 0.0
        %7761 = vmatprep.subr.mxu0 0.0
        %7762 = vmatpush1.msra.mxu0 0.0
        %7763 = vmatprep.subr.mxu0 0.0
        %7764 = vmatpush1.msra.mxu0 0.0
        %7765 = vmatprep.subr.mxu0 0.0
        %7766 = vmatpush1.msra.mxu0 0.0
        %7767 = vmatprep.subr.mxu0 0.0
        %7768 = vmatpush1.msra.mxu0 0.0
        %7769 = vmatprep.subr.mxu0 0.0
        %7770 = vmatpush1.msra.mxu0 0.0
        %7771 = vmatprep.subr.mxu0 0.0
        %7772 = vmatpush1.msra.mxu0 0.0
        %7773 = vmatprep.subr.mxu0 0.0
        %7774 = vmatpush1.msra.mxu0 0.0
        %7775 = vmatprep.subr.mxu0 0.0
        %7776 = vmatpush1.msra.mxu0 0.0
        %7777 = vmatprep.subr.mxu0 0.0
        %7778 = vmatpush1.msra.mxu0 0.0
        %7779 = vmatprep.subr.mxu0 0.0
        %7780 = vmatpush1.msra.mxu0 0.0
        %7781 = vmatprep.subr.mxu0 0.0
        %7782 = vmatpush1.msra.mxu0 0.0
        %7783 = vmatprep.subr.mxu0 0.0
        %7784 = vmatpush1.msra.mxu0 0.0
        %7785 = vmatprep.subr.mxu0 0.0
        %7786 = vmatpush1.msra.mxu0 0.0
        %7787 = vmatprep.subr.mxu0 0.0
        %7788 = vmatpush1.msra.mxu0 0.0
        %7789 = vmatprep.subr.mxu0 0.0
        %7790 = vmatpush1.msra.mxu0 0.0
        %7791 = vmatprep.subr.mxu0 0.0
        %7792 = vmatpush1.msra.mxu0 0.0
        %7793 = vmatprep.subr.mxu0 0.0
        %7794 = vmatpush1.msra.mxu0 0.0
        %7795 = vmatprep.subr.mxu0 0.0
        %7796 = vmatpush1.msra.mxu0 0.0
        %7797 = vmatprep.subr.mxu0 0.0
        %7798 = vmatpush1.msra.mxu0 0.0
        %7799 = vmatprep.subr.mxu0 0.0
        %7800 = vmatpush1.msra.mxu0 0.0
        %7801 = vmatprep.subr.mxu0 0.0
        %7802 = vmatpush1.msra.mxu0 0.0
        %7803 = vmatprep.subr.mxu0 0.0
        %7804 = vmatpush1.msra.mxu0 0.0
        %7805 = vmatprep.subr.mxu0 0.0
        %7806 = vmatpush1.msra.mxu0 0.0
        %7807 = vmatprep.subr.mxu0 0.0
        %7808 = vmatpush1.msra.mxu0 0.0
        %7809 = vmatprep.subr.mxu0 0.0
        %7810 = vmatpush1.msra.mxu0 0.0
        %7811 = vmatprep.subr.mxu0 0.0
        %7812 = vmatpush1.msra.mxu0 0.0
        %7813 = vmatprep.subr.mxu0 0.0
        %7814 = vmatpush1.msra.mxu0 0.0
        %7815 = vmatprep.subr.mxu0 0.0
        %7816 = vmatpush1.msra.mxu0 0.0
        %7817 = vmatprep.subr.mxu0 0.0
        %7818 = vmatpush1.msra.mxu0 0.0
        %7819 = vmatprep.subr.mxu0 0.0
        %7820 = vmatpush1.msra.mxu0 0.0
        %7821 = vmatprep.mubr.f32.mxu0 0.0
        %7822 = vmatmul.mubr.f32.gmra.mrb[0].mxu0 %v7746
        %v7823 = vpop.f32.mrb[0].mxu0
        %v7824 = vadd.f32 0.0, %v7823
        %v7825 = vpop.f32.mrb[0].mxu0
        %v7826 = vadd.f32 0.0, %v7825
        %7827 = vmatprep.mubr.f32.mxu0 0.0
        %7828 = vmatmul.mubr.f32.gmra.mrb[0].mxu0 %v7749
        %v7829 = vpop.f32.mrb[0].mxu0
        %v7830 = vadd.f32 0.0, %v7829
        %v7831 = vpop.f32.mrb[0].mxu0
        %v7832 = vadd.f32 0.0, %v7831
        %7833 = vmatprep.mubr.f32.mxu0 0.0
        %7834 = vmatmul.mubr.f32.gmra.mrb[0].mxu0 %v7752
        %v7835 = vpop.f32.mrb[0].mxu0
        %v7836 = vadd.f32 0.0, %v7835
        %v7837 = vpop.f32.mrb[0].mxu0
        %v7838 = vadd.f32 0.0, %v7837
        %7839 = vmatprep.mubr.f32.mxu0 0.0
        %7840 = vmatmul.mubr.f32.gmra.mrb[0].mxu0 %v7755
        %v7841 = vpop.f32.mrb[0].mxu0
        %v7842 = vadd.f32 0.0, %v7841
        %v7843 = vpop.f32.mrb[0].mxu0
        %v7844 = vadd.f32 0.0, %v7843
        %7845 = vdwg.mxu0
        %7846 = vmatprep.subr.mxu0 %v7738
        %7847 = vmatpush1.msra.mxu0 %v7737
        %7848 = vmatprep.subr.mxu0 0.0
        %7849 = vmatpush1.msra.mxu0 0.0
        %7850 = vmatprep.subr.mxu0 0.0
        %7851 = vmatpush1.msra.mxu0 0.0
        %7852 = vmatprep.subr.mxu0 0.0
        %7853 = vmatpush1.msra.mxu0 0.0
        %7854 = vmatprep.subr.mxu0 0.0
        %7855 = vmatpush1.msra.mxu0 0.0
        %7856 = vmatprep.subr.mxu0 0.0
        %7857 = vmatpush1.msra.mxu0 0.0
        %7858 = vmatprep.subr.mxu0 0.0
        %7859 = vmatpush1.msra.mxu0 0.0
        %7860 = vmatprep.subr.mxu0 0.0
        %7861 = vmatpush1.msra.mxu0 0.0
        %7862 = vmatprep.subr.mxu0 0.0
        %7863 = vmatpush1.msra.mxu0 0.0
        %7864 = vmatprep.subr.mxu0 0.0
        %7865 = vmatpush1.msra.mxu0 0.0
        %7866 = vmatprep.subr.mxu0 0.0
        %7867 = vmatpush1.msra.mxu0 0.0
        %7868 = vmatprep.subr.mxu0 0.0
        %7869 = vmatpush1.msra.mxu0 0.0
        %7870 = vmatprep.subr.mxu0 0.0
        %7871 = vmatpush1.msra.mxu0 0.0
        %7872 = vmatprep.subr.mxu0 0.0
        %7873 = vmatpush1.msra.mxu0 0.0
        %7874 = vmatprep.subr.mxu0 0.0
        %7875 = vmatpush1.msra.mxu0 0.0
        %7876 = vmatprep.subr.mxu0 0.0
        %7877 = vmatpush1.msra.mxu0 0.0
        %7878 = vmatprep.subr.mxu0 0.0
        %7879 = vmatpush1.msra.mxu0 0.0
        %7880 = vmatprep.subr.mxu0 0.0
        %7881 = vmatpush1.msra.mxu0 0.0
        %7882 = vmatprep.subr.mxu0 0.0
        %7883 = vmatpush1.msra.mxu0 0.0
        %7884 = vmatprep.subr.mxu0 0.0
        %7885 = vmatpush1.msra.mxu0 0.0
        %7886 = vmatprep.subr.mxu0 0.0
        %7887 = vmatpush1.msra.mxu0 0.0
        %7888 = vmatprep.subr.mxu0 0.0
        %7889 = vmatpush1.msra.mxu0 0.0
        %7890 = vmatprep.subr.mxu0 0.0
        %7891 = vmatpush1.msra.mxu0 0.0
        %7892 = vmatprep.subr.mxu0 0.0
        %7893 = vmatpush1.msra.mxu0 0.0
        %7894 = vmatprep.subr.mxu0 0.0
        %7895 = vmatpush1.msra.mxu0 0.0
        %7896 = vmatprep.subr.mxu0 0.0
        %7897 = vmatpush1.msra.mxu0 0.0
        %7898 = vmatprep.subr.mxu0 0.0
        %7899 = vmatpush1.msra.mxu0 0.0
        %7900 = vmatprep.subr.mxu0 0.0
        %7901 = vmatpush1.msra.mxu0 0.0
        %7902 = vmatprep.subr.mxu0 0.0
        %7903 = vmatpush1.msra.mxu0 0.0
        %7904 = vmatprep.subr.mxu0 0.0
        %7905 = vmatpush1.msra.mxu0 0.0
        %7906 = vmatprep.subr.mxu0 0.0
        %7907 = vmatpush1.msra.mxu0 0.0
        %7908 = vmatprep.subr.mxu0 0.0
        %7909 = vmatpush1.msra.mxu0 0.0
        %7910 = vmatprep.mubr.f32.mxu0 0.0
        %7911 = vmatmul.mubr.f32.gmra.mrb[0].mxu0 %v7746
        %v7912 = vpop.f32.mrb[0].mxu0
        %v7913 = vadd.f32 0.0, %v7912
        %v7914 = vpop.f32.mrb[0].mxu0
        %v7915 = vadd.f32 0.0, %v7914
        %7916 = vmatprep.mubr.f32.mxu0 0.0
        %7917 = vmatmul.mubr.f32.gmra.mrb[0].mxu0 %v7749
        %v7918 = vpop.f32.mrb[0].mxu0
        %v7919 = vadd.f32 0.0, %v7918
        %v7920 = vpop.f32.mrb[0].mxu0
        %v7921 = vadd.f32 0.0, %v7920
        %7922 = vmatprep.mubr.f32.mxu0 0.0
        %7923 = vmatmul.mubr.f32.gmra.mrb[0].mxu0 %v7752
        %v7924 = vpop.f32.mrb[0].mxu0
        %v7925 = vadd.f32 0.0, %v7924
        %v7926 = vpop.f32.mrb[0].mxu0
        %v7927 = vadd.f32 0.0, %v7926
        %7928 = vmatprep.mubr.f32.mxu0 0.0
        %7929 = vmatmul.mubr.f32.gmra.mrb[0].mxu0 %v7755
        %v7930 = vpop.f32.mrb[0].mxu0
        %v7931 = vadd.f32 0.0, %v7930
        %v7932 = vpop.f32.mrb[0].mxu0
        %v7933 = vadd.f32 0.0, %v7932
        %7934 = vdwg.mxu0
        %7935 = vmatprep.subr.mxu0 0.0
        %7936 = vmatpush1.msra.mxu0 %v7739
        %7937 = vmatprep.subr.mxu0 0.0
        %7938 = vmatpush1.msra.mxu0 0.0
        %7939 = vmatprep.subr.mxu0 0.0
        %7940 = vmatpush1.msra.mxu0 0.0
        %7941 = vmatprep.subr.mxu0 0.0
        %7942 = vmatpush1.msra.mxu0 0.0
        %7943 = vmatprep.subr.mxu0 0.0
        %7944 = vmatpush1.msra.mxu0 0.0
        %7945 = vmatprep.subr.mxu0 0.0
        %7946 = vmatpush1.msra.mxu0 0.0
        %7947 = vmatprep.subr.mxu0 0.0
        %7948 = vmatpush1.msra.mxu0 0.0
        %7949 = vmatprep.subr.mxu0 0.0
        %7950 = vmatpush1.msra.mxu0 0.0
        %7951 = vmatprep.subr.mxu0 0.0
        %7952 = vmatpush1.msra.mxu0 0.0
        %7953 = vmatprep.subr.mxu0 0.0
        %7954 = vmatpush1.msra.mxu0 0.0
        %7955 = vmatprep.subr.mxu0 0.0
        %7956 = vmatpush1.msra.mxu0 0.0
        %7957 = vmatprep.subr.mxu0 0.0
        %7958 = vmatpush1.msra.mxu0 0.0
        %7959 = vmatprep.subr.mxu0 0.0
        %7960 = vmatpush1.msra.mxu0 0.0
        %7961 = vmatprep.subr.mxu0 0.0
        %7962 = vmatpush1.msra.mxu0 0.0
        %7963 = vmatprep.subr.mxu0 0.0
        %7964 = vmatpush1.msra.mxu0 0.0
        %7965 = vmatprep.subr.mxu0 0.0
        %7966 = vmatpush1.msra.mxu0 0.0
        %7967 = vmatprep.subr.mxu0 0.0
        %7968 = vmatpush1.msra.mxu0 0.0
        %7969 = vmatprep.subr.mxu0 0.0
        %7970 = vmatpush1.msra.mxu0 0.0
        %7971 = vmatprep.subr.mxu0 0.0
        %7972 = vmatpush1.msra.mxu0 0.0
        %7973 = vmatprep.subr.mxu0 0.0
        %7974 = vmatpush1.msra.mxu0 0.0
        %7975 = vmatprep.subr.mxu0 0.0
        %7976 = vmatpush1.msra.mxu0 0.0
        %7977 = vmatprep.subr.mxu0 0.0
        %7978 = vmatpush1.msra.mxu0 0.0
        %7979 = vmatprep.subr.mxu0 0.0
        %7980 = vmatpush1.msra.mxu0 0.0
        %7981 = vmatprep.subr.mxu0 0.0
        %7982 = vmatpush1.msra.mxu0 0.0
        %7983 = vmatprep.subr.mxu0 0.0
        %7984 = vmatpush1.msra.mxu0 0.0
        %7985 = vmatprep.subr.mxu0 0.0
        %7986 = vmatpush1.msra.mxu0 0.0
        %7987 = vmatprep.subr.mxu0 0.0
        %7988 = vmatpush1.msra.mxu0 0.0
        %7989 = vmatprep.subr.mxu0 0.0
        %7990 = vmatpush1.msra.mxu0 0.0
        %7991 = vmatprep.subr.mxu0 0.0
        %7992 = vmatpush1.msra.mxu0 0.0
        %7993 = vmatprep.subr.mxu0 0.0
        %7994 = vmatpush1.msra.mxu0 0.0
        %7995 = vmatprep.subr.mxu0 0.0
        %7996 = vmatpush1.msra.mxu0 0.0
        %7997 = vmatprep.subr.mxu0 0.0
        %7998 = vmatpush1.msra.mxu0 0.0
        %7999 = vmatprep.mubr.f32.mxu0 0.0
        %8000 = vmatmul.mubr.f32.gmra.mrb[0].mxu0 %v7746
        %v8001 = vpop.f32.mrb[0].mxu0
        %v8002 = vadd.f32 0.0, %v8001
        %v8003 = vpop.f32.mrb[0].mxu0
        %8004 = vmatprep.mubr.f32.mxu0 0.0
        %8005 = vmatmul.mubr.f32.gmra.mrb[0].mxu0 %v7749
        %v8006 = vpop.f32.mrb[0].mxu0
        %v8007 = vadd.f32 0.0, %v8006
        %v8008 = vpop.f32.mrb[0].mxu0
        %8009 = vmatprep.mubr.f32.mxu0 0.0
        %8010 = vmatmul.mubr.f32.gmra.mrb[0].mxu0 %v7752
        %v8011 = vpop.f32.mrb[0].mxu0
        %v8012 = vadd.f32 0.0, %v8011
        %v8013 = vpop.f32.mrb[0].mxu0
        %8014 = vmatprep.mubr.f32.mxu0 0.0
        %8015 = vmatmul.mubr.f32.gmra.mrb[0].mxu0 %v7755
        %v8016 = vpop.f32.mrb[0].mxu0
        %v8017 = vadd.f32 0.0, %v8016
        %v8018 = vpop.f32.mrb[0].mxu0
        %8019 = vdwg.mxu0
        %v8020 = vadd.f32 %v7697, %v7824
        %v8021 = vadd.f32 %v7698, %v7826
        %v8022 = vadd.f32 %v7699, %v7913
        %v8023 = vadd.f32 %v7700, %v7915
        %v8024 = vadd.f32 %v7701, %v8002
        %v8025 = vadd.f32 %v7702, %v7830
        %v8026 = vadd.f32 %v7703, %v7832
        %v8027 = vadd.f32 %v7704, %v7919
        %v8028 = vadd.f32 %v7705, %v7921
        %v8029 = vadd.f32 %v7706, %v8007
        %v8030 = vadd.f32 %v7707, %v7836
        %v8031 = vadd.f32 %v7708, %v7838
        %v8032 = vadd.f32 %v7709, %v7925
        %v8033 = vadd.f32 %v7710, %v7927
        %v8034 = vadd.f32 %v7711, %v8012
        %v8035 = vadd.f32 %v7712, %v7842
        %v8036 = vadd.f32 %v7713, %v7844
        %v8037 = vadd.f32 %v7714, %v7931
        %v8038 = vadd.f32 %v7715, %v7933
        %v8039 = vadd.f32 %v7716, %v8017
        %s8040 = scalar_lea.vmem %s1, 768
        %v8041 = vld [vmem:[%s8040] sm:$0xff]
        %v8042 = vld [vmem:[%s8040 + $0x8] sm:$0xff]
        %v8043 = vld [vmem:[%s8040 + $0x10] sm:$0xff]
        %v8044 = vld [vmem:[%s8040 + $0x18] sm:$0xff]
        %8045 = vrot.lane.b32.xlu0 %v6095, 36
        %v8046 = vpop.permute.xlu0 %8045
        %8047 = vrot.lane.b32.xlu0 %v6096, 36
        %v8048 = vpop.permute.xlu0 %8047
        %8049 = vrot.lane.b32.xlu0 %v6097, 36
        %v8050 = vpop.permute.xlu0 %8049
        %8051 = vrot.lane.b32.xlu0 %v6098, 36
        %v8052 = vpop.permute.xlu0 %8051
        %8053 = vrot.lane.b32.xlu0 %v6099, 36
        %v8054 = vpop.permute.xlu0 %8053
        %8055 = vrot.lane.b32.xlu0 %v6100, 36
        %v8056 = vpop.permute.xlu0 %8055
        %vm8057 = vcmask 293888
        %v8058 = vsel %vm8057, %v8046, %v8048
        %v8059 = vsel %vm8057, %v8048, %v8050
        %v8060 = vsel %vm8057, %v8050, %v8052
        %v8061 = vsel %vm8057, %v8052, %v8054
        %v8062 = vsel %vm8057, %v8054, %v8056
        %v8069 = vsel %vm372, %v8041, 0
        %v8072 = vsel %vm372, %v8042, 0
        %v8075 = vsel %vm372, %v8043, 0
        %v8078 = vsel %vm372, %v8044, 0
        %8080 = vmatprep.subr.mxu0 %v8059
        %8081 = vmatpush1.msra.mxu0 %v8058
        %8082 = vmatprep.subr.mxu0 0.0
        %8083 = vmatpush1.msra.mxu0 0.0
        %8084 = vmatprep.subr.mxu0 0.0
        %8085 = vmatpush1.msra.mxu0 0.0
        %8086 = vmatprep.subr.mxu0 0.0
        %8087 = vmatpush1.msra.mxu0 0.0
        %8088 = vmatprep.subr.mxu0 0.0
        %8089 = vmatpush1.msra.mxu0 0.0
        %8090 = vmatprep.subr.mxu0 0.0
        %8091 = vmatpush1.msra.mxu0 0.0
        %8092 = vmatprep.subr.mxu0 0.0
        %8093 = vmatpush1.msra.mxu0 0.0
        %8094 = vmatprep.subr.mxu0 0.0
        %8095 = vmatpush1.msra.mxu0 0.0
        %8096 = vmatprep.subr.mxu0 0.0
        %8097 = vmatpush1.msra.mxu0 0.0
        %8098 = vmatprep.subr.mxu0 0.0
        %8099 = vmatpush1.msra.mxu0 0.0
        %8100 = vmatprep.subr.mxu0 0.0
        %8101 = vmatpush1.msra.mxu0 0.0
        %8102 = vmatprep.subr.mxu0 0.0
        %8103 = vmatpush1.msra.mxu0 0.0
        %8104 = vmatprep.subr.mxu0 0.0
        %8105 = vmatpush1.msra.mxu0 0.0
        %8106 = vmatprep.subr.mxu0 0.0
        %8107 = vmatpush1.msra.mxu0 0.0
        %8108 = vmatprep.subr.mxu0 0.0
        %8109 = vmatpush1.msra.mxu0 0.0
        %8110 = vmatprep.subr.mxu0 0.0
        %8111 = vmatpush1.msra.mxu0 0.0
        %8112 = vmatprep.subr.mxu0 0.0
        %8113 = vmatpush1.msra.mxu0 0.0
        %8114 = vmatprep.subr.mxu0 0.0
        %8115 = vmatpush1.msra.mxu0 0.0
        %8116 = vmatprep.subr.mxu0 0.0
        %8117 = vmatpush1.msra.mxu0 0.0
        %8118 = vmatprep.subr.mxu0 0.0
        %8119 = vmatpush1.msra.mxu0 0.0
        %8120 = vmatprep.subr.mxu0 0.0
        %8121 = vmatpush1.msra.mxu0 0.0
        %8122 = vmatprep.subr.mxu0 0.0
        %8123 = vmatpush1.msra.mxu0 0.0
        %8124 = vmatprep.subr.mxu0 0.0
        %8125 = vmatpush1.msra.mxu0 0.0
        %8126 = vmatprep.subr.mxu0 0.0
        %8127 = vmatpush1.msra.mxu0 0.0
        %8128 = vmatprep.subr.mxu0 0.0
        %8129 = vmatpush1.msra.mxu0 0.0
        %8130 = vmatprep.subr.mxu0 0.0
        %8131 = vmatpush1.msra.mxu0 0.0
        %8132 = vmatprep.subr.mxu0 0.0
        %8133 = vmatpush1.msra.mxu0 0.0
        %8134 = vmatprep.subr.mxu0 0.0
        %8135 = vmatpush1.msra.mxu0 0.0
        %8136 = vmatprep.subr.mxu0 0.0
        %8137 = vmatpush1.msra.mxu0 0.0
        %8138 = vmatprep.subr.mxu0 0.0
        %8139 = vmatpush1.msra.mxu0 0.0
        %8140 = vmatprep.subr.mxu0 0.0
        %8141 = vmatpush1.msra.mxu0 0.0
        %8142 = vmatprep.subr.mxu0 0.0
        %8143 = vmatpush1.msra.mxu0 0.0
        %8144 = vmatprep.mubr.f32.mxu0 0.0
        %8145 = vmatmul.mubr.f32.gmra.mrb[0].mxu0 %v8069
        %v8146 = vpop.f32.mrb[0].mxu0
        %v8147 = vadd.f32 0.0, %v8146
        %v8148 = vpop.f32.mrb[0].mxu0
        %v8149 = vadd.f32 0.0, %v8148
        %8150 = vmatprep.mubr.f32.mxu0 0.0
        %8151 = vmatmul.mubr.f32.gmra.mrb[0].mxu0 %v8072
        %v8152 = vpop.f32.mrb[0].mxu0
        %v8153 = vadd.f32 0.0, %v8152
        %v8154 = vpop.f32.mrb[0].mxu0
        %v8155 = vadd.f32 0.0, %v8154
        %8156 = vmatprep.mubr.f32.mxu0 0.0
        %8157 = vmatmul.mubr.f32.gmra.mrb[0].mxu0 %v8075
        %v8158 = vpop.f32.mrb[0].mxu0
        %v8159 = vadd.f32 0.0, %v8158
        %v8160 = vpop.f32.mrb[0].mxu0
        %v8161 = vadd.f32 0.0, %v8160
        %8162 = vmatprep.mubr.f32.mxu0 0.0
        %8163 = vmatmul.mubr.f32.gmra.mrb[0].mxu0 %v8078
        %v8164 = vpop.f32.mrb[0].mxu0
        %v8165 = vadd.f32 0.0, %v8164
        %v8166 = vpop.f32.mrb[0].mxu0
        %v8167 = vadd.f32 0.0, %v8166
        %8168 = vdwg.mxu0
        %8169 = vmatprep.subr.mxu0 %v8061
        %8170 = vmatpush1.msra.mxu0 %v8060
        %8171 = vmatprep.subr.mxu0 0.0
        %8172 = vmatpush1.msra.mxu0 0.0
        %8173 = vmatprep.subr.mxu0 0.0
        %8174 = vmatpush1.msra.mxu0 0.0
        %8175 = vmatprep.subr.mxu0 0.0
        %8176 = vmatpush1.msra.mxu0 0.0
        %8177 = vmatprep.subr.mxu0 0.0
        %8178 = vmatpush1.msra.mxu0 0.0
        %8179 = vmatprep.subr.mxu0 0.0
        %8180 = vmatpush1.msra.mxu0 0.0
        %8181 = vmatprep.subr.mxu0 0.0
        %8182 = vmatpush1.msra.mxu0 0.0
        %8183 = vmatprep.subr.mxu0 0.0
        %8184 = vmatpush1.msra.mxu0 0.0
        %8185 = vmatprep.subr.mxu0 0.0
        %8186 = vmatpush1.msra.mxu0 0.0
        %8187 = vmatprep.subr.mxu0 0.0
        %8188 = vmatpush1.msra.mxu0 0.0
        %8189 = vmatprep.subr.mxu0 0.0
        %8190 = vmatpush1.msra.mxu0 0.0
        %8191 = vmatprep.subr.mxu0 0.0
        %8192 = vmatpush1.msra.mxu0 0.0
        %8193 = vmatprep.subr.mxu0 0.0
        %8194 = vmatpush1.msra.mxu0 0.0
        %8195 = vmatprep.subr.mxu0 0.0
        %8196 = vmatpush1.msra.mxu0 0.0
        %8197 = vmatprep.subr.mxu0 0.0
        %8198 = vmatpush1.msra.mxu0 0.0
        %8199 = vmatprep.subr.mxu0 0.0
        %8200 = vmatpush1.msra.mxu0 0.0
        %8201 = vmatprep.subr.mxu0 0.0
        %8202 = vmatpush1.msra.mxu0 0.0
        %8203 = vmatprep.subr.mxu0 0.0
        %8204 = vmatpush1.msra.mxu0 0.0
        %8205 = vmatprep.subr.mxu0 0.0
        %8206 = vmatpush1.msra.mxu0 0.0
        %8207 = vmatprep.subr.mxu0 0.0
        %8208 = vmatpush1.msra.mxu0 0.0
        %8209 = vmatprep.subr.mxu0 0.0
        %8210 = vmatpush1.msra.mxu0 0.0
        %8211 = vmatprep.subr.mxu0 0.0
        %8212 = vmatpush1.msra.mxu0 0.0
        %8213 = vmatprep.subr.mxu0 0.0
        %8214 = vmatpush1.msra.mxu0 0.0
        %8215 = vmatprep.subr.mxu0 0.0
        %8216 = vmatpush1.msra.mxu0 0.0
        %8217 = vmatprep.subr.mxu0 0.0
        %8218 = vmatpush1.msra.mxu0 0.0
        %8219 = vmatprep.subr.mxu0 0.0
        %8220 = vmatpush1.msra.mxu0 0.0
        %8221 = vmatprep.subr.mxu0 0.0
        %8222 = vmatpush1.msra.mxu0 0.0
        %8223 = vmatprep.subr.mxu0 0.0
        %8224 = vmatpush1.msra.mxu0 0.0
        %8225 = vmatprep.subr.mxu0 0.0
        %8226 = vmatpush1.msra.mxu0 0.0
        %8227 = vmatprep.subr.mxu0 0.0
        %8228 = vmatpush1.msra.mxu0 0.0
        %8229 = vmatprep.subr.mxu0 0.0
        %8230 = vmatpush1.msra.mxu0 0.0
        %8231 = vmatprep.subr.mxu0 0.0
        %8232 = vmatpush1.msra.mxu0 0.0
        %8233 = vmatprep.mubr.f32.mxu0 0.0
        %8234 = vmatmul.mubr.f32.gmra.mrb[0].mxu0 %v8069
        %v8235 = vpop.f32.mrb[0].mxu0
        %v8236 = vadd.f32 0.0, %v8235
        %v8237 = vpop.f32.mrb[0].mxu0
        %v8238 = vadd.f32 0.0, %v8237
        %8239 = vmatprep.mubr.f32.mxu0 0.0
        %8240 = vmatmul.mubr.f32.gmra.mrb[0].mxu0 %v8072
        %v8241 = vpop.f32.mrb[0].mxu0
        %v8242 = vadd.f32 0.0, %v8241
        %v8243 = vpop.f32.mrb[0].mxu0
        %v8244 = vadd.f32 0.0, %v8243
        %8245 = vmatprep.mubr.f32.mxu0 0.0
        %8246 = vmatmul.mubr.f32.gmra.mrb[0].mxu0 %v8075
        %v8247 = vpop.f32.mrb[0].mxu0
        %v8248 = vadd.f32 0.0, %v8247
        %v8249 = vpop.f32.mrb[0].mxu0
        %v8250 = vadd.f32 0.0, %v8249
        %8251 = vmatprep.mubr.f32.mxu0 0.0
        %8252 = vmatmul.mubr.f32.gmra.mrb[0].mxu0 %v8078
        %v8253 = vpop.f32.mrb[0].mxu0
        %v8254 = vadd.f32 0.0, %v8253
        %v8255 = vpop.f32.mrb[0].mxu0
        %v8256 = vadd.f32 0.0, %v8255
        %8257 = vdwg.mxu0
        %8258 = vmatprep.subr.mxu0 0.0
        %8259 = vmatpush1.msra.mxu0 %v8062
        %8260 = vmatprep.subr.mxu0 0.0
        %8261 = vmatpush1.msra.mxu0 0.0
        %8262 = vmatprep.subr.mxu0 0.0
        %8263 = vmatpush1.msra.mxu0 0.0
        %8264 = vmatprep.subr.mxu0 0.0
        %8265 = vmatpush1.msra.mxu0 0.0
        %8266 = vmatprep.subr.mxu0 0.0
        %8267 = vmatpush1.msra.mxu0 0.0
        %8268 = vmatprep.subr.mxu0 0.0
        %8269 = vmatpush1.msra.mxu0 0.0
        %8270 = vmatprep.subr.mxu0 0.0
        %8271 = vmatpush1.msra.mxu0 0.0
        %8272 = vmatprep.subr.mxu0 0.0
        %8273 = vmatpush1.msra.mxu0 0.0
        %8274 = vmatprep.subr.mxu0 0.0
        %8275 = vmatpush1.msra.mxu0 0.0
        %8276 = vmatprep.subr.mxu0 0.0
        %8277 = vmatpush1.msra.mxu0 0.0
        %8278 = vmatprep.subr.mxu0 0.0
        %8279 = vmatpush1.msra.mxu0 0.0
        %8280 = vmatprep.subr.mxu0 0.0
        %8281 = vmatpush1.msra.mxu0 0.0
        %8282 = vmatprep.subr.mxu0 0.0
        %8283 = vmatpush1.msra.mxu0 0.0
        %8284 = vmatprep.subr.mxu0 0.0
        %8285 = vmatpush1.msra.mxu0 0.0
        %8286 = vmatprep.subr.mxu0 0.0
        %8287 = vmatpush1.msra.mxu0 0.0
        %8288 = vmatprep.subr.mxu0 0.0
        %8289 = vmatpush1.msra.mxu0 0.0
        %8290 = vmatprep.subr.mxu0 0.0
        %8291 = vmatpush1.msra.mxu0 0.0
        %8292 = vmatprep.subr.mxu0 0.0
        %8293 = vmatpush1.msra.mxu0 0.0
        %8294 = vmatprep.subr.mxu0 0.0
        %8295 = vmatpush1.msra.mxu0 0.0
        %8296 = vmatprep.subr.mxu0 0.0
        %8297 = vmatpush1.msra.mxu0 0.0
        %8298 = vmatprep.subr.mxu0 0.0
        %8299 = vmatpush1.msra.mxu0 0.0
        %8300 = vmatprep.subr.mxu0 0.0
        %8301 = vmatpush1.msra.mxu0 0.0
        %8302 = vmatprep.subr.mxu0 0.0
        %8303 = vmatpush1.msra.mxu0 0.0
        %8304 = vmatprep.subr.mxu0 0.0
        %8305 = vmatpush1.msra.mxu0 0.0
        %8306 = vmatprep.subr.mxu0 0.0
        %8307 = vmatpush1.msra.mxu0 0.0
        %8308 = vmatprep.subr.mxu0 0.0
        %8309 = vmatpush1.msra.mxu0 0.0
        %8310 = vmatprep.subr.mxu0 0.0
        %8311 = vmatpush1.msra.mxu0 0.0
        %8312 = vmatprep.subr.mxu0 0.0
        %8313 = vmatpush1.msra.mxu0 0.0
        %8314 = vmatprep.subr.mxu0 0.0
        %8315 = vmatpush1.msra.mxu0 0.0
        %8316 = vmatprep.subr.mxu0 0.0
        %8317 = vmatpush1.msra.mxu0 0.0
        %8318 = vmatprep.subr.mxu0 0.0
        %8319 = vmatpush1.msra.mxu0 0.0
        %8320 = vmatprep.subr.mxu0 0.0
        %8321 = vmatpush1.msra.mxu0 0.0
        %8322 = vmatprep.mubr.f32.mxu0 0.0
        %8323 = vmatmul.mubr.f32.gmra.mrb[0].mxu0 %v8069
        %v8324 = vpop.f32.mrb[0].mxu0
        %v8325 = vadd.f32 0.0, %v8324
        %v8326 = vpop.f32.mrb[0].mxu0
        %8327 = vmatprep.mubr.f32.mxu0 0.0
        %8328 = vmatmul.mubr.f32.gmra.mrb[0].mxu0 %v8072
        %v8329 = vpop.f32.mrb[0].mxu0
        %v8330 = vadd.f32 0.0, %v8329
        %v8331 = vpop.f32.mrb[0].mxu0
        %8332 = vmatprep.mubr.f32.mxu0 0.0
        %8333 = vmatmul.mubr.f32.gmra.mrb[0].mxu0 %v8075
        %v8334 = vpop.f32.mrb[0].mxu0
        %v8335 = vadd.f32 0.0, %v8334
        %v8336 = vpop.f32.mrb[0].mxu0
        %8337 = vmatprep.mubr.f32.mxu0 0.0
        %8338 = vmatmul.mubr.f32.gmra.mrb[0].mxu0 %v8078
        %v8339 = vpop.f32.mrb[0].mxu0
        %v8340 = vadd.f32 0.0, %v8339
        %v8341 = vpop.f32.mrb[0].mxu0
        %8342 = vdwg.mxu0
        %v8343 = vadd.f32 %v8020, %v8147
        %v8344 = vadd.f32 %v8021, %v8149
        %v8345 = vadd.f32 %v8022, %v8236
        %v8346 = vadd.f32 %v8023, %v8238
        %v8347 = vadd.f32 %v8024, %v8325
        %v8348 = vadd.f32 %v8025, %v8153
        %v8349 = vadd.f32 %v8026, %v8155
        %v8350 = vadd.f32 %v8027, %v8242
        %v8351 = vadd.f32 %v8028, %v8244
        %v8352 = vadd.f32 %v8029, %v8330
        %v8353 = vadd.f32 %v8030, %v8159
        %v8354 = vadd.f32 %v8031, %v8161
        %v8355 = vadd.f32 %v8032, %v8248
        %v8356 = vadd.f32 %v8033, %v8250
        %v8357 = vadd.f32 %v8034, %v8335
        %v8358 = vadd.f32 %v8035, %v8165
        %v8359 = vadd.f32 %v8036, %v8167
        %v8360 = vadd.f32 %v8037, %v8254
        %v8361 = vadd.f32 %v8038, %v8256
        %v8362 = vadd.f32 %v8039, %v8340
        %s8363 = scalar_lea.vmem %s1, 800
        %v8364 = vld [vmem:[%s8363] sm:$0xff]
        %v8365 = vld [vmem:[%s8363 + $0x8] sm:$0xff]
        %v8366 = vld [vmem:[%s8363 + $0x10] sm:$0xff]
        %v8367 = vld [vmem:[%s8363 + $0x18] sm:$0xff]
        %8368 = vrot.lane.b32.xlu0 %v6095, 35
        %v8369 = vpop.permute.xlu0 %8368
        %8370 = vrot.lane.b32.xlu0 %v6096, 35
        %v8371 = vpop.permute.xlu0 %8370
        %8372 = vrot.lane.b32.xlu0 %v6097, 35
        %v8373 = vpop.permute.xlu0 %8372
        %8374 = vrot.lane.b32.xlu0 %v6098, 35
        %v8375 = vpop.permute.xlu0 %8374
        %8376 = vrot.lane.b32.xlu0 %v6099, 35
        %v8377 = vpop.permute.xlu0 %8376
        %8378 = vrot.lane.b32.xlu0 %v6100, 35
        %v8379 = vpop.permute.xlu0 %8378
        %vm8380 = vcmask 285696
        %v8381 = vsel %vm8380, %v8369, %v8371
        %v8382 = vsel %vm8380, %v8371, %v8373
        %v8383 = vsel %vm8380, %v8373, %v8375
        %v8384 = vsel %vm8380, %v8375, %v8377
        %v8385 = vsel %vm8380, %v8377, %v8379
        %v8392 = vsel %vm372, %v8364, 0
        %v8395 = vsel %vm372, %v8365, 0
        %v8398 = vsel %vm372, %v8366, 0
        %v8401 = vsel %vm372, %v8367, 0
        %8403 = vmatprep.subr.mxu0 %v8382
        %8404 = vmatpush1.msra.mxu0 %v8381
        %8405 = vmatprep.subr.mxu0 0.0
        %8406 = vmatpush1.msra.mxu0 0.0
        %8407 = vmatprep.subr.mxu0 0.0
        %8408 = vmatpush1.msra.mxu0 0.0
        %8409 = vmatprep.subr.mxu0 0.0
        %8410 = vmatpush1.msra.mxu0 0.0
        %8411 = vmatprep.subr.mxu0 0.0
        %8412 = vmatpush1.msra.mxu0 0.0
        %8413 = vmatprep.subr.mxu0 0.0
        %8414 = vmatpush1.msra.mxu0 0.0
        %8415 = vmatprep.subr.mxu0 0.0
        %8416 = vmatpush1.msra.mxu0 0.0
        %8417 = vmatprep.subr.mxu0 0.0
        %8418 = vmatpush1.msra.mxu0 0.0
        %8419 = vmatprep.subr.mxu0 0.0
        %8420 = vmatpush1.msra.mxu0 0.0
        %8421 = vmatprep.subr.mxu0 0.0
        %8422 = vmatpush1.msra.mxu0 0.0
        %8423 = vmatprep.subr.mxu0 0.0
        %8424 = vmatpush1.msra.mxu0 0.0
        %8425 = vmatprep.subr.mxu0 0.0
        %8426 = vmatpush1.msra.mxu0 0.0
        %8427 = vmatprep.subr.mxu0 0.0
        %8428 = vmatpush1.msra.mxu0 0.0
        %8429 = vmatprep.subr.mxu0 0.0
        %8430 = vmatpush1.msra.mxu0 0.0
        %8431 = vmatprep.subr.mxu0 0.0
        %8432 = vmatpush1.msra.mxu0 0.0
        %8433 = vmatprep.subr.mxu0 0.0
        %8434 = vmatpush1.msra.mxu0 0.0
        %8435 = vmatprep.subr.mxu0 0.0
        %8436 = vmatpush1.msra.mxu0 0.0
        %8437 = vmatprep.subr.mxu0 0.0
        %8438 = vmatpush1.msra.mxu0 0.0
        %8439 = vmatprep.subr.mxu0 0.0
        %8440 = vmatpush1.msra.mxu0 0.0
        %8441 = vmatprep.subr.mxu0 0.0
        %8442 = vmatpush1.msra.mxu0 0.0
        %8443 = vmatprep.subr.mxu0 0.0
        %8444 = vmatpush1.msra.mxu0 0.0
        %8445 = vmatprep.subr.mxu0 0.0
        %8446 = vmatpush1.msra.mxu0 0.0
        %8447 = vmatprep.subr.mxu0 0.0
        %8448 = vmatpush1.msra.mxu0 0.0
        %8449 = vmatprep.subr.mxu0 0.0
        %8450 = vmatpush1.msra.mxu0 0.0
        %8451 = vmatprep.subr.mxu0 0.0
        %8452 = vmatpush1.msra.mxu0 0.0
        %8453 = vmatprep.subr.mxu0 0.0
        %8454 = vmatpush1.msra.mxu0 0.0
        %8455 = vmatprep.subr.mxu0 0.0
        %8456 = vmatpush1.msra.mxu0 0.0
        %8457 = vmatprep.subr.mxu0 0.0
        %8458 = vmatpush1.msra.mxu0 0.0
        %8459 = vmatprep.subr.mxu0 0.0
        %8460 = vmatpush1.msra.mxu0 0.0
        %8461 = vmatprep.subr.mxu0 0.0
        %8462 = vmatpush1.msra.mxu0 0.0
        %8463 = vmatprep.subr.mxu0 0.0
        %8464 = vmatpush1.msra.mxu0 0.0
        %8465 = vmatprep.subr.mxu0 0.0
        %8466 = vmatpush1.msra.mxu0 0.0
        %8467 = vmatprep.mubr.f32.mxu0 0.0
        %8468 = vmatmul.mubr.f32.gmra.mrb[0].mxu0 %v8392
        %v8469 = vpop.f32.mrb[0].mxu0
        %v8470 = vadd.f32 0.0, %v8469
        %v8471 = vpop.f32.mrb[0].mxu0
        %v8472 = vadd.f32 0.0, %v8471
        %8473 = vmatprep.mubr.f32.mxu0 0.0
        %8474 = vmatmul.mubr.f32.gmra.mrb[0].mxu0 %v8395
        %v8475 = vpop.f32.mrb[0].mxu0
        %v8476 = vadd.f32 0.0, %v8475
        %v8477 = vpop.f32.mrb[0].mxu0
        %v8478 = vadd.f32 0.0, %v8477
        %8479 = vmatprep.mubr.f32.mxu0 0.0
        %8480 = vmatmul.mubr.f32.gmra.mrb[0].mxu0 %v8398
        %v8481 = vpop.f32.mrb[0].mxu0
        %v8482 = vadd.f32 0.0, %v8481
        %v8483 = vpop.f32.mrb[0].mxu0
        %v8484 = vadd.f32 0.0, %v8483
        %8485 = vmatprep.mubr.f32.mxu0 0.0
        %8486 = vmatmul.mubr.f32.gmra.mrb[0].mxu0 %v8401
        %v8487 = vpop.f32.mrb[0].mxu0
        %v8488 = vadd.f32 0.0, %v8487
        %v8489 = vpop.f32.mrb[0].mxu0
        %v8490 = vadd.f32 0.0, %v8489
        %8491 = vdwg.mxu0
        %8492 = vmatprep.subr.mxu0 %v8384
        %8493 = vmatpush1.msra.mxu0 %v8383
        %8494 = vmatprep.subr.mxu0 0.0
        %8495 = vmatpush1.msra.mxu0 0.0
        %8496 = vmatprep.subr.mxu0 0.0
        %8497 = vmatpush1.msra.mxu0 0.0
        %8498 = vmatprep.subr.mxu0 0.0
        %8499 = vmatpush1.msra.mxu0 0.0
        %8500 = vmatprep.subr.mxu0 0.0
        %8501 = vmatpush1.msra.mxu0 0.0
        %8502 = vmatprep.subr.mxu0 0.0
        %8503 = vmatpush1.msra.mxu0 0.0
        %8504 = vmatprep.subr.mxu0 0.0
        %8505 = vmatpush1.msra.mxu0 0.0
        %8506 = vmatprep.subr.mxu0 0.0
        %8507 = vmatpush1.msra.mxu0 0.0
        %8508 = vmatprep.subr.mxu0 0.0
        %8509 = vmatpush1.msra.mxu0 0.0
        %8510 = vmatprep.subr.mxu0 0.0
        %8511 = vmatpush1.msra.mxu0 0.0
        %8512 = vmatprep.subr.mxu0 0.0
        %8513 = vmatpush1.msra.mxu0 0.0
        %8514 = vmatprep.subr.mxu0 0.0
        %8515 = vmatpush1.msra.mxu0 0.0
        %8516 = vmatprep.subr.mxu0 0.0
        %8517 = vmatpush1.msra.mxu0 0.0
        %8518 = vmatprep.subr.mxu0 0.0
        %8519 = vmatpush1.msra.mxu0 0.0
        %8520 = vmatprep.subr.mxu0 0.0
        %8521 = vmatpush1.msra.mxu0 0.0
        %8522 = vmatprep.subr.mxu0 0.0
        %8523 = vmatpush1.msra.mxu0 0.0
        %8524 = vmatprep.subr.mxu0 0.0
        %8525 = vmatpush1.msra.mxu0 0.0
        %8526 = vmatprep.subr.mxu0 0.0
        %8527 = vmatpush1.msra.mxu0 0.0
        %8528 = vmatprep.subr.mxu0 0.0
        %8529 = vmatpush1.msra.mxu0 0.0
        %8530 = vmatprep.subr.mxu0 0.0
        %8531 = vmatpush1.msra.mxu0 0.0
        %8532 = vmatprep.subr.mxu0 0.0
        %8533 = vmatpush1.msra.mxu0 0.0
        %8534 = vmatprep.subr.mxu0 0.0
        %8535 = vmatpush1.msra.mxu0 0.0
        %8536 = vmatprep.subr.mxu0 0.0
        %8537 = vmatpush1.msra.mxu0 0.0
        %8538 = vmatprep.subr.mxu0 0.0
        %8539 = vmatpush1.msra.mxu0 0.0
        %8540 = vmatprep.subr.mxu0 0.0
        %8541 = vmatpush1.msra.mxu0 0.0
        %8542 = vmatprep.subr.mxu0 0.0
        %8543 = vmatpush1.msra.mxu0 0.0
        %8544 = vmatprep.subr.mxu0 0.0
        %8545 = vmatpush1.msra.mxu0 0.0
        %8546 = vmatprep.subr.mxu0 0.0
        %8547 = vmatpush1.msra.mxu0 0.0
        %8548 = vmatprep.subr.mxu0 0.0
        %8549 = vmatpush1.msra.mxu0 0.0
        %8550 = vmatprep.subr.mxu0 0.0
        %8551 = vmatpush1.msra.mxu0 0.0
        %8552 = vmatprep.subr.mxu0 0.0
        %8553 = vmatpush1.msra.mxu0 0.0
        %8554 = vmatprep.subr.mxu0 0.0
        %8555 = vmatpush1.msra.mxu0 0.0
        %8556 = vmatprep.mubr.f32.mxu0 0.0
        %8557 = vmatmul.mubr.f32.gmra.mrb[0].mxu0 %v8392
        %v8558 = vpop.f32.mrb[0].mxu0
        %v8559 = vadd.f32 0.0, %v8558
        %v8560 = vpop.f32.mrb[0].mxu0
        %v8561 = vadd.f32 0.0, %v8560
        %8562 = vmatprep.mubr.f32.mxu0 0.0
        %8563 = vmatmul.mubr.f32.gmra.mrb[0].mxu0 %v8395
        %v8564 = vpop.f32.mrb[0].mxu0
        %v8565 = vadd.f32 0.0, %v8564
        %v8566 = vpop.f32.mrb[0].mxu0
        %v8567 = vadd.f32 0.0, %v8566
        %8568 = vmatprep.mubr.f32.mxu0 0.0
        %8569 = vmatmul.mubr.f32.gmra.mrb[0].mxu0 %v8398
        %v8570 = vpop.f32.mrb[0].mxu0
        %v8571 = vadd.f32 0.0, %v8570
        %v8572 = vpop.f32.mrb[0].mxu0
        %v8573 = vadd.f32 0.0, %v8572
        %8574 = vmatprep.mubr.f32.mxu0 0.0
        %8575 = vmatmul.mubr.f32.gmra.mrb[0].mxu0 %v8401
        %v8576 = vpop.f32.mrb[0].mxu0
        %v8577 = vadd.f32 0.0, %v8576
        %v8578 = vpop.f32.mrb[0].mxu0
        %v8579 = vadd.f32 0.0, %v8578
        %8580 = vdwg.mxu0
        %8581 = vmatprep.subr.mxu0 0.0
        %8582 = vmatpush1.msra.mxu0 %v8385
        %8583 = vmatprep.subr.mxu0 0.0
        %8584 = vmatpush1.msra.mxu0 0.0
        %8585 = vmatprep.subr.mxu0 0.0
        %8586 = vmatpush1.msra.mxu0 0.0
        %8587 = vmatprep.subr.mxu0 0.0
        %8588 = vmatpush1.msra.mxu0 0.0
        %8589 = vmatprep.subr.mxu0 0.0
        %8590 = vmatpush1.msra.mxu0 0.0
        %8591 = vmatprep.subr.mxu0 0.0
        %8592 = vmatpush1.msra.mxu0 0.0
        %8593 = vmatprep.subr.mxu0 0.0
        %8594 = vmatpush1.msra.mxu0 0.0
        %8595 = vmatprep.subr.mxu0 0.0
        %8596 = vmatpush1.msra.mxu0 0.0
        %8597 = vmatprep.subr.mxu0 0.0
        %8598 = vmatpush1.msra.mxu0 0.0
        %8599 = vmatprep.subr.mxu0 0.0
        %8600 = vmatpush1.msra.mxu0 0.0
        %8601 = vmatprep.subr.mxu0 0.0
        %8602 = vmatpush1.msra.mxu0 0.0
        %8603 = vmatprep.subr.mxu0 0.0
        %8604 = vmatpush1.msra.mxu0 0.0
        %8605 = vmatprep.subr.mxu0 0.0
        %8606 = vmatpush1.msra.mxu0 0.0
        %8607 = vmatprep.subr.mxu0 0.0
        %8608 = vmatpush1.msra.mxu0 0.0
        %8609 = vmatprep.subr.mxu0 0.0
        %8610 = vmatpush1.msra.mxu0 0.0
        %8611 = vmatprep.subr.mxu0 0.0
        %8612 = vmatpush1.msra.mxu0 0.0
        %8613 = vmatprep.subr.mxu0 0.0
        %8614 = vmatpush1.msra.mxu0 0.0
        %8615 = vmatprep.subr.mxu0 0.0
        %8616 = vmatpush1.msra.mxu0 0.0
        %8617 = vmatprep.subr.mxu0 0.0
        %8618 = vmatpush1.msra.mxu0 0.0
        %8619 = vmatprep.subr.mxu0 0.0
        %8620 = vmatpush1.msra.mxu0 0.0
        %8621 = vmatprep.subr.mxu0 0.0
        %8622 = vmatpush1.msra.mxu0 0.0
        %8623 = vmatprep.subr.mxu0 0.0
        %8624 = vmatpush1.msra.mxu0 0.0
        %8625 = vmatprep.subr.mxu0 0.0
        %8626 = vmatpush1.msra.mxu0 0.0
        %8627 = vmatprep.subr.mxu0 0.0
        %8628 = vmatpush1.msra.mxu0 0.0
        %8629 = vmatprep.subr.mxu0 0.0
        %8630 = vmatpush1.msra.mxu0 0.0
        %8631 = vmatprep.subr.mxu0 0.0
        %8632 = vmatpush1.msra.mxu0 0.0
        %8633 = vmatprep.subr.mxu0 0.0
        %8634 = vmatpush1.msra.mxu0 0.0
        %8635 = vmatprep.subr.mxu0 0.0
        %8636 = vmatpush1.msra.mxu0 0.0
        %8637 = vmatprep.subr.mxu0 0.0
        %8638 = vmatpush1.msra.mxu0 0.0
        %8639 = vmatprep.subr.mxu0 0.0
        %8640 = vmatpush1.msra.mxu0 0.0
        %8641 = vmatprep.subr.mxu0 0.0
        %8642 = vmatpush1.msra.mxu0 0.0
        %8643 = vmatprep.subr.mxu0 0.0
        %8644 = vmatpush1.msra.mxu0 0.0
        %8645 = vmatprep.mubr.f32.mxu0 0.0
        %8646 = vmatmul.mubr.f32.gmra.mrb[0].mxu0 %v8392
        %v8647 = vpop.f32.mrb[0].mxu0
        %v8648 = vadd.f32 0.0, %v8647
        %v8649 = vpop.f32.mrb[0].mxu0
        %8650 = vmatprep.mubr.f32.mxu0 0.0
        %8651 = vmatmul.mubr.f32.gmra.mrb[0].mxu0 %v8395
        %v8652 = vpop.f32.mrb[0].mxu0
        %v8653 = vadd.f32 0.0, %v8652
        %v8654 = vpop.f32.mrb[0].mxu0
        %8655 = vmatprep.mubr.f32.mxu0 0.0
        %8656 = vmatmul.mubr.f32.gmra.mrb[0].mxu0 %v8398
        %v8657 = vpop.f32.mrb[0].mxu0
        %v8658 = vadd.f32 0.0, %v8657
        %v8659 = vpop.f32.mrb[0].mxu0
        %8660 = vmatprep.mubr.f32.mxu0 0.0
        %8661 = vmatmul.mubr.f32.gmra.mrb[0].mxu0 %v8401
        %v8662 = vpop.f32.mrb[0].mxu0
        %v8663 = vadd.f32 0.0, %v8662
        %v8664 = vpop.f32.mrb[0].mxu0
        %8665 = vdwg.mxu0
        %v8666 = vadd.f32 %v8343, %v8470
        %v8667 = vadd.f32 %v8344, %v8472
        %v8668 = vadd.f32 %v8345, %v8559
        %v8669 = vadd.f32 %v8346, %v8561
        %v8670 = vadd.f32 %v8347, %v8648
        %v8671 = vadd.f32 %v8348, %v8476
        %v8672 = vadd.f32 %v8349, %v8478
        %v8673 = vadd.f32 %v8350, %v8565
        %v8674 = vadd.f32 %v8351, %v8567
        %v8675 = vadd.f32 %v8352, %v8653
        %v8676 = vadd.f32 %v8353, %v8482
        %v8677 = vadd.f32 %v8354, %v8484
        %v8678 = vadd.f32 %v8355, %v8571
        %v8679 = vadd.f32 %v8356, %v8573
        %v8680 = vadd.f32 %v8357, %v8658
        %v8681 = vadd.f32 %v8358, %v8488
        %v8682 = vadd.f32 %v8359, %v8490
        %v8683 = vadd.f32 %v8360, %v8577
        %v8684 = vadd.f32 %v8361, %v8579
        %v8685 = vadd.f32 %v8362, %v8663
        %s8686 = scalar_lea.vmem %s1, 832
        %v8687 = vld [vmem:[%s8686] sm:$0xff]
        %v8688 = vld [vmem:[%s8686 + $0x8] sm:$0xff]
        %v8689 = vld [vmem:[%s8686 + $0x10] sm:$0xff]
        %v8690 = vld [vmem:[%s8686 + $0x18] sm:$0xff]
        %8691 = vrot.lane.b32.xlu0 %v6095, 34
        %v8692 = vpop.permute.xlu0 %8691
        %8693 = vrot.lane.b32.xlu0 %v6096, 34
        %v8694 = vpop.permute.xlu0 %8693
        %8695 = vrot.lane.b32.xlu0 %v6097, 34
        %v8696 = vpop.permute.xlu0 %8695
        %8697 = vrot.lane.b32.xlu0 %v6098, 34
        %v8698 = vpop.permute.xlu0 %8697
        %8699 = vrot.lane.b32.xlu0 %v6099, 34
        %v8700 = vpop.permute.xlu0 %8699
        %8701 = vrot.lane.b32.xlu0 %v6100, 34
        %v8702 = vpop.permute.xlu0 %8701
        %vm8703 = vcmask 277504
        %v8704 = vsel %vm8703, %v8692, %v8694
        %v8705 = vsel %vm8703, %v8694, %v8696
        %v8706 = vsel %vm8703, %v8696, %v8698
        %v8707 = vsel %vm8703, %v8698, %v8700
        %v8708 = vsel %vm8703, %v8700, %v8702
        %v8715 = vsel %vm372, %v8687, 0
        %v8718 = vsel %vm372, %v8688, 0
        %v8721 = vsel %vm372, %v8689, 0
        %v8724 = vsel %vm372, %v8690, 0
        %8726 = vmatprep.subr.mxu0 %v8705
        %8727 = vmatpush1.msra.mxu0 %v8704
        %8728 = vmatprep.subr.mxu0 0.0
        %8729 = vmatpush1.msra.mxu0 0.0
        %8730 = vmatprep.subr.mxu0 0.0
        %8731 = vmatpush1.msra.mxu0 0.0
        %8732 = vmatprep.subr.mxu0 0.0
        %8733 = vmatpush1.msra.mxu0 0.0
        %8734 = vmatprep.subr.mxu0 0.0
        %8735 = vmatpush1.msra.mxu0 0.0
        %8736 = vmatprep.subr.mxu0 0.0
        %8737 = vmatpush1.msra.mxu0 0.0
        %8738 = vmatprep.subr.mxu0 0.0
        %8739 = vmatpush1.msra.mxu0 0.0
        %8740 = vmatprep.subr.mxu0 0.0
        %8741 = vmatpush1.msra.mxu0 0.0
        %8742 = vmatprep.subr.mxu0 0.0
        %8743 = vmatpush1.msra.mxu0 0.0
        %8744 = vmatprep.subr.mxu0 0.0
        %8745 = vmatpush1.msra.mxu0 0.0
        %8746 = vmatprep.subr.mxu0 0.0
        %8747 = vmatpush1.msra.mxu0 0.0
        %8748 = vmatprep.subr.mxu0 0.0
        %8749 = vmatpush1.msra.mxu0 0.0
        %8750 = vmatprep.subr.mxu0 0.0
        %8751 = vmatpush1.msra.mxu0 0.0
        %8752 = vmatprep.subr.mxu0 0.0
        %8753 = vmatpush1.msra.mxu0 0.0
        %8754 = vmatprep.subr.mxu0 0.0
        %8755 = vmatpush1.msra.mxu0 0.0
        %8756 = vmatprep.subr.mxu0 0.0
        %8757 = vmatpush1.msra.mxu0 0.0
        %8758 = vmatprep.subr.mxu0 0.0
        %8759 = vmatpush1.msra.mxu0 0.0
        %8760 = vmatprep.subr.mxu0 0.0
        %8761 = vmatpush1.msra.mxu0 0.0
        %8762 = vmatprep.subr.mxu0 0.0
        %8763 = vmatpush1.msra.mxu0 0.0
        %8764 = vmatprep.subr.mxu0 0.0
        %8765 = vmatpush1.msra.mxu0 0.0
        %8766 = vmatprep.subr.mxu0 0.0
        %8767 = vmatpush1.msra.mxu0 0.0
        %8768 = vmatprep.subr.mxu0 0.0
        %8769 = vmatpush1.msra.mxu0 0.0
        %8770 = vmatprep.subr.mxu0 0.0
        %8771 = vmatpush1.msra.mxu0 0.0
        %8772 = vmatprep.subr.mxu0 0.0
        %8773 = vmatpush1.msra.mxu0 0.0
        %8774 = vmatprep.subr.mxu0 0.0
        %8775 = vmatpush1.msra.mxu0 0.0
        %8776 = vmatprep.subr.mxu0 0.0
        %8777 = vmatpush1.msra.mxu0 0.0
        %8778 = vmatprep.subr.mxu0 0.0
        %8779 = vmatpush1.msra.mxu0 0.0
        %8780 = vmatprep.subr.mxu0 0.0
        %8781 = vmatpush1.msra.mxu0 0.0
        %8782 = vmatprep.subr.mxu0 0.0
        %8783 = vmatpush1.msra.mxu0 0.0
        %8784 = vmatprep.subr.mxu0 0.0
        %8785 = vmatpush1.msra.mxu0 0.0
        %8786 = vmatprep.subr.mxu0 0.0
        %8787 = vmatpush1.msra.mxu0 0.0
        %8788 = vmatprep.subr.mxu0 0.0
        %8789 = vmatpush1.msra.mxu0 0.0
        %8790 = vmatprep.mubr.f32.mxu0 0.0
        %8791 = vmatmul.mubr.f32.gmra.mrb[0].mxu0 %v8715
        %v8792 = vpop.f32.mrb[0].mxu0
        %v8793 = vadd.f32 0.0, %v8792
        %v8794 = vpop.f32.mrb[0].mxu0
        %v8795 = vadd.f32 0.0, %v8794
        %8796 = vmatprep.mubr.f32.mxu0 0.0
        %8797 = vmatmul.mubr.f32.gmra.mrb[0].mxu0 %v8718
        %v8798 = vpop.f32.mrb[0].mxu0
        %v8799 = vadd.f32 0.0, %v8798
        %v8800 = vpop.f32.mrb[0].mxu0
        %v8801 = vadd.f32 0.0, %v8800
        %8802 = vmatprep.mubr.f32.mxu0 0.0
        %8803 = vmatmul.mubr.f32.gmra.mrb[0].mxu0 %v8721
        %v8804 = vpop.f32.mrb[0].mxu0
        %v8805 = vadd.f32 0.0, %v8804
        %v8806 = vpop.f32.mrb[0].mxu0
        %v8807 = vadd.f32 0.0, %v8806
        %8808 = vmatprep.mubr.f32.mxu0 0.0
        %8809 = vmatmul.mubr.f32.gmra.mrb[0].mxu0 %v8724
        %v8810 = vpop.f32.mrb[0].mxu0
        %v8811 = vadd.f32 0.0, %v8810
        %v8812 = vpop.f32.mrb[0].mxu0
        %v8813 = vadd.f32 0.0, %v8812
        %8814 = vdwg.mxu0
        %8815 = vmatprep.subr.mxu0 %v8707
        %8816 = vmatpush1.msra.mxu0 %v8706
        %8817 = vmatprep.subr.mxu0 0.0
        %8818 = vmatpush1.msra.mxu0 0.0
        %8819 = vmatprep.subr.mxu0 0.0
        %8820 = vmatpush1.msra.mxu0 0.0
        %8821 = vmatprep.subr.mxu0 0.0
        %8822 = vmatpush1.msra.mxu0 0.0
        %8823 = vmatprep.subr.mxu0 0.0
        %8824 = vmatpush1.msra.mxu0 0.0
        %8825 = vmatprep.subr.mxu0 0.0
        %8826 = vmatpush1.msra.mxu0 0.0
        %8827 = vmatprep.subr.mxu0 0.0
        %8828 = vmatpush1.msra.mxu0 0.0
        %8829 = vmatprep.subr.mxu0 0.0
        %8830 = vmatpush1.msra.mxu0 0.0
        %8831 = vmatprep.subr.mxu0 0.0
        %8832 = vmatpush1.msra.mxu0 0.0
        %8833 = vmatprep.subr.mxu0 0.0
        %8834 = vmatpush1.msra.mxu0 0.0
        %8835 = vmatprep.subr.mxu0 0.0
        %8836 = vmatpush1.msra.mxu0 0.0
        %8837 = vmatprep.subr.mxu0 0.0
        %8838 = vmatpush1.msra.mxu0 0.0
        %8839 = vmatprep.subr.mxu0 0.0
        %8840 = vmatpush1.msra.mxu0 0.0
        %8841 = vmatprep.subr.mxu0 0.0
        %8842 = vmatpush1.msra.mxu0 0.0
        %8843 = vmatprep.subr.mxu0 0.0
        %8844 = vmatpush1.msra.mxu0 0.0
        %8845 = vmatprep.subr.mxu0 0.0
        %8846 = vmatpush1.msra.mxu0 0.0
        %8847 = vmatprep.subr.mxu0 0.0
        %8848 = vmatpush1.msra.mxu0 0.0
        %8849 = vmatprep.subr.mxu0 0.0
        %8850 = vmatpush1.msra.mxu0 0.0
        %8851 = vmatprep.subr.mxu0 0.0
        %8852 = vmatpush1.msra.mxu0 0.0
        %8853 = vmatprep.subr.mxu0 0.0
        %8854 = vmatpush1.msra.mxu0 0.0
        %8855 = vmatprep.subr.mxu0 0.0
        %8856 = vmatpush1.msra.mxu0 0.0
        %8857 = vmatprep.subr.mxu0 0.0
        %8858 = vmatpush1.msra.mxu0 0.0
        %8859 = vmatprep.subr.mxu0 0.0
        %8860 = vmatpush1.msra.mxu0 0.0
        %8861 = vmatprep.subr.mxu0 0.0
        %8862 = vmatpush1.msra.mxu0 0.0
        %8863 = vmatprep.subr.mxu0 0.0
        %8864 = vmatpush1.msra.mxu0 0.0
        %8865 = vmatprep.subr.mxu0 0.0
        %8866 = vmatpush1.msra.mxu0 0.0
        %8867 = vmatprep.subr.mxu0 0.0
        %8868 = vmatpush1.msra.mxu0 0.0
        %8869 = vmatprep.subr.mxu0 0.0
        %8870 = vmatpush1.msra.mxu0 0.0
        %8871 = vmatprep.subr.mxu0 0.0
        %8872 = vmatpush1.msra.mxu0 0.0
        %8873 = vmatprep.subr.mxu0 0.0
        %8874 = vmatpush1.msra.mxu0 0.0
        %8875 = vmatprep.subr.mxu0 0.0
        %8876 = vmatpush1.msra.mxu0 0.0
        %8877 = vmatprep.subr.mxu0 0.0
        %8878 = vmatpush1.msra.mxu0 0.0
        %8879 = vmatprep.mubr.f32.mxu0 0.0
        %8880 = vmatmul.mubr.f32.gmra.mrb[0].mxu0 %v8715
        %v8881 = vpop.f32.mrb[0].mxu0
        %v8882 = vadd.f32 0.0, %v8881
        %v8883 = vpop.f32.mrb[0].mxu0
        %v8884 = vadd.f32 0.0, %v8883
        %8885 = vmatprep.mubr.f32.mxu0 0.0
        %8886 = vmatmul.mubr.f32.gmra.mrb[0].mxu0 %v8718
        %v8887 = vpop.f32.mrb[0].mxu0
        %v8888 = vadd.f32 0.0, %v8887
        %v8889 = vpop.f32.mrb[0].mxu0
        %v8890 = vadd.f32 0.0, %v8889
        %8891 = vmatprep.mubr.f32.mxu0 0.0
        %8892 = vmatmul.mubr.f32.gmra.mrb[0].mxu0 %v8721
        %v8893 = vpop.f32.mrb[0].mxu0
        %v8894 = vadd.f32 0.0, %v8893
        %v8895 = vpop.f32.mrb[0].mxu0
        %v8896 = vadd.f32 0.0, %v8895
        %8897 = vmatprep.mubr.f32.mxu0 0.0
        %8898 = vmatmul.mubr.f32.gmra.mrb[0].mxu0 %v8724
        %v8899 = vpop.f32.mrb[0].mxu0
        %v8900 = vadd.f32 0.0, %v8899
        %v8901 = vpop.f32.mrb[0].mxu0
        %v8902 = vadd.f32 0.0, %v8901
        %8903 = vdwg.mxu0
        %8904 = vmatprep.subr.mxu0 0.0
        %8905 = vmatpush1.msra.mxu0 %v8708
        %8906 = vmatprep.subr.mxu0 0.0
        %8907 = vmatpush1.msra.mxu0 0.0
        %8908 = vmatprep.subr.mxu0 0.0
        %8909 = vmatpush1.msra.mxu0 0.0
        %8910 = vmatprep.subr.mxu0 0.0
        %8911 = vmatpush1.msra.mxu0 0.0
        %8912 = vmatprep.subr.mxu0 0.0
        %8913 = vmatpush1.msra.mxu0 0.0
        %8914 = vmatprep.subr.mxu0 0.0
        %8915 = vmatpush1.msra.mxu0 0.0
        %8916 = vmatprep.subr.mxu0 0.0
        %8917 = vmatpush1.msra.mxu0 0.0
        %8918 = vmatprep.subr.mxu0 0.0
        %8919 = vmatpush1.msra.mxu0 0.0
        %8920 = vmatprep.subr.mxu0 0.0
        %8921 = vmatpush1.msra.mxu0 0.0
        %8922 = vmatprep.subr.mxu0 0.0
        %8923 = vmatpush1.msra.mxu0 0.0
        %8924 = vmatprep.subr.mxu0 0.0
        %8925 = vmatpush1.msra.mxu0 0.0
        %8926 = vmatprep.subr.mxu0 0.0
        %8927 = vmatpush1.msra.mxu0 0.0
        %8928 = vmatprep.subr.mxu0 0.0
        %8929 = vmatpush1.msra.mxu0 0.0
        %8930 = vmatprep.subr.mxu0 0.0
        %8931 = vmatpush1.msra.mxu0 0.0
        %8932 = vmatprep.subr.mxu0 0.0
        %8933 = vmatpush1.msra.mxu0 0.0
        %8934 = vmatprep.subr.mxu0 0.0
        %8935 = vmatpush1.msra.mxu0 0.0
        %8936 = vmatprep.subr.mxu0 0.0
        %8937 = vmatpush1.msra.mxu0 0.0
        %8938 = vmatprep.subr.mxu0 0.0
        %8939 = vmatpush1.msra.mxu0 0.0
        %8940 = vmatprep.subr.mxu0 0.0
        %8941 = vmatpush1.msra.mxu0 0.0
        %8942 = vmatprep.subr.mxu0 0.0
        %8943 = vmatpush1.msra.mxu0 0.0
        %8944 = vmatprep.subr.mxu0 0.0
        %8945 = vmatpush1.msra.mxu0 0.0
        %8946 = vmatprep.subr.mxu0 0.0
        %8947 = vmatpush1.msra.mxu0 0.0
        %8948 = vmatprep.subr.mxu0 0.0
        %8949 = vmatpush1.msra.mxu0 0.0
        %8950 = vmatprep.subr.mxu0 0.0
        %8951 = vmatpush1.msra.mxu0 0.0
        %8952 = vmatprep.subr.mxu0 0.0
        %8953 = vmatpush1.msra.mxu0 0.0
        %8954 = vmatprep.subr.mxu0 0.0
        %8955 = vmatpush1.msra.mxu0 0.0
        %8956 = vmatprep.subr.mxu0 0.0
        %8957 = vmatpush1.msra.mxu0 0.0
        %8958 = vmatprep.subr.mxu0 0.0
        %8959 = vmatpush1.msra.mxu0 0.0
        %8960 = vmatprep.subr.mxu0 0.0
        %8961 = vmatpush1.msra.mxu0 0.0
        %8962 = vmatprep.subr.mxu0 0.0
        %8963 = vmatpush1.msra.mxu0 0.0
        %8964 = vmatprep.subr.mxu0 0.0
        %8965 = vmatpush1.msra.mxu0 0.0
        %8966 = vmatprep.subr.mxu0 0.0
        %8967 = vmatpush1.msra.mxu0 0.0
        %8968 = vmatprep.mubr.f32.mxu0 0.0
        %8969 = vmatmul.mubr.f32.gmra.mrb[0].mxu0 %v8715
        %v8970 = vpop.f32.mrb[0].mxu0
        %v8971 = vadd.f32 0.0, %v8970
        %v8972 = vpop.f32.mrb[0].mxu0
        %8973 = vmatprep.mubr.f32.mxu0 0.0
        %8974 = vmatmul.mubr.f32.gmra.mrb[0].mxu0 %v8718
        %v8975 = vpop.f32.mrb[0].mxu0
        %v8976 = vadd.f32 0.0, %v8975
        %v8977 = vpop.f32.mrb[0].mxu0
        %8978 = vmatprep.mubr.f32.mxu0 0.0
        %8979 = vmatmul.mubr.f32.gmra.mrb[0].mxu0 %v8721
        %v8980 = vpop.f32.mrb[0].mxu0
        %v8981 = vadd.f32 0.0, %v8980
        %v8982 = vpop.f32.mrb[0].mxu0
        %8983 = vmatprep.mubr.f32.mxu0 0.0
        %8984 = vmatmul.mubr.f32.gmra.mrb[0].mxu0 %v8724
        %v8985 = vpop.f32.mrb[0].mxu0
        %v8986 = vadd.f32 0.0, %v8985
        %v8987 = vpop.f32.mrb[0].mxu0
        %8988 = vdwg.mxu0
        %v8989 = vadd.f32 %v8666, %v8793
        %v8990 = vadd.f32 %v8667, %v8795
        %v8991 = vadd.f32 %v8668, %v8882
        %v8992 = vadd.f32 %v8669, %v8884
        %v8993 = vadd.f32 %v8670, %v8971
        %v8994 = vadd.f32 %v8671, %v8799
        %v8995 = vadd.f32 %v8672, %v8801
        %v8996 = vadd.f32 %v8673, %v8888
        %v8997 = vadd.f32 %v8674, %v8890
        %v8998 = vadd.f32 %v8675, %v8976
        %v8999 = vadd.f32 %v8676, %v8805
        %v9000 = vadd.f32 %v8677, %v8807
        %v9001 = vadd.f32 %v8678, %v8894
        %v9002 = vadd.f32 %v8679, %v8896
        %v9003 = vadd.f32 %v8680, %v8981
        %v9004 = vadd.f32 %v8681, %v8811
        %v9005 = vadd.f32 %v8682, %v8813
        %v9006 = vadd.f32 %v8683, %v8900
        %v9007 = vadd.f32 %v8684, %v8902
        %v9008 = vadd.f32 %v8685, %v8986
        %v9009 = vld [vmem:[%s2] sm:$0xff]
        %v9010 = vld [vmem:[%s2 + $0x8] sm:$0xff]
        %v9011 = vld [vmem:[%s2 + $0x10] sm:$0xff]
        %v9012 = vld [vmem:[%s2 + $0x18] sm:$0xff]
        %9014 = vset.pattern.permute.xlu0 0
        %9015 = vperm.xlu0 %9014, %v9009
        %v9016 = vpop.permute.xlu0 %9015
        %9019 = vset.pattern.permute.xlu0 0
        %9020 = vperm.xlu0 %9019, %v9010
        %v9021 = vpop.permute.xlu0 %9020
        %9024 = vset.pattern.permute.xlu0 0
        %9025 = vperm.xlu0 %9024, %v9011
        %v9026 = vpop.permute.xlu0 %9025
        %9029 = vset.pattern.permute.xlu0 0
        %9030 = vperm.xlu0 %9029, %v9012
        %v9031 = vpop.permute.xlu0 %9030
        %v9033 = vadd.f32 %v8989, %v9016
        %v9034 = vadd.f32 %v8990, %v9016
        %v9035 = vadd.f32 %v8991, %v9016
        %v9036 = vadd.f32 %v8992, %v9016
        %v9037 = vadd.f32 %v8993, %v9016
        %v9038 = vadd.f32 %v8994, %v9021
        %v9039 = vadd.f32 %v8995, %v9021
        %v9040 = vadd.f32 %v8996, %v9021
        %v9041 = vadd.f32 %v8997, %v9021
        %v9042 = vadd.f32 %v8998, %v9021
        %v9043 = vadd.f32 %v8999, %v9026
        %v9044 = vadd.f32 %v9000, %v9026
        %v9045 = vadd.f32 %v9001, %v9026
        %v9046 = vadd.f32 %v9002, %v9026
        %v9047 = vadd.f32 %v9003, %v9026
        %v9048 = vadd.f32 %v9004, %v9031
        %v9049 = vadd.f32 %v9005, %v9031
        %v9050 = vadd.f32 %v9006, %v9031
        %v9051 = vadd.f32 %v9007, %v9031
        %v9052 = vadd.f32 %v9008, %v9031
        %9053 = vst [vmem:[%s232] sm:$0xff] %v9033
        %9054 = vst [vmem:[%s232 + $0x8] sm:$0xff] %v9034
        %9055 = vst [vmem:[%s232 + $0x10] sm:$0xff] %v9035
        %9056 = vst [vmem:[%s232 + $0x18] sm:$0xff] %v9036
        %9057 = vst [vmem:[%s232 + $0x20] sm:$0xff] %v9037
        %9058 = vst [vmem:[%s232 + $0x28] sm:$0xff] %v9038
        %9059 = vst [vmem:[%s232 + $0x30] sm:$0xff] %v9039
        %9060 = vst [vmem:[%s232 + $0x38] sm:$0xff] %v9040
        %9061 = vst [vmem:[%s232 + $0x40] sm:$0xff] %v9041
        %9062 = vst [vmem:[%s232 + $0x48] sm:$0xff] %v9042
        %9063 = vst [vmem:[%s232 + $0x50] sm:$0xff] %v9043
        %9064 = vst [vmem:[%s232 + $0x58] sm:$0xff] %v9044
        %9065 = vst [vmem:[%s232 + $0x60] sm:$0xff] %v9045
        %9066 = vst [vmem:[%s232 + $0x68] sm:$0xff] %v9046
        %9067 = vst [vmem:[%s232 + $0x70] sm:$0xff] %v9047
        %9068 = vst [vmem:[%s232 + $0x78] sm:$0xff] %v9048
        %9069 = vst [vmem:[%s232 + $0x80] sm:$0xff] %v9049
        %9070 = vst [vmem:[%s232 + $0x88] sm:$0xff] %v9050
        %9071 = vst [vmem:[%s232 + $0x90] sm:$0xff] %v9051
        %9072 = vst [vmem:[%s232 + $0x98] sm:$0xff] %v9052
        %p9073 = scmp.eq.s32.totalorder %s26, 0
        // Predicated region
        $region67: #{tpu_custom_call.1} parent=31 // pred_check
          %p9074 = pneg %p9073
        $region68: #{tpu_custom_call.1} parent=31 // pred_check_branch
          %9076 = sbr.rel (%p9074) target = $region70
        $region69: #{tpu_custom_call.1} parent=31 // pred_region
          %vm9077 = vcmask 7168
          %9078 = vst.msk [vmem:[%s257] sm:$0xff] %vm9077, 0.0
          %9079 = vst.msk [vmem:[%s257 + $0x8] sm:$0xff] %vm9077, 0.0
          %9080 = vst.msk [vmem:[%s257 + $0x10] sm:$0xff] %vm9077, 0.0
          %9081 = vst.msk [vmem:[%s257 + $0x18] sm:$0xff] %vm9077, 0.0
          %9082 = vst.msk [vmem:[%s262] sm:$0xff] %vm9077, 0.0
          %9083 = vst.msk [vmem:[%s262 + $0x8] sm:$0xff] %vm9077, 0.0
          %9084 = vst.msk [vmem:[%s262 + $0x10] sm:$0xff] %vm9077, 0.0
          %9085 = vst.msk [vmem:[%s262 + $0x18] sm:$0xff] %vm9077, 0.0
        $region70: #{tpu_custom_call.1} parent=31 // pred_fallthru
          _
        %v9086 = vld [vmem:[%s250] sm:$0x1f]
        %v9088 = vlaneseq
        %v9089 = vshrl.u32 %v9088, 7
        %v9090 = vsub.s32 0, %v9089
        %v9091 = vrot.slane %v9086, %v9090
        %v9092 = vlaneseq
        %v9093 = vshrl.u32 %v9092, 7
        %v9094 = vsub.s32 1, %v9093
        %v9095 = vrot.slane %v9086, %v9094
        %v9096 = vlaneseq
        %v9097 = vshrl.u32 %v9096, 7
        %v9098 = vsub.s32 2, %v9097
        %v9099 = vrot.slane %v9086, %v9098
        %v9100 = vlaneseq
        %v9101 = vshrl.u32 %v9100, 7
        %v9102 = vsub.s32 3, %v9101
        %v9103 = vrot.slane %v9086, %v9102
        %v9104 = vlaneseq
        %v9105 = vshrl.u32 %v9104, 7
        %v9106 = vsub.s32 4, %v9105
        %v9107 = vrot.slane %v9086, %v9106
        %v9113 = vmul.f32 %v9033, %v9091
        %v9114 = vmul.f32 %v9034, %v9095
        %v9115 = vmul.f32 %v9035, %v9099
        %v9116 = vmul.f32 %v9036, %v9103
        %v9117 = vmul.f32 %v9037, %v9107
        %v9118 = vmul.f32 %v9038, %v9091
        %v9119 = vmul.f32 %v9039, %v9095
        %v9120 = vmul.f32 %v9040, %v9099
        %v9121 = vmul.f32 %v9041, %v9103
        %v9122 = vmul.f32 %v9042, %v9107
        %v9123 = vmul.f32 %v9043, %v9091
        %v9124 = vmul.f32 %v9044, %v9095
        %v9125 = vmul.f32 %v9045, %v9099
        %v9126 = vmul.f32 %v9046, %v9103
        %v9127 = vmul.f32 %v9047, %v9107
        %v9128 = vmul.f32 %v9048, %v9091
        %v9129 = vmul.f32 %v9049, %v9095
        %v9130 = vmul.f32 %v9050, %v9099
        %v9131 = vmul.f32 %v9051, %v9103
        %v9132 = vmul.f32 %v9052, %v9107
        %v9133 = vld [vmem:[%s257] sm:$0xff]
        %v9134 = vld [vmem:[%s257 + $0x8] sm:$0xff]
        %v9135 = vld [vmem:[%s257 + $0x10] sm:$0xff]
        %v9136 = vld [vmem:[%s257 + $0x18] sm:$0xff]
        %v9137 = vadd.f32 %v9113, %v9114
        %v9138 = vadd.f32 %v9137, %v9115
        %v9139 = vadd.f32 %v9138, %v9116
        %v9140 = vadd.f32 %v9139, %v9117
        %9141 = vadd.xlane.f32.xlu0 %v9140
        %v9142 = vpop.xlane.xlu0 %9141
        %v9143 = vadd.f32 %v9118, %v9119
        %v9144 = vadd.f32 %v9143, %v9120
        %v9145 = vadd.f32 %v9144, %v9121
        %v9146 = vadd.f32 %v9145, %v9122
        %9147 = vadd.xlane.f32.xlu0 %v9146
        %v9148 = vpop.xlane.xlu0 %9147
        %v9149 = vadd.f32 %v9123, %v9124
        %v9150 = vadd.f32 %v9149, %v9125
        %v9151 = vadd.f32 %v9150, %v9126
        %v9152 = vadd.f32 %v9151, %v9127
        %9153 = vadd.xlane.f32.xlu0 %v9152
        %v9154 = vpop.xlane.xlu0 %9153
        %v9155 = vadd.f32 %v9128, %v9129
        %v9156 = vadd.f32 %v9155, %v9130
        %v9157 = vadd.f32 %v9156, %v9131
        %v9158 = vadd.f32 %v9157, %v9132
        %9159 = vadd.xlane.f32.xlu0 %v9158
        %v9160 = vpop.xlane.xlu0 %9159
        %v9161 = vadd.f32 %v9133, %v9142
        %v9162 = vadd.f32 %v9134, %v9148
        %v9163 = vadd.f32 %v9135, %v9154
        %v9164 = vadd.f32 %v9136, %v9160
        %vm9165 = vcmask 7168
        %9166 = vst.msk [vmem:[%s257] sm:$0xff] %vm9165, %v9161
        %9167 = vst.msk [vmem:[%s257 + $0x8] sm:$0xff] %vm9165, %v9162
        %9168 = vst.msk [vmem:[%s257 + $0x10] sm:$0xff] %vm9165, %v9163
        %9169 = vst.msk [vmem:[%s257 + $0x18] sm:$0xff] %vm9165, %v9164
        %v9170 = vld [vmem:[%s262] sm:$0xff]
        %v9171 = vld [vmem:[%s262 + $0x8] sm:$0xff]
        %v9172 = vld [vmem:[%s262 + $0x10] sm:$0xff]
        %v9173 = vld [vmem:[%s262 + $0x18] sm:$0xff]
        %v9174 = vmul.f32 %v9113, %v9033
        %v9175 = vmul.f32 %v9114, %v9034
        %v9176 = vmul.f32 %v9115, %v9035
        %v9177 = vmul.f32 %v9116, %v9036
        %v9178 = vmul.f32 %v9117, %v9037
        %v9179 = vmul.f32 %v9118, %v9038
        %v9180 = vmul.f32 %v9119, %v9039
        %v9181 = vmul.f32 %v9120, %v9040
        %v9182 = vmul.f32 %v9121, %v9041
        %v9183 = vmul.f32 %v9122, %v9042
        %v9184 = vmul.f32 %v9123, %v9043
        %v9185 = vmul.f32 %v9124, %v9044
        %v9186 = vmul.f32 %v9125, %v9045
        %v9187 = vmul.f32 %v9126, %v9046
        %v9188 = vmul.f32 %v9127, %v9047
        %v9189 = vmul.f32 %v9128, %v9048
        %v9190 = vmul.f32 %v9129, %v9049
        %v9191 = vmul.f32 %v9130, %v9050
        %v9192 = vmul.f32 %v9131, %v9051
        %v9193 = vmul.f32 %v9132, %v9052
        %v9194 = vadd.f32 %v9174, %v9175
        %v9195 = vadd.f32 %v9194, %v9176
        %v9196 = vadd.f32 %v9195, %v9177
        %v9197 = vadd.f32 %v9196, %v9178
        %9198 = vadd.xlane.f32.xlu0 %v9197
        %v9199 = vpop.xlane.xlu0 %9198
        %v9200 = vadd.f32 %v9179, %v9180
        %v9201 = vadd.f32 %v9200, %v9181
        %v9202 = vadd.f32 %v9201, %v9182
        %v9203 = vadd.f32 %v9202, %v9183
        %9204 = vadd.xlane.f32.xlu0 %v9203
        %v9205 = vpop.xlane.xlu0 %9204
        %v9206 = vadd.f32 %v9184, %v9185
        %v9207 = vadd.f32 %v9206, %v9186
        %v9208 = vadd.f32 %v9207, %v9187
        %v9209 = vadd.f32 %v9208, %v9188
        %9210 = vadd.xlane.f32.xlu0 %v9209
        %v9211 = vpop.xlane.xlu0 %9210
        %v9212 = vadd.f32 %v9189, %v9190
        %v9213 = vadd.f32 %v9212, %v9191
        %v9214 = vadd.f32 %v9213, %v9192
        %v9215 = vadd.f32 %v9214, %v9193
        %9216 = vadd.xlane.f32.xlu0 %v9215
        %v9217 = vpop.xlane.xlu0 %9216
        %v9218 = vadd.f32 %v9170, %v9199
        %v9219 = vadd.f32 %v9171, %v9205
        %v9220 = vadd.f32 %v9172, %v9211
        %v9221 = vadd.f32 %v9173, %v9217
        %9222 = vst.msk [vmem:[%s262] sm:$0xff] %vm9165, %v9218
        %9223 = vst.msk [vmem:[%s262 + $0x8] sm:$0xff] %vm9165, %v9219
        %9224 = vst.msk [vmem:[%s262 + $0x10] sm:$0xff] %vm9165, %v9220
        %9225 = vst.msk [vmem:[%s262 + $0x18] sm:$0xff] %vm9165, %v9221
        %s9226 = sand.u32 %s111, 1
        %s9227 = scalar_lea.sflag [#allocation5], %s9226
        %s9228 = sand.u32 %s111, 1
        %s9229 = smul.addr %s9228, 160
        %s9230 = scalar_lea.vmem [#allocation4], %s9229
        %p9231 = scmp.lt.s32.totalorder %s25, 1
        %s9232 = scalar_select %p9231, %s25, 1
        %s9233 = smul.addr %s9232, 4
        %s9234 = smul.addr %s9233, 8
        %s9235 = scalar_lea.vmem %s5, %s9234
        %p9236 = scmp.lt.s32.totalorder %s25, 1
        %s9237 = scalar_select %p9236, %s25, 1
        %s9238 = smul.addr %s9237, 4
        %s9239 = smul.addr %s9238, 8
        %s9240 = scalar_lea.vmem %s6, %s9239
        // Predicated region
        $region71: #{tpu_custom_call.1} parent=31 // pred_check
          %p9241 = pneg %p121
        $region72: #{tpu_custom_call.1} parent=31 // pred_check_branch
          %9243 = sbr.rel (%p9241) target = $region74
        $region73: #{tpu_custom_call.1} parent=31 // pred_region
          %s9244 = smul.u32 5, %s26
          %s9246 = ssub.s32 2560, 2560
          %9247 = vsyncadd %s9227, %s9246
          %s9248 = smul.addr %s25, 20
          %s9249 = sadd.s32 %s9244, %s9248
          %s9250 = smul.addr %s9249, 128
          %s9251 = scalar_lea.hbm %s4, %s9250
          %s9252 = sshll.u32 %s9230, 4
          %s9253 = int_to_ptr.vmem [resolvable:$true] %s9252
          %9258 = dma.vmem_to_hbm [thread:$0]  %s9253, 2560, %s9251, %s9227, 640, 640, 40
        $region74: #{tpu_custom_call.1} parent=31 // pred_fallthru
          _
        // Predicated region
        $region75: #{tpu_custom_call.1} parent=31 // pred_check
          %p9259 = pneg %p147
        $region76: #{tpu_custom_call.1} parent=31 // pred_check_branch
          %9261 = sbr.rel (%p9259) target = $region78
        $region77: #{tpu_custom_call.1} parent=31 // pred_region
          _
        $region78: #{tpu_custom_call.1} parent=31 // pred_fallthru
          _
        // Predicated region
        $region79: #{tpu_custom_call.1} parent=31 // pred_check
          %p9262 = pneg %p173
        $region80: #{tpu_custom_call.1} parent=31 // pred_check_branch
          %9264 = sbr.rel (%p9262) target = $region82
        $region81: #{tpu_custom_call.1} parent=31 // pred_region
          _
        $region82: #{tpu_custom_call.1} parent=31 // pred_fallthru
          _
      $region32: #{tpu_custom_call.1} parent=5 // pred_fallthru
        _
      %p9265 = scmp.le.s32.totalorder 2, %s16
      // Predicated region
      $region83: #{tpu_custom_call.1} parent=5 // pred_check
        %p9266 = pneg %p9265
      $region84: #{tpu_custom_call.1} parent=5 // pred_check_branch
        %9268 = sbr.rel (%p9266) target = $region86
      $region85: #{tpu_custom_call.1} parent=5 // pred_region
        %s9269 = ssub.s32 %s16, 2
        // Predicated region
        $region87: #{tpu_custom_call.1} parent=85 // pred_check
          %p9270 = pneg %p127
        $region88: #{tpu_custom_call.1} parent=85 // pred_check_branch
          %9272 = sbr.rel (%p9270) target = $region90
        $region89: #{tpu_custom_call.1} parent=85 // pred_region
          %s9273 = sand.u32 %s112, 1
          %s9274 = scalar_lea.sflag [#allocation5], %s9273
          %s9275 = sand.u32 %s112, 1
          %s9276 = smul.addr %s9275, 160
          %s9277 = scalar_lea.vmem [#allocation4], %s9276
          %9278 = dma.done %s9274, 2560
        $region90: #{tpu_custom_call.1} parent=85 // pred_fallthru
          _
        // Predicated region
        $region91: #{tpu_custom_call.1} parent=85 // pred_check
          %p9279 = pneg %p153
        $region92: #{tpu_custom_call.1} parent=85 // pred_check_branch
          %9281 = sbr.rel (%p9279) target = $region94
        $region93: #{tpu_custom_call.1} parent=85 // pred_region
          %p9282 = scmp.lt.s32.totalorder %s27, 1
          %s9283 = scalar_select %p9282, %s27, 1
          %s9284 = smul.addr %s9283, 4
          %s9285 = smul.addr %s9284, 8
          %s9286 = scalar_lea.vmem %s5, %s9285
        $region94: #{tpu_custom_call.1} parent=85 // pred_fallthru
          _
        // Predicated region
        $region95: #{tpu_custom_call.1} parent=85 // pred_check
          %p9287 = pneg %p179
        $region96: #{tpu_custom_call.1} parent=85 // pred_check_branch
          %9289 = sbr.rel (%p9287) target = $region98
        $region97: #{tpu_custom_call.1} parent=85 // pred_region
          %p9290 = scmp.lt.s32.totalorder %s27, 1
          %s9291 = scalar_select %p9290, %s27, 1
          %s9292 = smul.addr %s9291, 4
          %s9293 = smul.addr %s9292, 8
          %s9294 = scalar_lea.vmem %s6, %s9293
        $region98: #{tpu_custom_call.1} parent=85 // pred_fallthru
          _
      $region86: #{tpu_custom_call.1} parent=5 // pred_fallthru
        _
    $region6: #{tpu_custom_call.1} parent=1 // loop_footer
      %s20 = sadd.s32 1, %s16
    $region7: #{tpu_custom_call.1} parent=1 // loop_footer_branch
      %15 = sbr.rel target = $region3
    $region8: #{tpu_custom_call.1} parent=1 // loop_exit
      _
    %9295 = vsyncpa [#allocation5], 1
    %s9296 = scalar_lea.sflag [#allocation5], 1
    %9297 = vsyncpa %s9296, 1
  %9298 = vsyncmov [#allocation3]
  %s9299 = vpop.sfrf %9298
  %p9300 = scmp.eq.s32.totalorder %s9299, 0
  %p9301 = pneg %p9300
  %9303 = shalt.err (%p9301)

</llo_original>
